<compile_context>
chip_gen: v7x
topology: tpu7x:2x2x1
jax: 0.10.0
libtpu: 0.0.40
codegen_flags: <defaults>
</compile_context>

<pallas_src>
import functools
import math

import jax
import jax.numpy as jnp
from jax import lax
from jax.experimental import pallas as pl
from jax.experimental.pallas import tpu as pltpu

_INV_SQRT2 = 0.7071067811865476


def _erf(x):
    # Abramowitz & Stegun 7.1.26 rational approximation, |abs err| < 1.5e-7 (avoids relying on an
    # erf lowering inside Mosaic).
    a1, a2, a3, a4, a5 = 0.254829592, -0.284496736, 1.421413741, -1.453152027, 1.061405429
    p = 0.3275911
    ax = jnp.abs(x)
    t = 1.0 / (1.0 + p * ax)
    poly = ((((a5 * t + a4) * t + a3) * t + a2) * t + a1) * t
    y = 1.0 - poly * jnp.exp(-ax * ax)
    return jnp.where(x >= 0, y, -y)


def _deform_conv_kernel(x_ref, wom_ref, wproj_ref, bproj_ref,
                        y_ref, ssum_ref, ssq_ref, xpad_ref, *, mo, pad):
    """Per-batch-element fused kernel.

    x_ref    : (1, H, W, C)      input block (NHWC, channels on lanes)
    wom_ref  : (9*C, 3*C)        fused depthwise(3x3)+pointwise(1x1) weight; output channels are
                                 pre-permuted to [dy_0..dy_{C-1} | dx_0..dx_{C-1} | mod_0..mod_{C-1}]
    wproj_ref: (Cout, C)         deform_conv2d 1x1 weight
    bproj_ref: (Cout, 1)         deform_conv2d bias
    y_ref    : (1, Cout, H*W)    pre-BN output, channel-major (lane-dense stores, free NCHW reshape)
    ssum_ref : (1, Cout, 1)      per-channel sum       (fused BatchNorm statistics)
    ssq_ref  : (1, Cout, 1)      per-channel sum(x^2)
    xpad_ref : (H+2P, W+2P, C)   VMEM scratch: zero-padded input copy, P = max_offset + 1
    """
    _, H, W, C = x_ref.shape
    Cout = y_ref.shape[1]
    HW = H * W
    P = pad
    cdt = wom_ref.dtype  # MXU operand dtype (bf16 fast path / f32 strict path)

    # ---- zero-padded copy of the input in VMEM (replaces a wrapper-level jnp.pad / extra HBM pass) ----
    xpad_ref[...] = jnp.zeros_like(xpad_ref)
    xpad_ref[P:P + H, P:P + W, :] = x_ref[0]

    # ---- DWConv2d (depthwise 3x3, pad=1  ∘  pointwise 1x1) as ONE im2col matmul, K = 9*C ----
    taps = []
    for kh in range(3):
        for kw in range(3):
            t = xpad_ref[P - 1 + kh:P - 1 + kh + H, P - 1 + kw:P - 1 + kw + W, :]
            taps.append(t.reshape(HW, C))
    patches = jnp.concatenate(taps, axis=1).astype(cdt)                       # (HW, 9C)
    om = jnp.dot(patches, wom_ref[...], preferred_element_type=jnp.float32)   # (HW, 3C) f32

    # ---- decode offsets / modulation (torchvision deform_conv2d layout, channels pre-permuted) ----
    mo_f = float(mo)
    off_y = jnp.clip(om[:, 0:C], -mo_f, mo_f).reshape(H, W, C)
    off_x = jnp.clip(om[:, C:2 * C], -mo_f, mo_f).reshape(H, W, C)
    mask = (2.0 * jax.nn.sigmoid(om[:, 2 * C:3 * C])).reshape(H, W, C)

    # ---- exact bilinear deformable sampling (offset_groups == C, zero padding outside the image) ----
    # sample(h,w,c) = sum_{sy,sx} relu(1-|dy-sy|) * relu(1-|dx-sx|) * xpad[h+sy, w+sx, c]
    # The weights are nonzero only at the two integer neighbours of dy (resp. dx), so this is exactly
    # bilinear interpolation; the clamp makes the shift window static.
    wx = [jnp.maximum(0.0, 1.0 - jnp.abs(off_x - float(sx))) for sx in range(-mo, mo + 2)]

    def sy_body(s, acc):
        sy = s - mo
        wy = jnp.maximum(0.0, 1.0 - jnp.abs(off_y - sy.astype(jnp.float32)))
        rows = xpad_ref[pl.ds(P + sy, H), :, :]                               # (H, W+2P, C)
        for i, sx in enumerate(range(-mo, mo + 2)):
            acc = acc + (wy * wx[i]) * rows[:, P + sx:P + sx + W, :]
        return acc

    acc = lax.fori_loop(0, 2 * mo + 2, sy_body, jnp.zeros((H, W, C), jnp.float32))
    sampled = (acc * mask).reshape(HW, C).astype(cdt)                          # modulated samples

    # ---- 1x1 projection emitted directly as (Cout, HW): lane-dense output, free NCHW reshape ----
    out_t = lax.dot_general(wproj_ref[...], sampled,
                            dimension_numbers=(((1,), (1,)), ((), ())),
                            preferred_element_type=jnp.float32)                # (Cout, HW) f32
    out_t = out_t + bproj_ref[...]                                             # bias added once, post-matmul

    y_ref[...] = out_t.reshape(1, Cout, HW)
    # fused BatchNorm statistics (so the next kernel never re-reads the activation for mean/var)
    ssum_ref[...] = jnp.sum(out_t, axis=1, keepdims=True).reshape(1, Cout, 1)
    ssq_ref[...] = jnp.sum(out_t * out_t, axis=1, keepdims=True).reshape(1, Cout, 1)


def _bn_gelu_kernel(y_ref, ssum_ref, ssq_ref, gamma_ref, beta_ref, o_ref):
    """BatchNorm2d (training-mode batch stats, biased var, eps=1e-5) + exact GELU.

    y_ref: (1, C, HW) per-batch tile; ssum/ssq: (B, C, 1) per-batch channel sums from the conv kernel.
    """
    _, C, HW = y_ref.shape
    n = float(ssum_ref.shape[0] * HW)                  # count over (batch, H, W)
    s = jnp.sum(ssum_ref[...], axis=0)                 # (C, 1)
    sq = jnp.sum(ssq_ref[...], axis=0)                 # (C, 1)
    mean = s / n
    var = sq / n - mean * mean                         # biased variance
    scale = lax.rsqrt(var + 1e-5) * gamma_ref[...]
    shift = beta_ref[...] - mean * scale
    z = y_ref[0] * scale + shift                       # (C, HW)
    g = 0.5 * z * (1.0 + _erf(z * _INV_SQRT2))         # exact (erf) GELU
    o_ref[...] = g.reshape(1, C, HW)


def deformable_mlp(x_nchw, params, *, mxu_dtype=jnp.bfloat16):
    """Forward pass of DeformableMLP. Input/output are NCHW (PyTorch layout)."""
    B, C, H, W = x_nchw.shape
    Cout = params["proj_w"].shape[0]
    assert Cout == C, "module applies BatchNorm2d(in_channels) to the deform output -> Cout must equal Cin"
    mo = max(H, W) // 4                                # offset clamp bound from the module
    P = mo + 1                                         # halo: all bilinear corners of clamped offsets fit
    HW = H * W

    x = jnp.transpose(x_nchw, (0, 2, 3, 1)).astype(jnp.float32)      # NHWC (channels -> lanes)

    # ---- fold DWConv2d (depthwise 3x3 + pointwise 1x1, both bias-free) into ONE (9C, 3C) weight ----
    dw = params["dw_w"].reshape(C, 9).astype(jnp.float32)            # (C, tap)
    pw = params["pw_w"].reshape(3 * C, C).astype(jnp.float32)        # (3C, C)
    # Reorder the pointwise output channels to [dy_0..dy_{C-1} | dx_0.. | mod_0..]: torchvision's
    # deform_conv2d reads group c's (dy, dx) from channels (2c, 2c+1) of cat(offset_y, offset_x)
    # (== om[:, :2C]) and its mask from modulator channel c.
    perm = jnp.concatenate([jnp.arange(0, 2 * C, 2),
                            jnp.arange(1, 2 * C, 2),
                            jnp.arange(2 * C, 3 * C)])
    pw_p = pw[perm]                                                  # (3C, C)
    # w_eff[t*C + c, o] = dw[c, t] * pw_p[o, c]   (matches im2col column order: tap-major, channel-minor)
    w_eff = (dw.T[:, :, None] * pw_p.T[None, :, :]).reshape(9 * C, 3 * C).astype(mxu_dtype)

    w_proj = params["proj_w"].reshape(Cout, C).astype(mxu_dtype)     # (Cout, Cin, 1, 1) -> (Cout, Cin)
    b_proj = params["proj_b"].reshape(Cout, 1).astype(jnp.float32)

    kernel = functools.partial(_deform_conv_kernel, mo=mo, pad=P)
    y_t, ssum, ssq = pl.pallas_call(
        kernel,
        out_shape=(jax.ShapeDtypeStruct((B, Cout, HW), jnp.float32),
                   jax.ShapeDtypeStruct((B, Cout, 1), jnp.float32),
                   jax.ShapeDtypeStruct((B, Cout, 1), jnp.float32)),
        grid=(B,),
        in_specs=[
            pl.BlockSpec((1, H, W, C), lambda b: (b, 0, 0, 0)),
            pl.BlockSpec((9 * C, 3 * C), lambda b: (0, 0)),
            pl.BlockSpec((Cout, C), lambda b: (0, 0)),
            pl.BlockSpec((Cout, 1), lambda b: (0, 0)),
        ],
        out_specs=(
            pl.BlockSpec((1, Cout, HW), lambda b: (b, 0, 0)),
            pl.BlockSpec((1, Cout, 1), lambda b: (b, 0, 0)),
            pl.BlockSpec((1, Cout, 1), lambda b: (b, 0, 0)),
        ),
        scratch_shapes=[pltpu.VMEM((H + 2 * P, W + 2 * P, C), jnp.float32)],
        compiler_params=pltpu.CompilerParams(
            dimension_semantics=("parallel",),
            vmem_limit_bytes=32 * 1024 * 1024),
    )(x, w_eff, w_proj, b_proj)

    gamma = params["bn_gamma"].reshape(Cout, 1).astype(jnp.float32)
    beta = params["bn_beta"].reshape(Cout, 1).astype(jnp.float32)

    out_flat = pl.pallas_call(
        _bn_gelu_kernel,
        out_shape=jax.ShapeDtypeStruct((B, Cout, HW), jnp.float32),
        grid=(B,),
        in_specs=[
            pl.BlockSpec((1, Cout, HW), lambda b: (b, 0, 0)),
            pl.BlockSpec((B, Cout, 1), lambda b: (0, 0, 0)),
            pl.BlockSpec((B, Cout, 1), lambda b: (0, 0, 0)),
            pl.BlockSpec((Cout, 1), lambda b: (0, 0)),
            pl.BlockSpec((Cout, 1), lambda b: (0, 0)),
        ],
        out_specs=pl.BlockSpec((1, Cout, HW), lambda b: (b, 0, 0)),
        compiler_params=pltpu.CompilerParams(
            dimension_semantics=("parallel",),
            vmem_limit_bytes=32 * 1024 * 1024),
    )(y_t, ssum, ssq, gamma, beta)

    # channel-major (B, C, H*W) layout makes the PyTorch NCHW output a free reshape (no transpose).
    return out_flat.reshape(B, Cout, H, W)


def _reference(x_nchw, params):
    """Pure-JAX (f32) reference of DeformableMLP.forward, structured like the PyTorch module."""
    B, C, H, W = x_nchw.shape
    Cout = params["proj_w"].shape[0]
    mo = max(H, W) // 4
    x = x_nchw.astype(jnp.float32)

    # DWConv2d: depthwise 3x3 (pad=1, groups=C, no bias) -> pointwise 1x1 (no bias)
    dep = lax.conv_general_dilated(
        x, params["dw_w"].astype(jnp.float32), (1, 1), ((1, 1), (1, 1)),
        dimension_numbers=("NCHW", "OIHW", "NCHW"), feature_group_count=C)
    om = lax.conv_general_dilated(
        dep, params["pw_w"].astype(jnp.float32), (1, 1), "VALID",
        dimension_numbers=("NCHW", "OIHW", "NCHW"))                          # (B, 3C, H, W)

    off_y, off_x, modulator = jnp.split(om, 3, axis=1)
    mask = 2.0 * jax.nn.sigmoid(modulator)                                   # (B, C, H, W)
    offset = jnp.clip(jnp.concatenate([off_y, off_x], axis=1), -float(mo), float(mo))

    # torchvision deform_conv2d (1x1 kernel, offset_groups == C): group c reads (dy, dx) from offset
    # channels (2c, 2c+1) and its mask from channel c; offset group c covers input channel c.
    dy = offset[:, 0::2]
    dx = offset[:, 1::2]
    py = jnp.arange(H, dtype=jnp.float32)[None, None, :, None] + dy
    px = jnp.arange(W, dtype=jnp.float32)[None, None, None, :] + dx

    y0 = jnp.floor(py)
    x0 = jnp.floor(px)
    ry = py - y0
    rx = px - x0

    bidx = jnp.arange(B)[:, None, None, None]
    cidx = jnp.arange(C)[None, :, None, None]

    def corner(yi, xi):
        valid = (yi >= 0) & (yi <= H - 1) & (xi >= 0) & (xi <= W - 1)
        yc = jnp.clip(yi, 0, H - 1).astype(jnp.int32)
        xc = jnp.clip(xi, 0, W - 1).astype(jnp.int32)
        return jnp.where(valid, x[bidx, cidx, yc, xc], 0.0)

    sampled = ((1.0 - ry) * (1.0 - rx) * corner(y0, x0)
               + (1.0 - ry) * rx * corner(y0, x0 + 1.0)
               + ry * (1.0 - rx) * corner(y0 + 1.0, x0)
               + ry * rx * corner(y0 + 1.0, x0 + 1.0)) * mask                # (B, C, H, W)

    w = params["proj_w"].reshape(Cout, C).astype(jnp.float32)
    y = jnp.einsum("oc,bchw->bohw", w, sampled) + params["proj_b"][None, :, None, None]

    # BatchNorm2d, fresh module in training mode: batch statistics, biased variance, eps=1e-5
    mean = jnp.mean(y, axis=(0, 2, 3), keepdims=True)
    var = jnp.mean(jnp.square(y - mean), axis=(0, 2, 3), keepdims=True)
    z = (y - mean) * lax.rsqrt(var + 1e-5)
    z = z * params["bn_gamma"][None, :, None, None] + params["bn_beta"][None, :, None, None]
    return jax.nn.gelu(z, approximate=False)


if __name__ == "__main__":
    # Small shapes consistent with the module. BatchNorm2d(in_channels) is applied to the
    # deform_conv2d output, so the module implicitly requires out_channels == in_channels.
    B, C, H, W = 2, 32, 16, 16

    key = jax.random.PRNGKey(0)
    kx, k1, k2, k3, k4 = jax.random.split(key, 5)

    def uniform(k, shape, bound):
        return jax.random.uniform(k, shape, jnp.float32, -bound, bound)

    x = jax.random.normal(kx, (B, C, H, W), jnp.float32)
    params = dict(
        # kaiming_uniform(a=sqrt(5))  =>  U(-1/sqrt(fan_in), +1/sqrt(fan_in))
        dw_w=uniform(k1, (C, 1, 3, 3), 1.0 / 3.0),                 # depthwise, fan_in = 9
        pw_w=uniform(k2, (3 * C, C, 1, 1), 1.0 / math.sqrt(C)),    # pointwise, fan_in = C
        proj_w=uniform(k3, (C, C, 1, 1), 1.0 / math.sqrt(C)),      # deform_conv2d 1x1 weight
        proj_b=uniform(k4, (C,), 1.0 / math.sqrt(C)),
        bn_gamma=jnp.ones((C,), jnp.float32),
        bn_beta=jnp.zeros((C,), jnp.float32),
    )
    # Scale the offset-producing pointwise rows so offsets span several pixels: exercises the
    # +-max_offset clamp, distant bilinear corners and the zero-padding boundary path.
    params["pw_w"] = params["pw_w"].at[: 2 * C].multiply(6.0)

    ref = _reference(x, params)

    # Strict functional check: f32-MXU path against the faithful f32 reference.
    out_f32 = jax.block_until_ready(deformable_mlp(x, params, mxu_dtype=jnp.float32))
    assert out_f32.shape == (B, C, H, W), out_f32.shape
    err_f32 = float(jnp.max(jnp.abs(out_f32 - ref)))
    assert err_f32 < 2e-3, f"f32 path max abs err {err_f32}"

    # Production path: bf16 MXU operands with f32 accumulation (bf16 is what v5e/v6e/v7x MXUs run fast).
    # Loose bound on the bf16-input drift (typically ~3e-2 here); the strict check is the f32 run above.
    out = jax.block_until_ready(deformable_mlp(x, params, mxu_dtype=jnp.bfloat16))
    err_bf16 = float(jnp.max(jnp.abs(out - ref)))
    assert err_bf16 < 1.5e-1, f"bf16 path max abs err {err_bf16}"

    print("KERNEL_OK")
</pallas_src>

<mosaic_0001>
module attributes {stable_mosaic.version = 11 : i64} {
  func.func @_deform_conv_kernel(%arg0: i32, %arg1: memref<1x16x16x32xf32, #tpu.memory_space<vmem>>, %arg2: memref<288x96xf32, #tpu.memory_space<vmem>>, %arg3: memref<32x32xf32, #tpu.memory_space<vmem>>, %arg4: memref<32x1xf32, #tpu.memory_space<vmem>>, %arg5: memref<1x32x256xf32, #tpu.memory_space<vmem>>, %arg6: memref<1x32x1xf32, #tpu.memory_space<vmem>>, %arg7: memref<1x32x1xf32, #tpu.memory_space<vmem>>, %arg8: memref<26x26x32xf32, #tpu.memory_space<vmem>>) attributes {dimension_semantics = [#tpu.dimension_semantics<parallel>], iteration_bounds = array<i64: 2>, scalar_prefetch = 0 : i64, scratch_operands = 1 : i64, tpu.core_type = #tpu.core_type<tc>, window_params = [{transform_indices = @transform_0, window_bounds = array<i64: 1, 16, 16, 32>}, {pipeline_mode = #tpu.pipeline_mode<synchronous>, transform_indices = @transform_1, window_bounds = array<i64: 288, 96>}, {pipeline_mode = #tpu.pipeline_mode<synchronous>, transform_indices = @transform_2, window_bounds = array<i64: 32, 32>}, {pipeline_mode = #tpu.pipeline_mode<synchronous>, transform_indices = @transform_3, window_bounds = array<i64: 32, 1>}, {transform_indices = @transform_4, window_bounds = array<i64: 1, 32, 256>}, {transform_indices = @transform_5, window_bounds = array<i64: 1, 32, 1>}, {transform_indices = @transform_6, window_bounds = array<i64: 1, 32, 1>}]} {
    %cst = arith.constant 0.000000e+00 : f32
    %0 = vector.broadcast %cst : f32 to vector<26x26x32xf32>
    %c0 = arith.constant 0 : index
    %c0_0 = arith.constant 0 : index
    %c0_1 = arith.constant 0 : index
    %1 = vector.load %arg8[%c0, %c0_0, %c0_1] : memref<26x26x32xf32, #tpu.memory_space<vmem>>, vector<26x26x32xf32>
    tpu.vector_store %arg8[%c0, %c0_0, %c0_1], %0 {strides = array<i32>} : memref<26x26x32xf32, #tpu.memory_space<vmem>>, vector<26x26x32xf32>,
    %c0_2 = arith.constant 0 : index
    %c0_3 = arith.constant 0 : index
    %c0_4 = arith.constant 0 : index
    %c0_5 = arith.constant 0 : index
    %2 = vector.load %arg1[%c0_2, %c0_3, %c0_4, %c0_5] : memref<1x16x16x32xf32, #tpu.memory_space<vmem>>, vector<1x16x16x32xf32>
    %3 = vector.shape_cast %2 : vector<1x16x16x32xf32> to vector<16x16x32xf32>
    %c5 = arith.constant 5 : index
    %c5_6 = arith.constant 5 : index
    %c0_7 = arith.constant 0 : index
    %4 = vector.load %arg8[%c5, %c5_6, %c0_7] : memref<26x26x32xf32, #tpu.memory_space<vmem>>, vector<16x16x32xf32>
    tpu.vector_store %arg8[%c5, %c5_6, %c0_7], %3 {strides = array<i32>} : memref<26x26x32xf32, #tpu.memory_space<vmem>>, vector<16x16x32xf32>,
    %c4 = arith.constant 4 : index
    %c4_8 = arith.constant 4 : index
    %c0_9 = arith.constant 0 : index
    %5 = vector.load %arg8[%c4, %c4_8, %c0_9] : memref<26x26x32xf32, #tpu.memory_space<vmem>>, vector<16x16x32xf32>
    %6 = vector.shape_cast %5 : vector<16x16x32xf32> to vector<256x32xf32>
    %c4_10 = arith.constant 4 : index
    %c5_11 = arith.constant 5 : index
    %c0_12 = arith.constant 0 : index
    %7 = vector.load %arg8[%c4_10, %c5_11, %c0_12] : memref<26x26x32xf32, #tpu.memory_space<vmem>>, vector<16x16x32xf32>
    %8 = vector.shape_cast %7 : vector<16x16x32xf32> to vector<256x32xf32>
    %c4_13 = arith.constant 4 : index
    %c6 = arith.constant 6 : index
    %c0_14 = arith.constant 0 : index
    %9 = vector.load %arg8[%c4_13, %c6, %c0_14] : memref<26x26x32xf32, #tpu.memory_space<vmem>>, vector<16x16x32xf32>
    %10 = vector.shape_cast %9 : vector<16x16x32xf32> to vector<256x32xf32>
    %c5_15 = arith.constant 5 : index
    %c4_16 = arith.constant 4 : index
    %c0_17 = arith.constant 0 : index
    %11 = vector.load %arg8[%c5_15, %c4_16, %c0_17] : memref<26x26x32xf32, #tpu.memory_space<vmem>>, vector<16x16x32xf32>
    %12 = vector.shape_cast %11 : vector<16x16x32xf32> to vector<256x32xf32>
    %c5_18 = arith.constant 5 : index
    %c5_19 = arith.constant 5 : index
    %c0_20 = arith.constant 0 : index
    %13 = vector.load %arg8[%c5_18, %c5_19, %c0_20] : memref<26x26x32xf32, #tpu.memory_space<vmem>>, vector<16x16x32xf32>
    %14 = vector.shape_cast %13 : vector<16x16x32xf32> to vector<256x32xf32>
    %c5_21 = arith.constant 5 : index
    %c6_22 = arith.constant 6 : index
    %c0_23 = arith.constant 0 : index
    %15 = vector.load %arg8[%c5_21, %c6_22, %c0_23] : memref<26x26x32xf32, #tpu.memory_space<vmem>>, vector<16x16x32xf32>
    %16 = vector.shape_cast %15 : vector<16x16x32xf32> to vector<256x32xf32>
    %c6_24 = arith.constant 6 : index
    %c4_25 = arith.constant 4 : index
    %c0_26 = arith.constant 0 : index
    %17 = vector.load %arg8[%c6_24, %c4_25, %c0_26] : memref<26x26x32xf32, #tpu.memory_space<vmem>>, vector<16x16x32xf32>
    %18 = vector.shape_cast %17 : vector<16x16x32xf32> to vector<256x32xf32>
    %c6_27 = arith.constant 6 : index
    %c5_28 = arith.constant 5 : index
    %c0_29 = arith.constant 0 : index
    %19 = vector.load %arg8[%c6_27, %c5_28, %c0_29] : memref<26x26x32xf32, #tpu.memory_space<vmem>>, vector<16x16x32xf32>
    %20 = vector.shape_cast %19 : vector<16x16x32xf32> to vector<256x32xf32>
    %c6_30 = arith.constant 6 : index
    %c6_31 = arith.constant 6 : index
    %c0_32 = arith.constant 0 : index
    %21 = vector.load %arg8[%c6_30, %c6_31, %c0_32] : memref<26x26x32xf32, #tpu.memory_space<vmem>>, vector<16x16x32xf32>
    %22 = vector.shape_cast %21 : vector<16x16x32xf32> to vector<256x32xf32>
    %23 = tpu.concatenate %6, %8, %10, %12, %14, %16, %18, %20, %22 in 1 : vector<256x32xf32>, vector<256x32xf32>, vector<256x32xf32>, vector<256x32xf32>, vector<256x32xf32>, vector<256x32xf32>, vector<256x32xf32>, vector<256x32xf32>, vector<256x32xf32> -> vector<256x288xf32>
    %c0_33 = arith.constant 0 : index
    %c0_34 = arith.constant 0 : index
    %24 = vector.load %arg2[%c0_33, %c0_34] : memref<288x96xf32, #tpu.memory_space<vmem>>, vector<288x96xf32>
    %cst_35 = arith.constant dense<0.000000e+00> : vector<256x96xf32>
    %25 = tpu.matmul %23, %24, %cst_35 {dimension_numbers = #tpu.dot_dimension_numbers<[1], [0], [0], [1], [0, 0, 1, 1], [], []>} : vector<256x288xf32>, vector<288x96xf32>, vector<256x96xf32> -> vector<256x96xf32>
    %26 = vector.extract_strided_slice %25 {offsets = [0, 0], sizes = [256, 32], strides = [1, 1]} : vector<256x96xf32> to vector<256x32xf32>
    %cst_36 = arith.constant -4.000000e+00 : f32
    %cst_37 = arith.constant 4.000000e+00 : f32
    %27 = vector.broadcast %cst_36 : f32 to vector<256x32xf32>
    %28 = arith.maximumf %27, %26 : vector<256x32xf32>
    %29 = vector.broadcast %cst_37 : f32 to vector<256x32xf32>
    %30 = arith.minimumf %29, %28 : vector<256x32xf32>
    %31 = vector.shape_cast %30 : vector<256x32xf32> to vector<16x16x32xf32>
    %32 = vector.extract_strided_slice %25 {offsets = [0, 32], sizes = [256, 32], strides = [1, 1]} : vector<256x96xf32> to vector<256x32xf32>
    %cst_38 = arith.constant -4.000000e+00 : f32
    %cst_39 = arith.constant 4.000000e+00 : f32
    %33 = vector.broadcast %cst_38 : f32 to vector<256x32xf32>
    %34 = arith.maximumf %33, %32 : vector<256x32xf32>
    %35 = vector.broadcast %cst_39 : f32 to vector<256x32xf32>
    %36 = arith.minimumf %35, %34 : vector<256x32xf32>
    %37 = vector.shape_cast %36 : vector<256x32xf32> to vector<16x16x32xf32>
    %38 = vector.extract_strided_slice %25 {offsets = [0, 64], sizes = [256, 32], strides = [1, 1]} : vector<256x96xf32> to vector<256x32xf32>
    %39 = arith.negf %38 : vector<256x32xf32>
    %40 = math.exp %39 : vector<256x32xf32>
    %cst_40 = arith.constant 1.000000e+00 : f32
    %41 = vector.broadcast %cst_40 : f32 to vector<256x32xf32>
    %42 = arith.addf %41, %40 : vector<256x32xf32>
    %43 = arith.divf %41, %42 : vector<256x32xf32>
    %cst_41 = arith.constant 2.000000e+00 : f32
    %44 = vector.broadcast %cst_41 : f32 to vector<256x32xf32>
    %45 = arith.mulf %44, %43 : vector<256x32xf32>
    %46 = vector.shape_cast %45 : vector<256x32xf32> to vector<16x16x32xf32>
    %cst_42 = arith.constant -4.000000e+00 : f32
    %47 = vector.broadcast %cst_42 : f32 to vector<16x16x32xf32>
    %48 = arith.subf %37, %47 : vector<16x16x32xf32>
    %49 = math.absf %48 : vector<16x16x32xf32>
    %cst_43 = arith.constant 1.000000e+00 : f32
    %50 = vector.broadcast %cst_43 : f32 to vector<16x16x32xf32>
    %51 = arith.subf %50, %49 : vector<16x16x32xf32>
    %cst_44 = arith.constant 0.000000e+00 : f32
    %52 = vector.broadcast %cst_44 : f32 to vector<16x16x32xf32>
    %53 = arith.maximumf %52, %51 : vector<16x16x32xf32>
    %cst_45 = arith.constant -3.000000e+00 : f32
    %54 = vector.broadcast %cst_45 : f32 to vector<16x16x32xf32>
    %55 = arith.subf %37, %54 : vector<16x16x32xf32>
    %56 = math.absf %55 : vector<16x16x32xf32>
    %cst_46 = arith.constant 1.000000e+00 : f32
    %57 = vector.broadcast %cst_46 : f32 to vector<16x16x32xf32>
    %58 = arith.subf %57, %56 : vector<16x16x32xf32>
    %cst_47 = arith.constant 0.000000e+00 : f32
    %59 = vector.broadcast %cst_47 : f32 to vector<16x16x32xf32>
    %60 = arith.maximumf %59, %58 : vector<16x16x32xf32>
    %cst_48 = arith.constant -2.000000e+00 : f32
    %61 = vector.broadcast %cst_48 : f32 to vector<16x16x32xf32>
    %62 = arith.subf %37, %61 : vector<16x16x32xf32>
    %63 = math.absf %62 : vector<16x16x32xf32>
    %cst_49 = arith.constant 1.000000e+00 : f32
    %64 = vector.broadcast %cst_49 : f32 to vector<16x16x32xf32>
    %65 = arith.subf %64, %63 : vector<16x16x32xf32>
    %cst_50 = arith.constant 0.000000e+00 : f32
    %66 = vector.broadcast %cst_50 : f32 to vector<16x16x32xf32>
    %67 = arith.maximumf %66, %65 : vector<16x16x32xf32>
    %cst_51 = arith.constant -1.000000e+00 : f32
    %68 = vector.broadcast %cst_51 : f32 to vector<16x16x32xf32>
    %69 = arith.subf %37, %68 : vector<16x16x32xf32>
    %70 = math.absf %69 : vector<16x16x32xf32>
    %cst_52 = arith.constant 1.000000e+00 : f32
    %71 = vector.broadcast %cst_52 : f32 to vector<16x16x32xf32>
    %72 = arith.subf %71, %70 : vector<16x16x32xf32>
    %cst_53 = arith.constant 0.000000e+00 : f32
    %73 = vector.broadcast %cst_53 : f32 to vector<16x16x32xf32>
    %74 = arith.maximumf %73, %72 : vector<16x16x32xf32>
    %cst_54 = arith.constant 0.000000e+00 : f32
    %75 = vector.broadcast %cst_54 : f32 to vector<16x16x32xf32>
    %76 = arith.subf %37, %75 : vector<16x16x32xf32>
    %77 = math.absf %76 : vector<16x16x32xf32>
    %cst_55 = arith.constant 1.000000e+00 : f32
    %78 = vector.broadcast %cst_55 : f32 to vector<16x16x32xf32>
    %79 = arith.subf %78, %77 : vector<16x16x32xf32>
    %cst_56 = arith.constant 0.000000e+00 : f32
    %80 = vector.broadcast %cst_56 : f32 to vector<16x16x32xf32>
    %81 = arith.maximumf %80, %79 : vector<16x16x32xf32>
    %cst_57 = arith.constant 1.000000e+00 : f32
    %82 = vector.broadcast %cst_57 : f32 to vector<16x16x32xf32>
    %83 = arith.subf %37, %82 : vector<16x16x32xf32>
    %84 = math.absf %83 : vector<16x16x32xf32>
    %cst_58 = arith.constant 1.000000e+00 : f32
    %85 = vector.broadcast %cst_58 : f32 to vector<16x16x32xf32>
    %86 = arith.subf %85, %84 : vector<16x16x32xf32>
    %cst_59 = arith.constant 0.000000e+00 : f32
    %87 = vector.broadcast %cst_59 : f32 to vector<16x16x32xf32>
    %88 = arith.maximumf %87, %86 : vector<16x16x32xf32>
    %cst_60 = arith.constant 2.000000e+00 : f32
    %89 = vector.broadcast %cst_60 : f32 to vector<16x16x32xf32>
    %90 = arith.subf %37, %89 : vector<16x16x32xf32>
    %91 = math.absf %90 : vector<16x16x32xf32>
    %cst_61 = arith.constant 1.000000e+00 : f32
    %92 = vector.broadcast %cst_61 : f32 to vector<16x16x32xf32>
    %93 = arith.subf %92, %91 : vector<16x16x32xf32>
    %cst_62 = arith.constant 0.000000e+00 : f32
    %94 = vector.broadcast %cst_62 : f32 to vector<16x16x32xf32>
    %95 = arith.maximumf %94, %93 : vector<16x16x32xf32>
    %cst_63 = arith.constant 3.000000e+00 : f32
    %96 = vector.broadcast %cst_63 : f32 to vector<16x16x32xf32>
    %97 = arith.subf %37, %96 : vector<16x16x32xf32>
    %98 = math.absf %97 : vector<16x16x32xf32>
    %cst_64 = arith.constant 1.000000e+00 : f32
    %99 = vector.broadcast %cst_64 : f32 to vector<16x16x32xf32>
    %100 = arith.subf %99, %98 : vector<16x16x32xf32>
    %cst_65 = arith.constant 0.000000e+00 : f32
    %101 = vector.broadcast %cst_65 : f32 to vector<16x16x32xf32>
    %102 = arith.maximumf %101, %100 : vector<16x16x32xf32>
    %cst_66 = arith.constant 4.000000e+00 : f32
    %103 = vector.broadcast %cst_66 : f32 to vector<16x16x32xf32>
    %104 = arith.subf %37, %103 : vector<16x16x32xf32>
    %105 = math.absf %104 : vector<16x16x32xf32>
    %cst_67 = arith.constant 1.000000e+00 : f32
    %106 = vector.broadcast %cst_67 : f32 to vector<16x16x32xf32>
    %107 = arith.subf %106, %105 : vector<16x16x32xf32>
    %cst_68 = arith.constant 0.000000e+00 : f32
    %108 = vector.broadcast %cst_68 : f32 to vector<16x16x32xf32>
    %109 = arith.maximumf %108, %107 : vector<16x16x32xf32>
    %cst_69 = arith.constant 5.000000e+00 : f32
    %110 = vector.broadcast %cst_69 : f32 to vector<16x16x32xf32>
    %111 = arith.subf %37, %110 : vector<16x16x32xf32>
    %112 = math.absf %111 : vector<16x16x32xf32>
    %cst_70 = arith.constant 1.000000e+00 : f32
    %113 = vector.broadcast %cst_70 : f32 to vector<16x16x32xf32>
    %114 = arith.subf %113, %112 : vector<16x16x32xf32>
    %cst_71 = arith.constant 0.000000e+00 : f32
    %115 = vector.broadcast %cst_71 : f32 to vector<16x16x32xf32>
    %116 = arith.maximumf %115, %114 : vector<16x16x32xf32>
    %cst_72 = arith.constant 0.000000e+00 : f32
    %117 = vector.broadcast %cst_72 : f32 to vector<16x16x32xf32>
    %c0_i32 = arith.constant 0 : i32
    %c10_i32 = arith.constant 10 : i32
    %118 = arith.addi %c0_i32, %c10_i32 : i32
    %c1_i32 = arith.constant 1 : i32
    %119 = scf.for %arg9 = %c0_i32 to %118 step %c1_i32 iter_args(%arg10 = %117) -> (vector<16x16x32xf32>)  : i32 {
      %c4_i32 = arith.constant 4 : i32
      %138 = arith.subi %arg9, %c4_i32 : i32
      %139 = arith.sitofp %138 : i32 to f32
      %140 = vector.broadcast %139 : f32 to vector<16x16x32xf32>
      %141 = arith.subf %31, %140 : vector<16x16x32xf32>
      %142 = math.absf %141 : vector<16x16x32xf32>
      %cst_90 = arith.constant 1.000000e+00 : f32
      %143 = vector.broadcast %cst_90 : f32 to vector<16x16x32xf32>
      %144 = arith.subf %143, %142 : vector<16x16x32xf32>
      %cst_91 = arith.constant 0.000000e+00 : f32
      %145 = vector.broadcast %cst_91 : f32 to vector<16x16x32xf32>
      %146 = arith.maximumf %145, %144 : vector<16x16x32xf32>
      %c5_i32 = arith.constant 5 : i32
      %147 = arith.addi %c5_i32, %138 : i32
      %148 = arith.index_cast %147 : i32 to index
      %c0_92 = arith.constant 0 : index
      %c0_93 = arith.constant 0 : index
      %149 = vector.load %arg8[%148, %c0_92, %c0_93] : memref<26x26x32xf32, #tpu.memory_space<vmem>>, vector<16x26x32xf32>
      %150 = arith.mulf %146, %53 : vector<16x16x32xf32>
      %151 = vector.extract_strided_slice %149 {offsets = [0, 1, 0], sizes = [16, 16, 32], strides = [1, 1, 1]} : vector<16x26x32xf32> to vector<16x16x32xf32>
      %152 = arith.mulf %150, %151 : vector<16x16x32xf32>
      %153 = arith.addf %arg10, %152 : vector<16x16x32xf32>
      %154 = arith.mulf %146, %60 : vector<16x16x32xf32>
      %155 = vector.extract_strided_slice %149 {offsets = [0, 2, 0], sizes = [16, 16, 32], strides = [1, 1, 1]} : vector<16x26x32xf32> to vector<16x16x32xf32>
      %156 = arith.mulf %154, %155 : vector<16x16x32xf32>
      %157 = arith.addf %153, %156 : vector<16x16x32xf32>
      %158 = arith.mulf %146, %67 : vector<16x16x32xf32>
      %159 = vector.extract_strided_slice %149 {offsets = [0, 3, 0], sizes = [16, 16, 32], strides = [1, 1, 1]} : vector<16x26x32xf32> to vector<16x16x32xf32>
      %160 = arith.mulf %158, %159 : vector<16x16x32xf32>
      %161 = arith.addf %157, %160 : vector<16x16x32xf32>
      %162 = arith.mulf %146, %74 : vector<16x16x32xf32>
      %163 = vector.extract_strided_slice %149 {offsets = [0, 4, 0], sizes = [16, 16, 32], strides = [1, 1, 1]} : vector<16x26x32xf32> to vector<16x16x32xf32>
      %164 = arith.mulf %162, %163 : vector<16x16x32xf32>
      %165 = arith.addf %161, %164 : vector<16x16x32xf32>
      %166 = arith.mulf %146, %81 : vector<16x16x32xf32>
      %167 = vector.extract_strided_slice %149 {offsets = [0, 5, 0], sizes = [16, 16, 32], strides = [1, 1, 1]} : vector<16x26x32xf32> to vector<16x16x32xf32>
      %168 = arith.mulf %166, %167 : vector<16x16x32xf32>
      %169 = arith.addf %165, %168 : vector<16x16x32xf32>
      %170 = arith.mulf %146, %88 : vector<16x16x32xf32>
      %171 = vector.extract_strided_slice %149 {offsets = [0, 6, 0], sizes = [16, 16, 32], strides = [1, 1, 1]} : vector<16x26x32xf32> to vector<16x16x32xf32>
      %172 = arith.mulf %170, %171 : vector<16x16x32xf32>
      %173 = arith.addf %169, %172 : vector<16x16x32xf32>
      %174 = arith.mulf %146, %95 : vector<16x16x32xf32>
      %175 = vector.extract_strided_slice %149 {offsets = [0, 7, 0], sizes = [16, 16, 32], strides = [1, 1, 1]} : vector<16x26x32xf32> to vector<16x16x32xf32>
      %176 = arith.mulf %174, %175 : vector<16x16x32xf32>
      %177 = arith.addf %173, %176 : vector<16x16x32xf32>
      %178 = arith.mulf %146, %102 : vector<16x16x32xf32>
      %179 = vector.extract_strided_slice %149 {offsets = [0, 8, 0], sizes = [16, 16, 32], strides = [1, 1, 1]} : vector<16x26x32xf32> to vector<16x16x32xf32>
      %180 = arith.mulf %178, %179 : vector<16x16x32xf32>
      %181 = arith.addf %177, %180 : vector<16x16x32xf32>
      %182 = arith.mulf %146, %109 : vector<16x16x32xf32>
      %183 = vector.extract_strided_slice %149 {offsets = [0, 9, 0], sizes = [16, 16, 32], strides = [1, 1, 1]} : vector<16x26x32xf32> to vector<16x16x32xf32>
      %184 = arith.mulf %182, %183 : vector<16x16x32xf32>
      %185 = arith.addf %181, %184 : vector<16x16x32xf32>
      %186 = arith.mulf %146, %116 : vector<16x16x32xf32>
      %187 = vector.extract_strided_slice %149 {offsets = [0, 10, 0], sizes = [16, 16, 32], strides = [1, 1, 1]} : vector<16x26x32xf32> to vector<16x16x32xf32>
      %188 = arith.mulf %186, %187 : vector<16x16x32xf32>
      %189 = arith.addf %185, %188 : vector<16x16x32xf32>
      scf.yield %189 : vector<16x16x32xf32>
    }
    %c10_i32_73 = arith.constant 10 : i32
    %120 = arith.mulf %119, %46 : vector<16x16x32xf32>
    %121 = vector.shape_cast %120 : vector<16x16x32xf32> to vector<256x32xf32>
    %c0_74 = arith.constant 0 : index
    %c0_75 = arith.constant 0 : index
    %122 = vector.load %arg3[%c0_74, %c0_75] : memref<32x32xf32, #tpu.memory_space<vmem>>, vector<32x32xf32>
    %cst_76 = arith.constant dense<0.000000e+00> : vector<32x256xf32>
    %123 = tpu.matmul %122, %121, %cst_76 {dimension_numbers = #tpu.dot_dimension_numbers<[1], [1], [0], [0], [0, 0, 1, 0], [], []>} : vector<32x32xf32>, vector<256x32xf32>, vector<32x256xf32> -> vector<32x256xf32>
    %c0_77 = arith.constant 0 : index
    %c0_78 = arith.constant 0 : index
    %124 = vector.load %arg4[%c0_77, %c0_78] : memref<32x1xf32, #tpu.memory_space<vmem>>, vector<32x1xf32>
    %125 = vector.broadcast %124 : vector<32x1xf32> to vector<32x256xf32>
    %126 = arith.addf %123, %125 : vector<32x256xf32>
    %127 = vector.shape_cast %126 : vector<32x256xf32> to vector<1x32x256xf32>
    %c0_79 = arith.constant 0 : index
    %c0_80 = arith.constant 0 : index
    %c0_81 = arith.constant 0 : index
    %128 = vector.load %arg5[%c0_79, %c0_80, %c0_81] : memref<1x32x256xf32, #tpu.memory_space<vmem>>, vector<1x32x256xf32>
    tpu.vector_store %arg5[%c0_79, %c0_80, %c0_81], %127 {strides = array<i32>} : memref<1x32x256xf32, #tpu.memory_space<vmem>>, vector<1x32x256xf32>,
    %cst_82 = arith.constant dense<0.000000e+00> : vector<32xf32>
    %129 = vector.multi_reduction <add>, %126, %cst_82 [1] : vector<32x256xf32> to vector<32xf32>
    %130 = vector.shape_cast %129 : vector<32xf32> to vector<32x1xf32>
    %131 = vector.shape_cast %130 : vector<32x1xf32> to vector<1x32x1xf32>
    %c0_83 = arith.constant 0 : index
    %c0_84 = arith.constant 0 : index
    %c0_85 = arith.constant 0 : index
    %132 = vector.load %arg6[%c0_83, %c0_84, %c0_85] : memref<1x32x1xf32, #tpu.memory_space<vmem>>, vector<1x32x1xf32>
    tpu.vector_store %arg6[%c0_83, %c0_84, %c0_85], %131 {strides = array<i32>} : memref<1x32x1xf32, #tpu.memory_space<vmem>>, vector<1x32x1xf32>,
    %133 = arith.mulf %126, %126 : vector<32x256xf32>
    %cst_86 = arith.constant dense<0.000000e+00> : vector<32xf32>
    %134 = vector.multi_reduction <add>, %133, %cst_86 [1] : vector<32x256xf32> to vector<32xf32>
    %135 = vector.shape_cast %134 : vector<32xf32> to vector<32x1xf32>
    %136 = vector.shape_cast %135 : vector<32x1xf32> to vector<1x32x1xf32>
    %c0_87 = arith.constant 0 : index
    %c0_88 = arith.constant 0 : index
    %c0_89 = arith.constant 0 : index
    %137 = vector.load %arg7[%c0_87, %c0_88, %c0_89] : memref<1x32x1xf32, #tpu.memory_space<vmem>>, vector<1x32x1xf32>
    tpu.vector_store %arg7[%c0_87, %c0_88, %c0_89], %136 {strides = array<i32>} : memref<1x32x1xf32, #tpu.memory_space<vmem>>, vector<1x32x1xf32>,
    return
  }
  func.func @transform_0(%arg0: i32) -> (i32, i32, i32, i32) {
    %c0_i32 = arith.constant 0 : i32
    %c0_i32_0 = arith.constant 0 : i32
    %c0_i32_1 = arith.constant 0 : i32
    %c0_i32_2 = arith.constant 0 : i32
    return %arg0, %c0_i32, %c0_i32_0, %c0_i32_1 : i32, i32, i32, i32
  }
  func.func @transform_1(%arg0: i32) -> (i32, i32) {
    %c0_i32 = arith.constant 0 : i32
    %c0_i32_0 = arith.constant 0 : i32
    %c0_i32_1 = arith.constant 0 : i32
    return %c0_i32, %c0_i32_0 : i32, i32
  }
  func.func @transform_2(%arg0: i32) -> (i32, i32) {
    %c0_i32 = arith.constant 0 : i32
    %c0_i32_0 = arith.constant 0 : i32
    %c0_i32_1 = arith.constant 0 : i32
    return %c0_i32, %c0_i32_0 : i32, i32
  }
  func.func @transform_3(%arg0: i32) -> (i32, i32) {
    %c0_i32 = arith.constant 0 : i32
    %c0_i32_0 = arith.constant 0 : i32
    %c0_i32_1 = arith.constant 0 : i32
    return %c0_i32, %c0_i32_0 : i32, i32
  }
  func.func @transform_4(%arg0: i32) -> (i32, i32, i32) {
    %c0_i32 = arith.constant 0 : i32
    %c0_i32_0 = arith.constant 0 : i32
    %c0_i32_1 = arith.constant 0 : i32
    return %arg0, %c0_i32, %c0_i32_0 : i32, i32, i32
  }
  func.func @transform_5(%arg0: i32) -> (i32, i32, i32) {
    %c0_i32 = arith.constant 0 : i32
    %c0_i32_0 = arith.constant 0 : i32
    %c0_i32_1 = arith.constant 0 : i32
    return %arg0, %c0_i32, %c0_i32_0 : i32, i32, i32
  }
  func.func @transform_6(%arg0: i32) -> (i32, i32, i32) {
    %c0_i32 = arith.constant 0 : i32
    %c0_i32_0 = arith.constant 0 : i32
    %c0_i32_1 = arith.constant 0 : i32
    return %arg0, %c0_i32, %c0_i32_0 : i32, i32, i32
  }
}

</mosaic_0001>

<llo_original>
// kernel: tpu_custom_call.1
$region0: #{tpu_custom_call.1}
  #allocation0 [shape = 'u32[]', space=smem, size = 0x4, offset = 0x4, fixed_abs, tag = 'smem constant byte address 0x4 - core index']
  #allocation1 [shape = 'u32[144,128]{1,0:T(1,128)}', space=vmem, size = 0x12000, scoped, tag = 'internal scratch']
  #allocation2 [shape = 'f32[26,26,32]{2,1,0:T(8,128)}', space=vmem, size = 0x68000, scoped, tag = 'scratch operand']
  %s0 = inlined_call_operand.hbm [shape: f32[2,16,16,32], index: 0, kind: input, shape index: {}]
  %s1 = inlined_call_operand.hbm [shape: f32[288,96], index: 1, kind: input, shape index: {}]
  %s2 = inlined_call_operand.vmem [shape: f32[32,32], index: 2, kind: input, shape index: {}]
  %s3 = inlined_call_operand.vmem [shape: f32[32,1], index: 3, kind: input, shape index: {}]
  %s4 = inlined_call_operand.hbm [shape: f32[2,32,256], index: 4, kind: output, shape index: {0}]
  %s5 = inlined_call_operand.vmem [shape: f32[2,32,1], index: 5, kind: output, shape index: {1}]
  %s6 = inlined_call_operand.vmem [shape: f32[2,32,1], index: 6, kind: output, shape index: {2}]
  %7 = xla_tuple %s4, %s5, %s6
  %s8 = sld [smem:[#allocation0]]
  $region80: #{tpu_custom_call.1} parent=0
    _
  %s10 = ssub.s32 1, %s8
  %s11 = scalar_select 0, %s10, %s8
  $region1: #{tpu_custom_call.1} parent=0
    #allocation3 [shape = 'u8[262144]{0}', space=vmem, size = 0x40000, scoped, tag = 'input window, operand 0']
    #allocation4 [shape = 's32[2]{0}', space=sflag, size = 0x8, scoped, tag = 'scoped memory for tpu_custom_call.1']
    #allocation5 [shape = 's32[2]{0}', space=sflag, size = 0x8, scoped, tag = 'scoped memory for tpu_custom_call.1']
    #allocation6 [shape = 'u8[147456]{0}', space=vmem, size = 0x24000, scoped, tag = 'input window, operand 1, single buffered']
    #allocation7 [shape = 's32[1]{0}', space=sflag, size = 0x4, scoped, tag = 'scoped memory for tpu_custom_call.1']
    #allocation8 [shape = 'u8[65536]{0}', space=vmem, size = 0x10000, scoped, tag = 'output window, operand 0']
    %12 = vsyncpa [#allocation4], 0
    %s13 = scalar_lea.sflag [#allocation4], 1
    %14 = vsyncpa %s13, 0
    %15 = vsyncpa [#allocation7], 0
    %16 = vsyncpa [#allocation5], 0
    %s17 = scalar_lea.sflag [#allocation5], 1
    %18 = vsyncpa %s17, 0
    loop: start=0, step=1, limit=4
    $region2: #{tpu_custom_call.1} parent=1 // loop_pre_header
      _
    $region3: #{tpu_custom_call.1} parent=1 // loop_header
      %s20 = sphi 0, %s24
      %p21 = scmp.ge.s32.totalorder %s20, 4
      %s30 = sphi 0, %s32
      %s33 = sphi 0, %s30
      %s34 = sphi 0, %s33
      %s50 = sphi 0, %s34
      %s54 = sphi 0, %s54
      %s56 = sphi 0, %s54
      %s57 = sphi 0, %s56
      %s71 = sphi 0, %s57
      %s75 = sphi 0, %s75
      %s77 = sphi 0, %s75
      %s78 = sphi 0, %s77
      %s92 = sphi 0, %s78
      %s96 = sphi 0, %s96
      %s98 = sphi 0, %s96
      %s99 = sphi 0, %s98
      %s113 = sphi 0, %s99
      %s119 = sphi 0, %s121
      %s122 = sphi 0, %s119
      %s123 = sphi 0, %s122
      %s139 = sphi 0, %s123
      %s145 = sphi 0, %s147
      %s148 = sphi 0, %s145
      %s149 = sphi 0, %s148
      %s165 = sphi 0, %s149
      %s171 = sphi 0, %s173
      %s174 = sphi 0, %s171
      %s175 = sphi 0, %s174
      %s191 = sphi 0, %s175
    $region4: #{tpu_custom_call.1} parent=1 // loop_header_branch
      %23 = sbr.rel (%p21) target = $region8
    $region5: #{tpu_custom_call.1} parent=1 // loop_body
      %s25 = ssub.s32 %s20, 1
      %s26 = ssub.s32 %s20, 2
      %s27 = sadd.s32 %s20, 1
      %s28 = ssub.s32 %s20, %s27
      %p29 = scmp.eq.s32.totalorder %s28, 0
      %s31 = sadd.s32 %s30, 1
      %s32 = scalar_select %p29, %s30, %s31
      %p35 = pneg %p29
      %p36 = scmp.eq.s32.totalorder %s20, 1
      %p37 = por %p35, %p36
      %p38 = scmp.ne.s32.totalorder %s30, %s33
      %p39 = scmp.eq.s32.totalorder %s20, 0
      %p40 = por %p38, %p39
      %p41 = scmp.ne.s32.totalorder %s30, %s33
      %p42 = scmp.eq.s32.totalorder %s25, 1
      %p43 = por %p41, %p42
      %p44 = scmp.ne.s32.totalorder %s33, %s34
      %p45 = scmp.eq.s32.totalorder %s25, 0
      %p46 = por %p44, %p45
      %p47 = scmp.ne.s32.totalorder %s33, %s34
      %p48 = scmp.eq.s32.totalorder %s26, 1
      %p49 = por %p47, %p48
      %p51 = scmp.ne.s32.totalorder %s34, %s50
      %p52 = scmp.eq.s32.totalorder %s26, 0
      %p53 = por %p51, %p52
      %s55 = sadd.s32 %s54, 1
      %p58 = scmp.eq.s32.totalorder %s20, 1
      %p59 = scmp.ne.s32.totalorder %s54, %s56
      %p60 = scmp.eq.s32.totalorder %s20, 0
      %p61 = por %p59, %p60
      %p62 = scmp.ne.s32.totalorder %s54, %s56
      %p63 = scmp.eq.s32.totalorder %s25, 1
      %p64 = por %p62, %p63
      %p65 = scmp.ne.s32.totalorder %s56, %s57
      %p66 = scmp.eq.s32.totalorder %s25, 0
      %p67 = por %p65, %p66
      %p68 = scmp.ne.s32.totalorder %s56, %s57
      %p69 = scmp.eq.s32.totalorder %s26, 1
      %p70 = por %p68, %p69
      %p72 = scmp.ne.s32.totalorder %s57, %s71
      %p73 = scmp.eq.s32.totalorder %s26, 0
      %p74 = por %p72, %p73
      %s76 = sadd.s32 %s75, 1
      %p79 = scmp.eq.s32.totalorder %s20, 1
      %p80 = scmp.ne.s32.totalorder %s75, %s77
      %p81 = scmp.eq.s32.totalorder %s20, 0
      %p82 = por %p80, %p81
      %p83 = scmp.ne.s32.totalorder %s75, %s77
      %p84 = scmp.eq.s32.totalorder %s25, 1
      %p85 = por %p83, %p84
      %p86 = scmp.ne.s32.totalorder %s77, %s78
      %p87 = scmp.eq.s32.totalorder %s25, 0
      %p88 = por %p86, %p87
      %p89 = scmp.ne.s32.totalorder %s77, %s78
      %p90 = scmp.eq.s32.totalorder %s26, 1
      %p91 = por %p89, %p90
      %p93 = scmp.ne.s32.totalorder %s78, %s92
      %p94 = scmp.eq.s32.totalorder %s26, 0
      %p95 = por %p93, %p94
      %s97 = sadd.s32 %s96, 1
      %p100 = scmp.eq.s32.totalorder %s20, 1
      %p101 = scmp.ne.s32.totalorder %s96, %s98
      %p102 = scmp.eq.s32.totalorder %s20, 0
      %p103 = por %p101, %p102
      %p104 = scmp.ne.s32.totalorder %s96, %s98
      %p105 = scmp.eq.s32.totalorder %s25, 1
      %p106 = por %p104, %p105
      %p107 = scmp.ne.s32.totalorder %s98, %s99
      %p108 = scmp.eq.s32.totalorder %s25, 0
      %p109 = por %p107, %p108
      %p110 = scmp.ne.s32.totalorder %s98, %s99
      %p111 = scmp.eq.s32.totalorder %s26, 1
      %p112 = por %p110, %p111
      %p114 = scmp.ne.s32.totalorder %s99, %s113
      %p115 = scmp.eq.s32.totalorder %s26, 0
      %p116 = por %p114, %p115
      %s117 = ssub.s32 %s20, %s27
      %p118 = scmp.eq.s32.totalorder %s117, 0
      %s120 = sadd.s32 %s119, 1
      %s121 = scalar_select %p118, %s119, %s120
      %p124 = pneg %p118
      %p125 = scmp.eq.s32.totalorder %s20, 1
      %p126 = por %p124, %p125
      %p127 = scmp.ne.s32.totalorder %s119, %s122
      %p128 = scmp.eq.s32.totalorder %s20, 0
      %p129 = por %p127, %p128
      %p130 = scmp.ne.s32.totalorder %s119, %s122
      %p131 = scmp.eq.s32.totalorder %s25, 1
      %p132 = por %p130, %p131
      %p133 = scmp.ne.s32.totalorder %s122, %s123
      %p134 = scmp.eq.s32.totalorder %s25, 0
      %p135 = por %p133, %p134
      %p136 = scmp.ne.s32.totalorder %s122, %s123
      %p137 = scmp.eq.s32.totalorder %s26, 1
      %p138 = por %p136, %p137
      %p140 = scmp.ne.s32.totalorder %s123, %s139
      %p141 = scmp.eq.s32.totalorder %s26, 0
      %p142 = por %p140, %p141
      %s143 = ssub.s32 %s20, %s27
      %p144 = scmp.eq.s32.totalorder %s143, 0
      %s146 = sadd.s32 %s145, 1
      %s147 = scalar_select %p144, %s145, %s146
      %p150 = pneg %p144
      %p151 = scmp.eq.s32.totalorder %s20, 1
      %p152 = por %p150, %p151
      %p153 = scmp.ne.s32.totalorder %s145, %s148
      %p154 = scmp.eq.s32.totalorder %s20, 0
      %p155 = por %p153, %p154
      %p156 = scmp.ne.s32.totalorder %s145, %s148
      %p157 = scmp.eq.s32.totalorder %s25, 1
      %p158 = por %p156, %p157
      %p159 = scmp.ne.s32.totalorder %s148, %s149
      %p160 = scmp.eq.s32.totalorder %s25, 0
      %p161 = por %p159, %p160
      %p162 = scmp.ne.s32.totalorder %s148, %s149
      %p163 = scmp.eq.s32.totalorder %s26, 1
      %p164 = por %p162, %p163
      %p166 = scmp.ne.s32.totalorder %s149, %s165
      %p167 = scmp.eq.s32.totalorder %s26, 0
      %p168 = por %p166, %p167
      %s169 = ssub.s32 %s20, %s27
      %p170 = scmp.eq.s32.totalorder %s169, 0
      %s172 = sadd.s32 %s171, 1
      %s173 = scalar_select %p170, %s171, %s172
      %p176 = pneg %p170
      %p177 = scmp.eq.s32.totalorder %s20, 1
      %p178 = por %p176, %p177
      %p179 = scmp.ne.s32.totalorder %s171, %s174
      %p180 = scmp.eq.s32.totalorder %s20, 0
      %p181 = por %p179, %p180
      %p182 = scmp.ne.s32.totalorder %s171, %s174
      %p183 = scmp.eq.s32.totalorder %s25, 1
      %p184 = por %p182, %p183
      %p185 = scmp.ne.s32.totalorder %s174, %s175
      %p186 = scmp.eq.s32.totalorder %s25, 0
      %p187 = por %p185, %p186
      %p188 = scmp.ne.s32.totalorder %s174, %s175
      %p189 = scmp.eq.s32.totalorder %s26, 1
      %p190 = por %p188, %p189
      %p192 = scmp.ne.s32.totalorder %s175, %s191
      %p193 = scmp.eq.s32.totalorder %s26, 0
      %p194 = por %p192, %p193
      %p195 = scmp.le.s32.totalorder 1, %s20
      %p196 = scmp.lt.s32.totalorder %s20, 3
      %p197 = pnand %p195, %p196
      %p198 = pneg %p197
      // Predicated region
      $region9: #{tpu_custom_call.1} parent=5 // pred_check
        _
      $region10: #{tpu_custom_call.1} parent=5 // pred_check_branch
        %200 = sbr.rel (%p197) target = $region12
      $region11: #{tpu_custom_call.1} parent=5 // pred_region
        %s201 = ssub.s32 %s20, 1
        // Predicated region
        $region13: #{tpu_custom_call.1} parent=11 // pred_check
          %p202 = pneg %p67
        $region14: #{tpu_custom_call.1} parent=11 // pred_check_branch
          %204 = sbr.rel (%p202) target = $region16
        $region15: #{tpu_custom_call.1} parent=11 // pred_region
          %s206 = ssub.s32 4608, 4608
          %207 = vsyncadd [#allocation7], %s206
          %s208 = sshll.u32 [#allocation6], 4
          %s209 = int_to_ptr.vmem [resolvable:$true] %s208
          %214 = dma.hbm_to_vmem [thread:$0]  %s1, 4608, %s209, [#allocation7], 128, 128, 8
        $region16: #{tpu_custom_call.1} parent=11 // pred_fallthru
          _
        // Predicated region
        $region17: #{tpu_custom_call.1} parent=11 // pred_check
          %p215 = pneg %p88
        $region18: #{tpu_custom_call.1} parent=11 // pred_check_branch
          %217 = sbr.rel (%p215) target = $region20
        $region19: #{tpu_custom_call.1} parent=11 // pred_region
          _
        $region20: #{tpu_custom_call.1} parent=11 // pred_fallthru
          _
        // Predicated region
        $region21: #{tpu_custom_call.1} parent=11 // pred_check
          %p218 = pneg %p109
        $region22: #{tpu_custom_call.1} parent=11 // pred_check_branch
          %220 = sbr.rel (%p218) target = $region24
        $region23: #{tpu_custom_call.1} parent=11 // pred_region
          _
        $region24: #{tpu_custom_call.1} parent=11 // pred_fallthru
          _
      $region12: #{tpu_custom_call.1} parent=5 // pred_fallthru
        _
      %p221 = scmp.lt.s32.totalorder %s20, 2
      // Predicated region
      $region25: #{tpu_custom_call.1} parent=5 // pred_check
        %p222 = pneg %p221
      $region26: #{tpu_custom_call.1} parent=5 // pred_check_branch
        %224 = sbr.rel (%p222) target = $region28
      $region27: #{tpu_custom_call.1} parent=5 // pred_region
        // Predicated region
        $region29: #{tpu_custom_call.1} parent=27 // pred_check
          %p225 = pneg %p40
        $region30: #{tpu_custom_call.1} parent=27 // pred_check_branch
          %227 = sbr.rel (%p225) target = $region32
        $region31: #{tpu_custom_call.1} parent=27 // pred_region
          %s228 = sand.u32 %s30, 1
          %s229 = scalar_lea.sflag [#allocation4], %s228
          %s230 = sand.u32 %s30, 1
          %s231 = smul.addr %s230, 256
          %s232 = scalar_lea.vmem [#allocation3], %s231
          %s234 = ssub.s32 4096, 4096
          %235 = vsyncadd %s229, %s234
          %s236 = smul.addr %s20, 32
          %s237 = smul.addr %s236, 128
          %s238 = scalar_lea.hbm %s0, %s237
          %s239 = sshll.u32 %s232, 4
          %s240 = int_to_ptr.vmem [resolvable:$true] %s239
          %245 = dma.hbm_to_vmem [thread:$0]  %s238, 4096, %s240, %s229, 128, 128, 8
        $region32: #{tpu_custom_call.1} parent=27 // pred_fallthru
          _
      $region28: #{tpu_custom_call.1} parent=5 // pred_fallthru
        _
      %p246 = scmp.le.s32.totalorder 1, %s20
      %p247 = scmp.lt.s32.totalorder %s20, 3
      %p248 = pnand %p246, %p247
      %p249 = pneg %p248
      // Predicated region
      $region33: #{tpu_custom_call.1} parent=5 // pred_check
        _
      $region34: #{tpu_custom_call.1} parent=5 // pred_check_branch
        %251 = sbr.rel (%p248) target = $region36
      $region35: #{tpu_custom_call.1} parent=5 // pred_region
        %s252 = ssub.s32 %s20, 1
        %s253 = sand.u32 %s33, 1
        %s254 = scalar_lea.sflag [#allocation4], %s253
        %s255 = sand.u32 %s33, 1
        %s256 = smul.addr %s255, 256
        %s257 = scalar_lea.vmem [#allocation3], %s256
        // Predicated region
        $region37: #{tpu_custom_call.1} parent=35 // pred_check
          %p258 = pneg %p46
        $region38: #{tpu_custom_call.1} parent=35 // pred_check_branch
          %260 = sbr.rel (%p258) target = $region40
        $region39: #{tpu_custom_call.1} parent=35 // pred_region
          %261 = dma.done %s254, 4096
        $region40: #{tpu_custom_call.1} parent=35 // pred_fallthru
          _
        // Predicated region
        $region41: #{tpu_custom_call.1} parent=35 // pred_check
          %p262 = pneg %p67
        $region42: #{tpu_custom_call.1} parent=35 // pred_check_branch
          %264 = sbr.rel (%p262) target = $region44
        $region43: #{tpu_custom_call.1} parent=35 // pred_region
          %265 = dma.done [#allocation7], 4608
        $region44: #{tpu_custom_call.1} parent=35 // pred_fallthru
          _
        %s266 = sand.u32 %s33, 1
        %s267 = scalar_lea.sflag [#allocation4], %s266
        %s268 = sand.u32 %s33, 1
        %s269 = smul.addr %s268, 256
        %s270 = scalar_lea.vmem [#allocation3], %s269
        %p271 = pneg %p46
        %p272 = pneg %p43
        %p273 = pneg %p67
        %p274 = pneg %p64
        %p275 = pneg %p88
        %p276 = pneg %p85
        %p277 = pneg %p109
        %p278 = pneg %p106
        %p279 = pneg %p135
        %p280 = pneg %p132
        %s281 = sand.u32 %s122, 1
        %s282 = scalar_lea.sflag [#allocation5], %s281
        %s283 = sand.u32 %s122, 1
        %s284 = smul.addr %s283, 64
        %s285 = scalar_lea.vmem [#allocation8], %s284
        %p286 = pneg %p161
        %p287 = pneg %p158
        %p288 = scmp.lt.s32.totalorder %s25, 1
        %s289 = scalar_select %p288, %s25, 1
        %s290 = smul.addr %s289, 4
        %s291 = smul.addr %s290, 8
        %s292 = scalar_lea.vmem %s5, %s291
        %p293 = pneg %p187
        %p294 = pneg %p184
        %p295 = scmp.lt.s32.totalorder %s25, 1
        %s296 = scalar_select %p295, %s25, 1
        %s297 = smul.addr %s296, 4
        %s298 = smul.addr %s297, 8
        %s299 = scalar_lea.vmem %s6, %s298
        %p300 = scmp.lt.s32.totalorder %s25, 1
        %s301 = scalar_select %p300, %s25, 1
        %s302 = smul.addr %s301, 4
        %s303 = smul.addr %s302, 8
        %s304 = scalar_lea.vmem %s5, %s303
        %p305 = scmp.lt.s32.totalorder %s25, 1
        %s306 = scalar_select %p305, %s25, 1
        %s307 = smul.addr %s306, 4
        %s308 = smul.addr %s307, 8
        %s309 = scalar_lea.vmem %s6, %s308
        %vm310 = vcmask 261120
        %311 = vst.msk [vmem:[#allocation2] sm:$0xff] %vm310, 0.0
        %312 = vst.msk [vmem:[#allocation2 + $0x8] sm:$0xff] %vm310, 0.0
        %313 = vst.msk [vmem:[#allocation2 + $0x10] sm:$0xff] %vm310, 0.0
        %vm314 = vcmask 254976
        %315 = vst.msk [vmem:[#allocation2 + $0x18] sm:$0x3] %vm314, 0.0
        %316 = vst.msk [vmem:[#allocation2 + $0x20] sm:$0xff] %vm310, 0.0
        %317 = vst.msk [vmem:[#allocation2 + $0x28] sm:$0xff] %vm310, 0.0
        %318 = vst.msk [vmem:[#allocation2 + $0x30] sm:$0xff] %vm310, 0.0
        %319 = vst.msk [vmem:[#allocation2 + $0x38] sm:$0x3] %vm314, 0.0
        %320 = vst.msk [vmem:[#allocation2 + $0x40] sm:$0xff] %vm310, 0.0
        %321 = vst.msk [vmem:[#allocation2 + $0x48] sm:$0xff] %vm310, 0.0
        %322 = vst.msk [vmem:[#allocation2 + $0x50] sm:$0xff] %vm310, 0.0
        %323 = vst.msk [vmem:[#allocation2 + $0x58] sm:$0x3] %vm314, 0.0
        %324 = vst.msk [vmem:[#allocation2 + $0x60] sm:$0xff] %vm310, 0.0
        %325 = vst.msk [vmem:[#allocation2 + $0x68] sm:$0xff] %vm310, 0.0
        %326 = vst.msk [vmem:[#allocation2 + $0x70] sm:$0xff] %vm310, 0.0
        %327 = vst.msk [vmem:[#allocation2 + $0x78] sm:$0x3] %vm314, 0.0
        %328 = vst.msk [vmem:[#allocation2 + $0x80] sm:$0xff] %vm310, 0.0
        %329 = vst.msk [vmem:[#allocation2 + $0x88] sm:$0xff] %vm310, 0.0
        %330 = vst.msk [vmem:[#allocation2 + $0x90] sm:$0xff] %vm310, 0.0
        %331 = vst.msk [vmem:[#allocation2 + $0x98] sm:$0x3] %vm314, 0.0
        %332 = vst.msk [vmem:[#allocation2 + $0xa0] sm:$0xff] %vm310, 0.0
        %333 = vst.msk [vmem:[#allocation2 + $0xa8] sm:$0xff] %vm310, 0.0
        %334 = vst.msk [vmem:[#allocation2 + $0xb0] sm:$0xff] %vm310, 0.0
        %335 = vst.msk [vmem:[#allocation2 + $0xb8] sm:$0x3] %vm314, 0.0
        %336 = vst.msk [vmem:[#allocation2 + $0xc0] sm:$0xff] %vm310, 0.0
        %337 = vst.msk [vmem:[#allocation2 + $0xc8] sm:$0xff] %vm310, 0.0
        %338 = vst.msk [vmem:[#allocation2 + $0xd0] sm:$0xff] %vm310, 0.0
        %339 = vst.msk [vmem:[#allocation2 + $0xd8] sm:$0x3] %vm314, 0.0
        %340 = vst.msk [vmem:[#allocation2 + $0xe0] sm:$0xff] %vm310, 0.0
        %341 = vst.msk [vmem:[#allocation2 + $0xe8] sm:$0xff] %vm310, 0.0
        %342 = vst.msk [vmem:[#allocation2 + $0xf0] sm:$0xff] %vm310, 0.0
        %343 = vst.msk [vmem:[#allocation2 + $0xf8] sm:$0x3] %vm314, 0.0
        %344 = vst.msk [vmem:[#allocation2 + $0x100] sm:$0xff] %vm310, 0.0
        %345 = vst.msk [vmem:[#allocation2 + $0x108] sm:$0xff] %vm310, 0.0
        %346 = vst.msk [vmem:[#allocation2 + $0x110] sm:$0xff] %vm310, 0.0
        %347 = vst.msk [vmem:[#allocation2 + $0x118] sm:$0x3] %vm314, 0.0
        %348 = vst.msk [vmem:[#allocation2 + $0x120] sm:$0xff] %vm310, 0.0
        %349 = vst.msk [vmem:[#allocation2 + $0x128] sm:$0xff] %vm310, 0.0
        %350 = vst.msk [vmem:[#allocation2 + $0x130] sm:$0xff] %vm310, 0.0
        %351 = vst.msk [vmem:[#allocation2 + $0x138] sm:$0x3] %vm314, 0.0
        %352 = vst.msk [vmem:[#allocation2 + $0x140] sm:$0xff] %vm310, 0.0
        %353 = vst.msk [vmem:[#allocation2 + $0x148] sm:$0xff] %vm310, 0.0
        %354 = vst.msk [vmem:[#allocation2 + $0x150] sm:$0xff] %vm310, 0.0
        %355 = vst.msk [vmem:[#allocation2 + $0x158] sm:$0x3] %vm314, 0.0
        %356 = vst.msk [vmem:[#allocation2 + $0x160] sm:$0xff] %vm310, 0.0
        %357 = vst.msk [vmem:[#allocation2 + $0x168] sm:$0xff] %vm310, 0.0
        %358 = vst.msk [vmem:[#allocation2 + $0x170] sm:$0xff] %vm310, 0.0
        %359 = vst.msk [vmem:[#allocation2 + $0x178] sm:$0x3] %vm314, 0.0
        %360 = vst.msk [vmem:[#allocation2 + $0x180] sm:$0xff] %vm310, 0.0
        %361 = vst.msk [vmem:[#allocation2 + $0x188] sm:$0xff] %vm310, 0.0
        %362 = vst.msk [vmem:[#allocation2 + $0x190] sm:$0xff] %vm310, 0.0
        %363 = vst.msk [vmem:[#allocation2 + $0x198] sm:$0x3] %vm314, 0.0
        %364 = vst.msk [vmem:[#allocation2 + $0x1a0] sm:$0xff] %vm310, 0.0
        %365 = vst.msk [vmem:[#allocation2 + $0x1a8] sm:$0xff] %vm310, 0.0
        %366 = vst.msk [vmem:[#allocation2 + $0x1b0] sm:$0xff] %vm310, 0.0
        %367 = vst.msk [vmem:[#allocation2 + $0x1b8] sm:$0x3] %vm314, 0.0
        %368 = vst.msk [vmem:[#allocation2 + $0x1c0] sm:$0xff] %vm310, 0.0
        %369 = vst.msk [vmem:[#allocation2 + $0x1c8] sm:$0xff] %vm310, 0.0
        %370 = vst.msk [vmem:[#allocation2 + $0x1d0] sm:$0xff] %vm310, 0.0
        %371 = vst.msk [vmem:[#allocation2 + $0x1d8] sm:$0x3] %vm314, 0.0
        %372 = vst.msk [vmem:[#allocation2 + $0x1e0] sm:$0xff] %vm310, 0.0
        %373 = vst.msk [vmem:[#allocation2 + $0x1e8] sm:$0xff] %vm310, 0.0
        %374 = vst.msk [vmem:[#allocation2 + $0x1f0] sm:$0xff] %vm310, 0.0
        %375 = vst.msk [vmem:[#allocation2 + $0x1f8] sm:$0x3] %vm314, 0.0
        %376 = vst.msk [vmem:[#allocation2 + $0x200] sm:$0xff] %vm310, 0.0
        %377 = vst.msk [vmem:[#allocation2 + $0x208] sm:$0xff] %vm310, 0.0
        %378 = vst.msk [vmem:[#allocation2 + $0x210] sm:$0xff] %vm310, 0.0
        %379 = vst.msk [vmem:[#allocation2 + $0x218] sm:$0x3] %vm314, 0.0
        %380 = vst.msk [vmem:[#allocation2 + $0x220] sm:$0xff] %vm310, 0.0
        %381 = vst.msk [vmem:[#allocation2 + $0x228] sm:$0xff] %vm310, 0.0
        %382 = vst.msk [vmem:[#allocation2 + $0x230] sm:$0xff] %vm310, 0.0
        %383 = vst.msk [vmem:[#allocation2 + $0x238] sm:$0x3] %vm314, 0.0
        %384 = vst.msk [vmem:[#allocation2 + $0x240] sm:$0xff] %vm310, 0.0
        %385 = vst.msk [vmem:[#allocation2 + $0x248] sm:$0xff] %vm310, 0.0
        %386 = vst.msk [vmem:[#allocation2 + $0x250] sm:$0xff] %vm310, 0.0
        %387 = vst.msk [vmem:[#allocation2 + $0x258] sm:$0x3] %vm314, 0.0
        %388 = vst.msk [vmem:[#allocation2 + $0x260] sm:$0xff] %vm310, 0.0
        %389 = vst.msk [vmem:[#allocation2 + $0x268] sm:$0xff] %vm310, 0.0
        %390 = vst.msk [vmem:[#allocation2 + $0x270] sm:$0xff] %vm310, 0.0
        %391 = vst.msk [vmem:[#allocation2 + $0x278] sm:$0x3] %vm314, 0.0
        %392 = vst.msk [vmem:[#allocation2 + $0x280] sm:$0xff] %vm310, 0.0
        %393 = vst.msk [vmem:[#allocation2 + $0x288] sm:$0xff] %vm310, 0.0
        %394 = vst.msk [vmem:[#allocation2 + $0x290] sm:$0xff] %vm310, 0.0
        %395 = vst.msk [vmem:[#allocation2 + $0x298] sm:$0x3] %vm314, 0.0
        %396 = vst.msk [vmem:[#allocation2 + $0x2a0] sm:$0xff] %vm310, 0.0
        %397 = vst.msk [vmem:[#allocation2 + $0x2a8] sm:$0xff] %vm310, 0.0
        %398 = vst.msk [vmem:[#allocation2 + $0x2b0] sm:$0xff] %vm310, 0.0
        %399 = vst.msk [vmem:[#allocation2 + $0x2b8] sm:$0x3] %vm314, 0.0
        %400 = vst.msk [vmem:[#allocation2 + $0x2c0] sm:$0xff] %vm310, 0.0
        %401 = vst.msk [vmem:[#allocation2 + $0x2c8] sm:$0xff] %vm310, 0.0
        %402 = vst.msk [vmem:[#allocation2 + $0x2d0] sm:$0xff] %vm310, 0.0
        %403 = vst.msk [vmem:[#allocation2 + $0x2d8] sm:$0x3] %vm314, 0.0
        %404 = vst.msk [vmem:[#allocation2 + $0x2e0] sm:$0xff] %vm310, 0.0
        %405 = vst.msk [vmem:[#allocation2 + $0x2e8] sm:$0xff] %vm310, 0.0
        %406 = vst.msk [vmem:[#allocation2 + $0x2f0] sm:$0xff] %vm310, 0.0
        %407 = vst.msk [vmem:[#allocation2 + $0x2f8] sm:$0x3] %vm314, 0.0
        %408 = vst.msk [vmem:[#allocation2 + $0x300] sm:$0xff] %vm310, 0.0
        %409 = vst.msk [vmem:[#allocation2 + $0x308] sm:$0xff] %vm310, 0.0
        %410 = vst.msk [vmem:[#allocation2 + $0x310] sm:$0xff] %vm310, 0.0
        %411 = vst.msk [vmem:[#allocation2 + $0x318] sm:$0x3] %vm314, 0.0
        %412 = vst.msk [vmem:[#allocation2 + $0x320] sm:$0xff] %vm310, 0.0
        %413 = vst.msk [vmem:[#allocation2 + $0x328] sm:$0xff] %vm310, 0.0
        %414 = vst.msk [vmem:[#allocation2 + $0x330] sm:$0xff] %vm310, 0.0
        %415 = vst.msk [vmem:[#allocation2 + $0x338] sm:$0x3] %vm314, 0.0
        %v416 = vld [vmem:[%s257] sm:$0xff]
        %v417 = vld [vmem:[%s257 + $0x8] sm:$0xff]
        %v418 = vld [vmem:[%s257 + $0x10] sm:$0xff]
        %v419 = vld [vmem:[%s257 + $0x18] sm:$0xff]
        %v420 = vld [vmem:[%s257 + $0x20] sm:$0xff]
        %v421 = vld [vmem:[%s257 + $0x28] sm:$0xff]
        %v422 = vld [vmem:[%s257 + $0x30] sm:$0xff]
        %v423 = vld [vmem:[%s257 + $0x38] sm:$0xff]
        %v424 = vld [vmem:[%s257 + $0x40] sm:$0xff]
        %v425 = vld [vmem:[%s257 + $0x48] sm:$0xff]
        %v426 = vld [vmem:[%s257 + $0x50] sm:$0xff]
        %v427 = vld [vmem:[%s257 + $0x58] sm:$0xff]
        %v428 = vld [vmem:[%s257 + $0x60] sm:$0xff]
        %v429 = vld [vmem:[%s257 + $0x68] sm:$0xff]
        %v430 = vld [vmem:[%s257 + $0x70] sm:$0xff]
        %v431 = vld [vmem:[%s257 + $0x78] sm:$0xff]
        %v432 = vld [vmem:[%s257 + $0x80] sm:$0xff]
        %v433 = vld [vmem:[%s257 + $0x88] sm:$0xff]
        %v434 = vld [vmem:[%s257 + $0x90] sm:$0xff]
        %v435 = vld [vmem:[%s257 + $0x98] sm:$0xff]
        %v436 = vld [vmem:[%s257 + $0xa0] sm:$0xff]
        %v437 = vld [vmem:[%s257 + $0xa8] sm:$0xff]
        %v438 = vld [vmem:[%s257 + $0xb0] sm:$0xff]
        %v439 = vld [vmem:[%s257 + $0xb8] sm:$0xff]
        %v440 = vld [vmem:[%s257 + $0xc0] sm:$0xff]
        %v441 = vld [vmem:[%s257 + $0xc8] sm:$0xff]
        %v442 = vld [vmem:[%s257 + $0xd0] sm:$0xff]
        %v443 = vld [vmem:[%s257 + $0xd8] sm:$0xff]
        %v444 = vld [vmem:[%s257 + $0xe0] sm:$0xff]
        %v445 = vld [vmem:[%s257 + $0xe8] sm:$0xff]
        %v446 = vld [vmem:[%s257 + $0xf0] sm:$0xff]
        %v447 = vld [vmem:[%s257 + $0xf8] sm:$0xff]
        %s448 = scalar_lea.vmem [#allocation2], 160
        %449 = vst.msk [vmem:[%s448 + $0x5] sm:$0xff] %vm310, %v416
        %450 = vst.msk [vmem:[%s448 + $0xd] sm:$0xff] %vm310, %v417
        %451 = vst.msk [vmem:[%s448 + $0x25] sm:$0xff] %vm310, %v418
        %452 = vst.msk [vmem:[%s448 + $0x2d] sm:$0xff] %vm310, %v419
        %453 = vst.msk [vmem:[%s448 + $0x45] sm:$0xff] %vm310, %v420
        %454 = vst.msk [vmem:[%s448 + $0x4d] sm:$0xff] %vm310, %v421
        %455 = vst.msk [vmem:[%s448 + $0x65] sm:$0xff] %vm310, %v422
        %456 = vst.msk [vmem:[%s448 + $0x6d] sm:$0xff] %vm310, %v423
        %457 = vst.msk [vmem:[%s448 + $0x85] sm:$0xff] %vm310, %v424
        %458 = vst.msk [vmem:[%s448 + $0x8d] sm:$0xff] %vm310, %v425
        %459 = vst.msk [vmem:[%s448 + $0xa5] sm:$0xff] %vm310, %v426
        %460 = vst.msk [vmem:[%s448 + $0xad] sm:$0xff] %vm310, %v427
        %461 = vst.msk [vmem:[%s448 + $0xc5] sm:$0xff] %vm310, %v428
        %462 = vst.msk [vmem:[%s448 + $0xcd] sm:$0xff] %vm310, %v429
        %463 = vst.msk [vmem:[%s448 + $0xe5] sm:$0xff] %vm310, %v430
        %464 = vst.msk [vmem:[%s448 + $0xed] sm:$0xff] %vm310, %v431
        %465 = vst.msk [vmem:[%s448 + $0x105] sm:$0xff] %vm310, %v432
        %466 = vst.msk [vmem:[%s448 + $0x10d] sm:$0xff] %vm310, %v433
        %467 = vst.msk [vmem:[%s448 + $0x125] sm:$0xff] %vm310, %v434
        %468 = vst.msk [vmem:[%s448 + $0x12d] sm:$0xff] %vm310, %v435
        %469 = vst.msk [vmem:[%s448 + $0x145] sm:$0xff] %vm310, %v436
        %470 = vst.msk [vmem:[%s448 + $0x14d] sm:$0xff] %vm310, %v437
        %471 = vst.msk [vmem:[%s448 + $0x165] sm:$0xff] %vm310, %v438
        %472 = vst.msk [vmem:[%s448 + $0x16d] sm:$0xff] %vm310, %v439
        %473 = vst.msk [vmem:[%s448 + $0x185] sm:$0xff] %vm310, %v440
        %474 = vst.msk [vmem:[%s448 + $0x18d] sm:$0xff] %vm310, %v441
        %475 = vst.msk [vmem:[%s448 + $0x1a5] sm:$0xff] %vm310, %v442
        %476 = vst.msk [vmem:[%s448 + $0x1ad] sm:$0xff] %vm310, %v443
        %477 = vst.msk [vmem:[%s448 + $0x1c5] sm:$0xff] %vm310, %v444
        %478 = vst.msk [vmem:[%s448 + $0x1cd] sm:$0xff] %vm310, %v445
        %479 = vst.msk [vmem:[%s448 + $0x1e5] sm:$0xff] %vm310, %v446
        %480 = vst.msk [vmem:[%s448 + $0x1ed] sm:$0xff] %vm310, %v447
        %s481 = scalar_lea.vmem [#allocation2], 128
        %v482 = vld [vmem:[%s481 + $0x4] sm:$0xff]
        %v483 = vld [vmem:[%s481 + $0xc] sm:$0xff]
        %v484 = vld [vmem:[%s481 + $0x24] sm:$0xff]
        %v485 = vld [vmem:[%s481 + $0x2c] sm:$0xff]
        %v486 = vld [vmem:[%s481 + $0x44] sm:$0xff]
        %v487 = vld [vmem:[%s481 + $0x4c] sm:$0xff]
        %v488 = vld [vmem:[%s481 + $0x64] sm:$0xff]
        %v489 = vld [vmem:[%s481 + $0x6c] sm:$0xff]
        %v490 = vld [vmem:[%s481 + $0x84] sm:$0xff]
        %v491 = vld [vmem:[%s481 + $0x8c] sm:$0xff]
        %v492 = vld [vmem:[%s481 + $0xa4] sm:$0xff]
        %v493 = vld [vmem:[%s481 + $0xac] sm:$0xff]
        %v494 = vld [vmem:[%s481 + $0xc4] sm:$0xff]
        %v495 = vld [vmem:[%s481 + $0xcc] sm:$0xff]
        %v496 = vld [vmem:[%s481 + $0xe4] sm:$0xff]
        %v497 = vld [vmem:[%s481 + $0xec] sm:$0xff]
        %v498 = vld [vmem:[%s481 + $0x104] sm:$0xff]
        %v499 = vld [vmem:[%s481 + $0x10c] sm:$0xff]
        %v500 = vld [vmem:[%s481 + $0x124] sm:$0xff]
        %v501 = vld [vmem:[%s481 + $0x12c] sm:$0xff]
        %v502 = vld [vmem:[%s481 + $0x144] sm:$0xff]
        %v503 = vld [vmem:[%s481 + $0x14c] sm:$0xff]
        %v504 = vld [vmem:[%s481 + $0x164] sm:$0xff]
        %v505 = vld [vmem:[%s481 + $0x16c] sm:$0xff]
        %v506 = vld [vmem:[%s481 + $0x184] sm:$0xff]
        %v507 = vld [vmem:[%s481 + $0x18c] sm:$0xff]
        %v508 = vld [vmem:[%s481 + $0x1a4] sm:$0xff]
        %v509 = vld [vmem:[%s481 + $0x1ac] sm:$0xff]
        %v510 = vld [vmem:[%s481 + $0x1c4] sm:$0xff]
        %v511 = vld [vmem:[%s481 + $0x1cc] sm:$0xff]
        %v512 = vld [vmem:[%s481 + $0x1e4] sm:$0xff]
        %v513 = vld [vmem:[%s481 + $0x1ec] sm:$0xff]
        %v514 = vld [vmem:[%s481 + $0x5] sm:$0xff]
        %v515 = vld [vmem:[%s481 + $0xd] sm:$0xff]
        %v516 = vld [vmem:[%s481 + $0x25] sm:$0xff]
        %v517 = vld [vmem:[%s481 + $0x2d] sm:$0xff]
        %v518 = vld [vmem:[%s481 + $0x45] sm:$0xff]
        %v519 = vld [vmem:[%s481 + $0x4d] sm:$0xff]
        %v520 = vld [vmem:[%s481 + $0x65] sm:$0xff]
        %v521 = vld [vmem:[%s481 + $0x6d] sm:$0xff]
        %v522 = vld [vmem:[%s481 + $0x85] sm:$0xff]
        %v523 = vld [vmem:[%s481 + $0x8d] sm:$0xff]
        %v524 = vld [vmem:[%s481 + $0xa5] sm:$0xff]
        %v525 = vld [vmem:[%s481 + $0xad] sm:$0xff]
        %v526 = vld [vmem:[%s481 + $0xc5] sm:$0xff]
        %v527 = vld [vmem:[%s481 + $0xcd] sm:$0xff]
        %v528 = vld [vmem:[%s481 + $0xe5] sm:$0xff]
        %v529 = vld [vmem:[%s481 + $0xed] sm:$0xff]
        %v530 = vld [vmem:[%s481 + $0x105] sm:$0xff]
        %v531 = vld [vmem:[%s481 + $0x10d] sm:$0xff]
        %v532 = vld [vmem:[%s481 + $0x125] sm:$0xff]
        %v533 = vld [vmem:[%s481 + $0x12d] sm:$0xff]
        %v534 = vld [vmem:[%s481 + $0x145] sm:$0xff]
        %v535 = vld [vmem:[%s481 + $0x14d] sm:$0xff]
        %v536 = vld [vmem:[%s481 + $0x165] sm:$0xff]
        %v537 = vld [vmem:[%s481 + $0x16d] sm:$0xff]
        %v538 = vld [vmem:[%s481 + $0x185] sm:$0xff]
        %v539 = vld [vmem:[%s481 + $0x18d] sm:$0xff]
        %v540 = vld [vmem:[%s481 + $0x1a5] sm:$0xff]
        %v541 = vld [vmem:[%s481 + $0x1ad] sm:$0xff]
        %v542 = vld [vmem:[%s481 + $0x1c5] sm:$0xff]
        %v543 = vld [vmem:[%s481 + $0x1cd] sm:$0xff]
        %v544 = vld [vmem:[%s481 + $0x1e5] sm:$0xff]
        %v545 = vld [vmem:[%s481 + $0x1ed] sm:$0xff]
        %v546 = vld [vmem:[%s481 + $0x6] sm:$0xff]
        %v547 = vld [vmem:[%s481 + $0xe] sm:$0xff]
        %v548 = vld [vmem:[%s481 + $0x26] sm:$0xff]
        %v549 = vld [vmem:[%s481 + $0x2e] sm:$0xff]
        %v550 = vld [vmem:[%s481 + $0x46] sm:$0xff]
        %v551 = vld [vmem:[%s481 + $0x4e] sm:$0xff]
        %v552 = vld [vmem:[%s481 + $0x66] sm:$0xff]
        %v553 = vld [vmem:[%s481 + $0x6e] sm:$0xff]
        %v554 = vld [vmem:[%s481 + $0x86] sm:$0xff]
        %v555 = vld [vmem:[%s481 + $0x8e] sm:$0xff]
        %v556 = vld [vmem:[%s481 + $0xa6] sm:$0xff]
        %v557 = vld [vmem:[%s481 + $0xae] sm:$0xff]
        %v558 = vld [vmem:[%s481 + $0xc6] sm:$0xff]
        %v559 = vld [vmem:[%s481 + $0xce] sm:$0xff]
        %v560 = vld [vmem:[%s481 + $0xe6] sm:$0xff]
        %v561 = vld [vmem:[%s481 + $0xee] sm:$0xff]
        %v562 = vld [vmem:[%s481 + $0x106] sm:$0xff]
        %v563 = vld [vmem:[%s481 + $0x10e] sm:$0xff]
        %v564 = vld [vmem:[%s481 + $0x126] sm:$0xff]
        %v565 = vld [vmem:[%s481 + $0x12e] sm:$0xff]
        %v566 = vld [vmem:[%s481 + $0x146] sm:$0xff]
        %v567 = vld [vmem:[%s481 + $0x14e] sm:$0xff]
        %v568 = vld [vmem:[%s481 + $0x166] sm:$0xff]
        %v569 = vld [vmem:[%s481 + $0x16e] sm:$0xff]
        %v570 = vld [vmem:[%s481 + $0x186] sm:$0xff]
        %v571 = vld [vmem:[%s481 + $0x18e] sm:$0xff]
        %v572 = vld [vmem:[%s481 + $0x1a6] sm:$0xff]
        %v573 = vld [vmem:[%s481 + $0x1ae] sm:$0xff]
        %v574 = vld [vmem:[%s481 + $0x1c6] sm:$0xff]
        %v575 = vld [vmem:[%s481 + $0x1ce] sm:$0xff]
        %v576 = vld [vmem:[%s481 + $0x1e6] sm:$0xff]
        %v577 = vld [vmem:[%s481 + $0x1ee] sm:$0xff]
        %v578 = vld [vmem:[%s448 + $0x4] sm:$0xff]
        %v579 = vld [vmem:[%s448 + $0xc] sm:$0xff]
        %v580 = vld [vmem:[%s448 + $0x24] sm:$0xff]
        %v581 = vld [vmem:[%s448 + $0x2c] sm:$0xff]
        %v582 = vld [vmem:[%s448 + $0x44] sm:$0xff]
        %v583 = vld [vmem:[%s448 + $0x4c] sm:$0xff]
        %v584 = vld [vmem:[%s448 + $0x64] sm:$0xff]
        %v585 = vld [vmem:[%s448 + $0x6c] sm:$0xff]
        %v586 = vld [vmem:[%s448 + $0x84] sm:$0xff]
        %v587 = vld [vmem:[%s448 + $0x8c] sm:$0xff]
        %v588 = vld [vmem:[%s448 + $0xa4] sm:$0xff]
        %v589 = vld [vmem:[%s448 + $0xac] sm:$0xff]
        %v590 = vld [vmem:[%s448 + $0xc4] sm:$0xff]
        %v591 = vld [vmem:[%s448 + $0xcc] sm:$0xff]
        %v592 = vld [vmem:[%s448 + $0xe4] sm:$0xff]
        %v593 = vld [vmem:[%s448 + $0xec] sm:$0xff]
        %v594 = vld [vmem:[%s448 + $0x104] sm:$0xff]
        %v595 = vld [vmem:[%s448 + $0x10c] sm:$0xff]
        %v596 = vld [vmem:[%s448 + $0x124] sm:$0xff]
        %v597 = vld [vmem:[%s448 + $0x12c] sm:$0xff]
        %v598 = vld [vmem:[%s448 + $0x144] sm:$0xff]
        %v599 = vld [vmem:[%s448 + $0x14c] sm:$0xff]
        %v600 = vld [vmem:[%s448 + $0x164] sm:$0xff]
        %v601 = vld [vmem:[%s448 + $0x16c] sm:$0xff]
        %v602 = vld [vmem:[%s448 + $0x184] sm:$0xff]
        %v603 = vld [vmem:[%s448 + $0x18c] sm:$0xff]
        %v604 = vld [vmem:[%s448 + $0x1a4] sm:$0xff]
        %v605 = vld [vmem:[%s448 + $0x1ac] sm:$0xff]
        %v606 = vld [vmem:[%s448 + $0x1c4] sm:$0xff]
        %v607 = vld [vmem:[%s448 + $0x1cc] sm:$0xff]
        %v608 = vld [vmem:[%s448 + $0x1e4] sm:$0xff]
        %v609 = vld [vmem:[%s448 + $0x1ec] sm:$0xff]
        %v610 = vld [vmem:[%s448 + $0x5] sm:$0xff]
        %v611 = vld [vmem:[%s448 + $0xd] sm:$0xff]
        %v612 = vld [vmem:[%s448 + $0x25] sm:$0xff]
        %v613 = vld [vmem:[%s448 + $0x2d] sm:$0xff]
        %v614 = vld [vmem:[%s448 + $0x45] sm:$0xff]
        %v615 = vld [vmem:[%s448 + $0x4d] sm:$0xff]
        %v616 = vld [vmem:[%s448 + $0x65] sm:$0xff]
        %v617 = vld [vmem:[%s448 + $0x6d] sm:$0xff]
        %v618 = vld [vmem:[%s448 + $0x85] sm:$0xff]
        %v619 = vld [vmem:[%s448 + $0x8d] sm:$0xff]
        %v620 = vld [vmem:[%s448 + $0xa5] sm:$0xff]
        %v621 = vld [vmem:[%s448 + $0xad] sm:$0xff]
        %v622 = vld [vmem:[%s448 + $0xc5] sm:$0xff]
        %v623 = vld [vmem:[%s448 + $0xcd] sm:$0xff]
        %v624 = vld [vmem:[%s448 + $0xe5] sm:$0xff]
        %v625 = vld [vmem:[%s448 + $0xed] sm:$0xff]
        %v626 = vld [vmem:[%s448 + $0x105] sm:$0xff]
        %v627 = vld [vmem:[%s448 + $0x10d] sm:$0xff]
        %v628 = vld [vmem:[%s448 + $0x125] sm:$0xff]
        %v629 = vld [vmem:[%s448 + $0x12d] sm:$0xff]
        %v630 = vld [vmem:[%s448 + $0x145] sm:$0xff]
        %v631 = vld [vmem:[%s448 + $0x14d] sm:$0xff]
        %v632 = vld [vmem:[%s448 + $0x165] sm:$0xff]
        %v633 = vld [vmem:[%s448 + $0x16d] sm:$0xff]
        %v634 = vld [vmem:[%s448 + $0x185] sm:$0xff]
        %v635 = vld [vmem:[%s448 + $0x18d] sm:$0xff]
        %v636 = vld [vmem:[%s448 + $0x1a5] sm:$0xff]
        %v637 = vld [vmem:[%s448 + $0x1ad] sm:$0xff]
        %v638 = vld [vmem:[%s448 + $0x1c5] sm:$0xff]
        %v639 = vld [vmem:[%s448 + $0x1cd] sm:$0xff]
        %v640 = vld [vmem:[%s448 + $0x1e5] sm:$0xff]
        %v641 = vld [vmem:[%s448 + $0x1ed] sm:$0xff]
        %v642 = vld [vmem:[%s448 + $0x6] sm:$0xff]
        %v643 = vld [vmem:[%s448 + $0xe] sm:$0xff]
        %v644 = vld [vmem:[%s448 + $0x26] sm:$0xff]
        %v645 = vld [vmem:[%s448 + $0x2e] sm:$0xff]
        %v646 = vld [vmem:[%s448 + $0x46] sm:$0xff]
        %v647 = vld [vmem:[%s448 + $0x4e] sm:$0xff]
        %v648 = vld [vmem:[%s448 + $0x66] sm:$0xff]
        %v649 = vld [vmem:[%s448 + $0x6e] sm:$0xff]
        %v650 = vld [vmem:[%s448 + $0x86] sm:$0xff]
        %v651 = vld [vmem:[%s448 + $0x8e] sm:$0xff]
        %v652 = vld [vmem:[%s448 + $0xa6] sm:$0xff]
        %v653 = vld [vmem:[%s448 + $0xae] sm:$0xff]
        %v654 = vld [vmem:[%s448 + $0xc6] sm:$0xff]
        %v655 = vld [vmem:[%s448 + $0xce] sm:$0xff]
        %v656 = vld [vmem:[%s448 + $0xe6] sm:$0xff]
        %v657 = vld [vmem:[%s448 + $0xee] sm:$0xff]
        %v658 = vld [vmem:[%s448 + $0x106] sm:$0xff]
        %v659 = vld [vmem:[%s448 + $0x10e] sm:$0xff]
        %v660 = vld [vmem:[%s448 + $0x126] sm:$0xff]
        %v661 = vld [vmem:[%s448 + $0x12e] sm:$0xff]
        %v662 = vld [vmem:[%s448 + $0x146] sm:$0xff]
        %v663 = vld [vmem:[%s448 + $0x14e] sm:$0xff]
        %v664 = vld [vmem:[%s448 + $0x166] sm:$0xff]
        %v665 = vld [vmem:[%s448 + $0x16e] sm:$0xff]
        %v666 = vld [vmem:[%s448 + $0x186] sm:$0xff]
        %v667 = vld [vmem:[%s448 + $0x18e] sm:$0xff]
        %v668 = vld [vmem:[%s448 + $0x1a6] sm:$0xff]
        %v669 = vld [vmem:[%s448 + $0x1ae] sm:$0xff]
        %v670 = vld [vmem:[%s448 + $0x1c6] sm:$0xff]
        %v671 = vld [vmem:[%s448 + $0x1ce] sm:$0xff]
        %v672 = vld [vmem:[%s448 + $0x1e6] sm:$0xff]
        %v673 = vld [vmem:[%s448 + $0x1ee] sm:$0xff]
        %s674 = scalar_lea.vmem [#allocation2], 192
        %v675 = vld [vmem:[%s674 + $0x4] sm:$0xff]
        %v676 = vld [vmem:[%s674 + $0xc] sm:$0xff]
        %v677 = vld [vmem:[%s674 + $0x24] sm:$0xff]
        %v678 = vld [vmem:[%s674 + $0x2c] sm:$0xff]
        %v679 = vld [vmem:[%s674 + $0x44] sm:$0xff]
        %v680 = vld [vmem:[%s674 + $0x4c] sm:$0xff]
        %v681 = vld [vmem:[%s674 + $0x64] sm:$0xff]
        %v682 = vld [vmem:[%s674 + $0x6c] sm:$0xff]
        %v683 = vld [vmem:[%s674 + $0x84] sm:$0xff]
        %v684 = vld [vmem:[%s674 + $0x8c] sm:$0xff]
        %v685 = vld [vmem:[%s674 + $0xa4] sm:$0xff]
        %v686 = vld [vmem:[%s674 + $0xac] sm:$0xff]
        %v687 = vld [vmem:[%s674 + $0xc4] sm:$0xff]
        %v688 = vld [vmem:[%s674 + $0xcc] sm:$0xff]
        %v689 = vld [vmem:[%s674 + $0xe4] sm:$0xff]
        %v690 = vld [vmem:[%s674 + $0xec] sm:$0xff]
        %v691 = vld [vmem:[%s674 + $0x104] sm:$0xff]
        %v692 = vld [vmem:[%s674 + $0x10c] sm:$0xff]
        %v693 = vld [vmem:[%s674 + $0x124] sm:$0xff]
        %v694 = vld [vmem:[%s674 + $0x12c] sm:$0xff]
        %v695 = vld [vmem:[%s674 + $0x144] sm:$0xff]
        %v696 = vld [vmem:[%s674 + $0x14c] sm:$0xff]
        %v697 = vld [vmem:[%s674 + $0x164] sm:$0xff]
        %v698 = vld [vmem:[%s674 + $0x16c] sm:$0xff]
        %v699 = vld [vmem:[%s674 + $0x184] sm:$0xff]
        %v700 = vld [vmem:[%s674 + $0x18c] sm:$0xff]
        %v701 = vld [vmem:[%s674 + $0x1a4] sm:$0xff]
        %v702 = vld [vmem:[%s674 + $0x1ac] sm:$0xff]
        %v703 = vld [vmem:[%s674 + $0x1c4] sm:$0xff]
        %v704 = vld [vmem:[%s674 + $0x1cc] sm:$0xff]
        %v705 = vld [vmem:[%s674 + $0x1e4] sm:$0xff]
        %v706 = vld [vmem:[%s674 + $0x1ec] sm:$0xff]
        %v707 = vld [vmem:[%s674 + $0x5] sm:$0xff]
        %v708 = vld [vmem:[%s674 + $0xd] sm:$0xff]
        %v709 = vld [vmem:[%s674 + $0x25] sm:$0xff]
        %v710 = vld [vmem:[%s674 + $0x2d] sm:$0xff]
        %v711 = vld [vmem:[%s674 + $0x45] sm:$0xff]
        %v712 = vld [vmem:[%s674 + $0x4d] sm:$0xff]
        %v713 = vld [vmem:[%s674 + $0x65] sm:$0xff]
        %v714 = vld [vmem:[%s674 + $0x6d] sm:$0xff]
        %v715 = vld [vmem:[%s674 + $0x85] sm:$0xff]
        %v716 = vld [vmem:[%s674 + $0x8d] sm:$0xff]
        %v717 = vld [vmem:[%s674 + $0xa5] sm:$0xff]
        %v718 = vld [vmem:[%s674 + $0xad] sm:$0xff]
        %v719 = vld [vmem:[%s674 + $0xc5] sm:$0xff]
        %v720 = vld [vmem:[%s674 + $0xcd] sm:$0xff]
        %v721 = vld [vmem:[%s674 + $0xe5] sm:$0xff]
        %v722 = vld [vmem:[%s674 + $0xed] sm:$0xff]
        %v723 = vld [vmem:[%s674 + $0x105] sm:$0xff]
        %v724 = vld [vmem:[%s674 + $0x10d] sm:$0xff]
        %v725 = vld [vmem:[%s674 + $0x125] sm:$0xff]
        %v726 = vld [vmem:[%s674 + $0x12d] sm:$0xff]
        %v727 = vld [vmem:[%s674 + $0x145] sm:$0xff]
        %v728 = vld [vmem:[%s674 + $0x14d] sm:$0xff]
        %v729 = vld [vmem:[%s674 + $0x165] sm:$0xff]
        %v730 = vld [vmem:[%s674 + $0x16d] sm:$0xff]
        %v731 = vld [vmem:[%s674 + $0x185] sm:$0xff]
        %v732 = vld [vmem:[%s674 + $0x18d] sm:$0xff]
        %v733 = vld [vmem:[%s674 + $0x1a5] sm:$0xff]
        %v734 = vld [vmem:[%s674 + $0x1ad] sm:$0xff]
        %v735 = vld [vmem:[%s674 + $0x1c5] sm:$0xff]
        %v736 = vld [vmem:[%s674 + $0x1cd] sm:$0xff]
        %v737 = vld [vmem:[%s674 + $0x1e5] sm:$0xff]
        %v738 = vld [vmem:[%s674 + $0x1ed] sm:$0xff]
        %v739 = vld [vmem:[%s674 + $0x6] sm:$0xff]
        %v740 = vld [vmem:[%s674 + $0xe] sm:$0xff]
        %v741 = vld [vmem:[%s674 + $0x26] sm:$0xff]
        %v742 = vld [vmem:[%s674 + $0x2e] sm:$0xff]
        %v743 = vld [vmem:[%s674 + $0x46] sm:$0xff]
        %v744 = vld [vmem:[%s674 + $0x4e] sm:$0xff]
        %v745 = vld [vmem:[%s674 + $0x66] sm:$0xff]
        %v746 = vld [vmem:[%s674 + $0x6e] sm:$0xff]
        %v747 = vld [vmem:[%s674 + $0x86] sm:$0xff]
        %v748 = vld [vmem:[%s674 + $0x8e] sm:$0xff]
        %v749 = vld [vmem:[%s674 + $0xa6] sm:$0xff]
        %v750 = vld [vmem:[%s674 + $0xae] sm:$0xff]
        %v751 = vld [vmem:[%s674 + $0xc6] sm:$0xff]
        %v752 = vld [vmem:[%s674 + $0xce] sm:$0xff]
        %v753 = vld [vmem:[%s674 + $0xe6] sm:$0xff]
        %v754 = vld [vmem:[%s674 + $0xee] sm:$0xff]
        %v755 = vld [vmem:[%s674 + $0x106] sm:$0xff]
        %v756 = vld [vmem:[%s674 + $0x10e] sm:$0xff]
        %v757 = vld [vmem:[%s674 + $0x126] sm:$0xff]
        %v758 = vld [vmem:[%s674 + $0x12e] sm:$0xff]
        %v759 = vld [vmem:[%s674 + $0x146] sm:$0xff]
        %v760 = vld [vmem:[%s674 + $0x14e] sm:$0xff]
        %v761 = vld [vmem:[%s674 + $0x166] sm:$0xff]
        %v762 = vld [vmem:[%s674 + $0x16e] sm:$0xff]
        %v763 = vld [vmem:[%s674 + $0x186] sm:$0xff]
        %v764 = vld [vmem:[%s674 + $0x18e] sm:$0xff]
        %v765 = vld [vmem:[%s674 + $0x1a6] sm:$0xff]
        %v766 = vld [vmem:[%s674 + $0x1ae] sm:$0xff]
        %v767 = vld [vmem:[%s674 + $0x1c6] sm:$0xff]
        %v768 = vld [vmem:[%s674 + $0x1ce] sm:$0xff]
        %v769 = vld [vmem:[%s674 + $0x1e6] sm:$0xff]
        %v770 = vld [vmem:[%s674 + $0x1ee] sm:$0xff]
        %803 = vrot.lane.b32.xlu0 %v514, 32
        %v804 = vpop.permute.xlu0 %803
        %805 = vrot.lane.b32.xlu0 %v515, 32
        %v806 = vpop.permute.xlu0 %805
        %807 = vrot.lane.b32.xlu0 %v516, 32
        %v808 = vpop.permute.xlu0 %807
        %809 = vrot.lane.b32.xlu0 %v517, 32
        %v810 = vpop.permute.xlu0 %809
        %811 = vrot.lane.b32.xlu0 %v518, 32
        %v812 = vpop.permute.xlu0 %811
        %813 = vrot.lane.b32.xlu0 %v519, 32
        %v814 = vpop.permute.xlu0 %813
        %815 = vrot.lane.b32.xlu0 %v520, 32
        %v816 = vpop.permute.xlu0 %815
        %817 = vrot.lane.b32.xlu0 %v521, 32
        %v818 = vpop.permute.xlu0 %817
        %819 = vrot.lane.b32.xlu0 %v522, 32
        %v820 = vpop.permute.xlu0 %819
        %821 = vrot.lane.b32.xlu0 %v523, 32
        %v822 = vpop.permute.xlu0 %821
        %823 = vrot.lane.b32.xlu0 %v524, 32
        %v824 = vpop.permute.xlu0 %823
        %825 = vrot.lane.b32.xlu0 %v525, 32
        %v826 = vpop.permute.xlu0 %825
        %827 = vrot.lane.b32.xlu0 %v526, 32
        %v828 = vpop.permute.xlu0 %827
        %829 = vrot.lane.b32.xlu0 %v527, 32
        %v830 = vpop.permute.xlu0 %829
        %831 = vrot.lane.b32.xlu0 %v528, 32
        %v832 = vpop.permute.xlu0 %831
        %833 = vrot.lane.b32.xlu0 %v529, 32
        %v834 = vpop.permute.xlu0 %833
        %835 = vrot.lane.b32.xlu0 %v530, 32
        %v836 = vpop.permute.xlu0 %835
        %837 = vrot.lane.b32.xlu0 %v531, 32
        %v838 = vpop.permute.xlu0 %837
        %839 = vrot.lane.b32.xlu0 %v532, 32
        %v840 = vpop.permute.xlu0 %839
        %841 = vrot.lane.b32.xlu0 %v533, 32
        %v842 = vpop.permute.xlu0 %841
        %843 = vrot.lane.b32.xlu0 %v534, 32
        %v844 = vpop.permute.xlu0 %843
        %845 = vrot.lane.b32.xlu0 %v535, 32
        %v846 = vpop.permute.xlu0 %845
        %847 = vrot.lane.b32.xlu0 %v536, 32
        %v848 = vpop.permute.xlu0 %847
        %849 = vrot.lane.b32.xlu0 %v537, 32
        %v850 = vpop.permute.xlu0 %849
        %851 = vrot.lane.b32.xlu0 %v538, 32
        %v852 = vpop.permute.xlu0 %851
        %853 = vrot.lane.b32.xlu0 %v539, 32
        %v854 = vpop.permute.xlu0 %853
        %855 = vrot.lane.b32.xlu0 %v540, 32
        %v856 = vpop.permute.xlu0 %855
        %857 = vrot.lane.b32.xlu0 %v541, 32
        %v858 = vpop.permute.xlu0 %857
        %859 = vrot.lane.b32.xlu0 %v542, 32
        %v860 = vpop.permute.xlu0 %859
        %861 = vrot.lane.b32.xlu0 %v543, 32
        %v862 = vpop.permute.xlu0 %861
        %863 = vrot.lane.b32.xlu0 %v544, 32
        %v864 = vpop.permute.xlu0 %863
        %865 = vrot.lane.b32.xlu0 %v545, 32
        %v866 = vpop.permute.xlu0 %865
        %931 = vrot.lane.b32.xlu0 %v546, 64
        %v932 = vpop.permute.xlu0 %931
        %933 = vrot.lane.b32.xlu0 %v547, 64
        %v934 = vpop.permute.xlu0 %933
        %935 = vrot.lane.b32.xlu0 %v548, 64
        %v936 = vpop.permute.xlu0 %935
        %937 = vrot.lane.b32.xlu0 %v549, 64
        %v938 = vpop.permute.xlu0 %937
        %939 = vrot.lane.b32.xlu0 %v550, 64
        %v940 = vpop.permute.xlu0 %939
        %941 = vrot.lane.b32.xlu0 %v551, 64
        %v942 = vpop.permute.xlu0 %941
        %943 = vrot.lane.b32.xlu0 %v552, 64
        %v944 = vpop.permute.xlu0 %943
        %945 = vrot.lane.b32.xlu0 %v553, 64
        %v946 = vpop.permute.xlu0 %945
        %947 = vrot.lane.b32.xlu0 %v554, 64
        %v948 = vpop.permute.xlu0 %947
        %949 = vrot.lane.b32.xlu0 %v555, 64
        %v950 = vpop.permute.xlu0 %949
        %951 = vrot.lane.b32.xlu0 %v556, 64
        %v952 = vpop.permute.xlu0 %951
        %953 = vrot.lane.b32.xlu0 %v557, 64
        %v954 = vpop.permute.xlu0 %953
        %955 = vrot.lane.b32.xlu0 %v558, 64
        %v956 = vpop.permute.xlu0 %955
        %957 = vrot.lane.b32.xlu0 %v559, 64
        %v958 = vpop.permute.xlu0 %957
        %959 = vrot.lane.b32.xlu0 %v560, 64
        %v960 = vpop.permute.xlu0 %959
        %961 = vrot.lane.b32.xlu0 %v561, 64
        %v962 = vpop.permute.xlu0 %961
        %963 = vrot.lane.b32.xlu0 %v562, 64
        %v964 = vpop.permute.xlu0 %963
        %965 = vrot.lane.b32.xlu0 %v563, 64
        %v966 = vpop.permute.xlu0 %965
        %967 = vrot.lane.b32.xlu0 %v564, 64
        %v968 = vpop.permute.xlu0 %967
        %969 = vrot.lane.b32.xlu0 %v565, 64
        %v970 = vpop.permute.xlu0 %969
        %971 = vrot.lane.b32.xlu0 %v566, 64
        %v972 = vpop.permute.xlu0 %971
        %973 = vrot.lane.b32.xlu0 %v567, 64
        %v974 = vpop.permute.xlu0 %973
        %975 = vrot.lane.b32.xlu0 %v568, 64
        %v976 = vpop.permute.xlu0 %975
        %977 = vrot.lane.b32.xlu0 %v569, 64
        %v978 = vpop.permute.xlu0 %977
        %979 = vrot.lane.b32.xlu0 %v570, 64
        %v980 = vpop.permute.xlu0 %979
        %981 = vrot.lane.b32.xlu0 %v571, 64
        %v982 = vpop.permute.xlu0 %981
        %983 = vrot.lane.b32.xlu0 %v572, 64
        %v984 = vpop.permute.xlu0 %983
        %985 = vrot.lane.b32.xlu0 %v573, 64
        %v986 = vpop.permute.xlu0 %985
        %987 = vrot.lane.b32.xlu0 %v574, 64
        %v988 = vpop.permute.xlu0 %987
        %989 = vrot.lane.b32.xlu0 %v575, 64
        %v990 = vpop.permute.xlu0 %989
        %991 = vrot.lane.b32.xlu0 %v576, 64
        %v992 = vpop.permute.xlu0 %991
        %993 = vrot.lane.b32.xlu0 %v577, 64
        %v994 = vpop.permute.xlu0 %993
        %1059 = vrot.lane.b32.xlu0 %v578, 96
        %v1060 = vpop.permute.xlu0 %1059
        %1061 = vrot.lane.b32.xlu0 %v579, 96
        %v1062 = vpop.permute.xlu0 %1061
        %1063 = vrot.lane.b32.xlu0 %v580, 96
        %v1064 = vpop.permute.xlu0 %1063
        %1065 = vrot.lane.b32.xlu0 %v581, 96
        %v1066 = vpop.permute.xlu0 %1065
        %1067 = vrot.lane.b32.xlu0 %v582, 96
        %v1068 = vpop.permute.xlu0 %1067
        %1069 = vrot.lane.b32.xlu0 %v583, 96
        %v1070 = vpop.permute.xlu0 %1069
        %1071 = vrot.lane.b32.xlu0 %v584, 96
        %v1072 = vpop.permute.xlu0 %1071
        %1073 = vrot.lane.b32.xlu0 %v585, 96
        %v1074 = vpop.permute.xlu0 %1073
        %1075 = vrot.lane.b32.xlu0 %v586, 96
        %v1076 = vpop.permute.xlu0 %1075
        %1077 = vrot.lane.b32.xlu0 %v587, 96
        %v1078 = vpop.permute.xlu0 %1077
        %1079 = vrot.lane.b32.xlu0 %v588, 96
        %v1080 = vpop.permute.xlu0 %1079
        %1081 = vrot.lane.b32.xlu0 %v589, 96
        %v1082 = vpop.permute.xlu0 %1081
        %1083 = vrot.lane.b32.xlu0 %v590, 96
        %v1084 = vpop.permute.xlu0 %1083
        %1085 = vrot.lane.b32.xlu0 %v591, 96
        %v1086 = vpop.permute.xlu0 %1085
        %1087 = vrot.lane.b32.xlu0 %v592, 96
        %v1088 = vpop.permute.xlu0 %1087
        %1089 = vrot.lane.b32.xlu0 %v593, 96
        %v1090 = vpop.permute.xlu0 %1089
        %1091 = vrot.lane.b32.xlu0 %v594, 96
        %v1092 = vpop.permute.xlu0 %1091
        %1093 = vrot.lane.b32.xlu0 %v595, 96
        %v1094 = vpop.permute.xlu0 %1093
        %1095 = vrot.lane.b32.xlu0 %v596, 96
        %v1096 = vpop.permute.xlu0 %1095
        %1097 = vrot.lane.b32.xlu0 %v597, 96
        %v1098 = vpop.permute.xlu0 %1097
        %1099 = vrot.lane.b32.xlu0 %v598, 96
        %v1100 = vpop.permute.xlu0 %1099
        %1101 = vrot.lane.b32.xlu0 %v599, 96
        %v1102 = vpop.permute.xlu0 %1101
        %1103 = vrot.lane.b32.xlu0 %v600, 96
        %v1104 = vpop.permute.xlu0 %1103
        %1105 = vrot.lane.b32.xlu0 %v601, 96
        %v1106 = vpop.permute.xlu0 %1105
        %1107 = vrot.lane.b32.xlu0 %v602, 96
        %v1108 = vpop.permute.xlu0 %1107
        %1109 = vrot.lane.b32.xlu0 %v603, 96
        %v1110 = vpop.permute.xlu0 %1109
        %1111 = vrot.lane.b32.xlu0 %v604, 96
        %v1112 = vpop.permute.xlu0 %1111
        %1113 = vrot.lane.b32.xlu0 %v605, 96
        %v1114 = vpop.permute.xlu0 %1113
        %1115 = vrot.lane.b32.xlu0 %v606, 96
        %v1116 = vpop.permute.xlu0 %1115
        %1117 = vrot.lane.b32.xlu0 %v607, 96
        %v1118 = vpop.permute.xlu0 %1117
        %1119 = vrot.lane.b32.xlu0 %v608, 96
        %v1120 = vpop.permute.xlu0 %1119
        %1121 = vrot.lane.b32.xlu0 %v609, 96
        %v1122 = vpop.permute.xlu0 %1121
        %1187 = vrot.lane.b32.xlu0 %v642, 32
        %v1188 = vpop.permute.xlu0 %1187
        %1189 = vrot.lane.b32.xlu0 %v643, 32
        %v1190 = vpop.permute.xlu0 %1189
        %1191 = vrot.lane.b32.xlu0 %v644, 32
        %v1192 = vpop.permute.xlu0 %1191
        %1193 = vrot.lane.b32.xlu0 %v645, 32
        %v1194 = vpop.permute.xlu0 %1193
        %1195 = vrot.lane.b32.xlu0 %v646, 32
        %v1196 = vpop.permute.xlu0 %1195
        %1197 = vrot.lane.b32.xlu0 %v647, 32
        %v1198 = vpop.permute.xlu0 %1197
        %1199 = vrot.lane.b32.xlu0 %v648, 32
        %v1200 = vpop.permute.xlu0 %1199
        %1201 = vrot.lane.b32.xlu0 %v649, 32
        %v1202 = vpop.permute.xlu0 %1201
        %1203 = vrot.lane.b32.xlu0 %v650, 32
        %v1204 = vpop.permute.xlu0 %1203
        %1205 = vrot.lane.b32.xlu0 %v651, 32
        %v1206 = vpop.permute.xlu0 %1205
        %1207 = vrot.lane.b32.xlu0 %v652, 32
        %v1208 = vpop.permute.xlu0 %1207
        %1209 = vrot.lane.b32.xlu0 %v653, 32
        %v1210 = vpop.permute.xlu0 %1209
        %1211 = vrot.lane.b32.xlu0 %v654, 32
        %v1212 = vpop.permute.xlu0 %1211
        %1213 = vrot.lane.b32.xlu0 %v655, 32
        %v1214 = vpop.permute.xlu0 %1213
        %1215 = vrot.lane.b32.xlu0 %v656, 32
        %v1216 = vpop.permute.xlu0 %1215
        %1217 = vrot.lane.b32.xlu0 %v657, 32
        %v1218 = vpop.permute.xlu0 %1217
        %1219 = vrot.lane.b32.xlu0 %v658, 32
        %v1220 = vpop.permute.xlu0 %1219
        %1221 = vrot.lane.b32.xlu0 %v659, 32
        %v1222 = vpop.permute.xlu0 %1221
        %1223 = vrot.lane.b32.xlu0 %v660, 32
        %v1224 = vpop.permute.xlu0 %1223
        %1225 = vrot.lane.b32.xlu0 %v661, 32
        %v1226 = vpop.permute.xlu0 %1225
        %1227 = vrot.lane.b32.xlu0 %v662, 32
        %v1228 = vpop.permute.xlu0 %1227
        %1229 = vrot.lane.b32.xlu0 %v663, 32
        %v1230 = vpop.permute.xlu0 %1229
        %1231 = vrot.lane.b32.xlu0 %v664, 32
        %v1232 = vpop.permute.xlu0 %1231
        %1233 = vrot.lane.b32.xlu0 %v665, 32
        %v1234 = vpop.permute.xlu0 %1233
        %1235 = vrot.lane.b32.xlu0 %v666, 32
        %v1236 = vpop.permute.xlu0 %1235
        %1237 = vrot.lane.b32.xlu0 %v667, 32
        %v1238 = vpop.permute.xlu0 %1237
        %1239 = vrot.lane.b32.xlu0 %v668, 32
        %v1240 = vpop.permute.xlu0 %1239
        %1241 = vrot.lane.b32.xlu0 %v669, 32
        %v1242 = vpop.permute.xlu0 %1241
        %1243 = vrot.lane.b32.xlu0 %v670, 32
        %v1244 = vpop.permute.xlu0 %1243
        %1245 = vrot.lane.b32.xlu0 %v671, 32
        %v1246 = vpop.permute.xlu0 %1245
        %1247 = vrot.lane.b32.xlu0 %v672, 32
        %v1248 = vpop.permute.xlu0 %1247
        %1249 = vrot.lane.b32.xlu0 %v673, 32
        %v1250 = vpop.permute.xlu0 %1249
        %1315 = vrot.lane.b32.xlu0 %v675, 64
        %v1316 = vpop.permute.xlu0 %1315
        %1317 = vrot.lane.b32.xlu0 %v676, 64
        %v1318 = vpop.permute.xlu0 %1317
        %1319 = vrot.lane.b32.xlu0 %v677, 64
        %v1320 = vpop.permute.xlu0 %1319
        %1321 = vrot.lane.b32.xlu0 %v678, 64
        %v1322 = vpop.permute.xlu0 %1321
        %1323 = vrot.lane.b32.xlu0 %v679, 64
        %v1324 = vpop.permute.xlu0 %1323
        %1325 = vrot.lane.b32.xlu0 %v680, 64
        %v1326 = vpop.permute.xlu0 %1325
        %1327 = vrot.lane.b32.xlu0 %v681, 64
        %v1328 = vpop.permute.xlu0 %1327
        %1329 = vrot.lane.b32.xlu0 %v682, 64
        %v1330 = vpop.permute.xlu0 %1329
        %1331 = vrot.lane.b32.xlu0 %v683, 64
        %v1332 = vpop.permute.xlu0 %1331
        %1333 = vrot.lane.b32.xlu0 %v684, 64
        %v1334 = vpop.permute.xlu0 %1333
        %1335 = vrot.lane.b32.xlu0 %v685, 64
        %v1336 = vpop.permute.xlu0 %1335
        %1337 = vrot.lane.b32.xlu0 %v686, 64
        %v1338 = vpop.permute.xlu0 %1337
        %1339 = vrot.lane.b32.xlu0 %v687, 64
        %v1340 = vpop.permute.xlu0 %1339
        %1341 = vrot.lane.b32.xlu0 %v688, 64
        %v1342 = vpop.permute.xlu0 %1341
        %1343 = vrot.lane.b32.xlu0 %v689, 64
        %v1344 = vpop.permute.xlu0 %1343
        %1345 = vrot.lane.b32.xlu0 %v690, 64
        %v1346 = vpop.permute.xlu0 %1345
        %1347 = vrot.lane.b32.xlu0 %v691, 64
        %v1348 = vpop.permute.xlu0 %1347
        %1349 = vrot.lane.b32.xlu0 %v692, 64
        %v1350 = vpop.permute.xlu0 %1349
        %1351 = vrot.lane.b32.xlu0 %v693, 64
        %v1352 = vpop.permute.xlu0 %1351
        %1353 = vrot.lane.b32.xlu0 %v694, 64
        %v1354 = vpop.permute.xlu0 %1353
        %1355 = vrot.lane.b32.xlu0 %v695, 64
        %v1356 = vpop.permute.xlu0 %1355
        %1357 = vrot.lane.b32.xlu0 %v696, 64
        %v1358 = vpop.permute.xlu0 %1357
        %1359 = vrot.lane.b32.xlu0 %v697, 64
        %v1360 = vpop.permute.xlu0 %1359
        %1361 = vrot.lane.b32.xlu0 %v698, 64
        %v1362 = vpop.permute.xlu0 %1361
        %1363 = vrot.lane.b32.xlu0 %v699, 64
        %v1364 = vpop.permute.xlu0 %1363
        %1365 = vrot.lane.b32.xlu0 %v700, 64
        %v1366 = vpop.permute.xlu0 %1365
        %1367 = vrot.lane.b32.xlu0 %v701, 64
        %v1368 = vpop.permute.xlu0 %1367
        %1369 = vrot.lane.b32.xlu0 %v702, 64
        %v1370 = vpop.permute.xlu0 %1369
        %1371 = vrot.lane.b32.xlu0 %v703, 64
        %v1372 = vpop.permute.xlu0 %1371
        %1373 = vrot.lane.b32.xlu0 %v704, 64
        %v1374 = vpop.permute.xlu0 %1373
        %1375 = vrot.lane.b32.xlu0 %v705, 64
        %v1376 = vpop.permute.xlu0 %1375
        %1377 = vrot.lane.b32.xlu0 %v706, 64
        %v1378 = vpop.permute.xlu0 %1377
        %1443 = vrot.lane.b32.xlu0 %v707, 96
        %v1444 = vpop.permute.xlu0 %1443
        %1445 = vrot.lane.b32.xlu0 %v708, 96
        %v1446 = vpop.permute.xlu0 %1445
        %1447 = vrot.lane.b32.xlu0 %v709, 96
        %v1448 = vpop.permute.xlu0 %1447
        %1449 = vrot.lane.b32.xlu0 %v710, 96
        %v1450 = vpop.permute.xlu0 %1449
        %1451 = vrot.lane.b32.xlu0 %v711, 96
        %v1452 = vpop.permute.xlu0 %1451
        %1453 = vrot.lane.b32.xlu0 %v712, 96
        %v1454 = vpop.permute.xlu0 %1453
        %1455 = vrot.lane.b32.xlu0 %v713, 96
        %v1456 = vpop.permute.xlu0 %1455
        %1457 = vrot.lane.b32.xlu0 %v714, 96
        %v1458 = vpop.permute.xlu0 %1457
        %1459 = vrot.lane.b32.xlu0 %v715, 96
        %v1460 = vpop.permute.xlu0 %1459
        %1461 = vrot.lane.b32.xlu0 %v716, 96
        %v1462 = vpop.permute.xlu0 %1461
        %1463 = vrot.lane.b32.xlu0 %v717, 96
        %v1464 = vpop.permute.xlu0 %1463
        %1465 = vrot.lane.b32.xlu0 %v718, 96
        %v1466 = vpop.permute.xlu0 %1465
        %1467 = vrot.lane.b32.xlu0 %v719, 96
        %v1468 = vpop.permute.xlu0 %1467
        %1469 = vrot.lane.b32.xlu0 %v720, 96
        %v1470 = vpop.permute.xlu0 %1469
        %1471 = vrot.lane.b32.xlu0 %v721, 96
        %v1472 = vpop.permute.xlu0 %1471
        %1473 = vrot.lane.b32.xlu0 %v722, 96
        %v1474 = vpop.permute.xlu0 %1473
        %1475 = vrot.lane.b32.xlu0 %v723, 96
        %v1476 = vpop.permute.xlu0 %1475
        %1477 = vrot.lane.b32.xlu0 %v724, 96
        %v1478 = vpop.permute.xlu0 %1477
        %1479 = vrot.lane.b32.xlu0 %v725, 96
        %v1480 = vpop.permute.xlu0 %1479
        %1481 = vrot.lane.b32.xlu0 %v726, 96
        %v1482 = vpop.permute.xlu0 %1481
        %1483 = vrot.lane.b32.xlu0 %v727, 96
        %v1484 = vpop.permute.xlu0 %1483
        %1485 = vrot.lane.b32.xlu0 %v728, 96
        %v1486 = vpop.permute.xlu0 %1485
        %1487 = vrot.lane.b32.xlu0 %v729, 96
        %v1488 = vpop.permute.xlu0 %1487
        %1489 = vrot.lane.b32.xlu0 %v730, 96
        %v1490 = vpop.permute.xlu0 %1489
        %1491 = vrot.lane.b32.xlu0 %v731, 96
        %v1492 = vpop.permute.xlu0 %1491
        %1493 = vrot.lane.b32.xlu0 %v732, 96
        %v1494 = vpop.permute.xlu0 %1493
        %1495 = vrot.lane.b32.xlu0 %v733, 96
        %v1496 = vpop.permute.xlu0 %1495
        %1497 = vrot.lane.b32.xlu0 %v734, 96
        %v1498 = vpop.permute.xlu0 %1497
        %1499 = vrot.lane.b32.xlu0 %v735, 96
        %v1500 = vpop.permute.xlu0 %1499
        %1501 = vrot.lane.b32.xlu0 %v736, 96
        %v1502 = vpop.permute.xlu0 %1501
        %1503 = vrot.lane.b32.xlu0 %v737, 96
        %v1504 = vpop.permute.xlu0 %1503
        %1505 = vrot.lane.b32.xlu0 %v738, 96
        %v1506 = vpop.permute.xlu0 %1505
        %v1539 = vsel %vm310, %v482, %v804
        %v1540 = vsel %vm310, %v483, %v806
        %v1541 = vsel %vm310, %v484, %v808
        %v1542 = vsel %vm310, %v485, %v810
        %v1543 = vsel %vm310, %v486, %v812
        %v1544 = vsel %vm310, %v487, %v814
        %v1545 = vsel %vm310, %v488, %v816
        %v1546 = vsel %vm310, %v489, %v818
        %v1547 = vsel %vm310, %v490, %v820
        %v1548 = vsel %vm310, %v491, %v822
        %v1549 = vsel %vm310, %v492, %v824
        %v1550 = vsel %vm310, %v493, %v826
        %v1551 = vsel %vm310, %v494, %v828
        %v1552 = vsel %vm310, %v495, %v830
        %v1553 = vsel %vm310, %v496, %v832
        %v1554 = vsel %vm310, %v497, %v834
        %v1555 = vsel %vm310, %v498, %v836
        %v1556 = vsel %vm310, %v499, %v838
        %v1557 = vsel %vm310, %v500, %v840
        %v1558 = vsel %vm310, %v501, %v842
        %v1559 = vsel %vm310, %v502, %v844
        %v1560 = vsel %vm310, %v503, %v846
        %v1561 = vsel %vm310, %v504, %v848
        %v1562 = vsel %vm310, %v505, %v850
        %v1563 = vsel %vm310, %v506, %v852
        %v1564 = vsel %vm310, %v507, %v854
        %v1565 = vsel %vm310, %v508, %v856
        %v1566 = vsel %vm310, %v509, %v858
        %v1567 = vsel %vm310, %v510, %v860
        %v1568 = vsel %vm310, %v511, %v862
        %v1569 = vsel %vm310, %v512, %v864
        %v1570 = vsel %vm310, %v513, %v866
        %vm1571 = vcmask 523264
        %v1572 = vsel %vm1571, %v1539, %v932
        %v1573 = vsel %vm1571, %v1540, %v934
        %v1574 = vsel %vm1571, %v1541, %v936
        %v1575 = vsel %vm1571, %v1542, %v938
        %v1576 = vsel %vm1571, %v1543, %v940
        %v1577 = vsel %vm1571, %v1544, %v942
        %v1578 = vsel %vm1571, %v1545, %v944
        %v1579 = vsel %vm1571, %v1546, %v946
        %v1580 = vsel %vm1571, %v1547, %v948
        %v1581 = vsel %vm1571, %v1548, %v950
        %v1582 = vsel %vm1571, %v1549, %v952
        %v1583 = vsel %vm1571, %v1550, %v954
        %v1584 = vsel %vm1571, %v1551, %v956
        %v1585 = vsel %vm1571, %v1552, %v958
        %v1586 = vsel %vm1571, %v1553, %v960
        %v1587 = vsel %vm1571, %v1554, %v962
        %v1588 = vsel %vm1571, %v1555, %v964
        %v1589 = vsel %vm1571, %v1556, %v966
        %v1590 = vsel %vm1571, %v1557, %v968
        %v1591 = vsel %vm1571, %v1558, %v970
        %v1592 = vsel %vm1571, %v1559, %v972
        %v1593 = vsel %vm1571, %v1560, %v974
        %v1594 = vsel %vm1571, %v1561, %v976
        %v1595 = vsel %vm1571, %v1562, %v978
        %v1596 = vsel %vm1571, %v1563, %v980
        %v1597 = vsel %vm1571, %v1564, %v982
        %v1598 = vsel %vm1571, %v1565, %v984
        %v1599 = vsel %vm1571, %v1566, %v986
        %v1600 = vsel %vm1571, %v1567, %v988
        %v1601 = vsel %vm1571, %v1568, %v990
        %v1602 = vsel %vm1571, %v1569, %v992
        %v1603 = vsel %vm1571, %v1570, %v994
        %vm1604 = vcmask 785408
        %v1605 = vsel %vm1604, %v1572, %v1060
        %v1606 = vsel %vm1604, %v1573, %v1062
        %v1607 = vsel %vm1604, %v1574, %v1064
        %v1608 = vsel %vm1604, %v1575, %v1066
        %v1609 = vsel %vm1604, %v1576, %v1068
        %v1610 = vsel %vm1604, %v1577, %v1070
        %v1611 = vsel %vm1604, %v1578, %v1072
        %v1612 = vsel %vm1604, %v1579, %v1074
        %v1613 = vsel %vm1604, %v1580, %v1076
        %v1614 = vsel %vm1604, %v1581, %v1078
        %v1615 = vsel %vm1604, %v1582, %v1080
        %v1616 = vsel %vm1604, %v1583, %v1082
        %v1617 = vsel %vm1604, %v1584, %v1084
        %v1618 = vsel %vm1604, %v1585, %v1086
        %v1619 = vsel %vm1604, %v1586, %v1088
        %v1620 = vsel %vm1604, %v1587, %v1090
        %v1621 = vsel %vm1604, %v1588, %v1092
        %v1622 = vsel %vm1604, %v1589, %v1094
        %v1623 = vsel %vm1604, %v1590, %v1096
        %v1624 = vsel %vm1604, %v1591, %v1098
        %v1625 = vsel %vm1604, %v1592, %v1100
        %v1626 = vsel %vm1604, %v1593, %v1102
        %v1627 = vsel %vm1604, %v1594, %v1104
        %v1628 = vsel %vm1604, %v1595, %v1106
        %v1629 = vsel %vm1604, %v1596, %v1108
        %v1630 = vsel %vm1604, %v1597, %v1110
        %v1631 = vsel %vm1604, %v1598, %v1112
        %v1632 = vsel %vm1604, %v1599, %v1114
        %v1633 = vsel %vm1604, %v1600, %v1116
        %v1634 = vsel %vm1604, %v1601, %v1118
        %v1635 = vsel %vm1604, %v1602, %v1120
        %v1636 = vsel %vm1604, %v1603, %v1122
        %v1637 = vsel %vm310, %v610, %v1188
        %v1638 = vsel %vm310, %v611, %v1190
        %v1639 = vsel %vm310, %v612, %v1192
        %v1640 = vsel %vm310, %v613, %v1194
        %v1641 = vsel %vm310, %v614, %v1196
        %v1642 = vsel %vm310, %v615, %v1198
        %v1643 = vsel %vm310, %v616, %v1200
        %v1644 = vsel %vm310, %v617, %v1202
        %v1645 = vsel %vm310, %v618, %v1204
        %v1646 = vsel %vm310, %v619, %v1206
        %v1647 = vsel %vm310, %v620, %v1208
        %v1648 = vsel %vm310, %v621, %v1210
        %v1649 = vsel %vm310, %v622, %v1212
        %v1650 = vsel %vm310, %v623, %v1214
        %v1651 = vsel %vm310, %v624, %v1216
        %v1652 = vsel %vm310, %v625, %v1218
        %v1653 = vsel %vm310, %v626, %v1220
        %v1654 = vsel %vm310, %v627, %v1222
        %v1655 = vsel %vm310, %v628, %v1224
        %v1656 = vsel %vm310, %v629, %v1226
        %v1657 = vsel %vm310, %v630, %v1228
        %v1658 = vsel %vm310, %v631, %v1230
        %v1659 = vsel %vm310, %v632, %v1232
        %v1660 = vsel %vm310, %v633, %v1234
        %v1661 = vsel %vm310, %v634, %v1236
        %v1662 = vsel %vm310, %v635, %v1238
        %v1663 = vsel %vm310, %v636, %v1240
        %v1664 = vsel %vm310, %v637, %v1242
        %v1665 = vsel %vm310, %v638, %v1244
        %v1666 = vsel %vm310, %v639, %v1246
        %v1667 = vsel %vm310, %v640, %v1248
        %v1668 = vsel %vm310, %v641, %v1250
        %v1669 = vsel %vm1571, %v1637, %v1316
        %v1670 = vsel %vm1571, %v1638, %v1318
        %v1671 = vsel %vm1571, %v1639, %v1320
        %v1672 = vsel %vm1571, %v1640, %v1322
        %v1673 = vsel %vm1571, %v1641, %v1324
        %v1674 = vsel %vm1571, %v1642, %v1326
        %v1675 = vsel %vm1571, %v1643, %v1328
        %v1676 = vsel %vm1571, %v1644, %v1330
        %v1677 = vsel %vm1571, %v1645, %v1332
        %v1678 = vsel %vm1571, %v1646, %v1334
        %v1679 = vsel %vm1571, %v1647, %v1336
        %v1680 = vsel %vm1571, %v1648, %v1338
        %v1681 = vsel %vm1571, %v1649, %v1340
        %v1682 = vsel %vm1571, %v1650, %v1342
        %v1683 = vsel %vm1571, %v1651, %v1344
        %v1684 = vsel %vm1571, %v1652, %v1346
        %v1685 = vsel %vm1571, %v1653, %v1348
        %v1686 = vsel %vm1571, %v1654, %v1350
        %v1687 = vsel %vm1571, %v1655, %v1352
        %v1688 = vsel %vm1571, %v1656, %v1354
        %v1689 = vsel %vm1571, %v1657, %v1356
        %v1690 = vsel %vm1571, %v1658, %v1358
        %v1691 = vsel %vm1571, %v1659, %v1360
        %v1692 = vsel %vm1571, %v1660, %v1362
        %v1693 = vsel %vm1571, %v1661, %v1364
        %v1694 = vsel %vm1571, %v1662, %v1366
        %v1695 = vsel %vm1571, %v1663, %v1368
        %v1696 = vsel %vm1571, %v1664, %v1370
        %v1697 = vsel %vm1571, %v1665, %v1372
        %v1698 = vsel %vm1571, %v1666, %v1374
        %v1699 = vsel %vm1571, %v1667, %v1376
        %v1700 = vsel %vm1571, %v1668, %v1378
        %v1701 = vsel %vm1604, %v1669, %v1444
        %v1702 = vsel %vm1604, %v1670, %v1446
        %v1703 = vsel %vm1604, %v1671, %v1448
        %v1704 = vsel %vm1604, %v1672, %v1450
        %v1705 = vsel %vm1604, %v1673, %v1452
        %v1706 = vsel %vm1604, %v1674, %v1454
        %v1707 = vsel %vm1604, %v1675, %v1456
        %v1708 = vsel %vm1604, %v1676, %v1458
        %v1709 = vsel %vm1604, %v1677, %v1460
        %v1710 = vsel %vm1604, %v1678, %v1462
        %v1711 = vsel %vm1604, %v1679, %v1464
        %v1712 = vsel %vm1604, %v1680, %v1466
        %v1713 = vsel %vm1604, %v1681, %v1468
        %v1714 = vsel %vm1604, %v1682, %v1470
        %v1715 = vsel %vm1604, %v1683, %v1472
        %v1716 = vsel %vm1604, %v1684, %v1474
        %v1717 = vsel %vm1604, %v1685, %v1476
        %v1718 = vsel %vm1604, %v1686, %v1478
        %v1719 = vsel %vm1604, %v1687, %v1480
        %v1720 = vsel %vm1604, %v1688, %v1482
        %v1721 = vsel %vm1604, %v1689, %v1484
        %v1722 = vsel %vm1604, %v1690, %v1486
        %v1723 = vsel %vm1604, %v1691, %v1488
        %v1724 = vsel %vm1604, %v1692, %v1490
        %v1725 = vsel %vm1604, %v1693, %v1492
        %v1726 = vsel %vm1604, %v1694, %v1494
        %v1727 = vsel %vm1604, %v1695, %v1496
        %v1728 = vsel %vm1604, %v1696, %v1498
        %v1729 = vsel %vm1604, %v1697, %v1500
        %v1730 = vsel %vm1604, %v1698, %v1502
        %v1731 = vsel %vm1604, %v1699, %v1504
        %v1732 = vsel %vm1604, %v1700, %v1506
        %v1733 = vld [vmem:[#allocation6] sm:$0xff]
        %v1734 = vld [vmem:[#allocation6 + $0x8] sm:$0xff]
        %v1735 = vld [vmem:[#allocation6 + $0x10] sm:$0xff]
        %v1736 = vld [vmem:[#allocation6 + $0x18] sm:$0xff]
        %v1737 = vld [vmem:[#allocation6 + $0x20] sm:$0xff]
        %v1738 = vld [vmem:[#allocation6 + $0x28] sm:$0xff]
        %v1739 = vld [vmem:[#allocation6 + $0x30] sm:$0xff]
        %v1740 = vld [vmem:[#allocation6 + $0x38] sm:$0xff]
        %v1741 = vld [vmem:[#allocation6 + $0x40] sm:$0xff]
        %v1742 = vld [vmem:[#allocation6 + $0x48] sm:$0xff]
        %v1743 = vld [vmem:[#allocation6 + $0x50] sm:$0xff]
        %v1744 = vld [vmem:[#allocation6 + $0x58] sm:$0xff]
        %v1745 = vld [vmem:[#allocation6 + $0x60] sm:$0xff]
        %v1746 = vld [vmem:[#allocation6 + $0x68] sm:$0xff]
        %v1747 = vld [vmem:[#allocation6 + $0x70] sm:$0xff]
        %v1748 = vld [vmem:[#allocation6 + $0x78] sm:$0xff]
        %v1749 = vld [vmem:[#allocation6 + $0x80] sm:$0xff]
        %v1750 = vld [vmem:[#allocation6 + $0x88] sm:$0xff]
        %v1751 = vld [vmem:[#allocation6 + $0x90] sm:$0xff]
        %v1752 = vld [vmem:[#allocation6 + $0x98] sm:$0xff]
        %v1753 = vld [vmem:[#allocation6 + $0xa0] sm:$0xff]
        %v1754 = vld [vmem:[#allocation6 + $0xa8] sm:$0xff]
        %v1755 = vld [vmem:[#allocation6 + $0xb0] sm:$0xff]
        %v1756 = vld [vmem:[#allocation6 + $0xb8] sm:$0xff]
        %v1757 = vld [vmem:[#allocation6 + $0xc0] sm:$0xff]
        %v1758 = vld [vmem:[#allocation6 + $0xc8] sm:$0xff]
        %v1759 = vld [vmem:[#allocation6 + $0xd0] sm:$0xff]
        %v1760 = vld [vmem:[#allocation6 + $0xd8] sm:$0xff]
        %v1761 = vld [vmem:[#allocation6 + $0xe0] sm:$0xff]
        %v1762 = vld [vmem:[#allocation6 + $0xe8] sm:$0xff]
        %v1763 = vld [vmem:[#allocation6 + $0xf0] sm:$0xff]
        %v1764 = vld [vmem:[#allocation6 + $0xf8] sm:$0xff]
        %v1765 = vld [vmem:[#allocation6 + $0x100] sm:$0xff]
        %v1766 = vld [vmem:[#allocation6 + $0x108] sm:$0xff]
        %v1767 = vld [vmem:[#allocation6 + $0x110] sm:$0xff]
        %v1768 = vld [vmem:[#allocation6 + $0x118] sm:$0xff]
        %v1770 = vsel %vm310, %v739, 0
        %v1773 = vsel %vm310, %v740, 0
        %v1776 = vsel %vm310, %v741, 0
        %v1779 = vsel %vm310, %v742, 0
        %v1782 = vsel %vm310, %v743, 0
        %v1785 = vsel %vm310, %v744, 0
        %v1788 = vsel %vm310, %v745, 0
        %v1791 = vsel %vm310, %v746, 0
        %v1794 = vsel %vm310, %v747, 0
        %v1797 = vsel %vm310, %v748, 0
        %v1800 = vsel %vm310, %v749, 0
        %v1803 = vsel %vm310, %v750, 0
        %v1806 = vsel %vm310, %v751, 0
        %v1809 = vsel %vm310, %v752, 0
        %v1812 = vsel %vm310, %v753, 0
        %v1815 = vsel %vm310, %v754, 0
        %v1818 = vsel %vm310, %v755, 0
        %v1821 = vsel %vm310, %v756, 0
        %v1824 = vsel %vm310, %v757, 0
        %v1827 = vsel %vm310, %v758, 0
        %v1830 = vsel %vm310, %v759, 0
        %v1833 = vsel %vm310, %v760, 0
        %v1836 = vsel %vm310, %v761, 0
        %v1839 = vsel %vm310, %v762, 0
        %v1842 = vsel %vm310, %v763, 0
        %v1845 = vsel %vm310, %v764, 0
        %v1848 = vsel %vm310, %v765, 0
        %v1851 = vsel %vm310, %v766, 0
        %v1854 = vsel %vm310, %v767, 0
        %v1857 = vsel %vm310, %v768, 0
        %v1860 = vsel %vm310, %v769, 0
        %v1863 = vsel %vm310, %v770, 0
        %1865 = vmatprep.subr.mxu0 0.0
        %1866 = vmatpush1.msra.mxu0 %v1733
        %1867 = vmatprep.subr.mxu0 0.0
        %1868 = vmatpush1.msra.mxu0 %v1734
        %1869 = vmatprep.subr.mxu0 0.0
        %1870 = vmatpush1.msra.mxu0 %v1735
        %1871 = vmatprep.subr.mxu0 0.0
        %1872 = vmatpush1.msra.mxu0 %v1736
        %1873 = vmatprep.subr.mxu0 0.0
        %1874 = vmatpush1.msra.mxu0 %v1737
        %1875 = vmatprep.subr.mxu0 0.0
        %1876 = vmatpush1.msra.mxu0 %v1738
        %1877 = vmatprep.subr.mxu0 0.0
        %1878 = vmatpush1.msra.mxu0 %v1739
        %1879 = vmatprep.subr.mxu0 0.0
        %1880 = vmatpush1.msra.mxu0 %v1740
        %1881 = vmatprep.subr.mxu0 0.0
        %1882 = vmatpush1.msra.mxu0 %v1741
        %1883 = vmatprep.subr.mxu0 0.0
        %1884 = vmatpush1.msra.mxu0 %v1742
        %1885 = vmatprep.subr.mxu0 0.0
        %1886 = vmatpush1.msra.mxu0 %v1743
        %1887 = vmatprep.subr.mxu0 0.0
        %1888 = vmatpush1.msra.mxu0 %v1744
        %1889 = vmatprep.subr.mxu0 0.0
        %1890 = vmatpush1.msra.mxu0 %v1745
        %1891 = vmatprep.subr.mxu0 0.0
        %1892 = vmatpush1.msra.mxu0 %v1746
        %1893 = vmatprep.subr.mxu0 0.0
        %1894 = vmatpush1.msra.mxu0 %v1747
        %1895 = vmatprep.subr.mxu0 0.0
        %1896 = vmatpush1.msra.mxu0 %v1748
        %1897 = vmatprep.subr.mxu0 0.0
        %1898 = vmatpush1.msra.mxu0 %v1749
        %1899 = vmatprep.subr.mxu0 0.0
        %1900 = vmatpush1.msra.mxu0 %v1750
        %1901 = vmatprep.subr.mxu0 0.0
        %1902 = vmatpush1.msra.mxu0 %v1751
        %1903 = vmatprep.subr.mxu0 0.0
        %1904 = vmatpush1.msra.mxu0 %v1752
        %1905 = vmatprep.subr.mxu0 0.0
        %1906 = vmatpush1.msra.mxu0 %v1753
        %1907 = vmatprep.subr.mxu0 0.0
        %1908 = vmatpush1.msra.mxu0 %v1754
        %1909 = vmatprep.subr.mxu0 0.0
        %1910 = vmatpush1.msra.mxu0 %v1755
        %1911 = vmatprep.subr.mxu0 0.0
        %1912 = vmatpush1.msra.mxu0 %v1756
        %1913 = vmatprep.subr.mxu0 0.0
        %1914 = vmatpush1.msra.mxu0 %v1757
        %1915 = vmatprep.subr.mxu0 0.0
        %1916 = vmatpush1.msra.mxu0 %v1758
        %1917 = vmatprep.subr.mxu0 0.0
        %1918 = vmatpush1.msra.mxu0 %v1759
        %1919 = vmatprep.subr.mxu0 0.0
        %1920 = vmatpush1.msra.mxu0 %v1760
        %1921 = vmatprep.subr.mxu0 0.0
        %1922 = vmatpush1.msra.mxu0 %v1761
        %1923 = vmatprep.subr.mxu0 0.0
        %1924 = vmatpush1.msra.mxu0 %v1762
        %1925 = vmatprep.subr.mxu0 0.0
        %1926 = vmatpush1.msra.mxu0 %v1763
        %1927 = vmatprep.subr.mxu0 0.0
        %1928 = vmatpush1.msra.mxu0 %v1764
        %1929 = vmatprep.mubr.f32.mxu0 %v1701
        %1930 = vmatmul.mubr.f32.gmra.mrb[0].mxu0 %v1605
        %v1931 = vpop.f32.mrb[0].mxu0
        %v1932 = vadd.f32 0.0, %v1931
        %v1933 = vpop.f32.mrb[0].mxu0
        %1934 = vmatprep.mubr.f32.mxu0 %v1702
        %1935 = vmatmul.mubr.f32.gmra.mrb[0].mxu0 %v1606
        %v1936 = vpop.f32.mrb[0].mxu0
        %v1937 = vadd.f32 0.0, %v1936
        %v1938 = vpop.f32.mrb[0].mxu0
        %1939 = vmatprep.mubr.f32.mxu0 %v1703
        %1940 = vmatmul.mubr.f32.gmra.mrb[0].mxu0 %v1607
        %v1941 = vpop.f32.mrb[0].mxu0
        %v1942 = vadd.f32 0.0, %v1941
        %v1943 = vpop.f32.mrb[0].mxu0
        %1944 = vmatprep.mubr.f32.mxu0 %v1704
        %1945 = vmatmul.mubr.f32.gmra.mrb[0].mxu0 %v1608
        %v1946 = vpop.f32.mrb[0].mxu0
        %v1947 = vadd.f32 0.0, %v1946
        %v1948 = vpop.f32.mrb[0].mxu0
        %1949 = vmatprep.mubr.f32.mxu0 %v1705
        %1950 = vmatmul.mubr.f32.gmra.mrb[0].mxu0 %v1609
        %v1951 = vpop.f32.mrb[0].mxu0
        %v1952 = vadd.f32 0.0, %v1951
        %v1953 = vpop.f32.mrb[0].mxu0
        %1954 = vmatprep.mubr.f32.mxu0 %v1706
        %1955 = vmatmul.mubr.f32.gmra.mrb[0].mxu0 %v1610
        %v1956 = vpop.f32.mrb[0].mxu0
        %v1957 = vadd.f32 0.0, %v1956
        %v1958 = vpop.f32.mrb[0].mxu0
        %1959 = vmatprep.mubr.f32.mxu0 %v1707
        %1960 = vmatmul.mubr.f32.gmra.mrb[0].mxu0 %v1611
        %v1961 = vpop.f32.mrb[0].mxu0
        %v1962 = vadd.f32 0.0, %v1961
        %v1963 = vpop.f32.mrb[0].mxu0
        %1964 = vmatprep.mubr.f32.mxu0 %v1708
        %1965 = vmatmul.mubr.f32.gmra.mrb[0].mxu0 %v1612
        %v1966 = vpop.f32.mrb[0].mxu0
        %v1967 = vadd.f32 0.0, %v1966
        %v1968 = vpop.f32.mrb[0].mxu0
        %1969 = vmatprep.mubr.f32.mxu0 %v1709
        %1970 = vmatmul.mubr.f32.gmra.mrb[0].mxu0 %v1613
        %v1971 = vpop.f32.mrb[0].mxu0
        %v1972 = vadd.f32 0.0, %v1971
        %v1973 = vpop.f32.mrb[0].mxu0
        %1974 = vmatprep.mubr.f32.mxu0 %v1710
        %1975 = vmatmul.mubr.f32.gmra.mrb[0].mxu0 %v1614
        %v1976 = vpop.f32.mrb[0].mxu0
        %v1977 = vadd.f32 0.0, %v1976
        %v1978 = vpop.f32.mrb[0].mxu0
        %1979 = vmatprep.mubr.f32.mxu0 %v1711
        %1980 = vmatmul.mubr.f32.gmra.mrb[0].mxu0 %v1615
        %v1981 = vpop.f32.mrb[0].mxu0
        %v1982 = vadd.f32 0.0, %v1981
        %v1983 = vpop.f32.mrb[0].mxu0
        %1984 = vmatprep.mubr.f32.mxu0 %v1712
        %1985 = vmatmul.mubr.f32.gmra.mrb[0].mxu0 %v1616
        %v1986 = vpop.f32.mrb[0].mxu0
        %v1987 = vadd.f32 0.0, %v1986
        %v1988 = vpop.f32.mrb[0].mxu0
        %1989 = vmatprep.mubr.f32.mxu0 %v1713
        %1990 = vmatmul.mubr.f32.gmra.mrb[0].mxu0 %v1617
        %v1991 = vpop.f32.mrb[0].mxu0
        %v1992 = vadd.f32 0.0, %v1991
        %v1993 = vpop.f32.mrb[0].mxu0
        %1994 = vmatprep.mubr.f32.mxu0 %v1714
        %1995 = vmatmul.mubr.f32.gmra.mrb[0].mxu0 %v1618
        %v1996 = vpop.f32.mrb[0].mxu0
        %v1997 = vadd.f32 0.0, %v1996
        %v1998 = vpop.f32.mrb[0].mxu0
        %1999 = vmatprep.mubr.f32.mxu0 %v1715
        %2000 = vmatmul.mubr.f32.gmra.mrb[0].mxu0 %v1619
        %v2001 = vpop.f32.mrb[0].mxu0
        %v2002 = vadd.f32 0.0, %v2001
        %v2003 = vpop.f32.mrb[0].mxu0
        %2004 = vmatprep.mubr.f32.mxu0 %v1716
        %2005 = vmatmul.mubr.f32.gmra.mrb[0].mxu0 %v1620
        %v2006 = vpop.f32.mrb[0].mxu0
        %v2007 = vadd.f32 0.0, %v2006
        %v2008 = vpop.f32.mrb[0].mxu0
        %2009 = vmatprep.mubr.f32.mxu0 %v1717
        %2010 = vmatmul.mubr.f32.gmra.mrb[0].mxu0 %v1621
        %v2011 = vpop.f32.mrb[0].mxu0
        %v2012 = vadd.f32 0.0, %v2011
        %v2013 = vpop.f32.mrb[0].mxu0
        %2014 = vmatprep.mubr.f32.mxu0 %v1718
        %2015 = vmatmul.mubr.f32.gmra.mrb[0].mxu0 %v1622
        %v2016 = vpop.f32.mrb[0].mxu0
        %v2017 = vadd.f32 0.0, %v2016
        %v2018 = vpop.f32.mrb[0].mxu0
        %2019 = vmatprep.mubr.f32.mxu0 %v1719
        %2020 = vmatmul.mubr.f32.gmra.mrb[0].mxu0 %v1623
        %v2021 = vpop.f32.mrb[0].mxu0
        %v2022 = vadd.f32 0.0, %v2021
        %v2023 = vpop.f32.mrb[0].mxu0
        %2024 = vmatprep.mubr.f32.mxu0 %v1720
        %2025 = vmatmul.mubr.f32.gmra.mrb[0].mxu0 %v1624
        %v2026 = vpop.f32.mrb[0].mxu0
        %v2027 = vadd.f32 0.0, %v2026
        %v2028 = vpop.f32.mrb[0].mxu0
        %2029 = vmatprep.mubr.f32.mxu0 %v1721
        %2030 = vmatmul.mubr.f32.gmra.mrb[0].mxu0 %v1625
        %v2031 = vpop.f32.mrb[0].mxu0
        %v2032 = vadd.f32 0.0, %v2031
        %v2033 = vpop.f32.mrb[0].mxu0
        %2034 = vmatprep.mubr.f32.mxu0 %v1722
        %2035 = vmatmul.mubr.f32.gmra.mrb[0].mxu0 %v1626
        %v2036 = vpop.f32.mrb[0].mxu0
        %v2037 = vadd.f32 0.0, %v2036
        %v2038 = vpop.f32.mrb[0].mxu0
        %2039 = vmatprep.mubr.f32.mxu0 %v1723
        %2040 = vmatmul.mubr.f32.gmra.mrb[0].mxu0 %v1627
        %v2041 = vpop.f32.mrb[0].mxu0
        %v2042 = vadd.f32 0.0, %v2041
        %v2043 = vpop.f32.mrb[0].mxu0
        %2044 = vmatprep.mubr.f32.mxu0 %v1724
        %2045 = vmatmul.mubr.f32.gmra.mrb[0].mxu0 %v1628
        %v2046 = vpop.f32.mrb[0].mxu0
        %v2047 = vadd.f32 0.0, %v2046
        %v2048 = vpop.f32.mrb[0].mxu0
        %2049 = vmatprep.mubr.f32.mxu0 %v1725
        %2050 = vmatmul.mubr.f32.gmra.mrb[0].mxu0 %v1629
        %v2051 = vpop.f32.mrb[0].mxu0
        %v2052 = vadd.f32 0.0, %v2051
        %v2053 = vpop.f32.mrb[0].mxu0
        %2054 = vmatprep.mubr.f32.mxu0 %v1726
        %2055 = vmatmul.mubr.f32.gmra.mrb[0].mxu0 %v1630
        %v2056 = vpop.f32.mrb[0].mxu0
        %v2057 = vadd.f32 0.0, %v2056
        %v2058 = vpop.f32.mrb[0].mxu0
        %2059 = vmatprep.mubr.f32.mxu0 %v1727
        %2060 = vmatmul.mubr.f32.gmra.mrb[0].mxu0 %v1631
        %v2061 = vpop.f32.mrb[0].mxu0
        %v2062 = vadd.f32 0.0, %v2061
        %v2063 = vpop.f32.mrb[0].mxu0
        %2064 = vmatprep.mubr.f32.mxu0 %v1728
        %2065 = vmatmul.mubr.f32.gmra.mrb[0].mxu0 %v1632
        %v2066 = vpop.f32.mrb[0].mxu0
        %v2067 = vadd.f32 0.0, %v2066
        %v2068 = vpop.f32.mrb[0].mxu0
        %2069 = vmatprep.mubr.f32.mxu0 %v1729
        %2070 = vmatmul.mubr.f32.gmra.mrb[0].mxu0 %v1633
        %v2071 = vpop.f32.mrb[0].mxu0
        %v2072 = vadd.f32 0.0, %v2071
        %v2073 = vpop.f32.mrb[0].mxu0
        %2074 = vmatprep.mubr.f32.mxu0 %v1730
        %2075 = vmatmul.mubr.f32.gmra.mrb[0].mxu0 %v1634
        %v2076 = vpop.f32.mrb[0].mxu0
        %v2077 = vadd.f32 0.0, %v2076
        %v2078 = vpop.f32.mrb[0].mxu0
        %2079 = vmatprep.mubr.f32.mxu0 %v1731
        %2080 = vmatmul.mubr.f32.gmra.mrb[0].mxu0 %v1635
        %v2081 = vpop.f32.mrb[0].mxu0
        %v2082 = vadd.f32 0.0, %v2081
        %v2083 = vpop.f32.mrb[0].mxu0
        %2084 = vmatprep.mubr.f32.mxu0 %v1732
        %2085 = vmatmul.mubr.f32.gmra.mrb[0].mxu0 %v1636
        %v2086 = vpop.f32.mrb[0].mxu0
        %v2087 = vadd.f32 0.0, %v2086
        %v2088 = vpop.f32.mrb[0].mxu0
        %2089 = vdwg.mxu0
        %2090 = vmatprep.subr.mxu0 0.0
        %2091 = vmatpush1.msra.mxu0 %v1765
        %2092 = vmatprep.subr.mxu0 0.0
        %2093 = vmatpush1.msra.mxu0 %v1766
        %2094 = vmatprep.subr.mxu0 0.0
        %2095 = vmatpush1.msra.mxu0 %v1767
        %2096 = vmatprep.subr.mxu0 0.0
        %2097 = vmatpush1.msra.mxu0 %v1768
        %2098 = vmatprep.subr.mxu0 0.0
        %2099 = vmatpush1.msra.mxu0 0.0
        %2100 = vmatprep.subr.mxu0 0.0
        %2101 = vmatpush1.msra.mxu0 0.0
        %2102 = vmatprep.subr.mxu0 0.0
        %2103 = vmatpush1.msra.mxu0 0.0
        %2104 = vmatprep.subr.mxu0 0.0
        %2105 = vmatpush1.msra.mxu0 0.0
        %2106 = vmatprep.subr.mxu0 0.0
        %2107 = vmatpush1.msra.mxu0 0.0
        %2108 = vmatprep.subr.mxu0 0.0
        %2109 = vmatpush1.msra.mxu0 0.0
        %2110 = vmatprep.subr.mxu0 0.0
        %2111 = vmatpush1.msra.mxu0 0.0
        %2112 = vmatprep.subr.mxu0 0.0
        %2113 = vmatpush1.msra.mxu0 0.0
        %2114 = vmatprep.subr.mxu0 0.0
        %2115 = vmatpush1.msra.mxu0 0.0
        %2116 = vmatprep.subr.mxu0 0.0
        %2117 = vmatpush1.msra.mxu0 0.0
        %2118 = vmatprep.subr.mxu0 0.0
        %2119 = vmatpush1.msra.mxu0 0.0
        %2120 = vmatprep.subr.mxu0 0.0
        %2121 = vmatpush1.msra.mxu0 0.0
        %2122 = vmatprep.subr.mxu0 0.0
        %2123 = vmatpush1.msra.mxu0 0.0
        %2124 = vmatprep.subr.mxu0 0.0
        %2125 = vmatpush1.msra.mxu0 0.0
        %2126 = vmatprep.subr.mxu0 0.0
        %2127 = vmatpush1.msra.mxu0 0.0
        %2128 = vmatprep.subr.mxu0 0.0
        %2129 = vmatpush1.msra.mxu0 0.0
        %2130 = vmatprep.subr.mxu0 0.0
        %2131 = vmatpush1.msra.mxu0 0.0
        %2132 = vmatprep.subr.mxu0 0.0
        %2133 = vmatpush1.msra.mxu0 0.0
        %2134 = vmatprep.subr.mxu0 0.0
        %2135 = vmatpush1.msra.mxu0 0.0
        %2136 = vmatprep.subr.mxu0 0.0
        %2137 = vmatpush1.msra.mxu0 0.0
        %2138 = vmatprep.subr.mxu0 0.0
        %2139 = vmatpush1.msra.mxu0 0.0
        %2140 = vmatprep.subr.mxu0 0.0
        %2141 = vmatpush1.msra.mxu0 0.0
        %2142 = vmatprep.subr.mxu0 0.0
        %2143 = vmatpush1.msra.mxu0 0.0
        %2144 = vmatprep.subr.mxu0 0.0
        %2145 = vmatpush1.msra.mxu0 0.0
        %2146 = vmatprep.subr.mxu0 0.0
        %2147 = vmatpush1.msra.mxu0 0.0
        %2148 = vmatprep.subr.mxu0 0.0
        %2149 = vmatpush1.msra.mxu0 0.0
        %2150 = vmatprep.subr.mxu0 0.0
        %2151 = vmatpush1.msra.mxu0 0.0
        %2152 = vmatprep.subr.mxu0 0.0
        %2153 = vmatpush1.msra.mxu0 0.0
        %2154 = vmatprep.mubr.f32.mxu0 0.0
        %2155 = vmatmul.mubr.f32.gmra.mrb[0].mxu0 %v1770
        %v2156 = vpop.f32.mrb[0].mxu0
        %v2157 = vadd.f32 %v1932, %v2156
        %v2158 = vpop.f32.mrb[0].mxu0
        %2159 = vmatprep.mubr.f32.mxu0 0.0
        %2160 = vmatmul.mubr.f32.gmra.mrb[0].mxu0 %v1773
        %v2161 = vpop.f32.mrb[0].mxu0
        %v2162 = vadd.f32 %v1937, %v2161
        %v2163 = vpop.f32.mrb[0].mxu0
        %2164 = vmatprep.mubr.f32.mxu0 0.0
        %2165 = vmatmul.mubr.f32.gmra.mrb[0].mxu0 %v1776
        %v2166 = vpop.f32.mrb[0].mxu0
        %v2167 = vadd.f32 %v1942, %v2166
        %v2168 = vpop.f32.mrb[0].mxu0
        %2169 = vmatprep.mubr.f32.mxu0 0.0
        %2170 = vmatmul.mubr.f32.gmra.mrb[0].mxu0 %v1779
        %v2171 = vpop.f32.mrb[0].mxu0
        %v2172 = vadd.f32 %v1947, %v2171
        %v2173 = vpop.f32.mrb[0].mxu0
        %2174 = vmatprep.mubr.f32.mxu0 0.0
        %2175 = vmatmul.mubr.f32.gmra.mrb[0].mxu0 %v1782
        %v2176 = vpop.f32.mrb[0].mxu0
        %v2177 = vadd.f32 %v1952, %v2176
        %v2178 = vpop.f32.mrb[0].mxu0
        %2179 = vmatprep.mubr.f32.mxu0 0.0
        %2180 = vmatmul.mubr.f32.gmra.mrb[0].mxu0 %v1785
        %v2181 = vpop.f32.mrb[0].mxu0
        %v2182 = vadd.f32 %v1957, %v2181
        %v2183 = vpop.f32.mrb[0].mxu0
        %2184 = vmatprep.mubr.f32.mxu0 0.0
        %2185 = vmatmul.mubr.f32.gmra.mrb[0].mxu0 %v1788
        %v2186 = vpop.f32.mrb[0].mxu0
        %v2187 = vadd.f32 %v1962, %v2186
        %v2188 = vpop.f32.mrb[0].mxu0
        %2189 = vmatprep.mubr.f32.mxu0 0.0
        %2190 = vmatmul.mubr.f32.gmra.mrb[0].mxu0 %v1791
        %v2191 = vpop.f32.mrb[0].mxu0
        %v2192 = vadd.f32 %v1967, %v2191
        %v2193 = vpop.f32.mrb[0].mxu0
        %2194 = vmatprep.mubr.f32.mxu0 0.0
        %2195 = vmatmul.mubr.f32.gmra.mrb[0].mxu0 %v1794
        %v2196 = vpop.f32.mrb[0].mxu0
        %v2197 = vadd.f32 %v1972, %v2196
        %v2198 = vpop.f32.mrb[0].mxu0
        %2199 = vmatprep.mubr.f32.mxu0 0.0
        %2200 = vmatmul.mubr.f32.gmra.mrb[0].mxu0 %v1797
        %v2201 = vpop.f32.mrb[0].mxu0
        %v2202 = vadd.f32 %v1977, %v2201
        %v2203 = vpop.f32.mrb[0].mxu0
        %2204 = vmatprep.mubr.f32.mxu0 0.0
        %2205 = vmatmul.mubr.f32.gmra.mrb[0].mxu0 %v1800
        %v2206 = vpop.f32.mrb[0].mxu0
        %v2207 = vadd.f32 %v1982, %v2206
        %v2208 = vpop.f32.mrb[0].mxu0
        %2209 = vmatprep.mubr.f32.mxu0 0.0
        %2210 = vmatmul.mubr.f32.gmra.mrb[0].mxu0 %v1803
        %v2211 = vpop.f32.mrb[0].mxu0
        %v2212 = vadd.f32 %v1987, %v2211
        %v2213 = vpop.f32.mrb[0].mxu0
        %2214 = vmatprep.mubr.f32.mxu0 0.0
        %2215 = vmatmul.mubr.f32.gmra.mrb[0].mxu0 %v1806
        %v2216 = vpop.f32.mrb[0].mxu0
        %v2217 = vadd.f32 %v1992, %v2216
        %v2218 = vpop.f32.mrb[0].mxu0
        %2219 = vmatprep.mubr.f32.mxu0 0.0
        %2220 = vmatmul.mubr.f32.gmra.mrb[0].mxu0 %v1809
        %v2221 = vpop.f32.mrb[0].mxu0
        %v2222 = vadd.f32 %v1997, %v2221
        %v2223 = vpop.f32.mrb[0].mxu0
        %2224 = vmatprep.mubr.f32.mxu0 0.0
        %2225 = vmatmul.mubr.f32.gmra.mrb[0].mxu0 %v1812
        %v2226 = vpop.f32.mrb[0].mxu0
        %v2227 = vadd.f32 %v2002, %v2226
        %v2228 = vpop.f32.mrb[0].mxu0
        %2229 = vmatprep.mubr.f32.mxu0 0.0
        %2230 = vmatmul.mubr.f32.gmra.mrb[0].mxu0 %v1815
        %v2231 = vpop.f32.mrb[0].mxu0
        %v2232 = vadd.f32 %v2007, %v2231
        %v2233 = vpop.f32.mrb[0].mxu0
        %2234 = vmatprep.mubr.f32.mxu0 0.0
        %2235 = vmatmul.mubr.f32.gmra.mrb[0].mxu0 %v1818
        %v2236 = vpop.f32.mrb[0].mxu0
        %v2237 = vadd.f32 %v2012, %v2236
        %v2238 = vpop.f32.mrb[0].mxu0
        %2239 = vmatprep.mubr.f32.mxu0 0.0
        %2240 = vmatmul.mubr.f32.gmra.mrb[0].mxu0 %v1821
        %v2241 = vpop.f32.mrb[0].mxu0
        %v2242 = vadd.f32 %v2017, %v2241
        %v2243 = vpop.f32.mrb[0].mxu0
        %2244 = vmatprep.mubr.f32.mxu0 0.0
        %2245 = vmatmul.mubr.f32.gmra.mrb[0].mxu0 %v1824
        %v2246 = vpop.f32.mrb[0].mxu0
        %v2247 = vadd.f32 %v2022, %v2246
        %v2248 = vpop.f32.mrb[0].mxu0
        %2249 = vmatprep.mubr.f32.mxu0 0.0
        %2250 = vmatmul.mubr.f32.gmra.mrb[0].mxu0 %v1827
        %v2251 = vpop.f32.mrb[0].mxu0
        %v2252 = vadd.f32 %v2027, %v2251
        %v2253 = vpop.f32.mrb[0].mxu0
        %2254 = vmatprep.mubr.f32.mxu0 0.0
        %2255 = vmatmul.mubr.f32.gmra.mrb[0].mxu0 %v1830
        %v2256 = vpop.f32.mrb[0].mxu0
        %v2257 = vadd.f32 %v2032, %v2256
        %v2258 = vpop.f32.mrb[0].mxu0
        %2259 = vmatprep.mubr.f32.mxu0 0.0
        %2260 = vmatmul.mubr.f32.gmra.mrb[0].mxu0 %v1833
        %v2261 = vpop.f32.mrb[0].mxu0
        %v2262 = vadd.f32 %v2037, %v2261
        %v2263 = vpop.f32.mrb[0].mxu0
        %2264 = vmatprep.mubr.f32.mxu0 0.0
        %2265 = vmatmul.mubr.f32.gmra.mrb[0].mxu0 %v1836
        %v2266 = vpop.f32.mrb[0].mxu0
        %v2267 = vadd.f32 %v2042, %v2266
        %v2268 = vpop.f32.mrb[0].mxu0
        %2269 = vmatprep.mubr.f32.mxu0 0.0
        %2270 = vmatmul.mubr.f32.gmra.mrb[0].mxu0 %v1839
        %v2271 = vpop.f32.mrb[0].mxu0
        %v2272 = vadd.f32 %v2047, %v2271
        %v2273 = vpop.f32.mrb[0].mxu0
        %2274 = vmatprep.mubr.f32.mxu0 0.0
        %2275 = vmatmul.mubr.f32.gmra.mrb[0].mxu0 %v1842
        %v2276 = vpop.f32.mrb[0].mxu0
        %v2277 = vadd.f32 %v2052, %v2276
        %v2278 = vpop.f32.mrb[0].mxu0
        %2279 = vmatprep.mubr.f32.mxu0 0.0
        %2280 = vmatmul.mubr.f32.gmra.mrb[0].mxu0 %v1845
        %v2281 = vpop.f32.mrb[0].mxu0
        %v2282 = vadd.f32 %v2057, %v2281
        %v2283 = vpop.f32.mrb[0].mxu0
        %2284 = vmatprep.mubr.f32.mxu0 0.0
        %2285 = vmatmul.mubr.f32.gmra.mrb[0].mxu0 %v1848
        %v2286 = vpop.f32.mrb[0].mxu0
        %v2287 = vadd.f32 %v2062, %v2286
        %v2288 = vpop.f32.mrb[0].mxu0
        %2289 = vmatprep.mubr.f32.mxu0 0.0
        %2290 = vmatmul.mubr.f32.gmra.mrb[0].mxu0 %v1851
        %v2291 = vpop.f32.mrb[0].mxu0
        %v2292 = vadd.f32 %v2067, %v2291
        %v2293 = vpop.f32.mrb[0].mxu0
        %2294 = vmatprep.mubr.f32.mxu0 0.0
        %2295 = vmatmul.mubr.f32.gmra.mrb[0].mxu0 %v1854
        %v2296 = vpop.f32.mrb[0].mxu0
        %v2297 = vadd.f32 %v2072, %v2296
        %v2298 = vpop.f32.mrb[0].mxu0
        %2299 = vmatprep.mubr.f32.mxu0 0.0
        %2300 = vmatmul.mubr.f32.gmra.mrb[0].mxu0 %v1857
        %v2301 = vpop.f32.mrb[0].mxu0
        %v2302 = vadd.f32 %v2077, %v2301
        %v2303 = vpop.f32.mrb[0].mxu0
        %2304 = vmatprep.mubr.f32.mxu0 0.0
        %2305 = vmatmul.mubr.f32.gmra.mrb[0].mxu0 %v1860
        %v2306 = vpop.f32.mrb[0].mxu0
        %v2307 = vadd.f32 %v2082, %v2306
        %v2308 = vpop.f32.mrb[0].mxu0
        %2309 = vmatprep.mubr.f32.mxu0 0.0
        %2310 = vmatmul.mubr.f32.gmra.mrb[0].mxu0 %v1863
        %v2311 = vpop.f32.mrb[0].mxu0
        %v2312 = vadd.f32 %v2087, %v2311
        %v2313 = vpop.f32.mrb[0].mxu0
        %2314 = vdwg.mxu0
        %v2315 = vmax.f32 %v2157, -4.0
        %v2316 = vmax.f32 %v2162, -4.0
        %v2317 = vmax.f32 %v2167, -4.0
        %v2318 = vmax.f32 %v2172, -4.0
        %v2319 = vmax.f32 %v2177, -4.0
        %v2320 = vmax.f32 %v2182, -4.0
        %v2321 = vmax.f32 %v2187, -4.0
        %v2322 = vmax.f32 %v2192, -4.0
        %v2323 = vmax.f32 %v2197, -4.0
        %v2324 = vmax.f32 %v2202, -4.0
        %v2325 = vmax.f32 %v2207, -4.0
        %v2326 = vmax.f32 %v2212, -4.0
        %v2327 = vmax.f32 %v2217, -4.0
        %v2328 = vmax.f32 %v2222, -4.0
        %v2329 = vmax.f32 %v2227, -4.0
        %v2330 = vmax.f32 %v2232, -4.0
        %v2331 = vmax.f32 %v2237, -4.0
        %v2332 = vmax.f32 %v2242, -4.0
        %v2333 = vmax.f32 %v2247, -4.0
        %v2334 = vmax.f32 %v2252, -4.0
        %v2335 = vmax.f32 %v2257, -4.0
        %v2336 = vmax.f32 %v2262, -4.0
        %v2337 = vmax.f32 %v2267, -4.0
        %v2338 = vmax.f32 %v2272, -4.0
        %v2339 = vmax.f32 %v2277, -4.0
        %v2340 = vmax.f32 %v2282, -4.0
        %v2341 = vmax.f32 %v2287, -4.0
        %v2342 = vmax.f32 %v2292, -4.0
        %v2343 = vmax.f32 %v2297, -4.0
        %v2344 = vmax.f32 %v2302, -4.0
        %v2345 = vmax.f32 %v2307, -4.0
        %v2346 = vmax.f32 %v2312, -4.0
        %v2347 = vmin.f32 %v2315, 4.0
        %v2348 = vmin.f32 %v2316, 4.0
        %v2349 = vmin.f32 %v2317, 4.0
        %v2350 = vmin.f32 %v2318, 4.0
        %v2351 = vmin.f32 %v2319, 4.0
        %v2352 = vmin.f32 %v2320, 4.0
        %v2353 = vmin.f32 %v2321, 4.0
        %v2354 = vmin.f32 %v2322, 4.0
        %v2355 = vmin.f32 %v2323, 4.0
        %v2356 = vmin.f32 %v2324, 4.0
        %v2357 = vmin.f32 %v2325, 4.0
        %v2358 = vmin.f32 %v2326, 4.0
        %v2359 = vmin.f32 %v2327, 4.0
        %v2360 = vmin.f32 %v2328, 4.0
        %v2361 = vmin.f32 %v2329, 4.0
        %v2362 = vmin.f32 %v2330, 4.0
        %v2363 = vmin.f32 %v2331, 4.0
        %v2364 = vmin.f32 %v2332, 4.0
        %v2365 = vmin.f32 %v2333, 4.0
        %v2366 = vmin.f32 %v2334, 4.0
        %v2367 = vmin.f32 %v2335, 4.0
        %v2368 = vmin.f32 %v2336, 4.0
        %v2369 = vmin.f32 %v2337, 4.0
        %v2370 = vmin.f32 %v2338, 4.0
        %v2371 = vmin.f32 %v2339, 4.0
        %v2372 = vmin.f32 %v2340, 4.0
        %v2373 = vmin.f32 %v2341, 4.0
        %v2374 = vmin.f32 %v2342, 4.0
        %v2375 = vmin.f32 %v2343, 4.0
        %v2376 = vmin.f32 %v2344, 4.0
        %v2377 = vmin.f32 %v2345, 4.0
        %v2378 = vmin.f32 %v2346, 4.0
        %v2379 = vxor.u32 %v2157, 2147483648
        %v2380 = vxor.u32 %v2162, 2147483648
        %v2381 = vxor.u32 %v2167, 2147483648
        %v2382 = vxor.u32 %v2172, 2147483648
        %v2383 = vxor.u32 %v2177, 2147483648
        %v2384 = vxor.u32 %v2182, 2147483648
        %v2385 = vxor.u32 %v2187, 2147483648
        %v2386 = vxor.u32 %v2192, 2147483648
        %v2387 = vxor.u32 %v2197, 2147483648
        %v2388 = vxor.u32 %v2202, 2147483648
        %v2389 = vxor.u32 %v2207, 2147483648
        %v2390 = vxor.u32 %v2212, 2147483648
        %v2391 = vxor.u32 %v2217, 2147483648
        %v2392 = vxor.u32 %v2222, 2147483648
        %v2393 = vxor.u32 %v2227, 2147483648
        %v2394 = vxor.u32 %v2232, 2147483648
        %v2395 = vxor.u32 %v2237, 2147483648
        %v2396 = vxor.u32 %v2242, 2147483648
        %v2397 = vxor.u32 %v2247, 2147483648
        %v2398 = vxor.u32 %v2252, 2147483648
        %v2399 = vxor.u32 %v2257, 2147483648
        %v2400 = vxor.u32 %v2262, 2147483648
        %v2401 = vxor.u32 %v2267, 2147483648
        %v2402 = vxor.u32 %v2272, 2147483648
        %v2403 = vxor.u32 %v2277, 2147483648
        %v2404 = vxor.u32 %v2282, 2147483648
        %v2405 = vxor.u32 %v2287, 2147483648
        %v2406 = vxor.u32 %v2292, 2147483648
        %v2407 = vxor.u32 %v2297, 2147483648
        %v2408 = vxor.u32 %v2302, 2147483648
        %v2409 = vxor.u32 %v2307, 2147483648
        %v2410 = vxor.u32 %v2312, 2147483648
        %v2411 = vmul.f32 %v2379, 1.442695
        %v2412 = vpow.pop %v2411
        %v2413 = vmul.f32 %v2380, 1.442695
        %v2414 = vpow.pop %v2413
        %v2415 = vmul.f32 %v2381, 1.442695
        %v2416 = vpow.pop %v2415
        %v2417 = vmul.f32 %v2382, 1.442695
        %v2418 = vpow.pop %v2417
        %v2419 = vmul.f32 %v2383, 1.442695
        %v2420 = vpow.pop %v2419
        %v2421 = vmul.f32 %v2384, 1.442695
        %v2422 = vpow.pop %v2421
        %v2423 = vmul.f32 %v2385, 1.442695
        %v2424 = vpow.pop %v2423
        %v2425 = vmul.f32 %v2386, 1.442695
        %v2426 = vpow.pop %v2425
        %v2427 = vmul.f32 %v2387, 1.442695
        %v2428 = vpow.pop %v2427
        %v2429 = vmul.f32 %v2388, 1.442695
        %v2430 = vpow.pop %v2429
        %v2431 = vmul.f32 %v2389, 1.442695
        %v2432 = vpow.pop %v2431
        %v2433 = vmul.f32 %v2390, 1.442695
        %v2434 = vpow.pop %v2433
        %v2435 = vmul.f32 %v2391, 1.442695
        %v2436 = vpow.pop %v2435
        %v2437 = vmul.f32 %v2392, 1.442695
        %v2438 = vpow.pop %v2437
        %v2439 = vmul.f32 %v2393, 1.442695
        %v2440 = vpow.pop %v2439
        %v2441 = vmul.f32 %v2394, 1.442695
        %v2442 = vpow.pop %v2441
        %v2443 = vmul.f32 %v2395, 1.442695
        %v2444 = vpow.pop %v2443
        %v2445 = vmul.f32 %v2396, 1.442695
        %v2446 = vpow.pop %v2445
        %v2447 = vmul.f32 %v2397, 1.442695
        %v2448 = vpow.pop %v2447
        %v2449 = vmul.f32 %v2398, 1.442695
        %v2450 = vpow.pop %v2449
        %v2451 = vmul.f32 %v2399, 1.442695
        %v2452 = vpow.pop %v2451
        %v2453 = vmul.f32 %v2400, 1.442695
        %v2454 = vpow.pop %v2453
        %v2455 = vmul.f32 %v2401, 1.442695
        %v2456 = vpow.pop %v2455
        %v2457 = vmul.f32 %v2402, 1.442695
        %v2458 = vpow.pop %v2457
        %v2459 = vmul.f32 %v2403, 1.442695
        %v2460 = vpow.pop %v2459
        %v2461 = vmul.f32 %v2404, 1.442695
        %v2462 = vpow.pop %v2461
        %v2463 = vmul.f32 %v2405, 1.442695
        %v2464 = vpow.pop %v2463
        %v2465 = vmul.f32 %v2406, 1.442695
        %v2466 = vpow.pop %v2465
        %v2467 = vmul.f32 %v2407, 1.442695
        %v2468 = vpow.pop %v2467
        %v2469 = vmul.f32 %v2408, 1.442695
        %v2470 = vpow.pop %v2469
        %v2471 = vmul.f32 %v2409, 1.442695
        %v2472 = vpow.pop %v2471
        %v2473 = vmul.f32 %v2410, 1.442695
        %v2474 = vpow.pop %v2473
        %v2475 = vadd.f32 %v2412, 1.0
        %v2476 = vadd.f32 %v2414, 1.0
        %v2477 = vadd.f32 %v2416, 1.0
        %v2478 = vadd.f32 %v2418, 1.0
        %v2479 = vadd.f32 %v2420, 1.0
        %v2480 = vadd.f32 %v2422, 1.0
        %v2481 = vadd.f32 %v2424, 1.0
        %v2482 = vadd.f32 %v2426, 1.0
        %v2483 = vadd.f32 %v2428, 1.0
        %v2484 = vadd.f32 %v2430, 1.0
        %v2485 = vadd.f32 %v2432, 1.0
        %v2486 = vadd.f32 %v2434, 1.0
        %v2487 = vadd.f32 %v2436, 1.0
        %v2488 = vadd.f32 %v2438, 1.0
        %v2489 = vadd.f32 %v2440, 1.0
        %v2490 = vadd.f32 %v2442, 1.0
        %v2491 = vadd.f32 %v2444, 1.0
        %v2492 = vadd.f32 %v2446, 1.0
        %v2493 = vadd.f32 %v2448, 1.0
        %v2494 = vadd.f32 %v2450, 1.0
        %v2495 = vadd.f32 %v2452, 1.0
        %v2496 = vadd.f32 %v2454, 1.0
        %v2497 = vadd.f32 %v2456, 1.0
        %v2498 = vadd.f32 %v2458, 1.0
        %v2499 = vadd.f32 %v2460, 1.0
        %v2500 = vadd.f32 %v2462, 1.0
        %v2501 = vadd.f32 %v2464, 1.0
        %v2502 = vadd.f32 %v2466, 1.0
        %v2503 = vadd.f32 %v2468, 1.0
        %v2504 = vadd.f32 %v2470, 1.0
        %v2505 = vadd.f32 %v2472, 1.0
        %v2506 = vadd.f32 %v2474, 1.0
        %v2507 = vrcp.pop %v2475
        %v2508 = vmul.f32 1.0, %v2507
        %v2509 = vrcp.pop %v2476
        %v2510 = vmul.f32 1.0, %v2509
        %v2511 = vrcp.pop %v2477
        %v2512 = vmul.f32 1.0, %v2511
        %v2513 = vrcp.pop %v2478
        %v2514 = vmul.f32 1.0, %v2513
        %v2515 = vrcp.pop %v2479
        %v2516 = vmul.f32 1.0, %v2515
        %v2517 = vrcp.pop %v2480
        %v2518 = vmul.f32 1.0, %v2517
        %v2519 = vrcp.pop %v2481
        %v2520 = vmul.f32 1.0, %v2519
        %v2521 = vrcp.pop %v2482
        %v2522 = vmul.f32 1.0, %v2521
        %v2523 = vrcp.pop %v2483
        %v2524 = vmul.f32 1.0, %v2523
        %v2525 = vrcp.pop %v2484
        %v2526 = vmul.f32 1.0, %v2525
        %v2527 = vrcp.pop %v2485
        %v2528 = vmul.f32 1.0, %v2527
        %v2529 = vrcp.pop %v2486
        %v2530 = vmul.f32 1.0, %v2529
        %v2531 = vrcp.pop %v2487
        %v2532 = vmul.f32 1.0, %v2531
        %v2533 = vrcp.pop %v2488
        %v2534 = vmul.f32 1.0, %v2533
        %v2535 = vrcp.pop %v2489
        %v2536 = vmul.f32 1.0, %v2535
        %v2537 = vrcp.pop %v2490
        %v2538 = vmul.f32 1.0, %v2537
        %v2539 = vrcp.pop %v2491
        %v2540 = vmul.f32 1.0, %v2539
        %v2541 = vrcp.pop %v2492
        %v2542 = vmul.f32 1.0, %v2541
        %v2543 = vrcp.pop %v2493
        %v2544 = vmul.f32 1.0, %v2543
        %v2545 = vrcp.pop %v2494
        %v2546 = vmul.f32 1.0, %v2545
        %v2547 = vrcp.pop %v2495
        %v2548 = vmul.f32 1.0, %v2547
        %v2549 = vrcp.pop %v2496
        %v2550 = vmul.f32 1.0, %v2549
        %v2551 = vrcp.pop %v2497
        %v2552 = vmul.f32 1.0, %v2551
        %v2553 = vrcp.pop %v2498
        %v2554 = vmul.f32 1.0, %v2553
        %v2555 = vrcp.pop %v2499
        %v2556 = vmul.f32 1.0, %v2555
        %v2557 = vrcp.pop %v2500
        %v2558 = vmul.f32 1.0, %v2557
        %v2559 = vrcp.pop %v2501
        %v2560 = vmul.f32 1.0, %v2559
        %v2561 = vrcp.pop %v2502
        %v2562 = vmul.f32 1.0, %v2561
        %v2563 = vrcp.pop %v2503
        %v2564 = vmul.f32 1.0, %v2563
        %v2565 = vrcp.pop %v2504
        %v2566 = vmul.f32 1.0, %v2565
        %v2567 = vrcp.pop %v2505
        %v2568 = vmul.f32 1.0, %v2567
        %v2569 = vrcp.pop %v2506
        %v2570 = vmul.f32 1.0, %v2569
        %v2571 = vmul.f32 %v2508, 2.0
        %v2572 = vmul.f32 %v2510, 2.0
        %v2573 = vmul.f32 %v2512, 2.0
        %v2574 = vmul.f32 %v2514, 2.0
        %v2575 = vmul.f32 %v2516, 2.0
        %v2576 = vmul.f32 %v2518, 2.0
        %v2577 = vmul.f32 %v2520, 2.0
        %v2578 = vmul.f32 %v2522, 2.0
        %v2579 = vmul.f32 %v2524, 2.0
        %v2580 = vmul.f32 %v2526, 2.0
        %v2581 = vmul.f32 %v2528, 2.0
        %v2582 = vmul.f32 %v2530, 2.0
        %v2583 = vmul.f32 %v2532, 2.0
        %v2584 = vmul.f32 %v2534, 2.0
        %v2585 = vmul.f32 %v2536, 2.0
        %v2586 = vmul.f32 %v2538, 2.0
        %v2587 = vmul.f32 %v2540, 2.0
        %v2588 = vmul.f32 %v2542, 2.0
        %v2589 = vmul.f32 %v2544, 2.0
        %v2590 = vmul.f32 %v2546, 2.0
        %v2591 = vmul.f32 %v2548, 2.0
        %v2592 = vmul.f32 %v2550, 2.0
        %v2593 = vmul.f32 %v2552, 2.0
        %v2594 = vmul.f32 %v2554, 2.0
        %v2595 = vmul.f32 %v2556, 2.0
        %v2596 = vmul.f32 %v2558, 2.0
        %v2597 = vmul.f32 %v2560, 2.0
        %v2598 = vmul.f32 %v2562, 2.0
        %v2599 = vmul.f32 %v2564, 2.0
        %v2600 = vmul.f32 %v2566, 2.0
        %v2601 = vmul.f32 %v2568, 2.0
        %v2602 = vmul.f32 %v2570, 2.0
        %v2603 = vsub.f32 %v2347, -4.0
        %v2604 = vsub.f32 %v2348, -4.0
        %v2605 = vsub.f32 %v2349, -4.0
        %v2606 = vsub.f32 %v2350, -4.0
        %v2607 = vsub.f32 %v2351, -4.0
        %v2608 = vsub.f32 %v2352, -4.0
        %v2609 = vsub.f32 %v2353, -4.0
        %v2610 = vsub.f32 %v2354, -4.0
        %v2611 = vsub.f32 %v2355, -4.0
        %v2612 = vsub.f32 %v2356, -4.0
        %v2613 = vsub.f32 %v2357, -4.0
        %v2614 = vsub.f32 %v2358, -4.0
        %v2615 = vsub.f32 %v2359, -4.0
        %v2616 = vsub.f32 %v2360, -4.0
        %v2617 = vsub.f32 %v2361, -4.0
        %v2618 = vsub.f32 %v2362, -4.0
        %v2619 = vsub.f32 %v2363, -4.0
        %v2620 = vsub.f32 %v2364, -4.0
        %v2621 = vsub.f32 %v2365, -4.0
        %v2622 = vsub.f32 %v2366, -4.0
        %v2623 = vsub.f32 %v2367, -4.0
        %v2624 = vsub.f32 %v2368, -4.0
        %v2625 = vsub.f32 %v2369, -4.0
        %v2626 = vsub.f32 %v2370, -4.0
        %v2627 = vsub.f32 %v2371, -4.0
        %v2628 = vsub.f32 %v2372, -4.0
        %v2629 = vsub.f32 %v2373, -4.0
        %v2630 = vsub.f32 %v2374, -4.0
        %v2631 = vsub.f32 %v2375, -4.0
        %v2632 = vsub.f32 %v2376, -4.0
        %v2633 = vsub.f32 %v2377, -4.0
        %v2634 = vsub.f32 %v2378, -4.0
        %v2635 = vand.u32 2147483647, %v2603
        %v2636 = vand.u32 2147483647, %v2604
        %v2637 = vand.u32 2147483647, %v2605
        %v2638 = vand.u32 2147483647, %v2606
        %v2639 = vand.u32 2147483647, %v2607
        %v2640 = vand.u32 2147483647, %v2608
        %v2641 = vand.u32 2147483647, %v2609
        %v2642 = vand.u32 2147483647, %v2610
        %v2643 = vand.u32 2147483647, %v2611
        %v2644 = vand.u32 2147483647, %v2612
        %v2645 = vand.u32 2147483647, %v2613
        %v2646 = vand.u32 2147483647, %v2614
        %v2647 = vand.u32 2147483647, %v2615
        %v2648 = vand.u32 2147483647, %v2616
        %v2649 = vand.u32 2147483647, %v2617
        %v2650 = vand.u32 2147483647, %v2618
        %v2651 = vand.u32 2147483647, %v2619
        %v2652 = vand.u32 2147483647, %v2620
        %v2653 = vand.u32 2147483647, %v2621
        %v2654 = vand.u32 2147483647, %v2622
        %v2655 = vand.u32 2147483647, %v2623
        %v2656 = vand.u32 2147483647, %v2624
        %v2657 = vand.u32 2147483647, %v2625
        %v2658 = vand.u32 2147483647, %v2626
        %v2659 = vand.u32 2147483647, %v2627
        %v2660 = vand.u32 2147483647, %v2628
        %v2661 = vand.u32 2147483647, %v2629
        %v2662 = vand.u32 2147483647, %v2630
        %v2663 = vand.u32 2147483647, %v2631
        %v2664 = vand.u32 2147483647, %v2632
        %v2665 = vand.u32 2147483647, %v2633
        %v2666 = vand.u32 2147483647, %v2634
        %v2667 = vsub.f32 1.0, %v2635
        %v2668 = vsub.f32 1.0, %v2636
        %v2669 = vsub.f32 1.0, %v2637
        %v2670 = vsub.f32 1.0, %v2638
        %v2671 = vsub.f32 1.0, %v2639
        %v2672 = vsub.f32 1.0, %v2640
        %v2673 = vsub.f32 1.0, %v2641
        %v2674 = vsub.f32 1.0, %v2642
        %v2675 = vsub.f32 1.0, %v2643
        %v2676 = vsub.f32 1.0, %v2644
        %v2677 = vsub.f32 1.0, %v2645
        %v2678 = vsub.f32 1.0, %v2646
        %v2679 = vsub.f32 1.0, %v2647
        %v2680 = vsub.f32 1.0, %v2648
        %v2681 = vsub.f32 1.0, %v2649
        %v2682 = vsub.f32 1.0, %v2650
        %v2683 = vsub.f32 1.0, %v2651
        %v2684 = vsub.f32 1.0, %v2652
        %v2685 = vsub.f32 1.0, %v2653
        %v2686 = vsub.f32 1.0, %v2654
        %v2687 = vsub.f32 1.0, %v2655
        %v2688 = vsub.f32 1.0, %v2656
        %v2689 = vsub.f32 1.0, %v2657
        %v2690 = vsub.f32 1.0, %v2658
        %v2691 = vsub.f32 1.0, %v2659
        %v2692 = vsub.f32 1.0, %v2660
        %v2693 = vsub.f32 1.0, %v2661
        %v2694 = vsub.f32 1.0, %v2662
        %v2695 = vsub.f32 1.0, %v2663
        %v2696 = vsub.f32 1.0, %v2664
        %v2697 = vsub.f32 1.0, %v2665
        %v2698 = vsub.f32 1.0, %v2666
        %v2699 = vmax.f32 %v2667, 0.0
        %v2700 = vmax.f32 %v2668, 0.0
        %v2701 = vmax.f32 %v2669, 0.0
        %v2702 = vmax.f32 %v2670, 0.0
        %v2703 = vmax.f32 %v2671, 0.0
        %v2704 = vmax.f32 %v2672, 0.0
        %v2705 = vmax.f32 %v2673, 0.0
        %v2706 = vmax.f32 %v2674, 0.0
        %v2707 = vmax.f32 %v2675, 0.0
        %v2708 = vmax.f32 %v2676, 0.0
        %v2709 = vmax.f32 %v2677, 0.0
        %v2710 = vmax.f32 %v2678, 0.0
        %v2711 = vmax.f32 %v2679, 0.0
        %v2712 = vmax.f32 %v2680, 0.0
        %v2713 = vmax.f32 %v2681, 0.0
        %v2714 = vmax.f32 %v2682, 0.0
        %v2715 = vmax.f32 %v2683, 0.0
        %v2716 = vmax.f32 %v2684, 0.0
        %v2717 = vmax.f32 %v2685, 0.0
        %v2718 = vmax.f32 %v2686, 0.0
        %v2719 = vmax.f32 %v2687, 0.0
        %v2720 = vmax.f32 %v2688, 0.0
        %v2721 = vmax.f32 %v2689, 0.0
        %v2722 = vmax.f32 %v2690, 0.0
        %v2723 = vmax.f32 %v2691, 0.0
        %v2724 = vmax.f32 %v2692, 0.0
        %v2725 = vmax.f32 %v2693, 0.0
        %v2726 = vmax.f32 %v2694, 0.0
        %v2727 = vmax.f32 %v2695, 0.0
        %v2728 = vmax.f32 %v2696, 0.0
        %v2729 = vmax.f32 %v2697, 0.0
        %v2730 = vmax.f32 %v2698, 0.0
        %v2731 = vsub.f32 %v2347, -3.0
        %v2732 = vsub.f32 %v2348, -3.0
        %v2733 = vsub.f32 %v2349, -3.0
        %v2734 = vsub.f32 %v2350, -3.0
        %v2735 = vsub.f32 %v2351, -3.0
        %v2736 = vsub.f32 %v2352, -3.0
        %v2737 = vsub.f32 %v2353, -3.0
        %v2738 = vsub.f32 %v2354, -3.0
        %v2739 = vsub.f32 %v2355, -3.0
        %v2740 = vsub.f32 %v2356, -3.0
        %v2741 = vsub.f32 %v2357, -3.0
        %v2742 = vsub.f32 %v2358, -3.0
        %v2743 = vsub.f32 %v2359, -3.0
        %v2744 = vsub.f32 %v2360, -3.0
        %v2745 = vsub.f32 %v2361, -3.0
        %v2746 = vsub.f32 %v2362, -3.0
        %v2747 = vsub.f32 %v2363, -3.0
        %v2748 = vsub.f32 %v2364, -3.0
        %v2749 = vsub.f32 %v2365, -3.0
        %v2750 = vsub.f32 %v2366, -3.0
        %v2751 = vsub.f32 %v2367, -3.0
        %v2752 = vsub.f32 %v2368, -3.0
        %v2753 = vsub.f32 %v2369, -3.0
        %v2754 = vsub.f32 %v2370, -3.0
        %v2755 = vsub.f32 %v2371, -3.0
        %v2756 = vsub.f32 %v2372, -3.0
        %v2757 = vsub.f32 %v2373, -3.0
        %v2758 = vsub.f32 %v2374, -3.0
        %v2759 = vsub.f32 %v2375, -3.0
        %v2760 = vsub.f32 %v2376, -3.0
        %v2761 = vsub.f32 %v2377, -3.0
        %v2762 = vsub.f32 %v2378, -3.0
        %v2763 = vand.u32 2147483647, %v2731
        %v2764 = vand.u32 2147483647, %v2732
        %v2765 = vand.u32 2147483647, %v2733
        %v2766 = vand.u32 2147483647, %v2734
        %v2767 = vand.u32 2147483647, %v2735
        %v2768 = vand.u32 2147483647, %v2736
        %v2769 = vand.u32 2147483647, %v2737
        %v2770 = vand.u32 2147483647, %v2738
        %v2771 = vand.u32 2147483647, %v2739
        %v2772 = vand.u32 2147483647, %v2740
        %v2773 = vand.u32 2147483647, %v2741
        %v2774 = vand.u32 2147483647, %v2742
        %v2775 = vand.u32 2147483647, %v2743
        %v2776 = vand.u32 2147483647, %v2744
        %v2777 = vand.u32 2147483647, %v2745
        %v2778 = vand.u32 2147483647, %v2746
        %v2779 = vand.u32 2147483647, %v2747
        %v2780 = vand.u32 2147483647, %v2748
        %v2781 = vand.u32 2147483647, %v2749
        %v2782 = vand.u32 2147483647, %v2750
        %v2783 = vand.u32 2147483647, %v2751
        %v2784 = vand.u32 2147483647, %v2752
        %v2785 = vand.u32 2147483647, %v2753
        %v2786 = vand.u32 2147483647, %v2754
        %v2787 = vand.u32 2147483647, %v2755
        %v2788 = vand.u32 2147483647, %v2756
        %v2789 = vand.u32 2147483647, %v2757
        %v2790 = vand.u32 2147483647, %v2758
        %v2791 = vand.u32 2147483647, %v2759
        %v2792 = vand.u32 2147483647, %v2760
        %v2793 = vand.u32 2147483647, %v2761
        %v2794 = vand.u32 2147483647, %v2762
        %v2795 = vsub.f32 1.0, %v2763
        %v2796 = vsub.f32 1.0, %v2764
        %v2797 = vsub.f32 1.0, %v2765
        %v2798 = vsub.f32 1.0, %v2766
        %v2799 = vsub.f32 1.0, %v2767
        %v2800 = vsub.f32 1.0, %v2768
        %v2801 = vsub.f32 1.0, %v2769
        %v2802 = vsub.f32 1.0, %v2770
        %v2803 = vsub.f32 1.0, %v2771
        %v2804 = vsub.f32 1.0, %v2772
        %v2805 = vsub.f32 1.0, %v2773
        %v2806 = vsub.f32 1.0, %v2774
        %v2807 = vsub.f32 1.0, %v2775
        %v2808 = vsub.f32 1.0, %v2776
        %v2809 = vsub.f32 1.0, %v2777
        %v2810 = vsub.f32 1.0, %v2778
        %v2811 = vsub.f32 1.0, %v2779
        %v2812 = vsub.f32 1.0, %v2780
        %v2813 = vsub.f32 1.0, %v2781
        %v2814 = vsub.f32 1.0, %v2782
        %v2815 = vsub.f32 1.0, %v2783
        %v2816 = vsub.f32 1.0, %v2784
        %v2817 = vsub.f32 1.0, %v2785
        %v2818 = vsub.f32 1.0, %v2786
        %v2819 = vsub.f32 1.0, %v2787
        %v2820 = vsub.f32 1.0, %v2788
        %v2821 = vsub.f32 1.0, %v2789
        %v2822 = vsub.f32 1.0, %v2790
        %v2823 = vsub.f32 1.0, %v2791
        %v2824 = vsub.f32 1.0, %v2792
        %v2825 = vsub.f32 1.0, %v2793
        %v2826 = vsub.f32 1.0, %v2794
        %v2827 = vmax.f32 %v2795, 0.0
        %v2828 = vmax.f32 %v2796, 0.0
        %v2829 = vmax.f32 %v2797, 0.0
        %v2830 = vmax.f32 %v2798, 0.0
        %v2831 = vmax.f32 %v2799, 0.0
        %v2832 = vmax.f32 %v2800, 0.0
        %v2833 = vmax.f32 %v2801, 0.0
        %v2834 = vmax.f32 %v2802, 0.0
        %v2835 = vmax.f32 %v2803, 0.0
        %v2836 = vmax.f32 %v2804, 0.0
        %v2837 = vmax.f32 %v2805, 0.0
        %v2838 = vmax.f32 %v2806, 0.0
        %v2839 = vmax.f32 %v2807, 0.0
        %v2840 = vmax.f32 %v2808, 0.0
        %v2841 = vmax.f32 %v2809, 0.0
        %v2842 = vmax.f32 %v2810, 0.0
        %v2843 = vmax.f32 %v2811, 0.0
        %v2844 = vmax.f32 %v2812, 0.0
        %v2845 = vmax.f32 %v2813, 0.0
        %v2846 = vmax.f32 %v2814, 0.0
        %v2847 = vmax.f32 %v2815, 0.0
        %v2848 = vmax.f32 %v2816, 0.0
        %v2849 = vmax.f32 %v2817, 0.0
        %v2850 = vmax.f32 %v2818, 0.0
        %v2851 = vmax.f32 %v2819, 0.0
        %v2852 = vmax.f32 %v2820, 0.0
        %v2853 = vmax.f32 %v2821, 0.0
        %v2854 = vmax.f32 %v2822, 0.0
        %v2855 = vmax.f32 %v2823, 0.0
        %v2856 = vmax.f32 %v2824, 0.0
        %v2857 = vmax.f32 %v2825, 0.0
        %v2858 = vmax.f32 %v2826, 0.0
        %v2859 = vsub.f32 %v2347, -2.0
        %v2860 = vsub.f32 %v2348, -2.0
        %v2861 = vsub.f32 %v2349, -2.0
        %v2862 = vsub.f32 %v2350, -2.0
        %v2863 = vsub.f32 %v2351, -2.0
        %v2864 = vsub.f32 %v2352, -2.0
        %v2865 = vsub.f32 %v2353, -2.0
        %v2866 = vsub.f32 %v2354, -2.0
        %v2867 = vsub.f32 %v2355, -2.0
        %v2868 = vsub.f32 %v2356, -2.0
        %v2869 = vsub.f32 %v2357, -2.0
        %v2870 = vsub.f32 %v2358, -2.0
        %v2871 = vsub.f32 %v2359, -2.0
        %v2872 = vsub.f32 %v2360, -2.0
        %v2873 = vsub.f32 %v2361, -2.0
        %v2874 = vsub.f32 %v2362, -2.0
        %v2875 = vsub.f32 %v2363, -2.0
        %v2876 = vsub.f32 %v2364, -2.0
        %v2877 = vsub.f32 %v2365, -2.0
        %v2878 = vsub.f32 %v2366, -2.0
        %v2879 = vsub.f32 %v2367, -2.0
        %v2880 = vsub.f32 %v2368, -2.0
        %v2881 = vsub.f32 %v2369, -2.0
        %v2882 = vsub.f32 %v2370, -2.0
        %v2883 = vsub.f32 %v2371, -2.0
        %v2884 = vsub.f32 %v2372, -2.0
        %v2885 = vsub.f32 %v2373, -2.0
        %v2886 = vsub.f32 %v2374, -2.0
        %v2887 = vsub.f32 %v2375, -2.0
        %v2888 = vsub.f32 %v2376, -2.0
        %v2889 = vsub.f32 %v2377, -2.0
        %v2890 = vsub.f32 %v2378, -2.0
        %v2891 = vand.u32 2147483647, %v2859
        %v2892 = vand.u32 2147483647, %v2860
        %v2893 = vand.u32 2147483647, %v2861
        %v2894 = vand.u32 2147483647, %v2862
        %v2895 = vand.u32 2147483647, %v2863
        %v2896 = vand.u32 2147483647, %v2864
        %v2897 = vand.u32 2147483647, %v2865
        %v2898 = vand.u32 2147483647, %v2866
        %v2899 = vand.u32 2147483647, %v2867
        %v2900 = vand.u32 2147483647, %v2868
        %v2901 = vand.u32 2147483647, %v2869
        %v2902 = vand.u32 2147483647, %v2870
        %v2903 = vand.u32 2147483647, %v2871
        %v2904 = vand.u32 2147483647, %v2872
        %v2905 = vand.u32 2147483647, %v2873
        %v2906 = vand.u32 2147483647, %v2874
        %v2907 = vand.u32 2147483647, %v2875
        %v2908 = vand.u32 2147483647, %v2876
        %v2909 = vand.u32 2147483647, %v2877
        %v2910 = vand.u32 2147483647, %v2878
        %v2911 = vand.u32 2147483647, %v2879
        %v2912 = vand.u32 2147483647, %v2880
        %v2913 = vand.u32 2147483647, %v2881
        %v2914 = vand.u32 2147483647, %v2882
        %v2915 = vand.u32 2147483647, %v2883
        %v2916 = vand.u32 2147483647, %v2884
        %v2917 = vand.u32 2147483647, %v2885
        %v2918 = vand.u32 2147483647, %v2886
        %v2919 = vand.u32 2147483647, %v2887
        %v2920 = vand.u32 2147483647, %v2888
        %v2921 = vand.u32 2147483647, %v2889
        %v2922 = vand.u32 2147483647, %v2890
        %v2923 = vsub.f32 1.0, %v2891
        %v2924 = vsub.f32 1.0, %v2892
        %v2925 = vsub.f32 1.0, %v2893
        %v2926 = vsub.f32 1.0, %v2894
        %v2927 = vsub.f32 1.0, %v2895
        %v2928 = vsub.f32 1.0, %v2896
        %v2929 = vsub.f32 1.0, %v2897
        %v2930 = vsub.f32 1.0, %v2898
        %v2931 = vsub.f32 1.0, %v2899
        %v2932 = vsub.f32 1.0, %v2900
        %v2933 = vsub.f32 1.0, %v2901
        %v2934 = vsub.f32 1.0, %v2902
        %v2935 = vsub.f32 1.0, %v2903
        %v2936 = vsub.f32 1.0, %v2904
        %v2937 = vsub.f32 1.0, %v2905
        %v2938 = vsub.f32 1.0, %v2906
        %v2939 = vsub.f32 1.0, %v2907
        %v2940 = vsub.f32 1.0, %v2908
        %v2941 = vsub.f32 1.0, %v2909
        %v2942 = vsub.f32 1.0, %v2910
        %v2943 = vsub.f32 1.0, %v2911
        %v2944 = vsub.f32 1.0, %v2912
        %v2945 = vsub.f32 1.0, %v2913
        %v2946 = vsub.f32 1.0, %v2914
        %v2947 = vsub.f32 1.0, %v2915
        %v2948 = vsub.f32 1.0, %v2916
        %v2949 = vsub.f32 1.0, %v2917
        %v2950 = vsub.f32 1.0, %v2918
        %v2951 = vsub.f32 1.0, %v2919
        %v2952 = vsub.f32 1.0, %v2920
        %v2953 = vsub.f32 1.0, %v2921
        %v2954 = vsub.f32 1.0, %v2922
        %v2955 = vmax.f32 %v2923, 0.0
        %v2956 = vmax.f32 %v2924, 0.0
        %v2957 = vmax.f32 %v2925, 0.0
        %v2958 = vmax.f32 %v2926, 0.0
        %v2959 = vmax.f32 %v2927, 0.0
        %v2960 = vmax.f32 %v2928, 0.0
        %v2961 = vmax.f32 %v2929, 0.0
        %v2962 = vmax.f32 %v2930, 0.0
        %v2963 = vmax.f32 %v2931, 0.0
        %v2964 = vmax.f32 %v2932, 0.0
        %v2965 = vmax.f32 %v2933, 0.0
        %v2966 = vmax.f32 %v2934, 0.0
        %v2967 = vmax.f32 %v2935, 0.0
        %v2968 = vmax.f32 %v2936, 0.0
        %v2969 = vmax.f32 %v2937, 0.0
        %v2970 = vmax.f32 %v2938, 0.0
        %v2971 = vmax.f32 %v2939, 0.0
        %v2972 = vmax.f32 %v2940, 0.0
        %v2973 = vmax.f32 %v2941, 0.0
        %v2974 = vmax.f32 %v2942, 0.0
        %v2975 = vmax.f32 %v2943, 0.0
        %v2976 = vmax.f32 %v2944, 0.0
        %v2977 = vmax.f32 %v2945, 0.0
        %v2978 = vmax.f32 %v2946, 0.0
        %v2979 = vmax.f32 %v2947, 0.0
        %v2980 = vmax.f32 %v2948, 0.0
        %v2981 = vmax.f32 %v2949, 0.0
        %v2982 = vmax.f32 %v2950, 0.0
        %v2983 = vmax.f32 %v2951, 0.0
        %v2984 = vmax.f32 %v2952, 0.0
        %v2985 = vmax.f32 %v2953, 0.0
        %v2986 = vmax.f32 %v2954, 0.0
        %v2987 = vsub.f32 %v2347, -1.0
        %v2988 = vsub.f32 %v2348, -1.0
        %v2989 = vsub.f32 %v2349, -1.0
        %v2990 = vsub.f32 %v2350, -1.0
        %v2991 = vsub.f32 %v2351, -1.0
        %v2992 = vsub.f32 %v2352, -1.0
        %v2993 = vsub.f32 %v2353, -1.0
        %v2994 = vsub.f32 %v2354, -1.0
        %v2995 = vsub.f32 %v2355, -1.0
        %v2996 = vsub.f32 %v2356, -1.0
        %v2997 = vsub.f32 %v2357, -1.0
        %v2998 = vsub.f32 %v2358, -1.0
        %v2999 = vsub.f32 %v2359, -1.0
        %v3000 = vsub.f32 %v2360, -1.0
        %v3001 = vsub.f32 %v2361, -1.0
        %v3002 = vsub.f32 %v2362, -1.0
        %v3003 = vsub.f32 %v2363, -1.0
        %v3004 = vsub.f32 %v2364, -1.0
        %v3005 = vsub.f32 %v2365, -1.0
        %v3006 = vsub.f32 %v2366, -1.0
        %v3007 = vsub.f32 %v2367, -1.0
        %v3008 = vsub.f32 %v2368, -1.0
        %v3009 = vsub.f32 %v2369, -1.0
        %v3010 = vsub.f32 %v2370, -1.0
        %v3011 = vsub.f32 %v2371, -1.0
        %v3012 = vsub.f32 %v2372, -1.0
        %v3013 = vsub.f32 %v2373, -1.0
        %v3014 = vsub.f32 %v2374, -1.0
        %v3015 = vsub.f32 %v2375, -1.0
        %v3016 = vsub.f32 %v2376, -1.0
        %v3017 = vsub.f32 %v2377, -1.0
        %v3018 = vsub.f32 %v2378, -1.0
        %v3019 = vand.u32 2147483647, %v2987
        %v3020 = vand.u32 2147483647, %v2988
        %v3021 = vand.u32 2147483647, %v2989
        %v3022 = vand.u32 2147483647, %v2990
        %v3023 = vand.u32 2147483647, %v2991
        %v3024 = vand.u32 2147483647, %v2992
        %v3025 = vand.u32 2147483647, %v2993
        %v3026 = vand.u32 2147483647, %v2994
        %v3027 = vand.u32 2147483647, %v2995
        %v3028 = vand.u32 2147483647, %v2996
        %v3029 = vand.u32 2147483647, %v2997
        %v3030 = vand.u32 2147483647, %v2998
        %v3031 = vand.u32 2147483647, %v2999
        %v3032 = vand.u32 2147483647, %v3000
        %v3033 = vand.u32 2147483647, %v3001
        %v3034 = vand.u32 2147483647, %v3002
        %v3035 = vand.u32 2147483647, %v3003
        %v3036 = vand.u32 2147483647, %v3004
        %v3037 = vand.u32 2147483647, %v3005
        %v3038 = vand.u32 2147483647, %v3006
        %v3039 = vand.u32 2147483647, %v3007
        %v3040 = vand.u32 2147483647, %v3008
        %v3041 = vand.u32 2147483647, %v3009
        %v3042 = vand.u32 2147483647, %v3010
        %v3043 = vand.u32 2147483647, %v3011
        %v3044 = vand.u32 2147483647, %v3012
        %v3045 = vand.u32 2147483647, %v3013
        %v3046 = vand.u32 2147483647, %v3014
        %v3047 = vand.u32 2147483647, %v3015
        %v3048 = vand.u32 2147483647, %v3016
        %v3049 = vand.u32 2147483647, %v3017
        %v3050 = vand.u32 2147483647, %v3018
        %v3051 = vsub.f32 1.0, %v3019
        %v3052 = vsub.f32 1.0, %v3020
        %v3053 = vsub.f32 1.0, %v3021
        %v3054 = vsub.f32 1.0, %v3022
        %v3055 = vsub.f32 1.0, %v3023
        %v3056 = vsub.f32 1.0, %v3024
        %v3057 = vsub.f32 1.0, %v3025
        %v3058 = vsub.f32 1.0, %v3026
        %v3059 = vsub.f32 1.0, %v3027
        %v3060 = vsub.f32 1.0, %v3028
        %v3061 = vsub.f32 1.0, %v3029
        %v3062 = vsub.f32 1.0, %v3030
        %v3063 = vsub.f32 1.0, %v3031
        %v3064 = vsub.f32 1.0, %v3032
        %v3065 = vsub.f32 1.0, %v3033
        %v3066 = vsub.f32 1.0, %v3034
        %v3067 = vsub.f32 1.0, %v3035
        %v3068 = vsub.f32 1.0, %v3036
        %v3069 = vsub.f32 1.0, %v3037
        %v3070 = vsub.f32 1.0, %v3038
        %v3071 = vsub.f32 1.0, %v3039
        %v3072 = vsub.f32 1.0, %v3040
        %v3073 = vsub.f32 1.0, %v3041
        %v3074 = vsub.f32 1.0, %v3042
        %v3075 = vsub.f32 1.0, %v3043
        %v3076 = vsub.f32 1.0, %v3044
        %v3077 = vsub.f32 1.0, %v3045
        %v3078 = vsub.f32 1.0, %v3046
        %v3079 = vsub.f32 1.0, %v3047
        %v3080 = vsub.f32 1.0, %v3048
        %v3081 = vsub.f32 1.0, %v3049
        %v3082 = vsub.f32 1.0, %v3050
        %v3083 = vmax.f32 %v3051, 0.0
        %v3084 = vmax.f32 %v3052, 0.0
        %v3085 = vmax.f32 %v3053, 0.0
        %v3086 = vmax.f32 %v3054, 0.0
        %v3087 = vmax.f32 %v3055, 0.0
        %v3088 = vmax.f32 %v3056, 0.0
        %v3089 = vmax.f32 %v3057, 0.0
        %v3090 = vmax.f32 %v3058, 0.0
        %v3091 = vmax.f32 %v3059, 0.0
        %v3092 = vmax.f32 %v3060, 0.0
        %v3093 = vmax.f32 %v3061, 0.0
        %v3094 = vmax.f32 %v3062, 0.0
        %v3095 = vmax.f32 %v3063, 0.0
        %v3096 = vmax.f32 %v3064, 0.0
        %v3097 = vmax.f32 %v3065, 0.0
        %v3098 = vmax.f32 %v3066, 0.0
        %v3099 = vmax.f32 %v3067, 0.0
        %v3100 = vmax.f32 %v3068, 0.0
        %v3101 = vmax.f32 %v3069, 0.0
        %v3102 = vmax.f32 %v3070, 0.0
        %v3103 = vmax.f32 %v3071, 0.0
        %v3104 = vmax.f32 %v3072, 0.0
        %v3105 = vmax.f32 %v3073, 0.0
        %v3106 = vmax.f32 %v3074, 0.0
        %v3107 = vmax.f32 %v3075, 0.0
        %v3108 = vmax.f32 %v3076, 0.0
        %v3109 = vmax.f32 %v3077, 0.0
        %v3110 = vmax.f32 %v3078, 0.0
        %v3111 = vmax.f32 %v3079, 0.0
        %v3112 = vmax.f32 %v3080, 0.0
        %v3113 = vmax.f32 %v3081, 0.0
        %v3114 = vmax.f32 %v3082, 0.0
        %v3115 = vand.u32 2147483647, %v2347
        %v3116 = vand.u32 2147483647, %v2348
        %v3117 = vand.u32 2147483647, %v2349
        %v3118 = vand.u32 2147483647, %v2350
        %v3119 = vand.u32 2147483647, %v2351
        %v3120 = vand.u32 2147483647, %v2352
        %v3121 = vand.u32 2147483647, %v2353
        %v3122 = vand.u32 2147483647, %v2354
        %v3123 = vand.u32 2147483647, %v2355
        %v3124 = vand.u32 2147483647, %v2356
        %v3125 = vand.u32 2147483647, %v2357
        %v3126 = vand.u32 2147483647, %v2358
        %v3127 = vand.u32 2147483647, %v2359
        %v3128 = vand.u32 2147483647, %v2360
        %v3129 = vand.u32 2147483647, %v2361
        %v3130 = vand.u32 2147483647, %v2362
        %v3131 = vand.u32 2147483647, %v2363
        %v3132 = vand.u32 2147483647, %v2364
        %v3133 = vand.u32 2147483647, %v2365
        %v3134 = vand.u32 2147483647, %v2366
        %v3135 = vand.u32 2147483647, %v2367
        %v3136 = vand.u32 2147483647, %v2368
        %v3137 = vand.u32 2147483647, %v2369
        %v3138 = vand.u32 2147483647, %v2370
        %v3139 = vand.u32 2147483647, %v2371
        %v3140 = vand.u32 2147483647, %v2372
        %v3141 = vand.u32 2147483647, %v2373
        %v3142 = vand.u32 2147483647, %v2374
        %v3143 = vand.u32 2147483647, %v2375
        %v3144 = vand.u32 2147483647, %v2376
        %v3145 = vand.u32 2147483647, %v2377
        %v3146 = vand.u32 2147483647, %v2378
        %v3147 = vsub.f32 1.0, %v3115
        %v3148 = vsub.f32 1.0, %v3116
        %v3149 = vsub.f32 1.0, %v3117
        %v3150 = vsub.f32 1.0, %v3118
        %v3151 = vsub.f32 1.0, %v3119
        %v3152 = vsub.f32 1.0, %v3120
        %v3153 = vsub.f32 1.0, %v3121
        %v3154 = vsub.f32 1.0, %v3122
        %v3155 = vsub.f32 1.0, %v3123
        %v3156 = vsub.f32 1.0, %v3124
        %v3157 = vsub.f32 1.0, %v3125
        %v3158 = vsub.f32 1.0, %v3126
        %v3159 = vsub.f32 1.0, %v3127
        %v3160 = vsub.f32 1.0, %v3128
        %v3161 = vsub.f32 1.0, %v3129
        %v3162 = vsub.f32 1.0, %v3130
        %v3163 = vsub.f32 1.0, %v3131
        %v3164 = vsub.f32 1.0, %v3132
        %v3165 = vsub.f32 1.0, %v3133
        %v3166 = vsub.f32 1.0, %v3134
        %v3167 = vsub.f32 1.0, %v3135
        %v3168 = vsub.f32 1.0, %v3136
        %v3169 = vsub.f32 1.0, %v3137
        %v3170 = vsub.f32 1.0, %v3138
        %v3171 = vsub.f32 1.0, %v3139
        %v3172 = vsub.f32 1.0, %v3140
        %v3173 = vsub.f32 1.0, %v3141
        %v3174 = vsub.f32 1.0, %v3142
        %v3175 = vsub.f32 1.0, %v3143
        %v3176 = vsub.f32 1.0, %v3144
        %v3177 = vsub.f32 1.0, %v3145
        %v3178 = vsub.f32 1.0, %v3146
        %v3179 = vmax.f32 %v3147, 0.0
        %v3180 = vmax.f32 %v3148, 0.0
        %v3181 = vmax.f32 %v3149, 0.0
        %v3182 = vmax.f32 %v3150, 0.0
        %v3183 = vmax.f32 %v3151, 0.0
        %v3184 = vmax.f32 %v3152, 0.0
        %v3185 = vmax.f32 %v3153, 0.0
        %v3186 = vmax.f32 %v3154, 0.0
        %v3187 = vmax.f32 %v3155, 0.0
        %v3188 = vmax.f32 %v3156, 0.0
        %v3189 = vmax.f32 %v3157, 0.0
        %v3190 = vmax.f32 %v3158, 0.0
        %v3191 = vmax.f32 %v3159, 0.0
        %v3192 = vmax.f32 %v3160, 0.0
        %v3193 = vmax.f32 %v3161, 0.0
        %v3194 = vmax.f32 %v3162, 0.0
        %v3195 = vmax.f32 %v3163, 0.0
        %v3196 = vmax.f32 %v3164, 0.0
        %v3197 = vmax.f32 %v3165, 0.0
        %v3198 = vmax.f32 %v3166, 0.0
        %v3199 = vmax.f32 %v3167, 0.0
        %v3200 = vmax.f32 %v3168, 0.0
        %v3201 = vmax.f32 %v3169, 0.0
        %v3202 = vmax.f32 %v3170, 0.0
        %v3203 = vmax.f32 %v3171, 0.0
        %v3204 = vmax.f32 %v3172, 0.0
        %v3205 = vmax.f32 %v3173, 0.0
        %v3206 = vmax.f32 %v3174, 0.0
        %v3207 = vmax.f32 %v3175, 0.0
        %v3208 = vmax.f32 %v3176, 0.0
        %v3209 = vmax.f32 %v3177, 0.0
        %v3210 = vmax.f32 %v3178, 0.0
        %v3211 = vsub.f32 %v2347, 1.0
        %v3212 = vsub.f32 %v2348, 1.0
        %v3213 = vsub.f32 %v2349, 1.0
        %v3214 = vsub.f32 %v2350, 1.0
        %v3215 = vsub.f32 %v2351, 1.0
        %v3216 = vsub.f32 %v2352, 1.0
        %v3217 = vsub.f32 %v2353, 1.0
        %v3218 = vsub.f32 %v2354, 1.0
        %v3219 = vsub.f32 %v2355, 1.0
        %v3220 = vsub.f32 %v2356, 1.0
        %v3221 = vsub.f32 %v2357, 1.0
        %v3222 = vsub.f32 %v2358, 1.0
        %v3223 = vsub.f32 %v2359, 1.0
        %v3224 = vsub.f32 %v2360, 1.0
        %v3225 = vsub.f32 %v2361, 1.0
        %v3226 = vsub.f32 %v2362, 1.0
        %v3227 = vsub.f32 %v2363, 1.0
        %v3228 = vsub.f32 %v2364, 1.0
        %v3229 = vsub.f32 %v2365, 1.0
        %v3230 = vsub.f32 %v2366, 1.0
        %v3231 = vsub.f32 %v2367, 1.0
        %v3232 = vsub.f32 %v2368, 1.0
        %v3233 = vsub.f32 %v2369, 1.0
        %v3234 = vsub.f32 %v2370, 1.0
        %v3235 = vsub.f32 %v2371, 1.0
        %v3236 = vsub.f32 %v2372, 1.0
        %v3237 = vsub.f32 %v2373, 1.0
        %v3238 = vsub.f32 %v2374, 1.0
        %v3239 = vsub.f32 %v2375, 1.0
        %v3240 = vsub.f32 %v2376, 1.0
        %v3241 = vsub.f32 %v2377, 1.0
        %v3242 = vsub.f32 %v2378, 1.0
        %v3243 = vand.u32 2147483647, %v3211
        %v3244 = vand.u32 2147483647, %v3212
        %v3245 = vand.u32 2147483647, %v3213
        %v3246 = vand.u32 2147483647, %v3214
        %v3247 = vand.u32 2147483647, %v3215
        %v3248 = vand.u32 2147483647, %v3216
        %v3249 = vand.u32 2147483647, %v3217
        %v3250 = vand.u32 2147483647, %v3218
        %v3251 = vand.u32 2147483647, %v3219
        %v3252 = vand.u32 2147483647, %v3220
        %v3253 = vand.u32 2147483647, %v3221
        %v3254 = vand.u32 2147483647, %v3222
        %v3255 = vand.u32 2147483647, %v3223
        %v3256 = vand.u32 2147483647, %v3224
        %v3257 = vand.u32 2147483647, %v3225
        %v3258 = vand.u32 2147483647, %v3226
        %v3259 = vand.u32 2147483647, %v3227
        %v3260 = vand.u32 2147483647, %v3228
        %v3261 = vand.u32 2147483647, %v3229
        %v3262 = vand.u32 2147483647, %v3230
        %v3263 = vand.u32 2147483647, %v3231
        %v3264 = vand.u32 2147483647, %v3232
        %v3265 = vand.u32 2147483647, %v3233
        %v3266 = vand.u32 2147483647, %v3234
        %v3267 = vand.u32 2147483647, %v3235
        %v3268 = vand.u32 2147483647, %v3236
        %v3269 = vand.u32 2147483647, %v3237
        %v3270 = vand.u32 2147483647, %v3238
        %v3271 = vand.u32 2147483647, %v3239
        %v3272 = vand.u32 2147483647, %v3240
        %v3273 = vand.u32 2147483647, %v3241
        %v3274 = vand.u32 2147483647, %v3242
        %v3275 = vsub.f32 1.0, %v3243
        %v3276 = vsub.f32 1.0, %v3244
        %v3277 = vsub.f32 1.0, %v3245
        %v3278 = vsub.f32 1.0, %v3246
        %v3279 = vsub.f32 1.0, %v3247
        %v3280 = vsub.f32 1.0, %v3248
        %v3281 = vsub.f32 1.0, %v3249
        %v3282 = vsub.f32 1.0, %v3250
        %v3283 = vsub.f32 1.0, %v3251
        %v3284 = vsub.f32 1.0, %v3252
        %v3285 = vsub.f32 1.0, %v3253
        %v3286 = vsub.f32 1.0, %v3254
        %v3287 = vsub.f32 1.0, %v3255
        %v3288 = vsub.f32 1.0, %v3256
        %v3289 = vsub.f32 1.0, %v3257
        %v3290 = vsub.f32 1.0, %v3258
        %v3291 = vsub.f32 1.0, %v3259
        %v3292 = vsub.f32 1.0, %v3260
        %v3293 = vsub.f32 1.0, %v3261
        %v3294 = vsub.f32 1.0, %v3262
        %v3295 = vsub.f32 1.0, %v3263
        %v3296 = vsub.f32 1.0, %v3264
        %v3297 = vsub.f32 1.0, %v3265
        %v3298 = vsub.f32 1.0, %v3266
        %v3299 = vsub.f32 1.0, %v3267
        %v3300 = vsub.f32 1.0, %v3268
        %v3301 = vsub.f32 1.0, %v3269
        %v3302 = vsub.f32 1.0, %v3270
        %v3303 = vsub.f32 1.0, %v3271
        %v3304 = vsub.f32 1.0, %v3272
        %v3305 = vsub.f32 1.0, %v3273
        %v3306 = vsub.f32 1.0, %v3274
        %v3307 = vmax.f32 %v3275, 0.0
        %v3308 = vmax.f32 %v3276, 0.0
        %v3309 = vmax.f32 %v3277, 0.0
        %v3310 = vmax.f32 %v3278, 0.0
        %v3311 = vmax.f32 %v3279, 0.0
        %v3312 = vmax.f32 %v3280, 0.0
        %v3313 = vmax.f32 %v3281, 0.0
        %v3314 = vmax.f32 %v3282, 0.0
        %v3315 = vmax.f32 %v3283, 0.0
        %v3316 = vmax.f32 %v3284, 0.0
        %v3317 = vmax.f32 %v3285, 0.0
        %v3318 = vmax.f32 %v3286, 0.0
        %v3319 = vmax.f32 %v3287, 0.0
        %v3320 = vmax.f32 %v3288, 0.0
        %v3321 = vmax.f32 %v3289, 0.0
        %v3322 = vmax.f32 %v3290, 0.0
        %v3323 = vmax.f32 %v3291, 0.0
        %v3324 = vmax.f32 %v3292, 0.0
        %v3325 = vmax.f32 %v3293, 0.0
        %v3326 = vmax.f32 %v3294, 0.0
        %v3327 = vmax.f32 %v3295, 0.0
        %v3328 = vmax.f32 %v3296, 0.0
        %v3329 = vmax.f32 %v3297, 0.0
        %v3330 = vmax.f32 %v3298, 0.0
        %v3331 = vmax.f32 %v3299, 0.0
        %v3332 = vmax.f32 %v3300, 0.0
        %v3333 = vmax.f32 %v3301, 0.0
        %v3334 = vmax.f32 %v3302, 0.0
        %v3335 = vmax.f32 %v3303, 0.0
        %v3336 = vmax.f32 %v3304, 0.0
        %v3337 = vmax.f32 %v3305, 0.0
        %v3338 = vmax.f32 %v3306, 0.0
        %v3339 = vsub.f32 %v2347, 2.0
        %v3340 = vsub.f32 %v2348, 2.0
        %v3341 = vsub.f32 %v2349, 2.0
        %v3342 = vsub.f32 %v2350, 2.0
        %v3343 = vsub.f32 %v2351, 2.0
        %v3344 = vsub.f32 %v2352, 2.0
        %v3345 = vsub.f32 %v2353, 2.0
        %v3346 = vsub.f32 %v2354, 2.0
        %v3347 = vsub.f32 %v2355, 2.0
        %v3348 = vsub.f32 %v2356, 2.0
        %v3349 = vsub.f32 %v2357, 2.0
        %v3350 = vsub.f32 %v2358, 2.0
        %v3351 = vsub.f32 %v2359, 2.0
        %v3352 = vsub.f32 %v2360, 2.0
        %v3353 = vsub.f32 %v2361, 2.0
        %v3354 = vsub.f32 %v2362, 2.0
        %v3355 = vsub.f32 %v2363, 2.0
        %v3356 = vsub.f32 %v2364, 2.0
        %v3357 = vsub.f32 %v2365, 2.0
        %v3358 = vsub.f32 %v2366, 2.0
        %v3359 = vsub.f32 %v2367, 2.0
        %v3360 = vsub.f32 %v2368, 2.0
        %v3361 = vsub.f32 %v2369, 2.0
        %v3362 = vsub.f32 %v2370, 2.0
        %v3363 = vsub.f32 %v2371, 2.0
        %v3364 = vsub.f32 %v2372, 2.0
        %v3365 = vsub.f32 %v2373, 2.0
        %v3366 = vsub.f32 %v2374, 2.0
        %v3367 = vsub.f32 %v2375, 2.0
        %v3368 = vsub.f32 %v2376, 2.0
        %v3369 = vsub.f32 %v2377, 2.0
        %v3370 = vsub.f32 %v2378, 2.0
        %v3371 = vand.u32 2147483647, %v3339
        %v3372 = vand.u32 2147483647, %v3340
        %v3373 = vand.u32 2147483647, %v3341
        %v3374 = vand.u32 2147483647, %v3342
        %v3375 = vand.u32 2147483647, %v3343
        %v3376 = vand.u32 2147483647, %v3344
        %v3377 = vand.u32 2147483647, %v3345
        %v3378 = vand.u32 2147483647, %v3346
        %v3379 = vand.u32 2147483647, %v3347
        %v3380 = vand.u32 2147483647, %v3348
        %v3381 = vand.u32 2147483647, %v3349
        %v3382 = vand.u32 2147483647, %v3350
        %v3383 = vand.u32 2147483647, %v3351
        %v3384 = vand.u32 2147483647, %v3352
        %v3385 = vand.u32 2147483647, %v3353
        %v3386 = vand.u32 2147483647, %v3354
        %v3387 = vand.u32 2147483647, %v3355
        %v3388 = vand.u32 2147483647, %v3356
        %v3389 = vand.u32 2147483647, %v3357
        %v3390 = vand.u32 2147483647, %v3358
        %v3391 = vand.u32 2147483647, %v3359
        %v3392 = vand.u32 2147483647, %v3360
        %v3393 = vand.u32 2147483647, %v3361
        %v3394 = vand.u32 2147483647, %v3362
        %v3395 = vand.u32 2147483647, %v3363
        %v3396 = vand.u32 2147483647, %v3364
        %v3397 = vand.u32 2147483647, %v3365
        %v3398 = vand.u32 2147483647, %v3366
        %v3399 = vand.u32 2147483647, %v3367
        %v3400 = vand.u32 2147483647, %v3368
        %v3401 = vand.u32 2147483647, %v3369
        %v3402 = vand.u32 2147483647, %v3370
        %v3403 = vsub.f32 1.0, %v3371
        %v3404 = vsub.f32 1.0, %v3372
        %v3405 = vsub.f32 1.0, %v3373
        %v3406 = vsub.f32 1.0, %v3374
        %v3407 = vsub.f32 1.0, %v3375
        %v3408 = vsub.f32 1.0, %v3376
        %v3409 = vsub.f32 1.0, %v3377
        %v3410 = vsub.f32 1.0, %v3378
        %v3411 = vsub.f32 1.0, %v3379
        %v3412 = vsub.f32 1.0, %v3380
        %v3413 = vsub.f32 1.0, %v3381
        %v3414 = vsub.f32 1.0, %v3382
        %v3415 = vsub.f32 1.0, %v3383
        %v3416 = vsub.f32 1.0, %v3384
        %v3417 = vsub.f32 1.0, %v3385
        %v3418 = vsub.f32 1.0, %v3386
        %v3419 = vsub.f32 1.0, %v3387
        %v3420 = vsub.f32 1.0, %v3388
        %v3421 = vsub.f32 1.0, %v3389
        %v3422 = vsub.f32 1.0, %v3390
        %v3423 = vsub.f32 1.0, %v3391
        %v3424 = vsub.f32 1.0, %v3392
        %v3425 = vsub.f32 1.0, %v3393
        %v3426 = vsub.f32 1.0, %v3394
        %v3427 = vsub.f32 1.0, %v3395
        %v3428 = vsub.f32 1.0, %v3396
        %v3429 = vsub.f32 1.0, %v3397
        %v3430 = vsub.f32 1.0, %v3398
        %v3431 = vsub.f32 1.0, %v3399
        %v3432 = vsub.f32 1.0, %v3400
        %v3433 = vsub.f32 1.0, %v3401
        %v3434 = vsub.f32 1.0, %v3402
        %v3435 = vmax.f32 %v3403, 0.0
        %v3436 = vmax.f32 %v3404, 0.0
        %v3437 = vmax.f32 %v3405, 0.0
        %v3438 = vmax.f32 %v3406, 0.0
        %v3439 = vmax.f32 %v3407, 0.0
        %v3440 = vmax.f32 %v3408, 0.0
        %v3441 = vmax.f32 %v3409, 0.0
        %v3442 = vmax.f32 %v3410, 0.0
        %v3443 = vmax.f32 %v3411, 0.0
        %v3444 = vmax.f32 %v3412, 0.0
        %v3445 = vmax.f32 %v3413, 0.0
        %v3446 = vmax.f32 %v3414, 0.0
        %v3447 = vmax.f32 %v3415, 0.0
        %v3448 = vmax.f32 %v3416, 0.0
        %v3449 = vmax.f32 %v3417, 0.0
        %v3450 = vmax.f32 %v3418, 0.0
        %v3451 = vmax.f32 %v3419, 0.0
        %v3452 = vmax.f32 %v3420, 0.0
        %v3453 = vmax.f32 %v3421, 0.0
        %v3454 = vmax.f32 %v3422, 0.0
        %v3455 = vmax.f32 %v3423, 0.0
        %v3456 = vmax.f32 %v3424, 0.0
        %v3457 = vmax.f32 %v3425, 0.0
        %v3458 = vmax.f32 %v3426, 0.0
        %v3459 = vmax.f32 %v3427, 0.0
        %v3460 = vmax.f32 %v3428, 0.0
        %v3461 = vmax.f32 %v3429, 0.0
        %v3462 = vmax.f32 %v3430, 0.0
        %v3463 = vmax.f32 %v3431, 0.0
        %v3464 = vmax.f32 %v3432, 0.0
        %v3465 = vmax.f32 %v3433, 0.0
        %v3466 = vmax.f32 %v3434, 0.0
        %v3467 = vsub.f32 %v2347, 3.0
        %v3468 = vsub.f32 %v2348, 3.0
        %v3469 = vsub.f32 %v2349, 3.0
        %v3470 = vsub.f32 %v2350, 3.0
        %v3471 = vsub.f32 %v2351, 3.0
        %v3472 = vsub.f32 %v2352, 3.0
        %v3473 = vsub.f32 %v2353, 3.0
        %v3474 = vsub.f32 %v2354, 3.0
        %v3475 = vsub.f32 %v2355, 3.0
        %v3476 = vsub.f32 %v2356, 3.0
        %v3477 = vsub.f32 %v2357, 3.0
        %v3478 = vsub.f32 %v2358, 3.0
        %v3479 = vsub.f32 %v2359, 3.0
        %v3480 = vsub.f32 %v2360, 3.0
        %v3481 = vsub.f32 %v2361, 3.0
        %v3482 = vsub.f32 %v2362, 3.0
        %v3483 = vsub.f32 %v2363, 3.0
        %v3484 = vsub.f32 %v2364, 3.0
        %v3485 = vsub.f32 %v2365, 3.0
        %v3486 = vsub.f32 %v2366, 3.0
        %v3487 = vsub.f32 %v2367, 3.0
        %v3488 = vsub.f32 %v2368, 3.0
        %v3489 = vsub.f32 %v2369, 3.0
        %v3490 = vsub.f32 %v2370, 3.0
        %v3491 = vsub.f32 %v2371, 3.0
        %v3492 = vsub.f32 %v2372, 3.0
        %v3493 = vsub.f32 %v2373, 3.0
        %v3494 = vsub.f32 %v2374, 3.0
        %v3495 = vsub.f32 %v2375, 3.0
        %v3496 = vsub.f32 %v2376, 3.0
        %v3497 = vsub.f32 %v2377, 3.0
        %v3498 = vsub.f32 %v2378, 3.0
        %v3499 = vand.u32 2147483647, %v3467
        %v3500 = vand.u32 2147483647, %v3468
        %v3501 = vand.u32 2147483647, %v3469
        %v3502 = vand.u32 2147483647, %v3470
        %v3503 = vand.u32 2147483647, %v3471
        %v3504 = vand.u32 2147483647, %v3472
        %v3505 = vand.u32 2147483647, %v3473
        %v3506 = vand.u32 2147483647, %v3474
        %v3507 = vand.u32 2147483647, %v3475
        %v3508 = vand.u32 2147483647, %v3476
        %v3509 = vand.u32 2147483647, %v3477
        %v3510 = vand.u32 2147483647, %v3478
        %v3511 = vand.u32 2147483647, %v3479
        %v3512 = vand.u32 2147483647, %v3480
        %v3513 = vand.u32 2147483647, %v3481
        %v3514 = vand.u32 2147483647, %v3482
        %v3515 = vand.u32 2147483647, %v3483
        %v3516 = vand.u32 2147483647, %v3484
        %v3517 = vand.u32 2147483647, %v3485
        %v3518 = vand.u32 2147483647, %v3486
        %v3519 = vand.u32 2147483647, %v3487
        %v3520 = vand.u32 2147483647, %v3488
        %v3521 = vand.u32 2147483647, %v3489
        %v3522 = vand.u32 2147483647, %v3490
        %v3523 = vand.u32 2147483647, %v3491
        %v3524 = vand.u32 2147483647, %v3492
        %v3525 = vand.u32 2147483647, %v3493
        %v3526 = vand.u32 2147483647, %v3494
        %v3527 = vand.u32 2147483647, %v3495
        %v3528 = vand.u32 2147483647, %v3496
        %v3529 = vand.u32 2147483647, %v3497
        %v3530 = vand.u32 2147483647, %v3498
        %v3531 = vsub.f32 1.0, %v3499
        %v3532 = vsub.f32 1.0, %v3500
        %v3533 = vsub.f32 1.0, %v3501
        %v3534 = vsub.f32 1.0, %v3502
        %v3535 = vsub.f32 1.0, %v3503
        %v3536 = vsub.f32 1.0, %v3504
        %v3537 = vsub.f32 1.0, %v3505
        %v3538 = vsub.f32 1.0, %v3506
        %v3539 = vsub.f32 1.0, %v3507
        %v3540 = vsub.f32 1.0, %v3508
        %v3541 = vsub.f32 1.0, %v3509
        %v3542 = vsub.f32 1.0, %v3510
        %v3543 = vsub.f32 1.0, %v3511
        %v3544 = vsub.f32 1.0, %v3512
        %v3545 = vsub.f32 1.0, %v3513
        %v3546 = vsub.f32 1.0, %v3514
        %v3547 = vsub.f32 1.0, %v3515
        %v3548 = vsub.f32 1.0, %v3516
        %v3549 = vsub.f32 1.0, %v3517
        %v3550 = vsub.f32 1.0, %v3518
        %v3551 = vsub.f32 1.0, %v3519
        %v3552 = vsub.f32 1.0, %v3520
        %v3553 = vsub.f32 1.0, %v3521
        %v3554 = vsub.f32 1.0, %v3522
        %v3555 = vsub.f32 1.0, %v3523
        %v3556 = vsub.f32 1.0, %v3524
        %v3557 = vsub.f32 1.0, %v3525
        %v3558 = vsub.f32 1.0, %v3526
        %v3559 = vsub.f32 1.0, %v3527
        %v3560 = vsub.f32 1.0, %v3528
        %v3561 = vsub.f32 1.0, %v3529
        %v3562 = vsub.f32 1.0, %v3530
        %v3563 = vmax.f32 %v3531, 0.0
        %v3564 = vmax.f32 %v3532, 0.0
        %v3565 = vmax.f32 %v3533, 0.0
        %v3566 = vmax.f32 %v3534, 0.0
        %v3567 = vmax.f32 %v3535, 0.0
        %v3568 = vmax.f32 %v3536, 0.0
        %v3569 = vmax.f32 %v3537, 0.0
        %v3570 = vmax.f32 %v3538, 0.0
        %v3571 = vmax.f32 %v3539, 0.0
        %v3572 = vmax.f32 %v3540, 0.0
        %v3573 = vmax.f32 %v3541, 0.0
        %v3574 = vmax.f32 %v3542, 0.0
        %v3575 = vmax.f32 %v3543, 0.0
        %v3576 = vmax.f32 %v3544, 0.0
        %v3577 = vmax.f32 %v3545, 0.0
        %v3578 = vmax.f32 %v3546, 0.0
        %v3579 = vmax.f32 %v3547, 0.0
        %v3580 = vmax.f32 %v3548, 0.0
        %v3581 = vmax.f32 %v3549, 0.0
        %v3582 = vmax.f32 %v3550, 0.0
        %v3583 = vmax.f32 %v3551, 0.0
        %v3584 = vmax.f32 %v3552, 0.0
        %v3585 = vmax.f32 %v3553, 0.0
        %v3586 = vmax.f32 %v3554, 0.0
        %v3587 = vmax.f32 %v3555, 0.0
        %v3588 = vmax.f32 %v3556, 0.0
        %v3589 = vmax.f32 %v3557, 0.0
        %v3590 = vmax.f32 %v3558, 0.0
        %v3591 = vmax.f32 %v3559, 0.0
        %v3592 = vmax.f32 %v3560, 0.0
        %v3593 = vmax.f32 %v3561, 0.0
        %v3594 = vmax.f32 %v3562, 0.0
        %v3595 = vsub.f32 %v2347, 4.0
        %v3596 = vsub.f32 %v2348, 4.0
        %v3597 = vsub.f32 %v2349, 4.0
        %v3598 = vsub.f32 %v2350, 4.0
        %v3599 = vsub.f32 %v2351, 4.0
        %v3600 = vsub.f32 %v2352, 4.0
        %v3601 = vsub.f32 %v2353, 4.0
        %v3602 = vsub.f32 %v2354, 4.0
        %v3603 = vsub.f32 %v2355, 4.0
        %v3604 = vsub.f32 %v2356, 4.0
        %v3605 = vsub.f32 %v2357, 4.0
        %v3606 = vsub.f32 %v2358, 4.0
        %v3607 = vsub.f32 %v2359, 4.0
        %v3608 = vsub.f32 %v2360, 4.0
        %v3609 = vsub.f32 %v2361, 4.0
        %v3610 = vsub.f32 %v2362, 4.0
        %v3611 = vsub.f32 %v2363, 4.0
        %v3612 = vsub.f32 %v2364, 4.0
        %v3613 = vsub.f32 %v2365, 4.0
        %v3614 = vsub.f32 %v2366, 4.0
        %v3615 = vsub.f32 %v2367, 4.0
        %v3616 = vsub.f32 %v2368, 4.0
        %v3617 = vsub.f32 %v2369, 4.0
        %v3618 = vsub.f32 %v2370, 4.0
        %v3619 = vsub.f32 %v2371, 4.0
        %v3620 = vsub.f32 %v2372, 4.0
        %v3621 = vsub.f32 %v2373, 4.0
        %v3622 = vsub.f32 %v2374, 4.0
        %v3623 = vsub.f32 %v2375, 4.0
        %v3624 = vsub.f32 %v2376, 4.0
        %v3625 = vsub.f32 %v2377, 4.0
        %v3626 = vsub.f32 %v2378, 4.0
        %v3627 = vand.u32 2147483647, %v3595
        %v3628 = vand.u32 2147483647, %v3596
        %v3629 = vand.u32 2147483647, %v3597
        %v3630 = vand.u32 2147483647, %v3598
        %v3631 = vand.u32 2147483647, %v3599
        %v3632 = vand.u32 2147483647, %v3600
        %v3633 = vand.u32 2147483647, %v3601
        %v3634 = vand.u32 2147483647, %v3602
        %v3635 = vand.u32 2147483647, %v3603
        %v3636 = vand.u32 2147483647, %v3604
        %v3637 = vand.u32 2147483647, %v3605
        %v3638 = vand.u32 2147483647, %v3606
        %v3639 = vand.u32 2147483647, %v3607
        %v3640 = vand.u32 2147483647, %v3608
        %v3641 = vand.u32 2147483647, %v3609
        %v3642 = vand.u32 2147483647, %v3610
        %v3643 = vand.u32 2147483647, %v3611
        %v3644 = vand.u32 2147483647, %v3612
        %v3645 = vand.u32 2147483647, %v3613
        %v3646 = vand.u32 2147483647, %v3614
        %v3647 = vand.u32 2147483647, %v3615
        %v3648 = vand.u32 2147483647, %v3616
        %v3649 = vand.u32 2147483647, %v3617
        %v3650 = vand.u32 2147483647, %v3618
        %v3651 = vand.u32 2147483647, %v3619
        %v3652 = vand.u32 2147483647, %v3620
        %v3653 = vand.u32 2147483647, %v3621
        %v3654 = vand.u32 2147483647, %v3622
        %v3655 = vand.u32 2147483647, %v3623
        %v3656 = vand.u32 2147483647, %v3624
        %v3657 = vand.u32 2147483647, %v3625
        %v3658 = vand.u32 2147483647, %v3626
        %v3659 = vsub.f32 1.0, %v3627
        %v3660 = vsub.f32 1.0, %v3628
        %v3661 = vsub.f32 1.0, %v3629
        %v3662 = vsub.f32 1.0, %v3630
        %v3663 = vsub.f32 1.0, %v3631
        %v3664 = vsub.f32 1.0, %v3632
        %v3665 = vsub.f32 1.0, %v3633
        %v3666 = vsub.f32 1.0, %v3634
        %v3667 = vsub.f32 1.0, %v3635
        %v3668 = vsub.f32 1.0, %v3636
        %v3669 = vsub.f32 1.0, %v3637
        %v3670 = vsub.f32 1.0, %v3638
        %v3671 = vsub.f32 1.0, %v3639
        %v3672 = vsub.f32 1.0, %v3640
        %v3673 = vsub.f32 1.0, %v3641
        %v3674 = vsub.f32 1.0, %v3642
        %v3675 = vsub.f32 1.0, %v3643
        %v3676 = vsub.f32 1.0, %v3644
        %v3677 = vsub.f32 1.0, %v3645
        %v3678 = vsub.f32 1.0, %v3646
        %v3679 = vsub.f32 1.0, %v3647
        %v3680 = vsub.f32 1.0, %v3648
        %v3681 = vsub.f32 1.0, %v3649
        %v3682 = vsub.f32 1.0, %v3650
        %v3683 = vsub.f32 1.0, %v3651
        %v3684 = vsub.f32 1.0, %v3652
        %v3685 = vsub.f32 1.0, %v3653
        %v3686 = vsub.f32 1.0, %v3654
        %v3687 = vsub.f32 1.0, %v3655
        %v3688 = vsub.f32 1.0, %v3656
        %v3689 = vsub.f32 1.0, %v3657
        %v3690 = vsub.f32 1.0, %v3658
        %v3691 = vmax.f32 %v3659, 0.0
        %v3692 = vmax.f32 %v3660, 0.0
        %v3693 = vmax.f32 %v3661, 0.0
        %v3694 = vmax.f32 %v3662, 0.0
        %v3695 = vmax.f32 %v3663, 0.0
        %v3696 = vmax.f32 %v3664, 0.0
        %v3697 = vmax.f32 %v3665, 0.0
        %v3698 = vmax.f32 %v3666, 0.0
        %v3699 = vmax.f32 %v3667, 0.0
        %v3700 = vmax.f32 %v3668, 0.0
        %v3701 = vmax.f32 %v3669, 0.0
        %v3702 = vmax.f32 %v3670, 0.0
        %v3703 = vmax.f32 %v3671, 0.0
        %v3704 = vmax.f32 %v3672, 0.0
        %v3705 = vmax.f32 %v3673, 0.0
        %v3706 = vmax.f32 %v3674, 0.0
        %v3707 = vmax.f32 %v3675, 0.0
        %v3708 = vmax.f32 %v3676, 0.0
        %v3709 = vmax.f32 %v3677, 0.0
        %v3710 = vmax.f32 %v3678, 0.0
        %v3711 = vmax.f32 %v3679, 0.0
        %v3712 = vmax.f32 %v3680, 0.0
        %v3713 = vmax.f32 %v3681, 0.0
        %v3714 = vmax.f32 %v3682, 0.0
        %v3715 = vmax.f32 %v3683, 0.0
        %v3716 = vmax.f32 %v3684, 0.0
        %v3717 = vmax.f32 %v3685, 0.0
        %v3718 = vmax.f32 %v3686, 0.0
        %v3719 = vmax.f32 %v3687, 0.0
        %v3720 = vmax.f32 %v3688, 0.0
        %v3721 = vmax.f32 %v3689, 0.0
        %v3722 = vmax.f32 %v3690, 0.0
        %v3723 = vsub.f32 %v2347, 5.0
        %v3724 = vsub.f32 %v2348, 5.0
        %v3725 = vsub.f32 %v2349, 5.0
        %v3726 = vsub.f32 %v2350, 5.0
        %v3727 = vsub.f32 %v2351, 5.0
        %v3728 = vsub.f32 %v2352, 5.0
        %v3729 = vsub.f32 %v2353, 5.0
        %v3730 = vsub.f32 %v2354, 5.0
        %v3731 = vsub.f32 %v2355, 5.0
        %v3732 = vsub.f32 %v2356, 5.0
        %v3733 = vsub.f32 %v2357, 5.0
        %v3734 = vsub.f32 %v2358, 5.0
        %v3735 = vsub.f32 %v2359, 5.0
        %v3736 = vsub.f32 %v2360, 5.0
        %v3737 = vsub.f32 %v2361, 5.0
        %v3738 = vsub.f32 %v2362, 5.0
        %v3739 = vsub.f32 %v2363, 5.0
        %v3740 = vsub.f32 %v2364, 5.0
        %v3741 = vsub.f32 %v2365, 5.0
        %v3742 = vsub.f32 %v2366, 5.0
        %v3743 = vsub.f32 %v2367, 5.0
        %v3744 = vsub.f32 %v2368, 5.0
        %v3745 = vsub.f32 %v2369, 5.0
        %v3746 = vsub.f32 %v2370, 5.0
        %v3747 = vsub.f32 %v2371, 5.0
        %v3748 = vsub.f32 %v2372, 5.0
        %v3749 = vsub.f32 %v2373, 5.0
        %v3750 = vsub.f32 %v2374, 5.0
        %v3751 = vsub.f32 %v2375, 5.0
        %v3752 = vsub.f32 %v2376, 5.0
        %v3753 = vsub.f32 %v2377, 5.0
        %v3754 = vsub.f32 %v2378, 5.0
        %v3755 = vand.u32 2147483647, %v3723
        %v3756 = vand.u32 2147483647, %v3724
        %v3757 = vand.u32 2147483647, %v3725
        %v3758 = vand.u32 2147483647, %v3726
        %v3759 = vand.u32 2147483647, %v3727
        %v3760 = vand.u32 2147483647, %v3728
        %v3761 = vand.u32 2147483647, %v3729
        %v3762 = vand.u32 2147483647, %v3730
        %v3763 = vand.u32 2147483647, %v3731
        %v3764 = vand.u32 2147483647, %v3732
        %v3765 = vand.u32 2147483647, %v3733
        %v3766 = vand.u32 2147483647, %v3734
        %v3767 = vand.u32 2147483647, %v3735
        %v3768 = vand.u32 2147483647, %v3736
        %v3769 = vand.u32 2147483647, %v3737
        %v3770 = vand.u32 2147483647, %v3738
        %v3771 = vand.u32 2147483647, %v3739
        %v3772 = vand.u32 2147483647, %v3740
        %v3773 = vand.u32 2147483647, %v3741
        %v3774 = vand.u32 2147483647, %v3742
        %v3775 = vand.u32 2147483647, %v3743
        %v3776 = vand.u32 2147483647, %v3744
        %v3777 = vand.u32 2147483647, %v3745
        %v3778 = vand.u32 2147483647, %v3746
        %v3779 = vand.u32 2147483647, %v3747
        %v3780 = vand.u32 2147483647, %v3748
        %v3781 = vand.u32 2147483647, %v3749
        %v3782 = vand.u32 2147483647, %v3750
        %v3783 = vand.u32 2147483647, %v3751
        %v3784 = vand.u32 2147483647, %v3752
        %v3785 = vand.u32 2147483647, %v3753
        %v3786 = vand.u32 2147483647, %v3754
        %v3787 = vsub.f32 1.0, %v3755
        %v3788 = vsub.f32 1.0, %v3756
        %v3789 = vsub.f32 1.0, %v3757
        %v3790 = vsub.f32 1.0, %v3758
        %v3791 = vsub.f32 1.0, %v3759
        %v3792 = vsub.f32 1.0, %v3760
        %v3793 = vsub.f32 1.0, %v3761
        %v3794 = vsub.f32 1.0, %v3762
        %v3795 = vsub.f32 1.0, %v3763
        %v3796 = vsub.f32 1.0, %v3764
        %v3797 = vsub.f32 1.0, %v3765
        %v3798 = vsub.f32 1.0, %v3766
        %v3799 = vsub.f32 1.0, %v3767
        %v3800 = vsub.f32 1.0, %v3768
        %v3801 = vsub.f32 1.0, %v3769
        %v3802 = vsub.f32 1.0, %v3770
        %v3803 = vsub.f32 1.0, %v3771
        %v3804 = vsub.f32 1.0, %v3772
        %v3805 = vsub.f32 1.0, %v3773
        %v3806 = vsub.f32 1.0, %v3774
        %v3807 = vsub.f32 1.0, %v3775
        %v3808 = vsub.f32 1.0, %v3776
        %v3809 = vsub.f32 1.0, %v3777
        %v3810 = vsub.f32 1.0, %v3778
        %v3811 = vsub.f32 1.0, %v3779
        %v3812 = vsub.f32 1.0, %v3780
        %v3813 = vsub.f32 1.0, %v3781
        %v3814 = vsub.f32 1.0, %v3782
        %v3815 = vsub.f32 1.0, %v3783
        %v3816 = vsub.f32 1.0, %v3784
        %v3817 = vsub.f32 1.0, %v3785
        %v3818 = vsub.f32 1.0, %v3786
        %v3819 = vmax.f32 %v3787, 0.0
        %v3820 = vmax.f32 %v3788, 0.0
        %v3821 = vmax.f32 %v3789, 0.0
        %v3822 = vmax.f32 %v3790, 0.0
        %v3823 = vmax.f32 %v3791, 0.0
        %v3824 = vmax.f32 %v3792, 0.0
        %v3825 = vmax.f32 %v3793, 0.0
        %v3826 = vmax.f32 %v3794, 0.0
        %v3827 = vmax.f32 %v3795, 0.0
        %v3828 = vmax.f32 %v3796, 0.0
        %v3829 = vmax.f32 %v3797, 0.0
        %v3830 = vmax.f32 %v3798, 0.0
        %v3831 = vmax.f32 %v3799, 0.0
        %v3832 = vmax.f32 %v3800, 0.0
        %v3833 = vmax.f32 %v3801, 0.0
        %v3834 = vmax.f32 %v3802, 0.0
        %v3835 = vmax.f32 %v3803, 0.0
        %v3836 = vmax.f32 %v3804, 0.0
        %v3837 = vmax.f32 %v3805, 0.0
        %v3838 = vmax.f32 %v3806, 0.0
        %v3839 = vmax.f32 %v3807, 0.0
        %v3840 = vmax.f32 %v3808, 0.0
        %v3841 = vmax.f32 %v3809, 0.0
        %v3842 = vmax.f32 %v3810, 0.0
        %v3843 = vmax.f32 %v3811, 0.0
        %v3844 = vmax.f32 %v3812, 0.0
        %v3845 = vmax.f32 %v3813, 0.0
        %v3846 = vmax.f32 %v3814, 0.0
        %v3847 = vmax.f32 %v3815, 0.0
        %v3848 = vmax.f32 %v3816, 0.0
        %v3849 = vmax.f32 %v3817, 0.0
        %v3850 = vmax.f32 %v3818, 0.0
        loop: start=0, step=1, limit=10
        $region45: #{tpu_custom_call.1} parent=35 // loop_pre_header
          _
        $region46: #{tpu_custom_call.1} parent=35 // loop_header
          %s3852 = sphi 0, %s3856
          %p3853 = scmp.ge.s32.totalorder %s3852, 10
          %v3857 = vphi 0.0, %v7246
          %v3858 = vphi 0.0, %v7247
          %v3859 = vphi 0.0, %v7248
          %v3860 = vphi 0.0, %v7249
          %v3861 = vphi 0.0, %v7250
          %v3862 = vphi 0.0, %v7251
          %v3863 = vphi 0.0, %v7252
          %v3864 = vphi 0.0, %v7253
          %v3865 = vphi 0.0, %v7254
          %v3866 = vphi 0.0, %v7255
          %v3867 = vphi 0.0, %v7256
          %v3868 = vphi 0.0, %v7257
          %v3869 = vphi 0.0, %v7258
          %v3870 = vphi 0.0, %v7259
          %v3871 = vphi 0.0, %v7260
          %v3872 = vphi 0.0, %v7261
          %v3873 = vphi 0.0, %v7262
          %v3874 = vphi 0.0, %v7263
          %v3875 = vphi 0.0, %v7264
          %v3876 = vphi 0.0, %v7265
          %v3877 = vphi 0.0, %v7266
          %v3878 = vphi 0.0, %v7267
          %v3879 = vphi 0.0, %v7268
          %v3880 = vphi 0.0, %v7269
          %v3881 = vphi 0.0, %v7270
          %v3882 = vphi 0.0, %v7271
          %v3883 = vphi 0.0, %v7272
          %v3884 = vphi 0.0, %v7273
          %v3885 = vphi 0.0, %v7274
          %v3886 = vphi 0.0, %v7275
          %v3887 = vphi 0.0, %v7276
          %v3888 = vphi 0.0, %v7277
        $region47: #{tpu_custom_call.1} parent=35 // loop_header_branch
          %3855 = sbr.rel (%p3853) target = $region51
        $region48: #{tpu_custom_call.1} parent=35 // loop_body
          %s3889 = ssub.s32 %s3852, 4
          %s3890 = scvt.s32.f32 %s3889
          %v3891 = vstv %s3890
          %v3892 = vsub.f32 %v2347, %v3891
          %v3893 = vsub.f32 %v2348, %v3891
          %v3894 = vsub.f32 %v2349, %v3891
          %v3895 = vsub.f32 %v2350, %v3891
          %v3896 = vsub.f32 %v2351, %v3891
          %v3897 = vsub.f32 %v2352, %v3891
          %v3898 = vsub.f32 %v2353, %v3891
          %v3899 = vsub.f32 %v2354, %v3891
          %v3900 = vsub.f32 %v2355, %v3891
          %v3901 = vsub.f32 %v2356, %v3891
          %v3902 = vsub.f32 %v2357, %v3891
          %v3903 = vsub.f32 %v2358, %v3891
          %v3904 = vsub.f32 %v2359, %v3891
          %v3905 = vsub.f32 %v2360, %v3891
          %v3906 = vsub.f32 %v2361, %v3891
          %v3907 = vsub.f32 %v2362, %v3891
          %v3908 = vsub.f32 %v2363, %v3891
          %v3909 = vsub.f32 %v2364, %v3891
          %v3910 = vsub.f32 %v2365, %v3891
          %v3911 = vsub.f32 %v2366, %v3891
          %v3912 = vsub.f32 %v2367, %v3891
          %v3913 = vsub.f32 %v2368, %v3891
          %v3914 = vsub.f32 %v2369, %v3891
          %v3915 = vsub.f32 %v2370, %v3891
          %v3916 = vsub.f32 %v2371, %v3891
          %v3917 = vsub.f32 %v2372, %v3891
          %v3918 = vsub.f32 %v2373, %v3891
          %v3919 = vsub.f32 %v2374, %v3891
          %v3920 = vsub.f32 %v2375, %v3891
          %v3921 = vsub.f32 %v2376, %v3891
          %v3922 = vsub.f32 %v2377, %v3891
          %v3923 = vsub.f32 %v2378, %v3891
          %v3924 = vand.u32 2147483647, %v3892
          %v3925 = vand.u32 2147483647, %v3893
          %v3926 = vand.u32 2147483647, %v3894
          %v3927 = vand.u32 2147483647, %v3895
          %v3928 = vand.u32 2147483647, %v3896
          %v3929 = vand.u32 2147483647, %v3897
          %v3930 = vand.u32 2147483647, %v3898
          %v3931 = vand.u32 2147483647, %v3899
          %v3932 = vand.u32 2147483647, %v3900
          %v3933 = vand.u32 2147483647, %v3901
          %v3934 = vand.u32 2147483647, %v3902
          %v3935 = vand.u32 2147483647, %v3903
          %v3936 = vand.u32 2147483647, %v3904
          %v3937 = vand.u32 2147483647, %v3905
          %v3938 = vand.u32 2147483647, %v3906
          %v3939 = vand.u32 2147483647, %v3907
          %v3940 = vand.u32 2147483647, %v3908
          %v3941 = vand.u32 2147483647, %v3909
          %v3942 = vand.u32 2147483647, %v3910
          %v3943 = vand.u32 2147483647, %v3911
          %v3944 = vand.u32 2147483647, %v3912
          %v3945 = vand.u32 2147483647, %v3913
          %v3946 = vand.u32 2147483647, %v3914
          %v3947 = vand.u32 2147483647, %v3915
          %v3948 = vand.u32 2147483647, %v3916
          %v3949 = vand.u32 2147483647, %v3917
          %v3950 = vand.u32 2147483647, %v3918
          %v3951 = vand.u32 2147483647, %v3919
          %v3952 = vand.u32 2147483647, %v3920
          %v3953 = vand.u32 2147483647, %v3921
          %v3954 = vand.u32 2147483647, %v3922
          %v3955 = vand.u32 2147483647, %v3923
          %v3956 = vsub.f32 1.0, %v3924
          %v3957 = vsub.f32 1.0, %v3925
          %v3958 = vsub.f32 1.0, %v3926
          %v3959 = vsub.f32 1.0, %v3927
          %v3960 = vsub.f32 1.0, %v3928
          %v3961 = vsub.f32 1.0, %v3929
          %v3962 = vsub.f32 1.0, %v3930
          %v3963 = vsub.f32 1.0, %v3931
          %v3964 = vsub.f32 1.0, %v3932
          %v3965 = vsub.f32 1.0, %v3933
          %v3966 = vsub.f32 1.0, %v3934
          %v3967 = vsub.f32 1.0, %v3935
          %v3968 = vsub.f32 1.0, %v3936
          %v3969 = vsub.f32 1.0, %v3937
          %v3970 = vsub.f32 1.0, %v3938
          %v3971 = vsub.f32 1.0, %v3939
          %v3972 = vsub.f32 1.0, %v3940
          %v3973 = vsub.f32 1.0, %v3941
          %v3974 = vsub.f32 1.0, %v3942
          %v3975 = vsub.f32 1.0, %v3943
          %v3976 = vsub.f32 1.0, %v3944
          %v3977 = vsub.f32 1.0, %v3945
          %v3978 = vsub.f32 1.0, %v3946
          %v3979 = vsub.f32 1.0, %v3947
          %v3980 = vsub.f32 1.0, %v3948
          %v3981 = vsub.f32 1.0, %v3949
          %v3982 = vsub.f32 1.0, %v3950
          %v3983 = vsub.f32 1.0, %v3951
          %v3984 = vsub.f32 1.0, %v3952
          %v3985 = vsub.f32 1.0, %v3953
          %v3986 = vsub.f32 1.0, %v3954
          %v3987 = vsub.f32 1.0, %v3955
          %v3988 = vmax.f32 %v3956, 0.0
          %v3989 = vmax.f32 %v3957, 0.0
          %v3990 = vmax.f32 %v3958, 0.0
          %v3991 = vmax.f32 %v3959, 0.0
          %v3992 = vmax.f32 %v3960, 0.0
          %v3993 = vmax.f32 %v3961, 0.0
          %v3994 = vmax.f32 %v3962, 0.0
          %v3995 = vmax.f32 %v3963, 0.0
          %v3996 = vmax.f32 %v3964, 0.0
          %v3997 = vmax.f32 %v3965, 0.0
          %v3998 = vmax.f32 %v3966, 0.0
          %v3999 = vmax.f32 %v3967, 0.0
          %v4000 = vmax.f32 %v3968, 0.0
          %v4001 = vmax.f32 %v3969, 0.0
          %v4002 = vmax.f32 %v3970, 0.0
          %v4003 = vmax.f32 %v3971, 0.0
          %v4004 = vmax.f32 %v3972, 0.0
          %v4005 = vmax.f32 %v3973, 0.0
          %v4006 = vmax.f32 %v3974, 0.0
          %v4007 = vmax.f32 %v3975, 0.0
          %v4008 = vmax.f32 %v3976, 0.0
          %v4009 = vmax.f32 %v3977, 0.0
          %v4010 = vmax.f32 %v3978, 0.0
          %v4011 = vmax.f32 %v3979, 0.0
          %v4012 = vmax.f32 %v3980, 0.0
          %v4013 = vmax.f32 %v3981, 0.0
          %v4014 = vmax.f32 %v3982, 0.0
          %v4015 = vmax.f32 %v3983, 0.0
          %v4016 = vmax.f32 %v3984, 0.0
          %v4017 = vmax.f32 %v3985, 0.0
          %v4018 = vmax.f32 %v3986, 0.0
          %v4019 = vmax.f32 %v3987, 0.0
          %s4020 = sadd.s32 %s3852, 1
          %s4021 = smul.u32 %s4020, 32
          %s4022 = scalar_lea.vmem [#allocation2], %s4021
          %v4023 = vld [vmem:[%s4022] sm:$0xff]
          %v4024 = vld [vmem:[%s4022 + $0x8] sm:$0xff]
          %v4025 = vld [vmem:[%s4022 + $0x10] sm:$0xff]
          %v4026 = vld [vmem:[%s4022 + $0x18] sm:$0x3]
          %v4027 = vld [vmem:[%s4022 + $0x20] sm:$0xff]
          %v4028 = vld [vmem:[%s4022 + $0x28] sm:$0xff]
          %v4029 = vld [vmem:[%s4022 + $0x30] sm:$0xff]
          %v4030 = vld [vmem:[%s4022 + $0x38] sm:$0x3]
          %v4031 = vld [vmem:[%s4022 + $0x40] sm:$0xff]
          %v4032 = vld [vmem:[%s4022 + $0x48] sm:$0xff]
          %v4033 = vld [vmem:[%s4022 + $0x50] sm:$0xff]
          %v4034 = vld [vmem:[%s4022 + $0x58] sm:$0x3]
          %v4035 = vld [vmem:[%s4022 + $0x60] sm:$0xff]
          %v4036 = vld [vmem:[%s4022 + $0x68] sm:$0xff]
          %v4037 = vld [vmem:[%s4022 + $0x70] sm:$0xff]
          %v4038 = vld [vmem:[%s4022 + $0x78] sm:$0x3]
          %v4039 = vld [vmem:[%s4022 + $0x80] sm:$0xff]
          %v4040 = vld [vmem:[%s4022 + $0x88] sm:$0xff]
          %v4041 = vld [vmem:[%s4022 + $0x90] sm:$0xff]
          %v4042 = vld [vmem:[%s4022 + $0x98] sm:$0x3]
          %v4043 = vld [vmem:[%s4022 + $0xa0] sm:$0xff]
          %v4044 = vld [vmem:[%s4022 + $0xa8] sm:$0xff]
          %v4045 = vld [vmem:[%s4022 + $0xb0] sm:$0xff]
          %v4046 = vld [vmem:[%s4022 + $0xb8] sm:$0x3]
          %v4047 = vld [vmem:[%s4022 + $0xc0] sm:$0xff]
          %v4048 = vld [vmem:[%s4022 + $0xc8] sm:$0xff]
          %v4049 = vld [vmem:[%s4022 + $0xd0] sm:$0xff]
          %v4050 = vld [vmem:[%s4022 + $0xd8] sm:$0x3]
          %v4051 = vld [vmem:[%s4022 + $0xe0] sm:$0xff]
          %v4052 = vld [vmem:[%s4022 + $0xe8] sm:$0xff]
          %v4053 = vld [vmem:[%s4022 + $0xf0] sm:$0xff]
          %v4054 = vld [vmem:[%s4022 + $0xf8] sm:$0x3]
          %v4055 = vld [vmem:[%s4022 + $0x100] sm:$0xff]
          %v4056 = vld [vmem:[%s4022 + $0x108] sm:$0xff]
          %v4057 = vld [vmem:[%s4022 + $0x110] sm:$0xff]
          %v4058 = vld [vmem:[%s4022 + $0x118] sm:$0x3]
          %v4059 = vld [vmem:[%s4022 + $0x120] sm:$0xff]
          %v4060 = vld [vmem:[%s4022 + $0x128] sm:$0xff]
          %v4061 = vld [vmem:[%s4022 + $0x130] sm:$0xff]
          %v4062 = vld [vmem:[%s4022 + $0x138] sm:$0x3]
          %v4063 = vld [vmem:[%s4022 + $0x140] sm:$0xff]
          %v4064 = vld [vmem:[%s4022 + $0x148] sm:$0xff]
          %v4065 = vld [vmem:[%s4022 + $0x150] sm:$0xff]
          %v4066 = vld [vmem:[%s4022 + $0x158] sm:$0x3]
          %v4067 = vld [vmem:[%s4022 + $0x160] sm:$0xff]
          %v4068 = vld [vmem:[%s4022 + $0x168] sm:$0xff]
          %v4069 = vld [vmem:[%s4022 + $0x170] sm:$0xff]
          %v4070 = vld [vmem:[%s4022 + $0x178] sm:$0x3]
          %v4071 = vld [vmem:[%s4022 + $0x180] sm:$0xff]
          %v4072 = vld [vmem:[%s4022 + $0x188] sm:$0xff]
          %v4073 = vld [vmem:[%s4022 + $0x190] sm:$0xff]
          %v4074 = vld [vmem:[%s4022 + $0x198] sm:$0x3]
          %v4075 = vld [vmem:[%s4022 + $0x1a0] sm:$0xff]
          %v4076 = vld [vmem:[%s4022 + $0x1a8] sm:$0xff]
          %v4077 = vld [vmem:[%s4022 + $0x1b0] sm:$0xff]
          %v4078 = vld [vmem:[%s4022 + $0x1b8] sm:$0x3]
          %v4079 = vld [vmem:[%s4022 + $0x1c0] sm:$0xff]
          %v4080 = vld [vmem:[%s4022 + $0x1c8] sm:$0xff]
          %v4081 = vld [vmem:[%s4022 + $0x1d0] sm:$0xff]
          %v4082 = vld [vmem:[%s4022 + $0x1d8] sm:$0x3]
          %v4083 = vld [vmem:[%s4022 + $0x1e0] sm:$0xff]
          %v4084 = vld [vmem:[%s4022 + $0x1e8] sm:$0xff]
          %v4085 = vld [vmem:[%s4022 + $0x1f0] sm:$0xff]
          %v4086 = vld [vmem:[%s4022 + $0x1f8] sm:$0x3]
          %4119 = vrot.lane.b32.xlu0 %v2699, 96
          %v4120 = vpop.permute.xlu0 %4119
          %4121 = vrot.lane.b32.xlu0 %v2700, 96
          %v4122 = vpop.permute.xlu0 %4121
          %4123 = vrot.lane.b32.xlu0 %v2701, 96
          %v4124 = vpop.permute.xlu0 %4123
          %4125 = vrot.lane.b32.xlu0 %v2702, 96
          %v4126 = vpop.permute.xlu0 %4125
          %4127 = vrot.lane.b32.xlu0 %v2703, 96
          %v4128 = vpop.permute.xlu0 %4127
          %4129 = vrot.lane.b32.xlu0 %v2704, 96
          %v4130 = vpop.permute.xlu0 %4129
          %4131 = vrot.lane.b32.xlu0 %v2705, 96
          %v4132 = vpop.permute.xlu0 %4131
          %4133 = vrot.lane.b32.xlu0 %v2706, 96
          %v4134 = vpop.permute.xlu0 %4133
          %4135 = vrot.lane.b32.xlu0 %v2707, 96
          %v4136 = vpop.permute.xlu0 %4135
          %4137 = vrot.lane.b32.xlu0 %v2708, 96
          %v4138 = vpop.permute.xlu0 %4137
          %4139 = vrot.lane.b32.xlu0 %v2709, 96
          %v4140 = vpop.permute.xlu0 %4139
          %4141 = vrot.lane.b32.xlu0 %v2710, 96
          %v4142 = vpop.permute.xlu0 %4141
          %4143 = vrot.lane.b32.xlu0 %v2711, 96
          %v4144 = vpop.permute.xlu0 %4143
          %4145 = vrot.lane.b32.xlu0 %v2712, 96
          %v4146 = vpop.permute.xlu0 %4145
          %4147 = vrot.lane.b32.xlu0 %v2713, 96
          %v4148 = vpop.permute.xlu0 %4147
          %4149 = vrot.lane.b32.xlu0 %v2714, 96
          %v4150 = vpop.permute.xlu0 %4149
          %4151 = vrot.lane.b32.xlu0 %v2715, 96
          %v4152 = vpop.permute.xlu0 %4151
          %4153 = vrot.lane.b32.xlu0 %v2716, 96
          %v4154 = vpop.permute.xlu0 %4153
          %4155 = vrot.lane.b32.xlu0 %v2717, 96
          %v4156 = vpop.permute.xlu0 %4155
          %4157 = vrot.lane.b32.xlu0 %v2718, 96
          %v4158 = vpop.permute.xlu0 %4157
          %4159 = vrot.lane.b32.xlu0 %v2719, 96
          %v4160 = vpop.permute.xlu0 %4159
          %4161 = vrot.lane.b32.xlu0 %v2720, 96
          %v4162 = vpop.permute.xlu0 %4161
          %4163 = vrot.lane.b32.xlu0 %v2721, 96
          %v4164 = vpop.permute.xlu0 %4163
          %4165 = vrot.lane.b32.xlu0 %v2722, 96
          %v4166 = vpop.permute.xlu0 %4165
          %4167 = vrot.lane.b32.xlu0 %v2723, 96
          %v4168 = vpop.permute.xlu0 %4167
          %4169 = vrot.lane.b32.xlu0 %v2724, 96
          %v4170 = vpop.permute.xlu0 %4169
          %4171 = vrot.lane.b32.xlu0 %v2725, 96
          %v4172 = vpop.permute.xlu0 %4171
          %4173 = vrot.lane.b32.xlu0 %v2726, 96
          %v4174 = vpop.permute.xlu0 %4173
          %4175 = vrot.lane.b32.xlu0 %v2727, 96
          %v4176 = vpop.permute.xlu0 %4175
          %4177 = vrot.lane.b32.xlu0 %v2728, 96
          %v4178 = vpop.permute.xlu0 %4177
          %4179 = vrot.lane.b32.xlu0 %v2729, 96
          %v4180 = vpop.permute.xlu0 %4179
          %4181 = vrot.lane.b32.xlu0 %v2730, 96
          %v4182 = vpop.permute.xlu0 %4181
          %v4215 = vmul.f32 %v3988, %v4120
          %v4216 = vmul.f32 %v3989, %v4122
          %v4217 = vmul.f32 %v3990, %v4124
          %v4218 = vmul.f32 %v3991, %v4126
          %v4219 = vmul.f32 %v3992, %v4128
          %v4220 = vmul.f32 %v3993, %v4130
          %v4221 = vmul.f32 %v3994, %v4132
          %v4222 = vmul.f32 %v3995, %v4134
          %v4223 = vmul.f32 %v3996, %v4136
          %v4224 = vmul.f32 %v3997, %v4138
          %v4225 = vmul.f32 %v3998, %v4140
          %v4226 = vmul.f32 %v3999, %v4142
          %v4227 = vmul.f32 %v4000, %v4144
          %v4228 = vmul.f32 %v4001, %v4146
          %v4229 = vmul.f32 %v4002, %v4148
          %v4230 = vmul.f32 %v4003, %v4150
          %v4231 = vmul.f32 %v4004, %v4152
          %v4232 = vmul.f32 %v4005, %v4154
          %v4233 = vmul.f32 %v4006, %v4156
          %v4234 = vmul.f32 %v4007, %v4158
          %v4235 = vmul.f32 %v4008, %v4160
          %v4236 = vmul.f32 %v4009, %v4162
          %v4237 = vmul.f32 %v4010, %v4164
          %v4238 = vmul.f32 %v4011, %v4166
          %v4239 = vmul.f32 %v4012, %v4168
          %v4240 = vmul.f32 %v4013, %v4170
          %v4241 = vmul.f32 %v4014, %v4172
          %v4242 = vmul.f32 %v4015, %v4174
          %v4243 = vmul.f32 %v4016, %v4176
          %v4244 = vmul.f32 %v4017, %v4178
          %v4245 = vmul.f32 %v4018, %v4180
          %v4246 = vmul.f32 %v4019, %v4182
          %vm4295 = vcmask 1046528
          %v4296 = vrot.slane %v4023, 1
          %v4297 = vrot.slane %v4024, 1
          %v4298 = vsel %vm4295, %v4296, %v4297
          %v4299 = vrot.slane %v4025, 1
          %v4300 = vsel %vm4295, %v4297, %v4299
          %v4301 = vrot.slane %v4027, 1
          %v4302 = vrot.slane %v4028, 1
          %v4303 = vsel %vm4295, %v4301, %v4302
          %v4304 = vrot.slane %v4029, 1
          %v4305 = vsel %vm4295, %v4302, %v4304
          %v4306 = vrot.slane %v4031, 1
          %v4307 = vrot.slane %v4032, 1
          %v4308 = vsel %vm4295, %v4306, %v4307
          %v4309 = vrot.slane %v4033, 1
          %v4310 = vsel %vm4295, %v4307, %v4309
          %v4311 = vrot.slane %v4035, 1
          %v4312 = vrot.slane %v4036, 1
          %v4313 = vsel %vm4295, %v4311, %v4312
          %v4314 = vrot.slane %v4037, 1
          %v4315 = vsel %vm4295, %v4312, %v4314
          %v4316 = vrot.slane %v4039, 1
          %v4317 = vrot.slane %v4040, 1
          %v4318 = vsel %vm4295, %v4316, %v4317
          %v4319 = vrot.slane %v4041, 1
          %v4320 = vsel %vm4295, %v4317, %v4319
          %v4321 = vrot.slane %v4043, 1
          %v4322 = vrot.slane %v4044, 1
          %v4323 = vsel %vm4295, %v4321, %v4322
          %v4324 = vrot.slane %v4045, 1
          %v4325 = vsel %vm4295, %v4322, %v4324
          %v4326 = vrot.slane %v4047, 1
          %v4327 = vrot.slane %v4048, 1
          %v4328 = vsel %vm4295, %v4326, %v4327
          %v4329 = vrot.slane %v4049, 1
          %v4330 = vsel %vm4295, %v4327, %v4329
          %v4331 = vrot.slane %v4051, 1
          %v4332 = vrot.slane %v4052, 1
          %v4333 = vsel %vm4295, %v4331, %v4332
          %v4334 = vrot.slane %v4053, 1
          %v4335 = vsel %vm4295, %v4332, %v4334
          %v4336 = vrot.slane %v4055, 1
          %v4337 = vrot.slane %v4056, 1
          %v4338 = vsel %vm4295, %v4336, %v4337
          %v4339 = vrot.slane %v4057, 1
          %v4340 = vsel %vm4295, %v4337, %v4339
          %v4341 = vrot.slane %v4059, 1
          %v4342 = vrot.slane %v4060, 1
          %v4343 = vsel %vm4295, %v4341, %v4342
          %v4344 = vrot.slane %v4061, 1
          %v4345 = vsel %vm4295, %v4342, %v4344
          %v4346 = vrot.slane %v4063, 1
          %v4347 = vrot.slane %v4064, 1
          %v4348 = vsel %vm4295, %v4346, %v4347
          %v4349 = vrot.slane %v4065, 1
          %v4350 = vsel %vm4295, %v4347, %v4349
          %v4351 = vrot.slane %v4067, 1
          %v4352 = vrot.slane %v4068, 1
          %v4353 = vsel %vm4295, %v4351, %v4352
          %v4354 = vrot.slane %v4069, 1
          %v4355 = vsel %vm4295, %v4352, %v4354
          %v4356 = vrot.slane %v4071, 1
          %v4357 = vrot.slane %v4072, 1
          %v4358 = vsel %vm4295, %v4356, %v4357
          %v4359 = vrot.slane %v4073, 1
          %v4360 = vsel %vm4295, %v4357, %v4359
          %v4361 = vrot.slane %v4075, 1
          %v4362 = vrot.slane %v4076, 1
          %v4363 = vsel %vm4295, %v4361, %v4362
          %v4364 = vrot.slane %v4077, 1
          %v4365 = vsel %vm4295, %v4362, %v4364
          %v4366 = vrot.slane %v4079, 1
          %v4367 = vrot.slane %v4080, 1
          %v4368 = vsel %vm4295, %v4366, %v4367
          %v4369 = vrot.slane %v4081, 1
          %v4370 = vsel %vm4295, %v4367, %v4369
          %v4371 = vrot.slane %v4083, 1
          %v4372 = vrot.slane %v4084, 1
          %v4373 = vsel %vm4295, %v4371, %v4372
          %v4374 = vrot.slane %v4085, 1
          %v4375 = vsel %vm4295, %v4372, %v4374
          %v4408 = vmul.f32 %v4215, %v4298
          %v4409 = vmul.f32 %v4216, %v4300
          %v4410 = vmul.f32 %v4217, %v4303
          %v4411 = vmul.f32 %v4218, %v4305
          %v4412 = vmul.f32 %v4219, %v4308
          %v4413 = vmul.f32 %v4220, %v4310
          %v4414 = vmul.f32 %v4221, %v4313
          %v4415 = vmul.f32 %v4222, %v4315
          %v4416 = vmul.f32 %v4223, %v4318
          %v4417 = vmul.f32 %v4224, %v4320
          %v4418 = vmul.f32 %v4225, %v4323
          %v4419 = vmul.f32 %v4226, %v4325
          %v4420 = vmul.f32 %v4227, %v4328
          %v4421 = vmul.f32 %v4228, %v4330
          %v4422 = vmul.f32 %v4229, %v4333
          %v4423 = vmul.f32 %v4230, %v4335
          %v4424 = vmul.f32 %v4231, %v4338
          %v4425 = vmul.f32 %v4232, %v4340
          %v4426 = vmul.f32 %v4233, %v4343
          %v4427 = vmul.f32 %v4234, %v4345
          %v4428 = vmul.f32 %v4235, %v4348
          %v4429 = vmul.f32 %v4236, %v4350
          %v4430 = vmul.f32 %v4237, %v4353
          %v4431 = vmul.f32 %v4238, %v4355
          %v4432 = vmul.f32 %v4239, %v4358
          %v4433 = vmul.f32 %v4240, %v4360
          %v4434 = vmul.f32 %v4241, %v4363
          %v4435 = vmul.f32 %v4242, %v4365
          %v4436 = vmul.f32 %v4243, %v4368
          %v4437 = vmul.f32 %v4244, %v4370
          %v4438 = vmul.f32 %v4245, %v4373
          %v4439 = vmul.f32 %v4246, %v4375
          %v4440 = vadd.f32 %v3857, %v4408
          %v4441 = vadd.f32 %v3858, %v4409
          %v4442 = vadd.f32 %v3859, %v4410
          %v4443 = vadd.f32 %v3860, %v4411
          %v4444 = vadd.f32 %v3861, %v4412
          %v4445 = vadd.f32 %v3862, %v4413
          %v4446 = vadd.f32 %v3863, %v4414
          %v4447 = vadd.f32 %v3864, %v4415
          %v4448 = vadd.f32 %v3865, %v4416
          %v4449 = vadd.f32 %v3866, %v4417
          %v4450 = vadd.f32 %v3867, %v4418
          %v4451 = vadd.f32 %v3868, %v4419
          %v4452 = vadd.f32 %v3869, %v4420
          %v4453 = vadd.f32 %v3870, %v4421
          %v4454 = vadd.f32 %v3871, %v4422
          %v4455 = vadd.f32 %v3872, %v4423
          %v4456 = vadd.f32 %v3873, %v4424
          %v4457 = vadd.f32 %v3874, %v4425
          %v4458 = vadd.f32 %v3875, %v4426
          %v4459 = vadd.f32 %v3876, %v4427
          %v4460 = vadd.f32 %v3877, %v4428
          %v4461 = vadd.f32 %v3878, %v4429
          %v4462 = vadd.f32 %v3879, %v4430
          %v4463 = vadd.f32 %v3880, %v4431
          %v4464 = vadd.f32 %v3881, %v4432
          %v4465 = vadd.f32 %v3882, %v4433
          %v4466 = vadd.f32 %v3883, %v4434
          %v4467 = vadd.f32 %v3884, %v4435
          %v4468 = vadd.f32 %v3885, %v4436
          %v4469 = vadd.f32 %v3886, %v4437
          %v4470 = vadd.f32 %v3887, %v4438
          %v4471 = vadd.f32 %v3888, %v4439
          %4504 = vrot.lane.b32.xlu0 %v2827, 96
          %v4505 = vpop.permute.xlu0 %4504
          %4506 = vrot.lane.b32.xlu0 %v2828, 96
          %v4507 = vpop.permute.xlu0 %4506
          %4508 = vrot.lane.b32.xlu0 %v2829, 96
          %v4509 = vpop.permute.xlu0 %4508
          %4510 = vrot.lane.b32.xlu0 %v2830, 96
          %v4511 = vpop.permute.xlu0 %4510
          %4512 = vrot.lane.b32.xlu0 %v2831, 96
          %v4513 = vpop.permute.xlu0 %4512
          %4514 = vrot.lane.b32.xlu0 %v2832, 96
          %v4515 = vpop.permute.xlu0 %4514
          %4516 = vrot.lane.b32.xlu0 %v2833, 96
          %v4517 = vpop.permute.xlu0 %4516
          %4518 = vrot.lane.b32.xlu0 %v2834, 96
          %v4519 = vpop.permute.xlu0 %4518
          %4520 = vrot.lane.b32.xlu0 %v2835, 96
          %v4521 = vpop.permute.xlu0 %4520
          %4522 = vrot.lane.b32.xlu0 %v2836, 96
          %v4523 = vpop.permute.xlu0 %4522
          %4524 = vrot.lane.b32.xlu0 %v2837, 96
          %v4525 = vpop.permute.xlu0 %4524
          %4526 = vrot.lane.b32.xlu0 %v2838, 96
          %v4527 = vpop.permute.xlu0 %4526
          %4528 = vrot.lane.b32.xlu0 %v2839, 96
          %v4529 = vpop.permute.xlu0 %4528
          %4530 = vrot.lane.b32.xlu0 %v2840, 96
          %v4531 = vpop.permute.xlu0 %4530
          %4532 = vrot.lane.b32.xlu0 %v2841, 96
          %v4533 = vpop.permute.xlu0 %4532
          %4534 = vrot.lane.b32.xlu0 %v2842, 96
          %v4535 = vpop.permute.xlu0 %4534
          %4536 = vrot.lane.b32.xlu0 %v2843, 96
          %v4537 = vpop.permute.xlu0 %4536
          %4538 = vrot.lane.b32.xlu0 %v2844, 96
          %v4539 = vpop.permute.xlu0 %4538
          %4540 = vrot.lane.b32.xlu0 %v2845, 96
          %v4541 = vpop.permute.xlu0 %4540
          %4542 = vrot.lane.b32.xlu0 %v2846, 96
          %v4543 = vpop.permute.xlu0 %4542
          %4544 = vrot.lane.b32.xlu0 %v2847, 96
          %v4545 = vpop.permute.xlu0 %4544
          %4546 = vrot.lane.b32.xlu0 %v2848, 96
          %v4547 = vpop.permute.xlu0 %4546
          %4548 = vrot.lane.b32.xlu0 %v2849, 96
          %v4549 = vpop.permute.xlu0 %4548
          %4550 = vrot.lane.b32.xlu0 %v2850, 96
          %v4551 = vpop.permute.xlu0 %4550
          %4552 = vrot.lane.b32.xlu0 %v2851, 96
          %v4553 = vpop.permute.xlu0 %4552
          %4554 = vrot.lane.b32.xlu0 %v2852, 96
          %v4555 = vpop.permute.xlu0 %4554
          %4556 = vrot.lane.b32.xlu0 %v2853, 96
          %v4557 = vpop.permute.xlu0 %4556
          %4558 = vrot.lane.b32.xlu0 %v2854, 96
          %v4559 = vpop.permute.xlu0 %4558
          %4560 = vrot.lane.b32.xlu0 %v2855, 96
          %v4561 = vpop.permute.xlu0 %4560
          %4562 = vrot.lane.b32.xlu0 %v2856, 96
          %v4563 = vpop.permute.xlu0 %4562
          %4564 = vrot.lane.b32.xlu0 %v2857, 96
          %v4565 = vpop.permute.xlu0 %4564
          %4566 = vrot.lane.b32.xlu0 %v2858, 96
          %v4567 = vpop.permute.xlu0 %4566
          %v4600 = vmul.f32 %v3988, %v4505
          %v4601 = vmul.f32 %v3989, %v4507
          %v4602 = vmul.f32 %v3990, %v4509
          %v4603 = vmul.f32 %v3991, %v4511
          %v4604 = vmul.f32 %v3992, %v4513
          %v4605 = vmul.f32 %v3993, %v4515
          %v4606 = vmul.f32 %v3994, %v4517
          %v4607 = vmul.f32 %v3995, %v4519
          %v4608 = vmul.f32 %v3996, %v4521
          %v4609 = vmul.f32 %v3997, %v4523
          %v4610 = vmul.f32 %v3998, %v4525
          %v4611 = vmul.f32 %v3999, %v4527
          %v4612 = vmul.f32 %v4000, %v4529
          %v4613 = vmul.f32 %v4001, %v4531
          %v4614 = vmul.f32 %v4002, %v4533
          %v4615 = vmul.f32 %v4003, %v4535
          %v4616 = vmul.f32 %v4004, %v4537
          %v4617 = vmul.f32 %v4005, %v4539
          %v4618 = vmul.f32 %v4006, %v4541
          %v4619 = vmul.f32 %v4007, %v4543
          %v4620 = vmul.f32 %v4008, %v4545
          %v4621 = vmul.f32 %v4009, %v4547
          %v4622 = vmul.f32 %v4010, %v4549
          %v4623 = vmul.f32 %v4011, %v4551
          %v4624 = vmul.f32 %v4012, %v4553
          %v4625 = vmul.f32 %v4013, %v4555
          %v4626 = vmul.f32 %v4014, %v4557
          %v4627 = vmul.f32 %v4015, %v4559
          %v4628 = vmul.f32 %v4016, %v4561
          %v4629 = vmul.f32 %v4017, %v4563
          %v4630 = vmul.f32 %v4018, %v4565
          %v4631 = vmul.f32 %v4019, %v4567
          %vm4632 = vcmask 1045504
          %v4633 = vrot.slane %v4023, 2
          %v4634 = vrot.slane %v4024, 2
          %v4635 = vsel %vm4632, %v4633, %v4634
          %v4636 = vrot.slane %v4025, 2
          %v4637 = vsel %vm4632, %v4634, %v4636
          %v4638 = vrot.slane %v4027, 2
          %v4639 = vrot.slane %v4028, 2
          %v4640 = vsel %vm4632, %v4638, %v4639
          %v4641 = vrot.slane %v4029, 2
          %v4642 = vsel %vm4632, %v4639, %v4641
          %v4643 = vrot.slane %v4031, 2
          %v4644 = vrot.slane %v4032, 2
          %v4645 = vsel %vm4632, %v4643, %v4644
          %v4646 = vrot.slane %v4033, 2
          %v4647 = vsel %vm4632, %v4644, %v4646
          %v4648 = vrot.slane %v4035, 2
          %v4649 = vrot.slane %v4036, 2
          %v4650 = vsel %vm4632, %v4648, %v4649
          %v4651 = vrot.slane %v4037, 2
          %v4652 = vsel %vm4632, %v4649, %v4651
          %v4653 = vrot.slane %v4039, 2
          %v4654 = vrot.slane %v4040, 2
          %v4655 = vsel %vm4632, %v4653, %v4654
          %v4656 = vrot.slane %v4041, 2
          %v4657 = vsel %vm4632, %v4654, %v4656
          %v4658 = vrot.slane %v4043, 2
          %v4659 = vrot.slane %v4044, 2
          %v4660 = vsel %vm4632, %v4658, %v4659
          %v4661 = vrot.slane %v4045, 2
          %v4662 = vsel %vm4632, %v4659, %v4661
          %v4663 = vrot.slane %v4047, 2
          %v4664 = vrot.slane %v4048, 2
          %v4665 = vsel %vm4632, %v4663, %v4664
          %v4666 = vrot.slane %v4049, 2
          %v4667 = vsel %vm4632, %v4664, %v4666
          %v4668 = vrot.slane %v4051, 2
          %v4669 = vrot.slane %v4052, 2
          %v4670 = vsel %vm4632, %v4668, %v4669
          %v4671 = vrot.slane %v4053, 2
          %v4672 = vsel %vm4632, %v4669, %v4671
          %v4673 = vrot.slane %v4055, 2
          %v4674 = vrot.slane %v4056, 2
          %v4675 = vsel %vm4632, %v4673, %v4674
          %v4676 = vrot.slane %v4057, 2
          %v4677 = vsel %vm4632, %v4674, %v4676
          %v4678 = vrot.slane %v4059, 2
          %v4679 = vrot.slane %v4060, 2
          %v4680 = vsel %vm4632, %v4678, %v4679
          %v4681 = vrot.slane %v4061, 2
          %v4682 = vsel %vm4632, %v4679, %v4681
          %v4683 = vrot.slane %v4063, 2
          %v4684 = vrot.slane %v4064, 2
          %v4685 = vsel %vm4632, %v4683, %v4684
          %v4686 = vrot.slane %v4065, 2
          %v4687 = vsel %vm4632, %v4684, %v4686
          %v4688 = vrot.slane %v4067, 2
          %v4689 = vrot.slane %v4068, 2
          %v4690 = vsel %vm4632, %v4688, %v4689
          %v4691 = vrot.slane %v4069, 2
          %v4692 = vsel %vm4632, %v4689, %v4691
          %v4693 = vrot.slane %v4071, 2
          %v4694 = vrot.slane %v4072, 2
          %v4695 = vsel %vm4632, %v4693, %v4694
          %v4696 = vrot.slane %v4073, 2
          %v4697 = vsel %vm4632, %v4694, %v4696
          %v4698 = vrot.slane %v4075, 2
          %v4699 = vrot.slane %v4076, 2
          %v4700 = vsel %vm4632, %v4698, %v4699
          %v4701 = vrot.slane %v4077, 2
          %v4702 = vsel %vm4632, %v4699, %v4701
          %v4703 = vrot.slane %v4079, 2
          %v4704 = vrot.slane %v4080, 2
          %v4705 = vsel %vm4632, %v4703, %v4704
          %v4706 = vrot.slane %v4081, 2
          %v4707 = vsel %vm4632, %v4704, %v4706
          %v4708 = vrot.slane %v4083, 2
          %v4709 = vrot.slane %v4084, 2
          %v4710 = vsel %vm4632, %v4708, %v4709
          %v4711 = vrot.slane %v4085, 2
          %v4712 = vsel %vm4632, %v4709, %v4711
          %v4745 = vmul.f32 %v4600, %v4635
          %v4746 = vmul.f32 %v4601, %v4637
          %v4747 = vmul.f32 %v4602, %v4640
          %v4748 = vmul.f32 %v4603, %v4642
          %v4749 = vmul.f32 %v4604, %v4645
          %v4750 = vmul.f32 %v4605, %v4647
          %v4751 = vmul.f32 %v4606, %v4650
          %v4752 = vmul.f32 %v4607, %v4652
          %v4753 = vmul.f32 %v4608, %v4655
          %v4754 = vmul.f32 %v4609, %v4657
          %v4755 = vmul.f32 %v4610, %v4660
          %v4756 = vmul.f32 %v4611, %v4662
          %v4757 = vmul.f32 %v4612, %v4665
          %v4758 = vmul.f32 %v4613, %v4667
          %v4759 = vmul.f32 %v4614, %v4670
          %v4760 = vmul.f32 %v4615, %v4672
          %v4761 = vmul.f32 %v4616, %v4675
          %v4762 = vmul.f32 %v4617, %v4677
          %v4763 = vmul.f32 %v4618, %v4680
          %v4764 = vmul.f32 %v4619, %v4682
          %v4765 = vmul.f32 %v4620, %v4685
          %v4766 = vmul.f32 %v4621, %v4687
          %v4767 = vmul.f32 %v4622, %v4690
          %v4768 = vmul.f32 %v4623, %v4692
          %v4769 = vmul.f32 %v4624, %v4695
          %v4770 = vmul.f32 %v4625, %v4697
          %v4771 = vmul.f32 %v4626, %v4700
          %v4772 = vmul.f32 %v4627, %v4702
          %v4773 = vmul.f32 %v4628, %v4705
          %v4774 = vmul.f32 %v4629, %v4707
          %v4775 = vmul.f32 %v4630, %v4710
          %v4776 = vmul.f32 %v4631, %v4712
          %v4777 = vadd.f32 %v4440, %v4745
          %v4778 = vadd.f32 %v4441, %v4746
          %v4779 = vadd.f32 %v4442, %v4747
          %v4780 = vadd.f32 %v4443, %v4748
          %v4781 = vadd.f32 %v4444, %v4749
          %v4782 = vadd.f32 %v4445, %v4750
          %v4783 = vadd.f32 %v4446, %v4751
          %v4784 = vadd.f32 %v4447, %v4752
          %v4785 = vadd.f32 %v4448, %v4753
          %v4786 = vadd.f32 %v4449, %v4754
          %v4787 = vadd.f32 %v4450, %v4755
          %v4788 = vadd.f32 %v4451, %v4756
          %v4789 = vadd.f32 %v4452, %v4757
          %v4790 = vadd.f32 %v4453, %v4758
          %v4791 = vadd.f32 %v4454, %v4759
          %v4792 = vadd.f32 %v4455, %v4760
          %v4793 = vadd.f32 %v4456, %v4761
          %v4794 = vadd.f32 %v4457, %v4762
          %v4795 = vadd.f32 %v4458, %v4763
          %v4796 = vadd.f32 %v4459, %v4764
          %v4797 = vadd.f32 %v4460, %v4765
          %v4798 = vadd.f32 %v4461, %v4766
          %v4799 = vadd.f32 %v4462, %v4767
          %v4800 = vadd.f32 %v4463, %v4768
          %v4801 = vadd.f32 %v4464, %v4769
          %v4802 = vadd.f32 %v4465, %v4770
          %v4803 = vadd.f32 %v4466, %v4771
          %v4804 = vadd.f32 %v4467, %v4772
          %v4805 = vadd.f32 %v4468, %v4773
          %v4806 = vadd.f32 %v4469, %v4774
          %v4807 = vadd.f32 %v4470, %v4775
          %v4808 = vadd.f32 %v4471, %v4776
          %4841 = vrot.lane.b32.xlu0 %v2955, 96
          %v4842 = vpop.permute.xlu0 %4841
          %4843 = vrot.lane.b32.xlu0 %v2956, 96
          %v4844 = vpop.permute.xlu0 %4843
          %4845 = vrot.lane.b32.xlu0 %v2957, 96
          %v4846 = vpop.permute.xlu0 %4845
          %4847 = vrot.lane.b32.xlu0 %v2958, 96
          %v4848 = vpop.permute.xlu0 %4847
          %4849 = vrot.lane.b32.xlu0 %v2959, 96
          %v4850 = vpop.permute.xlu0 %4849
          %4851 = vrot.lane.b32.xlu0 %v2960, 96
          %v4852 = vpop.permute.xlu0 %4851
          %4853 = vrot.lane.b32.xlu0 %v2961, 96
          %v4854 = vpop.permute.xlu0 %4853
          %4855 = vrot.lane.b32.xlu0 %v2962, 96
          %v4856 = vpop.permute.xlu0 %4855
          %4857 = vrot.lane.b32.xlu0 %v2963, 96
          %v4858 = vpop.permute.xlu0 %4857
          %4859 = vrot.lane.b32.xlu0 %v2964, 96
          %v4860 = vpop.permute.xlu0 %4859
          %4861 = vrot.lane.b32.xlu0 %v2965, 96
          %v4862 = vpop.permute.xlu0 %4861
          %4863 = vrot.lane.b32.xlu0 %v2966, 96
          %v4864 = vpop.permute.xlu0 %4863
          %4865 = vrot.lane.b32.xlu0 %v2967, 96
          %v4866 = vpop.permute.xlu0 %4865
          %4867 = vrot.lane.b32.xlu0 %v2968, 96
          %v4868 = vpop.permute.xlu0 %4867
          %4869 = vrot.lane.b32.xlu0 %v2969, 96
          %v4870 = vpop.permute.xlu0 %4869
          %4871 = vrot.lane.b32.xlu0 %v2970, 96
          %v4872 = vpop.permute.xlu0 %4871
          %4873 = vrot.lane.b32.xlu0 %v2971, 96
          %v4874 = vpop.permute.xlu0 %4873
          %4875 = vrot.lane.b32.xlu0 %v2972, 96
          %v4876 = vpop.permute.xlu0 %4875
          %4877 = vrot.lane.b32.xlu0 %v2973, 96
          %v4878 = vpop.permute.xlu0 %4877
          %4879 = vrot.lane.b32.xlu0 %v2974, 96
          %v4880 = vpop.permute.xlu0 %4879
          %4881 = vrot.lane.b32.xlu0 %v2975, 96
          %v4882 = vpop.permute.xlu0 %4881
          %4883 = vrot.lane.b32.xlu0 %v2976, 96
          %v4884 = vpop.permute.xlu0 %4883
          %4885 = vrot.lane.b32.xlu0 %v2977, 96
          %v4886 = vpop.permute.xlu0 %4885
          %4887 = vrot.lane.b32.xlu0 %v2978, 96
          %v4888 = vpop.permute.xlu0 %4887
          %4889 = vrot.lane.b32.xlu0 %v2979, 96
          %v4890 = vpop.permute.xlu0 %4889
          %4891 = vrot.lane.b32.xlu0 %v2980, 96
          %v4892 = vpop.permute.xlu0 %4891
          %4893 = vrot.lane.b32.xlu0 %v2981, 96
          %v4894 = vpop.permute.xlu0 %4893
          %4895 = vrot.lane.b32.xlu0 %v2982, 96
          %v4896 = vpop.permute.xlu0 %4895
          %4897 = vrot.lane.b32.xlu0 %v2983, 96
          %v4898 = vpop.permute.xlu0 %4897
          %4899 = vrot.lane.b32.xlu0 %v2984, 96
          %v4900 = vpop.permute.xlu0 %4899
          %4901 = vrot.lane.b32.xlu0 %v2985, 96
          %v4902 = vpop.permute.xlu0 %4901
          %4903 = vrot.lane.b32.xlu0 %v2986, 96
          %v4904 = vpop.permute.xlu0 %4903
          %v4937 = vmul.f32 %v3988, %v4842
          %v4938 = vmul.f32 %v3989, %v4844
          %v4939 = vmul.f32 %v3990, %v4846
          %v4940 = vmul.f32 %v3991, %v4848
          %v4941 = vmul.f32 %v3992, %v4850
          %v4942 = vmul.f32 %v3993, %v4852
          %v4943 = vmul.f32 %v3994, %v4854
          %v4944 = vmul.f32 %v3995, %v4856
          %v4945 = vmul.f32 %v3996, %v4858
          %v4946 = vmul.f32 %v3997, %v4860
          %v4947 = vmul.f32 %v3998, %v4862
          %v4948 = vmul.f32 %v3999, %v4864
          %v4949 = vmul.f32 %v4000, %v4866
          %v4950 = vmul.f32 %v4001, %v4868
          %v4951 = vmul.f32 %v4002, %v4870
          %v4952 = vmul.f32 %v4003, %v4872
          %v4953 = vmul.f32 %v4004, %v4874
          %v4954 = vmul.f32 %v4005, %v4876
          %v4955 = vmul.f32 %v4006, %v4878
          %v4956 = vmul.f32 %v4007, %v4880
          %v4957 = vmul.f32 %v4008, %v4882
          %v4958 = vmul.f32 %v4009, %v4884
          %v4959 = vmul.f32 %v4010, %v4886
          %v4960 = vmul.f32 %v4011, %v4888
          %v4961 = vmul.f32 %v4012, %v4890
          %v4962 = vmul.f32 %v4013, %v4892
          %v4963 = vmul.f32 %v4014, %v4894
          %v4964 = vmul.f32 %v4015, %v4896
          %v4965 = vmul.f32 %v4016, %v4898
          %v4966 = vmul.f32 %v4017, %v4900
          %v4967 = vmul.f32 %v4018, %v4902
          %v4968 = vmul.f32 %v4019, %v4904
          %vm4969 = vcmask 1044480
          %v4970 = vrot.slane %v4023, 3
          %v4971 = vrot.slane %v4024, 3
          %v4972 = vsel %vm4969, %v4970, %v4971
          %v4973 = vrot.slane %v4025, 3
          %v4974 = vsel %vm4969, %v4971, %v4973
          %v4975 = vrot.slane %v4027, 3
          %v4976 = vrot.slane %v4028, 3
          %v4977 = vsel %vm4969, %v4975, %v4976
          %v4978 = vrot.slane %v4029, 3
          %v4979 = vsel %vm4969, %v4976, %v4978
          %v4980 = vrot.slane %v4031, 3
          %v4981 = vrot.slane %v4032, 3
          %v4982 = vsel %vm4969, %v4980, %v4981
          %v4983 = vrot.slane %v4033, 3
          %v4984 = vsel %vm4969, %v4981, %v4983
          %v4985 = vrot.slane %v4035, 3
          %v4986 = vrot.slane %v4036, 3
          %v4987 = vsel %vm4969, %v4985, %v4986
          %v4988 = vrot.slane %v4037, 3
          %v4989 = vsel %vm4969, %v4986, %v4988
          %v4990 = vrot.slane %v4039, 3
          %v4991 = vrot.slane %v4040, 3
          %v4992 = vsel %vm4969, %v4990, %v4991
          %v4993 = vrot.slane %v4041, 3
          %v4994 = vsel %vm4969, %v4991, %v4993
          %v4995 = vrot.slane %v4043, 3
          %v4996 = vrot.slane %v4044, 3
          %v4997 = vsel %vm4969, %v4995, %v4996
          %v4998 = vrot.slane %v4045, 3
          %v4999 = vsel %vm4969, %v4996, %v4998
          %v5000 = vrot.slane %v4047, 3
          %v5001 = vrot.slane %v4048, 3
          %v5002 = vsel %vm4969, %v5000, %v5001
          %v5003 = vrot.slane %v4049, 3
          %v5004 = vsel %vm4969, %v5001, %v5003
          %v5005 = vrot.slane %v4051, 3
          %v5006 = vrot.slane %v4052, 3
          %v5007 = vsel %vm4969, %v5005, %v5006
          %v5008 = vrot.slane %v4053, 3
          %v5009 = vsel %vm4969, %v5006, %v5008
          %v5010 = vrot.slane %v4055, 3
          %v5011 = vrot.slane %v4056, 3
          %v5012 = vsel %vm4969, %v5010, %v5011
          %v5013 = vrot.slane %v4057, 3
          %v5014 = vsel %vm4969, %v5011, %v5013
          %v5015 = vrot.slane %v4059, 3
          %v5016 = vrot.slane %v4060, 3
          %v5017 = vsel %vm4969, %v5015, %v5016
          %v5018 = vrot.slane %v4061, 3
          %v5019 = vsel %vm4969, %v5016, %v5018
          %v5020 = vrot.slane %v4063, 3
          %v5021 = vrot.slane %v4064, 3
          %v5022 = vsel %vm4969, %v5020, %v5021
          %v5023 = vrot.slane %v4065, 3
          %v5024 = vsel %vm4969, %v5021, %v5023
          %v5025 = vrot.slane %v4067, 3
          %v5026 = vrot.slane %v4068, 3
          %v5027 = vsel %vm4969, %v5025, %v5026
          %v5028 = vrot.slane %v4069, 3
          %v5029 = vsel %vm4969, %v5026, %v5028
          %v5030 = vrot.slane %v4071, 3
          %v5031 = vrot.slane %v4072, 3
          %v5032 = vsel %vm4969, %v5030, %v5031
          %v5033 = vrot.slane %v4073, 3
          %v5034 = vsel %vm4969, %v5031, %v5033
          %v5035 = vrot.slane %v4075, 3
          %v5036 = vrot.slane %v4076, 3
          %v5037 = vsel %vm4969, %v5035, %v5036
          %v5038 = vrot.slane %v4077, 3
          %v5039 = vsel %vm4969, %v5036, %v5038
          %v5040 = vrot.slane %v4079, 3
          %v5041 = vrot.slane %v4080, 3
          %v5042 = vsel %vm4969, %v5040, %v5041
          %v5043 = vrot.slane %v4081, 3
          %v5044 = vsel %vm4969, %v5041, %v5043
          %v5045 = vrot.slane %v4083, 3
          %v5046 = vrot.slane %v4084, 3
          %v5047 = vsel %vm4969, %v5045, %v5046
          %v5048 = vrot.slane %v4085, 3
          %v5049 = vsel %vm4969, %v5046, %v5048
          %v5082 = vmul.f32 %v4937, %v4972
          %v5083 = vmul.f32 %v4938, %v4974
          %v5084 = vmul.f32 %v4939, %v4977
          %v5085 = vmul.f32 %v4940, %v4979
          %v5086 = vmul.f32 %v4941, %v4982
          %v5087 = vmul.f32 %v4942, %v4984
          %v5088 = vmul.f32 %v4943, %v4987
          %v5089 = vmul.f32 %v4944, %v4989
          %v5090 = vmul.f32 %v4945, %v4992
          %v5091 = vmul.f32 %v4946, %v4994
          %v5092 = vmul.f32 %v4947, %v4997
          %v5093 = vmul.f32 %v4948, %v4999
          %v5094 = vmul.f32 %v4949, %v5002
          %v5095 = vmul.f32 %v4950, %v5004
          %v5096 = vmul.f32 %v4951, %v5007
          %v5097 = vmul.f32 %v4952, %v5009
          %v5098 = vmul.f32 %v4953, %v5012
          %v5099 = vmul.f32 %v4954, %v5014
          %v5100 = vmul.f32 %v4955, %v5017
          %v5101 = vmul.f32 %v4956, %v5019
          %v5102 = vmul.f32 %v4957, %v5022
          %v5103 = vmul.f32 %v4958, %v5024
          %v5104 = vmul.f32 %v4959, %v5027
          %v5105 = vmul.f32 %v4960, %v5029
          %v5106 = vmul.f32 %v4961, %v5032
          %v5107 = vmul.f32 %v4962, %v5034
          %v5108 = vmul.f32 %v4963, %v5037
          %v5109 = vmul.f32 %v4964, %v5039
          %v5110 = vmul.f32 %v4965, %v5042
          %v5111 = vmul.f32 %v4966, %v5044
          %v5112 = vmul.f32 %v4967, %v5047
          %v5113 = vmul.f32 %v4968, %v5049
          %v5114 = vadd.f32 %v4777, %v5082
          %v5115 = vadd.f32 %v4778, %v5083
          %v5116 = vadd.f32 %v4779, %v5084
          %v5117 = vadd.f32 %v4780, %v5085
          %v5118 = vadd.f32 %v4781, %v5086
          %v5119 = vadd.f32 %v4782, %v5087
          %v5120 = vadd.f32 %v4783, %v5088
          %v5121 = vadd.f32 %v4784, %v5089
          %v5122 = vadd.f32 %v4785, %v5090
          %v5123 = vadd.f32 %v4786, %v5091
          %v5124 = vadd.f32 %v4787, %v5092
          %v5125 = vadd.f32 %v4788, %v5093
          %v5126 = vadd.f32 %v4789, %v5094
          %v5127 = vadd.f32 %v4790, %v5095
          %v5128 = vadd.f32 %v4791, %v5096
          %v5129 = vadd.f32 %v4792, %v5097
          %v5130 = vadd.f32 %v4793, %v5098
          %v5131 = vadd.f32 %v4794, %v5099
          %v5132 = vadd.f32 %v4795, %v5100
          %v5133 = vadd.f32 %v4796, %v5101
          %v5134 = vadd.f32 %v4797, %v5102
          %v5135 = vadd.f32 %v4798, %v5103
          %v5136 = vadd.f32 %v4799, %v5104
          %v5137 = vadd.f32 %v4800, %v5105
          %v5138 = vadd.f32 %v4801, %v5106
          %v5139 = vadd.f32 %v4802, %v5107
          %v5140 = vadd.f32 %v4803, %v5108
          %v5141 = vadd.f32 %v4804, %v5109
          %v5142 = vadd.f32 %v4805, %v5110
          %v5143 = vadd.f32 %v4806, %v5111
          %v5144 = vadd.f32 %v4807, %v5112
          %v5145 = vadd.f32 %v4808, %v5113
          %5178 = vrot.lane.b32.xlu0 %v3083, 96
          %v5179 = vpop.permute.xlu0 %5178
          %5180 = vrot.lane.b32.xlu0 %v3084, 96
          %v5181 = vpop.permute.xlu0 %5180
          %5182 = vrot.lane.b32.xlu0 %v3085, 96
          %v5183 = vpop.permute.xlu0 %5182
          %5184 = vrot.lane.b32.xlu0 %v3086, 96
          %v5185 = vpop.permute.xlu0 %5184
          %5186 = vrot.lane.b32.xlu0 %v3087, 96
          %v5187 = vpop.permute.xlu0 %5186
          %5188 = vrot.lane.b32.xlu0 %v3088, 96
          %v5189 = vpop.permute.xlu0 %5188
          %5190 = vrot.lane.b32.xlu0 %v3089, 96
          %v5191 = vpop.permute.xlu0 %5190
          %5192 = vrot.lane.b32.xlu0 %v3090, 96
          %v5193 = vpop.permute.xlu0 %5192
          %5194 = vrot.lane.b32.xlu0 %v3091, 96
          %v5195 = vpop.permute.xlu0 %5194
          %5196 = vrot.lane.b32.xlu0 %v3092, 96
          %v5197 = vpop.permute.xlu0 %5196
          %5198 = vrot.lane.b32.xlu0 %v3093, 96
          %v5199 = vpop.permute.xlu0 %5198
          %5200 = vrot.lane.b32.xlu0 %v3094, 96
          %v5201 = vpop.permute.xlu0 %5200
          %5202 = vrot.lane.b32.xlu0 %v3095, 96
          %v5203 = vpop.permute.xlu0 %5202
          %5204 = vrot.lane.b32.xlu0 %v3096, 96
          %v5205 = vpop.permute.xlu0 %5204
          %5206 = vrot.lane.b32.xlu0 %v3097, 96
          %v5207 = vpop.permute.xlu0 %5206
          %5208 = vrot.lane.b32.xlu0 %v3098, 96
          %v5209 = vpop.permute.xlu0 %5208
          %5210 = vrot.lane.b32.xlu0 %v3099, 96
          %v5211 = vpop.permute.xlu0 %5210
          %5212 = vrot.lane.b32.xlu0 %v3100, 96
          %v5213 = vpop.permute.xlu0 %5212
          %5214 = vrot.lane.b32.xlu0 %v3101, 96
          %v5215 = vpop.permute.xlu0 %5214
          %5216 = vrot.lane.b32.xlu0 %v3102, 96
          %v5217 = vpop.permute.xlu0 %5216
          %5218 = vrot.lane.b32.xlu0 %v3103, 96
          %v5219 = vpop.permute.xlu0 %5218
          %5220 = vrot.lane.b32.xlu0 %v3104, 96
          %v5221 = vpop.permute.xlu0 %5220
          %5222 = vrot.lane.b32.xlu0 %v3105, 96
          %v5223 = vpop.permute.xlu0 %5222
          %5224 = vrot.lane.b32.xlu0 %v3106, 96
          %v5225 = vpop.permute.xlu0 %5224
          %5226 = vrot.lane.b32.xlu0 %v3107, 96
          %v5227 = vpop.permute.xlu0 %5226
          %5228 = vrot.lane.b32.xlu0 %v3108, 96
          %v5229 = vpop.permute.xlu0 %5228
          %5230 = vrot.lane.b32.xlu0 %v3109, 96
          %v5231 = vpop.permute.xlu0 %5230
          %5232 = vrot.lane.b32.xlu0 %v3110, 96
          %v5233 = vpop.permute.xlu0 %5232
          %5234 = vrot.lane.b32.xlu0 %v3111, 96
          %v5235 = vpop.permute.xlu0 %5234
          %5236 = vrot.lane.b32.xlu0 %v3112, 96
          %v5237 = vpop.permute.xlu0 %5236
          %5238 = vrot.lane.b32.xlu0 %v3113, 96
          %v5239 = vpop.permute.xlu0 %5238
          %5240 = vrot.lane.b32.xlu0 %v3114, 96
          %v5241 = vpop.permute.xlu0 %5240
          %v5274 = vmul.f32 %v3988, %v5179
          %v5275 = vmul.f32 %v3989, %v5181
          %v5276 = vmul.f32 %v3990, %v5183
          %v5277 = vmul.f32 %v3991, %v5185
          %v5278 = vmul.f32 %v3992, %v5187
          %v5279 = vmul.f32 %v3993, %v5189
          %v5280 = vmul.f32 %v3994, %v5191
          %v5281 = vmul.f32 %v3995, %v5193
          %v5282 = vmul.f32 %v3996, %v5195
          %v5283 = vmul.f32 %v3997, %v5197
          %v5284 = vmul.f32 %v3998, %v5199
          %v5285 = vmul.f32 %v3999, %v5201
          %v5286 = vmul.f32 %v4000, %v5203
          %v5287 = vmul.f32 %v4001, %v5205
          %v5288 = vmul.f32 %v4002, %v5207
          %v5289 = vmul.f32 %v4003, %v5209
          %v5290 = vmul.f32 %v4004, %v5211
          %v5291 = vmul.f32 %v4005, %v5213
          %v5292 = vmul.f32 %v4006, %v5215
          %v5293 = vmul.f32 %v4007, %v5217
          %v5294 = vmul.f32 %v4008, %v5219
          %v5295 = vmul.f32 %v4009, %v5221
          %v5296 = vmul.f32 %v4010, %v5223
          %v5297 = vmul.f32 %v4011, %v5225
          %v5298 = vmul.f32 %v4012, %v5227
          %v5299 = vmul.f32 %v4013, %v5229
          %v5300 = vmul.f32 %v4014, %v5231
          %v5301 = vmul.f32 %v4015, %v5233
          %v5302 = vmul.f32 %v4016, %v5235
          %v5303 = vmul.f32 %v4017, %v5237
          %v5304 = vmul.f32 %v4018, %v5239
          %v5305 = vmul.f32 %v4019, %v5241
          %vm5306 = vcmask 1043456
          %v5307 = vrot.slane %v4023, 4
          %v5308 = vrot.slane %v4024, 4
          %v5309 = vsel %vm5306, %v5307, %v5308
          %v5310 = vrot.slane %v4025, 4
          %v5311 = vsel %vm5306, %v5308, %v5310
          %v5312 = vrot.slane %v4027, 4
          %v5313 = vrot.slane %v4028, 4
          %v5314 = vsel %vm5306, %v5312, %v5313
          %v5315 = vrot.slane %v4029, 4
          %v5316 = vsel %vm5306, %v5313, %v5315
          %v5317 = vrot.slane %v4031, 4
          %v5318 = vrot.slane %v4032, 4
          %v5319 = vsel %vm5306, %v5317, %v5318
          %v5320 = vrot.slane %v4033, 4
          %v5321 = vsel %vm5306, %v5318, %v5320
          %v5322 = vrot.slane %v4035, 4
          %v5323 = vrot.slane %v4036, 4
          %v5324 = vsel %vm5306, %v5322, %v5323
          %v5325 = vrot.slane %v4037, 4
          %v5326 = vsel %vm5306, %v5323, %v5325
          %v5327 = vrot.slane %v4039, 4
          %v5328 = vrot.slane %v4040, 4
          %v5329 = vsel %vm5306, %v5327, %v5328
          %v5330 = vrot.slane %v4041, 4
          %v5331 = vsel %vm5306, %v5328, %v5330
          %v5332 = vrot.slane %v4043, 4
          %v5333 = vrot.slane %v4044, 4
          %v5334 = vsel %vm5306, %v5332, %v5333
          %v5335 = vrot.slane %v4045, 4
          %v5336 = vsel %vm5306, %v5333, %v5335
          %v5337 = vrot.slane %v4047, 4
          %v5338 = vrot.slane %v4048, 4
          %v5339 = vsel %vm5306, %v5337, %v5338
          %v5340 = vrot.slane %v4049, 4
          %v5341 = vsel %vm5306, %v5338, %v5340
          %v5342 = vrot.slane %v4051, 4
          %v5343 = vrot.slane %v4052, 4
          %v5344 = vsel %vm5306, %v5342, %v5343
          %v5345 = vrot.slane %v4053, 4
          %v5346 = vsel %vm5306, %v5343, %v5345
          %v5347 = vrot.slane %v4055, 4
          %v5348 = vrot.slane %v4056, 4
          %v5349 = vsel %vm5306, %v5347, %v5348
          %v5350 = vrot.slane %v4057, 4
          %v5351 = vsel %vm5306, %v5348, %v5350
          %v5352 = vrot.slane %v4059, 4
          %v5353 = vrot.slane %v4060, 4
          %v5354 = vsel %vm5306, %v5352, %v5353
          %v5355 = vrot.slane %v4061, 4
          %v5356 = vsel %vm5306, %v5353, %v5355
          %v5357 = vrot.slane %v4063, 4
          %v5358 = vrot.slane %v4064, 4
          %v5359 = vsel %vm5306, %v5357, %v5358
          %v5360 = vrot.slane %v4065, 4
          %v5361 = vsel %vm5306, %v5358, %v5360
          %v5362 = vrot.slane %v4067, 4
          %v5363 = vrot.slane %v4068, 4
          %v5364 = vsel %vm5306, %v5362, %v5363
          %v5365 = vrot.slane %v4069, 4
          %v5366 = vsel %vm5306, %v5363, %v5365
          %v5367 = vrot.slane %v4071, 4
          %v5368 = vrot.slane %v4072, 4
          %v5369 = vsel %vm5306, %v5367, %v5368
          %v5370 = vrot.slane %v4073, 4
          %v5371 = vsel %vm5306, %v5368, %v5370
          %v5372 = vrot.slane %v4075, 4
          %v5373 = vrot.slane %v4076, 4
          %v5374 = vsel %vm5306, %v5372, %v5373
          %v5375 = vrot.slane %v4077, 4
          %v5376 = vsel %vm5306, %v5373, %v5375
          %v5377 = vrot.slane %v4079, 4
          %v5378 = vrot.slane %v4080, 4
          %v5379 = vsel %vm5306, %v5377, %v5378
          %v5380 = vrot.slane %v4081, 4
          %v5381 = vsel %vm5306, %v5378, %v5380
          %v5382 = vrot.slane %v4083, 4
          %v5383 = vrot.slane %v4084, 4
          %v5384 = vsel %vm5306, %v5382, %v5383
          %v5385 = vrot.slane %v4085, 4
          %v5386 = vsel %vm5306, %v5383, %v5385
          %v5419 = vmul.f32 %v5274, %v5309
          %v5420 = vmul.f32 %v5275, %v5311
          %v5421 = vmul.f32 %v5276, %v5314
          %v5422 = vmul.f32 %v5277, %v5316
          %v5423 = vmul.f32 %v5278, %v5319
          %v5424 = vmul.f32 %v5279, %v5321
          %v5425 = vmul.f32 %v5280, %v5324
          %v5426 = vmul.f32 %v5281, %v5326
          %v5427 = vmul.f32 %v5282, %v5329
          %v5428 = vmul.f32 %v5283, %v5331
          %v5429 = vmul.f32 %v5284, %v5334
          %v5430 = vmul.f32 %v5285, %v5336
          %v5431 = vmul.f32 %v5286, %v5339
          %v5432 = vmul.f32 %v5287, %v5341
          %v5433 = vmul.f32 %v5288, %v5344
          %v5434 = vmul.f32 %v5289, %v5346
          %v5435 = vmul.f32 %v5290, %v5349
          %v5436 = vmul.f32 %v5291, %v5351
          %v5437 = vmul.f32 %v5292, %v5354
          %v5438 = vmul.f32 %v5293, %v5356
          %v5439 = vmul.f32 %v5294, %v5359
          %v5440 = vmul.f32 %v5295, %v5361
          %v5441 = vmul.f32 %v5296, %v5364
          %v5442 = vmul.f32 %v5297, %v5366
          %v5443 = vmul.f32 %v5298, %v5369
          %v5444 = vmul.f32 %v5299, %v5371
          %v5445 = vmul.f32 %v5300, %v5374
          %v5446 = vmul.f32 %v5301, %v5376
          %v5447 = vmul.f32 %v5302, %v5379
          %v5448 = vmul.f32 %v5303, %v5381
          %v5449 = vmul.f32 %v5304, %v5384
          %v5450 = vmul.f32 %v5305, %v5386
          %v5451 = vadd.f32 %v5114, %v5419
          %v5452 = vadd.f32 %v5115, %v5420
          %v5453 = vadd.f32 %v5116, %v5421
          %v5454 = vadd.f32 %v5117, %v5422
          %v5455 = vadd.f32 %v5118, %v5423
          %v5456 = vadd.f32 %v5119, %v5424
          %v5457 = vadd.f32 %v5120, %v5425
          %v5458 = vadd.f32 %v5121, %v5426
          %v5459 = vadd.f32 %v5122, %v5427
          %v5460 = vadd.f32 %v5123, %v5428
          %v5461 = vadd.f32 %v5124, %v5429
          %v5462 = vadd.f32 %v5125, %v5430
          %v5463 = vadd.f32 %v5126, %v5431
          %v5464 = vadd.f32 %v5127, %v5432
          %v5465 = vadd.f32 %v5128, %v5433
          %v5466 = vadd.f32 %v5129, %v5434
          %v5467 = vadd.f32 %v5130, %v5435
          %v5468 = vadd.f32 %v5131, %v5436
          %v5469 = vadd.f32 %v5132, %v5437
          %v5470 = vadd.f32 %v5133, %v5438
          %v5471 = vadd.f32 %v5134, %v5439
          %v5472 = vadd.f32 %v5135, %v5440
          %v5473 = vadd.f32 %v5136, %v5441
          %v5474 = vadd.f32 %v5137, %v5442
          %v5475 = vadd.f32 %v5138, %v5443
          %v5476 = vadd.f32 %v5139, %v5444
          %v5477 = vadd.f32 %v5140, %v5445
          %v5478 = vadd.f32 %v5141, %v5446
          %v5479 = vadd.f32 %v5142, %v5447
          %v5480 = vadd.f32 %v5143, %v5448
          %v5481 = vadd.f32 %v5144, %v5449
          %v5482 = vadd.f32 %v5145, %v5450
          %5515 = vrot.lane.b32.xlu0 %v3179, 96
          %v5516 = vpop.permute.xlu0 %5515
          %5517 = vrot.lane.b32.xlu0 %v3180, 96
          %v5518 = vpop.permute.xlu0 %5517
          %5519 = vrot.lane.b32.xlu0 %v3181, 96
          %v5520 = vpop.permute.xlu0 %5519
          %5521 = vrot.lane.b32.xlu0 %v3182, 96
          %v5522 = vpop.permute.xlu0 %5521
          %5523 = vrot.lane.b32.xlu0 %v3183, 96
          %v5524 = vpop.permute.xlu0 %5523
          %5525 = vrot.lane.b32.xlu0 %v3184, 96
          %v5526 = vpop.permute.xlu0 %5525
          %5527 = vrot.lane.b32.xlu0 %v3185, 96
          %v5528 = vpop.permute.xlu0 %5527
          %5529 = vrot.lane.b32.xlu0 %v3186, 96
          %v5530 = vpop.permute.xlu0 %5529
          %5531 = vrot.lane.b32.xlu0 %v3187, 96
          %v5532 = vpop.permute.xlu0 %5531
          %5533 = vrot.lane.b32.xlu0 %v3188, 96
          %v5534 = vpop.permute.xlu0 %5533
          %5535 = vrot.lane.b32.xlu0 %v3189, 96
          %v5536 = vpop.permute.xlu0 %5535
          %5537 = vrot.lane.b32.xlu0 %v3190, 96
          %v5538 = vpop.permute.xlu0 %5537
          %5539 = vrot.lane.b32.xlu0 %v3191, 96
          %v5540 = vpop.permute.xlu0 %5539
          %5541 = vrot.lane.b32.xlu0 %v3192, 96
          %v5542 = vpop.permute.xlu0 %5541
          %5543 = vrot.lane.b32.xlu0 %v3193, 96
          %v5544 = vpop.permute.xlu0 %5543
          %5545 = vrot.lane.b32.xlu0 %v3194, 96
          %v5546 = vpop.permute.xlu0 %5545
          %5547 = vrot.lane.b32.xlu0 %v3195, 96
          %v5548 = vpop.permute.xlu0 %5547
          %5549 = vrot.lane.b32.xlu0 %v3196, 96
          %v5550 = vpop.permute.xlu0 %5549
          %5551 = vrot.lane.b32.xlu0 %v3197, 96
          %v5552 = vpop.permute.xlu0 %5551
          %5553 = vrot.lane.b32.xlu0 %v3198, 96
          %v5554 = vpop.permute.xlu0 %5553
          %5555 = vrot.lane.b32.xlu0 %v3199, 96
          %v5556 = vpop.permute.xlu0 %5555
          %5557 = vrot.lane.b32.xlu0 %v3200, 96
          %v5558 = vpop.permute.xlu0 %5557
          %5559 = vrot.lane.b32.xlu0 %v3201, 96
          %v5560 = vpop.permute.xlu0 %5559
          %5561 = vrot.lane.b32.xlu0 %v3202, 96
          %v5562 = vpop.permute.xlu0 %5561
          %5563 = vrot.lane.b32.xlu0 %v3203, 96
          %v5564 = vpop.permute.xlu0 %5563
          %5565 = vrot.lane.b32.xlu0 %v3204, 96
          %v5566 = vpop.permute.xlu0 %5565
          %5567 = vrot.lane.b32.xlu0 %v3205, 96
          %v5568 = vpop.permute.xlu0 %5567
          %5569 = vrot.lane.b32.xlu0 %v3206, 96
          %v5570 = vpop.permute.xlu0 %5569
          %5571 = vrot.lane.b32.xlu0 %v3207, 96
          %v5572 = vpop.permute.xlu0 %5571
          %5573 = vrot.lane.b32.xlu0 %v3208, 96
          %v5574 = vpop.permute.xlu0 %5573
          %5575 = vrot.lane.b32.xlu0 %v3209, 96
          %v5576 = vpop.permute.xlu0 %5575
          %5577 = vrot.lane.b32.xlu0 %v3210, 96
          %v5578 = vpop.permute.xlu0 %5577
          %v5611 = vmul.f32 %v3988, %v5516
          %v5612 = vmul.f32 %v3989, %v5518
          %v5613 = vmul.f32 %v3990, %v5520
          %v5614 = vmul.f32 %v3991, %v5522
          %v5615 = vmul.f32 %v3992, %v5524
          %v5616 = vmul.f32 %v3993, %v5526
          %v5617 = vmul.f32 %v3994, %v5528
          %v5618 = vmul.f32 %v3995, %v5530
          %v5619 = vmul.f32 %v3996, %v5532
          %v5620 = vmul.f32 %v3997, %v5534
          %v5621 = vmul.f32 %v3998, %v5536
          %v5622 = vmul.f32 %v3999, %v5538
          %v5623 = vmul.f32 %v4000, %v5540
          %v5624 = vmul.f32 %v4001, %v5542
          %v5625 = vmul.f32 %v4002, %v5544
          %v5626 = vmul.f32 %v4003, %v5546
          %v5627 = vmul.f32 %v4004, %v5548
          %v5628 = vmul.f32 %v4005, %v5550
          %v5629 = vmul.f32 %v4006, %v5552
          %v5630 = vmul.f32 %v4007, %v5554
          %v5631 = vmul.f32 %v4008, %v5556
          %v5632 = vmul.f32 %v4009, %v5558
          %v5633 = vmul.f32 %v4010, %v5560
          %v5634 = vmul.f32 %v4011, %v5562
          %v5635 = vmul.f32 %v4012, %v5564
          %v5636 = vmul.f32 %v4013, %v5566
          %v5637 = vmul.f32 %v4014, %v5568
          %v5638 = vmul.f32 %v4015, %v5570
          %v5639 = vmul.f32 %v4016, %v5572
          %v5640 = vmul.f32 %v4017, %v5574
          %v5641 = vmul.f32 %v4018, %v5576
          %v5642 = vmul.f32 %v4019, %v5578
          %vm5643 = vcmask 1042432
          %v5644 = vrot.slane %v4023, 5
          %v5645 = vrot.slane %v4024, 5
          %v5646 = vsel %vm5643, %v5644, %v5645
          %v5647 = vrot.slane %v4025, 5
          %v5648 = vsel %vm5643, %v5645, %v5647
          %v5649 = vrot.slane %v4027, 5
          %v5650 = vrot.slane %v4028, 5
          %v5651 = vsel %vm5643, %v5649, %v5650
          %v5652 = vrot.slane %v4029, 5
          %v5653 = vsel %vm5643, %v5650, %v5652
          %v5654 = vrot.slane %v4031, 5
          %v5655 = vrot.slane %v4032, 5
          %v5656 = vsel %vm5643, %v5654, %v5655
          %v5657 = vrot.slane %v4033, 5
          %v5658 = vsel %vm5643, %v5655, %v5657
          %v5659 = vrot.slane %v4035, 5
          %v5660 = vrot.slane %v4036, 5
          %v5661 = vsel %vm5643, %v5659, %v5660
          %v5662 = vrot.slane %v4037, 5
          %v5663 = vsel %vm5643, %v5660, %v5662
          %v5664 = vrot.slane %v4039, 5
          %v5665 = vrot.slane %v4040, 5
          %v5666 = vsel %vm5643, %v5664, %v5665
          %v5667 = vrot.slane %v4041, 5
          %v5668 = vsel %vm5643, %v5665, %v5667
          %v5669 = vrot.slane %v4043, 5
          %v5670 = vrot.slane %v4044, 5
          %v5671 = vsel %vm5643, %v5669, %v5670
          %v5672 = vrot.slane %v4045, 5
          %v5673 = vsel %vm5643, %v5670, %v5672
          %v5674 = vrot.slane %v4047, 5
          %v5675 = vrot.slane %v4048, 5
          %v5676 = vsel %vm5643, %v5674, %v5675
          %v5677 = vrot.slane %v4049, 5
          %v5678 = vsel %vm5643, %v5675, %v5677
          %v5679 = vrot.slane %v4051, 5
          %v5680 = vrot.slane %v4052, 5
          %v5681 = vsel %vm5643, %v5679, %v5680
          %v5682 = vrot.slane %v4053, 5
          %v5683 = vsel %vm5643, %v5680, %v5682
          %v5684 = vrot.slane %v4055, 5
          %v5685 = vrot.slane %v4056, 5
          %v5686 = vsel %vm5643, %v5684, %v5685
          %v5687 = vrot.slane %v4057, 5
          %v5688 = vsel %vm5643, %v5685, %v5687
          %v5689 = vrot.slane %v4059, 5
          %v5690 = vrot.slane %v4060, 5
          %v5691 = vsel %vm5643, %v5689, %v5690
          %v5692 = vrot.slane %v4061, 5
          %v5693 = vsel %vm5643, %v5690, %v5692
          %v5694 = vrot.slane %v4063, 5
          %v5695 = vrot.slane %v4064, 5
          %v5696 = vsel %vm5643, %v5694, %v5695
          %v5697 = vrot.slane %v4065, 5
          %v5698 = vsel %vm5643, %v5695, %v5697
          %v5699 = vrot.slane %v4067, 5
          %v5700 = vrot.slane %v4068, 5
          %v5701 = vsel %vm5643, %v5699, %v5700
          %v5702 = vrot.slane %v4069, 5
          %v5703 = vsel %vm5643, %v5700, %v5702
          %v5704 = vrot.slane %v4071, 5
          %v5705 = vrot.slane %v4072, 5
          %v5706 = vsel %vm5643, %v5704, %v5705
          %v5707 = vrot.slane %v4073, 5
          %v5708 = vsel %vm5643, %v5705, %v5707
          %v5709 = vrot.slane %v4075, 5
          %v5710 = vrot.slane %v4076, 5
          %v5711 = vsel %vm5643, %v5709, %v5710
          %v5712 = vrot.slane %v4077, 5
          %v5713 = vsel %vm5643, %v5710, %v5712
          %v5714 = vrot.slane %v4079, 5
          %v5715 = vrot.slane %v4080, 5
          %v5716 = vsel %vm5643, %v5714, %v5715
          %v5717 = vrot.slane %v4081, 5
          %v5718 = vsel %vm5643, %v5715, %v5717
          %v5719 = vrot.slane %v4083, 5
          %v5720 = vrot.slane %v4084, 5
          %v5721 = vsel %vm5643, %v5719, %v5720
          %v5722 = vrot.slane %v4085, 5
          %v5723 = vsel %vm5643, %v5720, %v5722
          %v5756 = vmul.f32 %v5611, %v5646
          %v5757 = vmul.f32 %v5612, %v5648
          %v5758 = vmul.f32 %v5613, %v5651
          %v5759 = vmul.f32 %v5614, %v5653
          %v5760 = vmul.f32 %v5615, %v5656
          %v5761 = vmul.f32 %v5616, %v5658
          %v5762 = vmul.f32 %v5617, %v5661
          %v5763 = vmul.f32 %v5618, %v5663
          %v5764 = vmul.f32 %v5619, %v5666
          %v5765 = vmul.f32 %v5620, %v5668
          %v5766 = vmul.f32 %v5621, %v5671
          %v5767 = vmul.f32 %v5622, %v5673
          %v5768 = vmul.f32 %v5623, %v5676
          %v5769 = vmul.f32 %v5624, %v5678
          %v5770 = vmul.f32 %v5625, %v5681
          %v5771 = vmul.f32 %v5626, %v5683
          %v5772 = vmul.f32 %v5627, %v5686
          %v5773 = vmul.f32 %v5628, %v5688
          %v5774 = vmul.f32 %v5629, %v5691
          %v5775 = vmul.f32 %v5630, %v5693
          %v5776 = vmul.f32 %v5631, %v5696
          %v5777 = vmul.f32 %v5632, %v5698
          %v5778 = vmul.f32 %v5633, %v5701
          %v5779 = vmul.f32 %v5634, %v5703
          %v5780 = vmul.f32 %v5635, %v5706
          %v5781 = vmul.f32 %v5636, %v5708
          %v5782 = vmul.f32 %v5637, %v5711
          %v5783 = vmul.f32 %v5638, %v5713
          %v5784 = vmul.f32 %v5639, %v5716
          %v5785 = vmul.f32 %v5640, %v5718
          %v5786 = vmul.f32 %v5641, %v5721
          %v5787 = vmul.f32 %v5642, %v5723
          %v5788 = vadd.f32 %v5451, %v5756
          %v5789 = vadd.f32 %v5452, %v5757
          %v5790 = vadd.f32 %v5453, %v5758
          %v5791 = vadd.f32 %v5454, %v5759
          %v5792 = vadd.f32 %v5455, %v5760
          %v5793 = vadd.f32 %v5456, %v5761
          %v5794 = vadd.f32 %v5457, %v5762
          %v5795 = vadd.f32 %v5458, %v5763
          %v5796 = vadd.f32 %v5459, %v5764
          %v5797 = vadd.f32 %v5460, %v5765
          %v5798 = vadd.f32 %v5461, %v5766
          %v5799 = vadd.f32 %v5462, %v5767
          %v5800 = vadd.f32 %v5463, %v5768
          %v5801 = vadd.f32 %v5464, %v5769
          %v5802 = vadd.f32 %v5465, %v5770
          %v5803 = vadd.f32 %v5466, %v5771
          %v5804 = vadd.f32 %v5467, %v5772
          %v5805 = vadd.f32 %v5468, %v5773
          %v5806 = vadd.f32 %v5469, %v5774
          %v5807 = vadd.f32 %v5470, %v5775
          %v5808 = vadd.f32 %v5471, %v5776
          %v5809 = vadd.f32 %v5472, %v5777
          %v5810 = vadd.f32 %v5473, %v5778
          %v5811 = vadd.f32 %v5474, %v5779
          %v5812 = vadd.f32 %v5475, %v5780
          %v5813 = vadd.f32 %v5476, %v5781
          %v5814 = vadd.f32 %v5477, %v5782
          %v5815 = vadd.f32 %v5478, %v5783
          %v5816 = vadd.f32 %v5479, %v5784
          %v5817 = vadd.f32 %v5480, %v5785
          %v5818 = vadd.f32 %v5481, %v5786
          %v5819 = vadd.f32 %v5482, %v5787
          %5852 = vrot.lane.b32.xlu0 %v3307, 96
          %v5853 = vpop.permute.xlu0 %5852
          %5854 = vrot.lane.b32.xlu0 %v3308, 96
          %v5855 = vpop.permute.xlu0 %5854
          %5856 = vrot.lane.b32.xlu0 %v3309, 96
          %v5857 = vpop.permute.xlu0 %5856
          %5858 = vrot.lane.b32.xlu0 %v3310, 96
          %v5859 = vpop.permute.xlu0 %5858
          %5860 = vrot.lane.b32.xlu0 %v3311, 96
          %v5861 = vpop.permute.xlu0 %5860
          %5862 = vrot.lane.b32.xlu0 %v3312, 96
          %v5863 = vpop.permute.xlu0 %5862
          %5864 = vrot.lane.b32.xlu0 %v3313, 96
          %v5865 = vpop.permute.xlu0 %5864
          %5866 = vrot.lane.b32.xlu0 %v3314, 96
          %v5867 = vpop.permute.xlu0 %5866
          %5868 = vrot.lane.b32.xlu0 %v3315, 96
          %v5869 = vpop.permute.xlu0 %5868
          %5870 = vrot.lane.b32.xlu0 %v3316, 96
          %v5871 = vpop.permute.xlu0 %5870
          %5872 = vrot.lane.b32.xlu0 %v3317, 96
          %v5873 = vpop.permute.xlu0 %5872
          %5874 = vrot.lane.b32.xlu0 %v3318, 96
          %v5875 = vpop.permute.xlu0 %5874
          %5876 = vrot.lane.b32.xlu0 %v3319, 96
          %v5877 = vpop.permute.xlu0 %5876
          %5878 = vrot.lane.b32.xlu0 %v3320, 96
          %v5879 = vpop.permute.xlu0 %5878
          %5880 = vrot.lane.b32.xlu0 %v3321, 96
          %v5881 = vpop.permute.xlu0 %5880
          %5882 = vrot.lane.b32.xlu0 %v3322, 96
          %v5883 = vpop.permute.xlu0 %5882
          %5884 = vrot.lane.b32.xlu0 %v3323, 96
          %v5885 = vpop.permute.xlu0 %5884
          %5886 = vrot.lane.b32.xlu0 %v3324, 96
          %v5887 = vpop.permute.xlu0 %5886
          %5888 = vrot.lane.b32.xlu0 %v3325, 96
          %v5889 = vpop.permute.xlu0 %5888
          %5890 = vrot.lane.b32.xlu0 %v3326, 96
          %v5891 = vpop.permute.xlu0 %5890
          %5892 = vrot.lane.b32.xlu0 %v3327, 96
          %v5893 = vpop.permute.xlu0 %5892
          %5894 = vrot.lane.b32.xlu0 %v3328, 96
          %v5895 = vpop.permute.xlu0 %5894
          %5896 = vrot.lane.b32.xlu0 %v3329, 96
          %v5897 = vpop.permute.xlu0 %5896
          %5898 = vrot.lane.b32.xlu0 %v3330, 96
          %v5899 = vpop.permute.xlu0 %5898
          %5900 = vrot.lane.b32.xlu0 %v3331, 96
          %v5901 = vpop.permute.xlu0 %5900
          %5902 = vrot.lane.b32.xlu0 %v3332, 96
          %v5903 = vpop.permute.xlu0 %5902
          %5904 = vrot.lane.b32.xlu0 %v3333, 96
          %v5905 = vpop.permute.xlu0 %5904
          %5906 = vrot.lane.b32.xlu0 %v3334, 96
          %v5907 = vpop.permute.xlu0 %5906
          %5908 = vrot.lane.b32.xlu0 %v3335, 96
          %v5909 = vpop.permute.xlu0 %5908
          %5910 = vrot.lane.b32.xlu0 %v3336, 96
          %v5911 = vpop.permute.xlu0 %5910
          %5912 = vrot.lane.b32.xlu0 %v3337, 96
          %v5913 = vpop.permute.xlu0 %5912
          %5914 = vrot.lane.b32.xlu0 %v3338, 96
          %v5915 = vpop.permute.xlu0 %5914
          %v5948 = vmul.f32 %v3988, %v5853
          %v5949 = vmul.f32 %v3989, %v5855
          %v5950 = vmul.f32 %v3990, %v5857
          %v5951 = vmul.f32 %v3991, %v5859
          %v5952 = vmul.f32 %v3992, %v5861
          %v5953 = vmul.f32 %v3993, %v5863
          %v5954 = vmul.f32 %v3994, %v5865
          %v5955 = vmul.f32 %v3995, %v5867
          %v5956 = vmul.f32 %v3996, %v5869
          %v5957 = vmul.f32 %v3997, %v5871
          %v5958 = vmul.f32 %v3998, %v5873
          %v5959 = vmul.f32 %v3999, %v5875
          %v5960 = vmul.f32 %v4000, %v5877
          %v5961 = vmul.f32 %v4001, %v5879
          %v5962 = vmul.f32 %v4002, %v5881
          %v5963 = vmul.f32 %v4003, %v5883
          %v5964 = vmul.f32 %v4004, %v5885
          %v5965 = vmul.f32 %v4005, %v5887
          %v5966 = vmul.f32 %v4006, %v5889
          %v5967 = vmul.f32 %v4007, %v5891
          %v5968 = vmul.f32 %v4008, %v5893
          %v5969 = vmul.f32 %v4009, %v5895
          %v5970 = vmul.f32 %v4010, %v5897
          %v5971 = vmul.f32 %v4011, %v5899
          %v5972 = vmul.f32 %v4012, %v5901
          %v5973 = vmul.f32 %v4013, %v5903
          %v5974 = vmul.f32 %v4014, %v5905
          %v5975 = vmul.f32 %v4015, %v5907
          %v5976 = vmul.f32 %v4016, %v5909
          %v5977 = vmul.f32 %v4017, %v5911
          %v5978 = vmul.f32 %v4018, %v5913
          %v5979 = vmul.f32 %v4019, %v5915
          %vm5980 = vcmask 1041408
          %v5981 = vrot.slane %v4023, 6
          %v5982 = vrot.slane %v4024, 6
          %v5983 = vsel %vm5980, %v5981, %v5982
          %v5984 = vrot.slane %v4025, 6
          %v5985 = vsel %vm5980, %v5982, %v5984
          %v5986 = vrot.slane %v4027, 6
          %v5987 = vrot.slane %v4028, 6
          %v5988 = vsel %vm5980, %v5986, %v5987
          %v5989 = vrot.slane %v4029, 6
          %v5990 = vsel %vm5980, %v5987, %v5989
          %v5991 = vrot.slane %v4031, 6
          %v5992 = vrot.slane %v4032, 6
          %v5993 = vsel %vm5980, %v5991, %v5992
          %v5994 = vrot.slane %v4033, 6
          %v5995 = vsel %vm5980, %v5992, %v5994
          %v5996 = vrot.slane %v4035, 6
          %v5997 = vrot.slane %v4036, 6
          %v5998 = vsel %vm5980, %v5996, %v5997
          %v5999 = vrot.slane %v4037, 6
          %v6000 = vsel %vm5980, %v5997, %v5999
          %v6001 = vrot.slane %v4039, 6
          %v6002 = vrot.slane %v4040, 6
          %v6003 = vsel %vm5980, %v6001, %v6002
          %v6004 = vrot.slane %v4041, 6
          %v6005 = vsel %vm5980, %v6002, %v6004
          %v6006 = vrot.slane %v4043, 6
          %v6007 = vrot.slane %v4044, 6
          %v6008 = vsel %vm5980, %v6006, %v6007
          %v6009 = vrot.slane %v4045, 6
          %v6010 = vsel %vm5980, %v6007, %v6009
          %v6011 = vrot.slane %v4047, 6
          %v6012 = vrot.slane %v4048, 6
          %v6013 = vsel %vm5980, %v6011, %v6012
          %v6014 = vrot.slane %v4049, 6
          %v6015 = vsel %vm5980, %v6012, %v6014
          %v6016 = vrot.slane %v4051, 6
          %v6017 = vrot.slane %v4052, 6
          %v6018 = vsel %vm5980, %v6016, %v6017
          %v6019 = vrot.slane %v4053, 6
          %v6020 = vsel %vm5980, %v6017, %v6019
          %v6021 = vrot.slane %v4055, 6
          %v6022 = vrot.slane %v4056, 6
          %v6023 = vsel %vm5980, %v6021, %v6022
          %v6024 = vrot.slane %v4057, 6
          %v6025 = vsel %vm5980, %v6022, %v6024
          %v6026 = vrot.slane %v4059, 6
          %v6027 = vrot.slane %v4060, 6
          %v6028 = vsel %vm5980, %v6026, %v6027
          %v6029 = vrot.slane %v4061, 6
          %v6030 = vsel %vm5980, %v6027, %v6029
          %v6031 = vrot.slane %v4063, 6
          %v6032 = vrot.slane %v4064, 6
          %v6033 = vsel %vm5980, %v6031, %v6032
          %v6034 = vrot.slane %v4065, 6
          %v6035 = vsel %vm5980, %v6032, %v6034
          %v6036 = vrot.slane %v4067, 6
          %v6037 = vrot.slane %v4068, 6
          %v6038 = vsel %vm5980, %v6036, %v6037
          %v6039 = vrot.slane %v4069, 6
          %v6040 = vsel %vm5980, %v6037, %v6039
          %v6041 = vrot.slane %v4071, 6
          %v6042 = vrot.slane %v4072, 6
          %v6043 = vsel %vm5980, %v6041, %v6042
          %v6044 = vrot.slane %v4073, 6
          %v6045 = vsel %vm5980, %v6042, %v6044
          %v6046 = vrot.slane %v4075, 6
          %v6047 = vrot.slane %v4076, 6
          %v6048 = vsel %vm5980, %v6046, %v6047
          %v6049 = vrot.slane %v4077, 6
          %v6050 = vsel %vm5980, %v6047, %v6049
          %v6051 = vrot.slane %v4079, 6
          %v6052 = vrot.slane %v4080, 6
          %v6053 = vsel %vm5980, %v6051, %v6052
          %v6054 = vrot.slane %v4081, 6
          %v6055 = vsel %vm5980, %v6052, %v6054
          %v6056 = vrot.slane %v4083, 6
          %v6057 = vrot.slane %v4084, 6
          %v6058 = vsel %vm5980, %v6056, %v6057
          %v6059 = vrot.slane %v4085, 6
          %v6060 = vsel %vm5980, %v6057, %v6059
          %v6093 = vmul.f32 %v5948, %v5983
          %v6094 = vmul.f32 %v5949, %v5985
          %v6095 = vmul.f32 %v5950, %v5988
          %v6096 = vmul.f32 %v5951, %v5990
          %v6097 = vmul.f32 %v5952, %v5993
          %v6098 = vmul.f32 %v5953, %v5995
          %v6099 = vmul.f32 %v5954, %v5998
          %v6100 = vmul.f32 %v5955, %v6000
          %v6101 = vmul.f32 %v5956, %v6003
          %v6102 = vmul.f32 %v5957, %v6005
          %v6103 = vmul.f32 %v5958, %v6008
          %v6104 = vmul.f32 %v5959, %v6010
          %v6105 = vmul.f32 %v5960, %v6013
          %v6106 = vmul.f32 %v5961, %v6015
          %v6107 = vmul.f32 %v5962, %v6018
          %v6108 = vmul.f32 %v5963, %v6020
          %v6109 = vmul.f32 %v5964, %v6023
          %v6110 = vmul.f32 %v5965, %v6025
          %v6111 = vmul.f32 %v5966, %v6028
          %v6112 = vmul.f32 %v5967, %v6030
          %v6113 = vmul.f32 %v5968, %v6033
          %v6114 = vmul.f32 %v5969, %v6035
          %v6115 = vmul.f32 %v5970, %v6038
          %v6116 = vmul.f32 %v5971, %v6040
          %v6117 = vmul.f32 %v5972, %v6043
          %v6118 = vmul.f32 %v5973, %v6045
          %v6119 = vmul.f32 %v5974, %v6048
          %v6120 = vmul.f32 %v5975, %v6050
          %v6121 = vmul.f32 %v5976, %v6053
          %v6122 = vmul.f32 %v5977, %v6055
          %v6123 = vmul.f32 %v5978, %v6058
          %v6124 = vmul.f32 %v5979, %v6060
          %v6125 = vadd.f32 %v5788, %v6093
          %v6126 = vadd.f32 %v5789, %v6094
          %v6127 = vadd.f32 %v5790, %v6095
          %v6128 = vadd.f32 %v5791, %v6096
          %v6129 = vadd.f32 %v5792, %v6097
          %v6130 = vadd.f32 %v5793, %v6098
          %v6131 = vadd.f32 %v5794, %v6099
          %v6132 = vadd.f32 %v5795, %v6100
          %v6133 = vadd.f32 %v5796, %v6101
          %v6134 = vadd.f32 %v5797, %v6102
          %v6135 = vadd.f32 %v5798, %v6103
          %v6136 = vadd.f32 %v5799, %v6104
          %v6137 = vadd.f32 %v5800, %v6105
          %v6138 = vadd.f32 %v5801, %v6106
          %v6139 = vadd.f32 %v5802, %v6107
          %v6140 = vadd.f32 %v5803, %v6108
          %v6141 = vadd.f32 %v5804, %v6109
          %v6142 = vadd.f32 %v5805, %v6110
          %v6143 = vadd.f32 %v5806, %v6111
          %v6144 = vadd.f32 %v5807, %v6112
          %v6145 = vadd.f32 %v5808, %v6113
          %v6146 = vadd.f32 %v5809, %v6114
          %v6147 = vadd.f32 %v5810, %v6115
          %v6148 = vadd.f32 %v5811, %v6116
          %v6149 = vadd.f32 %v5812, %v6117
          %v6150 = vadd.f32 %v5813, %v6118
          %v6151 = vadd.f32 %v5814, %v6119
          %v6152 = vadd.f32 %v5815, %v6120
          %v6153 = vadd.f32 %v5816, %v6121
          %v6154 = vadd.f32 %v5817, %v6122
          %v6155 = vadd.f32 %v5818, %v6123
          %v6156 = vadd.f32 %v5819, %v6124
          %6189 = vrot.lane.b32.xlu0 %v3435, 96
          %v6190 = vpop.permute.xlu0 %6189
          %6191 = vrot.lane.b32.xlu0 %v3436, 96
          %v6192 = vpop.permute.xlu0 %6191
          %6193 = vrot.lane.b32.xlu0 %v3437, 96
          %v6194 = vpop.permute.xlu0 %6193
          %6195 = vrot.lane.b32.xlu0 %v3438, 96
          %v6196 = vpop.permute.xlu0 %6195
          %6197 = vrot.lane.b32.xlu0 %v3439, 96
          %v6198 = vpop.permute.xlu0 %6197
          %6199 = vrot.lane.b32.xlu0 %v3440, 96
          %v6200 = vpop.permute.xlu0 %6199
          %6201 = vrot.lane.b32.xlu0 %v3441, 96
          %v6202 = vpop.permute.xlu0 %6201
          %6203 = vrot.lane.b32.xlu0 %v3442, 96
          %v6204 = vpop.permute.xlu0 %6203
          %6205 = vrot.lane.b32.xlu0 %v3443, 96
          %v6206 = vpop.permute.xlu0 %6205
          %6207 = vrot.lane.b32.xlu0 %v3444, 96
          %v6208 = vpop.permute.xlu0 %6207
          %6209 = vrot.lane.b32.xlu0 %v3445, 96
          %v6210 = vpop.permute.xlu0 %6209
          %6211 = vrot.lane.b32.xlu0 %v3446, 96
          %v6212 = vpop.permute.xlu0 %6211
          %6213 = vrot.lane.b32.xlu0 %v3447, 96
          %v6214 = vpop.permute.xlu0 %6213
          %6215 = vrot.lane.b32.xlu0 %v3448, 96
          %v6216 = vpop.permute.xlu0 %6215
          %6217 = vrot.lane.b32.xlu0 %v3449, 96
          %v6218 = vpop.permute.xlu0 %6217
          %6219 = vrot.lane.b32.xlu0 %v3450, 96
          %v6220 = vpop.permute.xlu0 %6219
          %6221 = vrot.lane.b32.xlu0 %v3451, 96
          %v6222 = vpop.permute.xlu0 %6221
          %6223 = vrot.lane.b32.xlu0 %v3452, 96
          %v6224 = vpop.permute.xlu0 %6223
          %6225 = vrot.lane.b32.xlu0 %v3453, 96
          %v6226 = vpop.permute.xlu0 %6225
          %6227 = vrot.lane.b32.xlu0 %v3454, 96
          %v6228 = vpop.permute.xlu0 %6227
          %6229 = vrot.lane.b32.xlu0 %v3455, 96
          %v6230 = vpop.permute.xlu0 %6229
          %6231 = vrot.lane.b32.xlu0 %v3456, 96
          %v6232 = vpop.permute.xlu0 %6231
          %6233 = vrot.lane.b32.xlu0 %v3457, 96
          %v6234 = vpop.permute.xlu0 %6233
          %6235 = vrot.lane.b32.xlu0 %v3458, 96
          %v6236 = vpop.permute.xlu0 %6235
          %6237 = vrot.lane.b32.xlu0 %v3459, 96
          %v6238 = vpop.permute.xlu0 %6237
          %6239 = vrot.lane.b32.xlu0 %v3460, 96
          %v6240 = vpop.permute.xlu0 %6239
          %6241 = vrot.lane.b32.xlu0 %v3461, 96
          %v6242 = vpop.permute.xlu0 %6241
          %6243 = vrot.lane.b32.xlu0 %v3462, 96
          %v6244 = vpop.permute.xlu0 %6243
          %6245 = vrot.lane.b32.xlu0 %v3463, 96
          %v6246 = vpop.permute.xlu0 %6245
          %6247 = vrot.lane.b32.xlu0 %v3464, 96
          %v6248 = vpop.permute.xlu0 %6247
          %6249 = vrot.lane.b32.xlu0 %v3465, 96
          %v6250 = vpop.permute.xlu0 %6249
          %6251 = vrot.lane.b32.xlu0 %v3466, 96
          %v6252 = vpop.permute.xlu0 %6251
          %v6285 = vmul.f32 %v3988, %v6190
          %v6286 = vmul.f32 %v3989, %v6192
          %v6287 = vmul.f32 %v3990, %v6194
          %v6288 = vmul.f32 %v3991, %v6196
          %v6289 = vmul.f32 %v3992, %v6198
          %v6290 = vmul.f32 %v3993, %v6200
          %v6291 = vmul.f32 %v3994, %v6202
          %v6292 = vmul.f32 %v3995, %v6204
          %v6293 = vmul.f32 %v3996, %v6206
          %v6294 = vmul.f32 %v3997, %v6208
          %v6295 = vmul.f32 %v3998, %v6210
          %v6296 = vmul.f32 %v3999, %v6212
          %v6297 = vmul.f32 %v4000, %v6214
          %v6298 = vmul.f32 %v4001, %v6216
          %v6299 = vmul.f32 %v4002, %v6218
          %v6300 = vmul.f32 %v4003, %v6220
          %v6301 = vmul.f32 %v4004, %v6222
          %v6302 = vmul.f32 %v4005, %v6224
          %v6303 = vmul.f32 %v4006, %v6226
          %v6304 = vmul.f32 %v4007, %v6228
          %v6305 = vmul.f32 %v4008, %v6230
          %v6306 = vmul.f32 %v4009, %v6232
          %v6307 = vmul.f32 %v4010, %v6234
          %v6308 = vmul.f32 %v4011, %v6236
          %v6309 = vmul.f32 %v4012, %v6238
          %v6310 = vmul.f32 %v4013, %v6240
          %v6311 = vmul.f32 %v4014, %v6242
          %v6312 = vmul.f32 %v4015, %v6244
          %v6313 = vmul.f32 %v4016, %v6246
          %v6314 = vmul.f32 %v4017, %v6248
          %v6315 = vmul.f32 %v4018, %v6250
          %v6316 = vmul.f32 %v4019, %v6252
          %vm6317 = vcmask 1040384
          %v6318 = vrot.slane %v4023, 7
          %v6319 = vrot.slane %v4024, 7
          %v6320 = vsel %vm6317, %v6318, %v6319
          %v6321 = vrot.slane %v4025, 7
          %v6322 = vsel %vm6317, %v6319, %v6321
          %v6323 = vrot.slane %v4027, 7
          %v6324 = vrot.slane %v4028, 7
          %v6325 = vsel %vm6317, %v6323, %v6324
          %v6326 = vrot.slane %v4029, 7
          %v6327 = vsel %vm6317, %v6324, %v6326
          %v6328 = vrot.slane %v4031, 7
          %v6329 = vrot.slane %v4032, 7
          %v6330 = vsel %vm6317, %v6328, %v6329
          %v6331 = vrot.slane %v4033, 7
          %v6332 = vsel %vm6317, %v6329, %v6331
          %v6333 = vrot.slane %v4035, 7
          %v6334 = vrot.slane %v4036, 7
          %v6335 = vsel %vm6317, %v6333, %v6334
          %v6336 = vrot.slane %v4037, 7
          %v6337 = vsel %vm6317, %v6334, %v6336
          %v6338 = vrot.slane %v4039, 7
          %v6339 = vrot.slane %v4040, 7
          %v6340 = vsel %vm6317, %v6338, %v6339
          %v6341 = vrot.slane %v4041, 7
          %v6342 = vsel %vm6317, %v6339, %v6341
          %v6343 = vrot.slane %v4043, 7
          %v6344 = vrot.slane %v4044, 7
          %v6345 = vsel %vm6317, %v6343, %v6344
          %v6346 = vrot.slane %v4045, 7
          %v6347 = vsel %vm6317, %v6344, %v6346
          %v6348 = vrot.slane %v4047, 7
          %v6349 = vrot.slane %v4048, 7
          %v6350 = vsel %vm6317, %v6348, %v6349
          %v6351 = vrot.slane %v4049, 7
          %v6352 = vsel %vm6317, %v6349, %v6351
          %v6353 = vrot.slane %v4051, 7
          %v6354 = vrot.slane %v4052, 7
          %v6355 = vsel %vm6317, %v6353, %v6354
          %v6356 = vrot.slane %v4053, 7
          %v6357 = vsel %vm6317, %v6354, %v6356
          %v6358 = vrot.slane %v4055, 7
          %v6359 = vrot.slane %v4056, 7
          %v6360 = vsel %vm6317, %v6358, %v6359
          %v6361 = vrot.slane %v4057, 7
          %v6362 = vsel %vm6317, %v6359, %v6361
          %v6363 = vrot.slane %v4059, 7
          %v6364 = vrot.slane %v4060, 7
          %v6365 = vsel %vm6317, %v6363, %v6364
          %v6366 = vrot.slane %v4061, 7
          %v6367 = vsel %vm6317, %v6364, %v6366
          %v6368 = vrot.slane %v4063, 7
          %v6369 = vrot.slane %v4064, 7
          %v6370 = vsel %vm6317, %v6368, %v6369
          %v6371 = vrot.slane %v4065, 7
          %v6372 = vsel %vm6317, %v6369, %v6371
          %v6373 = vrot.slane %v4067, 7
          %v6374 = vrot.slane %v4068, 7
          %v6375 = vsel %vm6317, %v6373, %v6374
          %v6376 = vrot.slane %v4069, 7
          %v6377 = vsel %vm6317, %v6374, %v6376
          %v6378 = vrot.slane %v4071, 7
          %v6379 = vrot.slane %v4072, 7
          %v6380 = vsel %vm6317, %v6378, %v6379
          %v6381 = vrot.slane %v4073, 7
          %v6382 = vsel %vm6317, %v6379, %v6381
          %v6383 = vrot.slane %v4075, 7
          %v6384 = vrot.slane %v4076, 7
          %v6385 = vsel %vm6317, %v6383, %v6384
          %v6386 = vrot.slane %v4077, 7
          %v6387 = vsel %vm6317, %v6384, %v6386
          %v6388 = vrot.slane %v4079, 7
          %v6389 = vrot.slane %v4080, 7
          %v6390 = vsel %vm6317, %v6388, %v6389
          %v6391 = vrot.slane %v4081, 7
          %v6392 = vsel %vm6317, %v6389, %v6391
          %v6393 = vrot.slane %v4083, 7
          %v6394 = vrot.slane %v4084, 7
          %v6395 = vsel %vm6317, %v6393, %v6394
          %v6396 = vrot.slane %v4085, 7
          %v6397 = vsel %vm6317, %v6394, %v6396
          %v6430 = vmul.f32 %v6285, %v6320
          %v6431 = vmul.f32 %v6286, %v6322
          %v6432 = vmul.f32 %v6287, %v6325
          %v6433 = vmul.f32 %v6288, %v6327
          %v6434 = vmul.f32 %v6289, %v6330
          %v6435 = vmul.f32 %v6290, %v6332
          %v6436 = vmul.f32 %v6291, %v6335
          %v6437 = vmul.f32 %v6292, %v6337
          %v6438 = vmul.f32 %v6293, %v6340
          %v6439 = vmul.f32 %v6294, %v6342
          %v6440 = vmul.f32 %v6295, %v6345
          %v6441 = vmul.f32 %v6296, %v6347
          %v6442 = vmul.f32 %v6297, %v6350
          %v6443 = vmul.f32 %v6298, %v6352
          %v6444 = vmul.f32 %v6299, %v6355
          %v6445 = vmul.f32 %v6300, %v6357
          %v6446 = vmul.f32 %v6301, %v6360
          %v6447 = vmul.f32 %v6302, %v6362
          %v6448 = vmul.f32 %v6303, %v6365
          %v6449 = vmul.f32 %v6304, %v6367
          %v6450 = vmul.f32 %v6305, %v6370
          %v6451 = vmul.f32 %v6306, %v6372
          %v6452 = vmul.f32 %v6307, %v6375
          %v6453 = vmul.f32 %v6308, %v6377
          %v6454 = vmul.f32 %v6309, %v6380
          %v6455 = vmul.f32 %v6310, %v6382
          %v6456 = vmul.f32 %v6311, %v6385
          %v6457 = vmul.f32 %v6312, %v6387
          %v6458 = vmul.f32 %v6313, %v6390
          %v6459 = vmul.f32 %v6314, %v6392
          %v6460 = vmul.f32 %v6315, %v6395
          %v6461 = vmul.f32 %v6316, %v6397
          %v6462 = vadd.f32 %v6125, %v6430
          %v6463 = vadd.f32 %v6126, %v6431
          %v6464 = vadd.f32 %v6127, %v6432
          %v6465 = vadd.f32 %v6128, %v6433
          %v6466 = vadd.f32 %v6129, %v6434
          %v6467 = vadd.f32 %v6130, %v6435
          %v6468 = vadd.f32 %v6131, %v6436
          %v6469 = vadd.f32 %v6132, %v6437
          %v6470 = vadd.f32 %v6133, %v6438
          %v6471 = vadd.f32 %v6134, %v6439
          %v6472 = vadd.f32 %v6135, %v6440
          %v6473 = vadd.f32 %v6136, %v6441
          %v6474 = vadd.f32 %v6137, %v6442
          %v6475 = vadd.f32 %v6138, %v6443
          %v6476 = vadd.f32 %v6139, %v6444
          %v6477 = vadd.f32 %v6140, %v6445
          %v6478 = vadd.f32 %v6141, %v6446
          %v6479 = vadd.f32 %v6142, %v6447
          %v6480 = vadd.f32 %v6143, %v6448
          %v6481 = vadd.f32 %v6144, %v6449
          %v6482 = vadd.f32 %v6145, %v6450
          %v6483 = vadd.f32 %v6146, %v6451
          %v6484 = vadd.f32 %v6147, %v6452
          %v6485 = vadd.f32 %v6148, %v6453
          %v6486 = vadd.f32 %v6149, %v6454
          %v6487 = vadd.f32 %v6150, %v6455
          %v6488 = vadd.f32 %v6151, %v6456
          %v6489 = vadd.f32 %v6152, %v6457
          %v6490 = vadd.f32 %v6153, %v6458
          %v6491 = vadd.f32 %v6154, %v6459
          %v6492 = vadd.f32 %v6155, %v6460
          %v6493 = vadd.f32 %v6156, %v6461
          %6526 = vrot.lane.b32.xlu0 %v3563, 96
          %v6527 = vpop.permute.xlu0 %6526
          %6528 = vrot.lane.b32.xlu0 %v3564, 96
          %v6529 = vpop.permute.xlu0 %6528
          %6530 = vrot.lane.b32.xlu0 %v3565, 96
          %v6531 = vpop.permute.xlu0 %6530
          %6532 = vrot.lane.b32.xlu0 %v3566, 96
          %v6533 = vpop.permute.xlu0 %6532
          %6534 = vrot.lane.b32.xlu0 %v3567, 96
          %v6535 = vpop.permute.xlu0 %6534
          %6536 = vrot.lane.b32.xlu0 %v3568, 96
          %v6537 = vpop.permute.xlu0 %6536
          %6538 = vrot.lane.b32.xlu0 %v3569, 96
          %v6539 = vpop.permute.xlu0 %6538
          %6540 = vrot.lane.b32.xlu0 %v3570, 96
          %v6541 = vpop.permute.xlu0 %6540
          %6542 = vrot.lane.b32.xlu0 %v3571, 96
          %v6543 = vpop.permute.xlu0 %6542
          %6544 = vrot.lane.b32.xlu0 %v3572, 96
          %v6545 = vpop.permute.xlu0 %6544
          %6546 = vrot.lane.b32.xlu0 %v3573, 96
          %v6547 = vpop.permute.xlu0 %6546
          %6548 = vrot.lane.b32.xlu0 %v3574, 96
          %v6549 = vpop.permute.xlu0 %6548
          %6550 = vrot.lane.b32.xlu0 %v3575, 96
          %v6551 = vpop.permute.xlu0 %6550
          %6552 = vrot.lane.b32.xlu0 %v3576, 96
          %v6553 = vpop.permute.xlu0 %6552
          %6554 = vrot.lane.b32.xlu0 %v3577, 96
          %v6555 = vpop.permute.xlu0 %6554
          %6556 = vrot.lane.b32.xlu0 %v3578, 96
          %v6557 = vpop.permute.xlu0 %6556
          %6558 = vrot.lane.b32.xlu0 %v3579, 96
          %v6559 = vpop.permute.xlu0 %6558
          %6560 = vrot.lane.b32.xlu0 %v3580, 96
          %v6561 = vpop.permute.xlu0 %6560
          %6562 = vrot.lane.b32.xlu0 %v3581, 96
          %v6563 = vpop.permute.xlu0 %6562
          %6564 = vrot.lane.b32.xlu0 %v3582, 96
          %v6565 = vpop.permute.xlu0 %6564
          %6566 = vrot.lane.b32.xlu0 %v3583, 96
          %v6567 = vpop.permute.xlu0 %6566
          %6568 = vrot.lane.b32.xlu0 %v3584, 96
          %v6569 = vpop.permute.xlu0 %6568
          %6570 = vrot.lane.b32.xlu0 %v3585, 96
          %v6571 = vpop.permute.xlu0 %6570
          %6572 = vrot.lane.b32.xlu0 %v3586, 96
          %v6573 = vpop.permute.xlu0 %6572
          %6574 = vrot.lane.b32.xlu0 %v3587, 96
          %v6575 = vpop.permute.xlu0 %6574
          %6576 = vrot.lane.b32.xlu0 %v3588, 96
          %v6577 = vpop.permute.xlu0 %6576
          %6578 = vrot.lane.b32.xlu0 %v3589, 96
          %v6579 = vpop.permute.xlu0 %6578
          %6580 = vrot.lane.b32.xlu0 %v3590, 96
          %v6581 = vpop.permute.xlu0 %6580
          %6582 = vrot.lane.b32.xlu0 %v3591, 96
          %v6583 = vpop.permute.xlu0 %6582
          %6584 = vrot.lane.b32.xlu0 %v3592, 96
          %v6585 = vpop.permute.xlu0 %6584
          %6586 = vrot.lane.b32.xlu0 %v3593, 96
          %v6587 = vpop.permute.xlu0 %6586
          %6588 = vrot.lane.b32.xlu0 %v3594, 96
          %v6589 = vpop.permute.xlu0 %6588
          %v6622 = vmul.f32 %v3988, %v6527
          %v6623 = vmul.f32 %v3989, %v6529
          %v6624 = vmul.f32 %v3990, %v6531
          %v6625 = vmul.f32 %v3991, %v6533
          %v6626 = vmul.f32 %v3992, %v6535
          %v6627 = vmul.f32 %v3993, %v6537
          %v6628 = vmul.f32 %v3994, %v6539
          %v6629 = vmul.f32 %v3995, %v6541
          %v6630 = vmul.f32 %v3996, %v6543
          %v6631 = vmul.f32 %v3997, %v6545
          %v6632 = vmul.f32 %v3998, %v6547
          %v6633 = vmul.f32 %v3999, %v6549
          %v6634 = vmul.f32 %v4000, %v6551
          %v6635 = vmul.f32 %v4001, %v6553
          %v6636 = vmul.f32 %v4002, %v6555
          %v6637 = vmul.f32 %v4003, %v6557
          %v6638 = vmul.f32 %v4004, %v6559
          %v6639 = vmul.f32 %v4005, %v6561
          %v6640 = vmul.f32 %v4006, %v6563
          %v6641 = vmul.f32 %v4007, %v6565
          %v6642 = vmul.f32 %v4008, %v6567
          %v6643 = vmul.f32 %v4009, %v6569
          %v6644 = vmul.f32 %v4010, %v6571
          %v6645 = vmul.f32 %v4011, %v6573
          %v6646 = vmul.f32 %v4012, %v6575
          %v6647 = vmul.f32 %v4013, %v6577
          %v6648 = vmul.f32 %v4014, %v6579
          %v6649 = vmul.f32 %v4015, %v6581
          %v6650 = vmul.f32 %v4016, %v6583
          %v6651 = vmul.f32 %v4017, %v6585
          %v6652 = vmul.f32 %v4018, %v6587
          %v6653 = vmul.f32 %v4019, %v6589
          %v6654 = vmul.f32 %v6622, %v4024
          %v6655 = vmul.f32 %v6623, %v4025
          %v6656 = vmul.f32 %v6624, %v4028
          %v6657 = vmul.f32 %v6625, %v4029
          %v6658 = vmul.f32 %v6626, %v4032
          %v6659 = vmul.f32 %v6627, %v4033
          %v6660 = vmul.f32 %v6628, %v4036
          %v6661 = vmul.f32 %v6629, %v4037
          %v6662 = vmul.f32 %v6630, %v4040
          %v6663 = vmul.f32 %v6631, %v4041
          %v6664 = vmul.f32 %v6632, %v4044
          %v6665 = vmul.f32 %v6633, %v4045
          %v6666 = vmul.f32 %v6634, %v4048
          %v6667 = vmul.f32 %v6635, %v4049
          %v6668 = vmul.f32 %v6636, %v4052
          %v6669 = vmul.f32 %v6637, %v4053
          %v6670 = vmul.f32 %v6638, %v4056
          %v6671 = vmul.f32 %v6639, %v4057
          %v6672 = vmul.f32 %v6640, %v4060
          %v6673 = vmul.f32 %v6641, %v4061
          %v6674 = vmul.f32 %v6642, %v4064
          %v6675 = vmul.f32 %v6643, %v4065
          %v6676 = vmul.f32 %v6644, %v4068
          %v6677 = vmul.f32 %v6645, %v4069
          %v6678 = vmul.f32 %v6646, %v4072
          %v6679 = vmul.f32 %v6647, %v4073
          %v6680 = vmul.f32 %v6648, %v4076
          %v6681 = vmul.f32 %v6649, %v4077
          %v6682 = vmul.f32 %v6650, %v4080
          %v6683 = vmul.f32 %v6651, %v4081
          %v6684 = vmul.f32 %v6652, %v4084
          %v6685 = vmul.f32 %v6653, %v4085
          %v6686 = vadd.f32 %v6462, %v6654
          %v6687 = vadd.f32 %v6463, %v6655
          %v6688 = vadd.f32 %v6464, %v6656
          %v6689 = vadd.f32 %v6465, %v6657
          %v6690 = vadd.f32 %v6466, %v6658
          %v6691 = vadd.f32 %v6467, %v6659
          %v6692 = vadd.f32 %v6468, %v6660
          %v6693 = vadd.f32 %v6469, %v6661
          %v6694 = vadd.f32 %v6470, %v6662
          %v6695 = vadd.f32 %v6471, %v6663
          %v6696 = vadd.f32 %v6472, %v6664
          %v6697 = vadd.f32 %v6473, %v6665
          %v6698 = vadd.f32 %v6474, %v6666
          %v6699 = vadd.f32 %v6475, %v6667
          %v6700 = vadd.f32 %v6476, %v6668
          %v6701 = vadd.f32 %v6477, %v6669
          %v6702 = vadd.f32 %v6478, %v6670
          %v6703 = vadd.f32 %v6479, %v6671
          %v6704 = vadd.f32 %v6480, %v6672
          %v6705 = vadd.f32 %v6481, %v6673
          %v6706 = vadd.f32 %v6482, %v6674
          %v6707 = vadd.f32 %v6483, %v6675
          %v6708 = vadd.f32 %v6484, %v6676
          %v6709 = vadd.f32 %v6485, %v6677
          %v6710 = vadd.f32 %v6486, %v6678
          %v6711 = vadd.f32 %v6487, %v6679
          %v6712 = vadd.f32 %v6488, %v6680
          %v6713 = vadd.f32 %v6489, %v6681
          %v6714 = vadd.f32 %v6490, %v6682
          %v6715 = vadd.f32 %v6491, %v6683
          %v6716 = vadd.f32 %v6492, %v6684
          %v6717 = vadd.f32 %v6493, %v6685
          %6750 = vrot.lane.b32.xlu0 %v3691, 96
          %v6751 = vpop.permute.xlu0 %6750
          %6752 = vrot.lane.b32.xlu0 %v3692, 96
          %v6753 = vpop.permute.xlu0 %6752
          %6754 = vrot.lane.b32.xlu0 %v3693, 96
          %v6755 = vpop.permute.xlu0 %6754
          %6756 = vrot.lane.b32.xlu0 %v3694, 96
          %v6757 = vpop.permute.xlu0 %6756
          %6758 = vrot.lane.b32.xlu0 %v3695, 96
          %v6759 = vpop.permute.xlu0 %6758
          %6760 = vrot.lane.b32.xlu0 %v3696, 96
          %v6761 = vpop.permute.xlu0 %6760
          %6762 = vrot.lane.b32.xlu0 %v3697, 96
          %v6763 = vpop.permute.xlu0 %6762
          %6764 = vrot.lane.b32.xlu0 %v3698, 96
          %v6765 = vpop.permute.xlu0 %6764
          %6766 = vrot.lane.b32.xlu0 %v3699, 96
          %v6767 = vpop.permute.xlu0 %6766
          %6768 = vrot.lane.b32.xlu0 %v3700, 96
          %v6769 = vpop.permute.xlu0 %6768
          %6770 = vrot.lane.b32.xlu0 %v3701, 96
          %v6771 = vpop.permute.xlu0 %6770
          %6772 = vrot.lane.b32.xlu0 %v3702, 96
          %v6773 = vpop.permute.xlu0 %6772
          %6774 = vrot.lane.b32.xlu0 %v3703, 96
          %v6775 = vpop.permute.xlu0 %6774
          %6776 = vrot.lane.b32.xlu0 %v3704, 96
          %v6777 = vpop.permute.xlu0 %6776
          %6778 = vrot.lane.b32.xlu0 %v3705, 96
          %v6779 = vpop.permute.xlu0 %6778
          %6780 = vrot.lane.b32.xlu0 %v3706, 96
          %v6781 = vpop.permute.xlu0 %6780
          %6782 = vrot.lane.b32.xlu0 %v3707, 96
          %v6783 = vpop.permute.xlu0 %6782
          %6784 = vrot.lane.b32.xlu0 %v3708, 96
          %v6785 = vpop.permute.xlu0 %6784
          %6786 = vrot.lane.b32.xlu0 %v3709, 96
          %v6787 = vpop.permute.xlu0 %6786
          %6788 = vrot.lane.b32.xlu0 %v3710, 96
          %v6789 = vpop.permute.xlu0 %6788
          %6790 = vrot.lane.b32.xlu0 %v3711, 96
          %v6791 = vpop.permute.xlu0 %6790
          %6792 = vrot.lane.b32.xlu0 %v3712, 96
          %v6793 = vpop.permute.xlu0 %6792
          %6794 = vrot.lane.b32.xlu0 %v3713, 96
          %v6795 = vpop.permute.xlu0 %6794
          %6796 = vrot.lane.b32.xlu0 %v3714, 96
          %v6797 = vpop.permute.xlu0 %6796
          %6798 = vrot.lane.b32.xlu0 %v3715, 96
          %v6799 = vpop.permute.xlu0 %6798
          %6800 = vrot.lane.b32.xlu0 %v3716, 96
          %v6801 = vpop.permute.xlu0 %6800
          %6802 = vrot.lane.b32.xlu0 %v3717, 96
          %v6803 = vpop.permute.xlu0 %6802
          %6804 = vrot.lane.b32.xlu0 %v3718, 96
          %v6805 = vpop.permute.xlu0 %6804
          %6806 = vrot.lane.b32.xlu0 %v3719, 96
          %v6807 = vpop.permute.xlu0 %6806
          %6808 = vrot.lane.b32.xlu0 %v3720, 96
          %v6809 = vpop.permute.xlu0 %6808
          %6810 = vrot.lane.b32.xlu0 %v3721, 96
          %v6811 = vpop.permute.xlu0 %6810
          %6812 = vrot.lane.b32.xlu0 %v3722, 96
          %v6813 = vpop.permute.xlu0 %6812
          %v6846 = vmul.f32 %v3988, %v6751
          %v6847 = vmul.f32 %v3989, %v6753
          %v6848 = vmul.f32 %v3990, %v6755
          %v6849 = vmul.f32 %v3991, %v6757
          %v6850 = vmul.f32 %v3992, %v6759
          %v6851 = vmul.f32 %v3993, %v6761
          %v6852 = vmul.f32 %v3994, %v6763
          %v6853 = vmul.f32 %v3995, %v6765
          %v6854 = vmul.f32 %v3996, %v6767
          %v6855 = vmul.f32 %v3997, %v6769
          %v6856 = vmul.f32 %v3998, %v6771
          %v6857 = vmul.f32 %v3999, %v6773
          %v6858 = vmul.f32 %v4000, %v6775
          %v6859 = vmul.f32 %v4001, %v6777
          %v6860 = vmul.f32 %v4002, %v6779
          %v6861 = vmul.f32 %v4003, %v6781
          %v6862 = vmul.f32 %v4004, %v6783
          %v6863 = vmul.f32 %v4005, %v6785
          %v6864 = vmul.f32 %v4006, %v6787
          %v6865 = vmul.f32 %v4007, %v6789
          %v6866 = vmul.f32 %v4008, %v6791
          %v6867 = vmul.f32 %v4009, %v6793
          %v6868 = vmul.f32 %v4010, %v6795
          %v6869 = vmul.f32 %v4011, %v6797
          %v6870 = vmul.f32 %v4012, %v6799
          %v6871 = vmul.f32 %v4013, %v6801
          %v6872 = vmul.f32 %v4014, %v6803
          %v6873 = vmul.f32 %v4015, %v6805
          %v6874 = vmul.f32 %v4016, %v6807
          %v6875 = vmul.f32 %v4017, %v6809
          %v6876 = vmul.f32 %v4018, %v6811
          %v6877 = vmul.f32 %v4019, %v6813
          %v6894 = vrot.slane %v4026, 1
          %v6895 = vsel %vm4295, %v4299, %v6894
          %v6896 = vrot.slane %v4030, 1
          %v6897 = vsel %vm4295, %v4304, %v6896
          %v6898 = vrot.slane %v4034, 1
          %v6899 = vsel %vm4295, %v4309, %v6898
          %v6900 = vrot.slane %v4038, 1
          %v6901 = vsel %vm4295, %v4314, %v6900
          %v6902 = vrot.slane %v4042, 1
          %v6903 = vsel %vm4295, %v4319, %v6902
          %v6904 = vrot.slane %v4046, 1
          %v6905 = vsel %vm4295, %v4324, %v6904
          %v6906 = vrot.slane %v4050, 1
          %v6907 = vsel %vm4295, %v4329, %v6906
          %v6908 = vrot.slane %v4054, 1
          %v6909 = vsel %vm4295, %v4334, %v6908
          %v6910 = vrot.slane %v4058, 1
          %v6911 = vsel %vm4295, %v4339, %v6910
          %v6912 = vrot.slane %v4062, 1
          %v6913 = vsel %vm4295, %v4344, %v6912
          %v6914 = vrot.slane %v4066, 1
          %v6915 = vsel %vm4295, %v4349, %v6914
          %v6916 = vrot.slane %v4070, 1
          %v6917 = vsel %vm4295, %v4354, %v6916
          %v6918 = vrot.slane %v4074, 1
          %v6919 = vsel %vm4295, %v4359, %v6918
          %v6920 = vrot.slane %v4078, 1
          %v6921 = vsel %vm4295, %v4364, %v6920
          %v6922 = vrot.slane %v4082, 1
          %v6923 = vsel %vm4295, %v4369, %v6922
          %v6924 = vrot.slane %v4086, 1
          %v6925 = vsel %vm4295, %v4374, %v6924
          %v6942 = vmul.f32 %v6846, %v4300
          %v6943 = vmul.f32 %v6847, %v6895
          %v6944 = vmul.f32 %v6848, %v4305
          %v6945 = vmul.f32 %v6849, %v6897
          %v6946 = vmul.f32 %v6850, %v4310
          %v6947 = vmul.f32 %v6851, %v6899
          %v6948 = vmul.f32 %v6852, %v4315
          %v6949 = vmul.f32 %v6853, %v6901
          %v6950 = vmul.f32 %v6854, %v4320
          %v6951 = vmul.f32 %v6855, %v6903
          %v6952 = vmul.f32 %v6856, %v4325
          %v6953 = vmul.f32 %v6857, %v6905
          %v6954 = vmul.f32 %v6858, %v4330
          %v6955 = vmul.f32 %v6859, %v6907
          %v6956 = vmul.f32 %v6860, %v4335
          %v6957 = vmul.f32 %v6861, %v6909
          %v6958 = vmul.f32 %v6862, %v4340
          %v6959 = vmul.f32 %v6863, %v6911
          %v6960 = vmul.f32 %v6864, %v4345
          %v6961 = vmul.f32 %v6865, %v6913
          %v6962 = vmul.f32 %v6866, %v4350
          %v6963 = vmul.f32 %v6867, %v6915
          %v6964 = vmul.f32 %v6868, %v4355
          %v6965 = vmul.f32 %v6869, %v6917
          %v6966 = vmul.f32 %v6870, %v4360
          %v6967 = vmul.f32 %v6871, %v6919
          %v6968 = vmul.f32 %v6872, %v4365
          %v6969 = vmul.f32 %v6873, %v6921
          %v6970 = vmul.f32 %v6874, %v4370
          %v6971 = vmul.f32 %v6875, %v6923
          %v6972 = vmul.f32 %v6876, %v4375
          %v6973 = vmul.f32 %v6877, %v6925
          %v6974 = vadd.f32 %v6686, %v6942
          %v6975 = vadd.f32 %v6687, %v6943
          %v6976 = vadd.f32 %v6688, %v6944
          %v6977 = vadd.f32 %v6689, %v6945
          %v6978 = vadd.f32 %v6690, %v6946
          %v6979 = vadd.f32 %v6691, %v6947
          %v6980 = vadd.f32 %v6692, %v6948
          %v6981 = vadd.f32 %v6693, %v6949
          %v6982 = vadd.f32 %v6694, %v6950
          %v6983 = vadd.f32 %v6695, %v6951
          %v6984 = vadd.f32 %v6696, %v6952
          %v6985 = vadd.f32 %v6697, %v6953
          %v6986 = vadd.f32 %v6698, %v6954
          %v6987 = vadd.f32 %v6699, %v6955
          %v6988 = vadd.f32 %v6700, %v6956
          %v6989 = vadd.f32 %v6701, %v6957
          %v6990 = vadd.f32 %v6702, %v6958
          %v6991 = vadd.f32 %v6703, %v6959
          %v6992 = vadd.f32 %v6704, %v6960
          %v6993 = vadd.f32 %v6705, %v6961
          %v6994 = vadd.f32 %v6706, %v6962
          %v6995 = vadd.f32 %v6707, %v6963
          %v6996 = vadd.f32 %v6708, %v6964
          %v6997 = vadd.f32 %v6709, %v6965
          %v6998 = vadd.f32 %v6710, %v6966
          %v6999 = vadd.f32 %v6711, %v6967
          %v7000 = vadd.f32 %v6712, %v6968
          %v7001 = vadd.f32 %v6713, %v6969
          %v7002 = vadd.f32 %v6714, %v6970
          %v7003 = vadd.f32 %v6715, %v6971
          %v7004 = vadd.f32 %v6716, %v6972
          %v7005 = vadd.f32 %v6717, %v6973
          %7038 = vrot.lane.b32.xlu0 %v3819, 96
          %v7039 = vpop.permute.xlu0 %7038
          %7040 = vrot.lane.b32.xlu0 %v3820, 96
          %v7041 = vpop.permute.xlu0 %7040
          %7042 = vrot.lane.b32.xlu0 %v3821, 96
          %v7043 = vpop.permute.xlu0 %7042
          %7044 = vrot.lane.b32.xlu0 %v3822, 96
          %v7045 = vpop.permute.xlu0 %7044
          %7046 = vrot.lane.b32.xlu0 %v3823, 96
          %v7047 = vpop.permute.xlu0 %7046
          %7048 = vrot.lane.b32.xlu0 %v3824, 96
          %v7049 = vpop.permute.xlu0 %7048
          %7050 = vrot.lane.b32.xlu0 %v3825, 96
          %v7051 = vpop.permute.xlu0 %7050
          %7052 = vrot.lane.b32.xlu0 %v3826, 96
          %v7053 = vpop.permute.xlu0 %7052
          %7054 = vrot.lane.b32.xlu0 %v3827, 96
          %v7055 = vpop.permute.xlu0 %7054
          %7056 = vrot.lane.b32.xlu0 %v3828, 96
          %v7057 = vpop.permute.xlu0 %7056
          %7058 = vrot.lane.b32.xlu0 %v3829, 96
          %v7059 = vpop.permute.xlu0 %7058
          %7060 = vrot.lane.b32.xlu0 %v3830, 96
          %v7061 = vpop.permute.xlu0 %7060
          %7062 = vrot.lane.b32.xlu0 %v3831, 96
          %v7063 = vpop.permute.xlu0 %7062
          %7064 = vrot.lane.b32.xlu0 %v3832, 96
          %v7065 = vpop.permute.xlu0 %7064
          %7066 = vrot.lane.b32.xlu0 %v3833, 96
          %v7067 = vpop.permute.xlu0 %7066
          %7068 = vrot.lane.b32.xlu0 %v3834, 96
          %v7069 = vpop.permute.xlu0 %7068
          %7070 = vrot.lane.b32.xlu0 %v3835, 96
          %v7071 = vpop.permute.xlu0 %7070
          %7072 = vrot.lane.b32.xlu0 %v3836, 96
          %v7073 = vpop.permute.xlu0 %7072
          %7074 = vrot.lane.b32.xlu0 %v3837, 96
          %v7075 = vpop.permute.xlu0 %7074
          %7076 = vrot.lane.b32.xlu0 %v3838, 96
          %v7077 = vpop.permute.xlu0 %7076
          %7078 = vrot.lane.b32.xlu0 %v3839, 96
          %v7079 = vpop.permute.xlu0 %7078
          %7080 = vrot.lane.b32.xlu0 %v3840, 96
          %v7081 = vpop.permute.xlu0 %7080
          %7082 = vrot.lane.b32.xlu0 %v3841, 96
          %v7083 = vpop.permute.xlu0 %7082
          %7084 = vrot.lane.b32.xlu0 %v3842, 96
          %v7085 = vpop.permute.xlu0 %7084
          %7086 = vrot.lane.b32.xlu0 %v3843, 96
          %v7087 = vpop.permute.xlu0 %7086
          %7088 = vrot.lane.b32.xlu0 %v3844, 96
          %v7089 = vpop.permute.xlu0 %7088
          %7090 = vrot.lane.b32.xlu0 %v3845, 96
          %v7091 = vpop.permute.xlu0 %7090
          %7092 = vrot.lane.b32.xlu0 %v3846, 96
          %v7093 = vpop.permute.xlu0 %7092
          %7094 = vrot.lane.b32.xlu0 %v3847, 96
          %v7095 = vpop.permute.xlu0 %7094
          %7096 = vrot.lane.b32.xlu0 %v3848, 96
          %v7097 = vpop.permute.xlu0 %7096
          %7098 = vrot.lane.b32.xlu0 %v3849, 96
          %v7099 = vpop.permute.xlu0 %7098
          %7100 = vrot.lane.b32.xlu0 %v3850, 96
          %v7101 = vpop.permute.xlu0 %7100
          %v7134 = vmul.f32 %v3988, %v7039
          %v7135 = vmul.f32 %v3989, %v7041
          %v7136 = vmul.f32 %v3990, %v7043
          %v7137 = vmul.f32 %v3991, %v7045
          %v7138 = vmul.f32 %v3992, %v7047
          %v7139 = vmul.f32 %v3993, %v7049
          %v7140 = vmul.f32 %v3994, %v7051
          %v7141 = vmul.f32 %v3995, %v7053
          %v7142 = vmul.f32 %v3996, %v7055
          %v7143 = vmul.f32 %v3997, %v7057
          %v7144 = vmul.f32 %v3998, %v7059
          %v7145 = vmul.f32 %v3999, %v7061
          %v7146 = vmul.f32 %v4000, %v7063
          %v7147 = vmul.f32 %v4001, %v7065
          %v7148 = vmul.f32 %v4002, %v7067
          %v7149 = vmul.f32 %v4003, %v7069
          %v7150 = vmul.f32 %v4004, %v7071
          %v7151 = vmul.f32 %v4005, %v7073
          %v7152 = vmul.f32 %v4006, %v7075
          %v7153 = vmul.f32 %v4007, %v7077
          %v7154 = vmul.f32 %v4008, %v7079
          %v7155 = vmul.f32 %v4009, %v7081
          %v7156 = vmul.f32 %v4010, %v7083
          %v7157 = vmul.f32 %v4011, %v7085
          %v7158 = vmul.f32 %v4012, %v7087
          %v7159 = vmul.f32 %v4013, %v7089
          %v7160 = vmul.f32 %v4014, %v7091
          %v7161 = vmul.f32 %v4015, %v7093
          %v7162 = vmul.f32 %v4016, %v7095
          %v7163 = vmul.f32 %v4017, %v7097
          %v7164 = vmul.f32 %v4018, %v7099
          %v7165 = vmul.f32 %v4019, %v7101
          %v7166 = vrot.slane %v4026, 2
          %v7167 = vsel %vm4632, %v4636, %v7166
          %v7168 = vrot.slane %v4030, 2
          %v7169 = vsel %vm4632, %v4641, %v7168
          %v7170 = vrot.slane %v4034, 2
          %v7171 = vsel %vm4632, %v4646, %v7170
          %v7172 = vrot.slane %v4038, 2
          %v7173 = vsel %vm4632, %v4651, %v7172
          %v7174 = vrot.slane %v4042, 2
          %v7175 = vsel %vm4632, %v4656, %v7174
          %v7176 = vrot.slane %v4046, 2
          %v7177 = vsel %vm4632, %v4661, %v7176
          %v7178 = vrot.slane %v4050, 2
          %v7179 = vsel %vm4632, %v4666, %v7178
          %v7180 = vrot.slane %v4054, 2
          %v7181 = vsel %vm4632, %v4671, %v7180
          %v7182 = vrot.slane %v4058, 2
          %v7183 = vsel %vm4632, %v4676, %v7182
          %v7184 = vrot.slane %v4062, 2
          %v7185 = vsel %vm4632, %v4681, %v7184
          %v7186 = vrot.slane %v4066, 2
          %v7187 = vsel %vm4632, %v4686, %v7186
          %v7188 = vrot.slane %v4070, 2
          %v7189 = vsel %vm4632, %v4691, %v7188
          %v7190 = vrot.slane %v4074, 2
          %v7191 = vsel %vm4632, %v4696, %v7190
          %v7192 = vrot.slane %v4078, 2
          %v7193 = vsel %vm4632, %v4701, %v7192
          %v7194 = vrot.slane %v4082, 2
          %v7195 = vsel %vm4632, %v4706, %v7194
          %v7196 = vrot.slane %v4086, 2
          %v7197 = vsel %vm4632, %v4711, %v7196
          %v7214 = vmul.f32 %v7134, %v4637
          %v7215 = vmul.f32 %v7135, %v7167
          %v7216 = vmul.f32 %v7136, %v4642
          %v7217 = vmul.f32 %v7137, %v7169
          %v7218 = vmul.f32 %v7138, %v4647
          %v7219 = vmul.f32 %v7139, %v7171
          %v7220 = vmul.f32 %v7140, %v4652
          %v7221 = vmul.f32 %v7141, %v7173
          %v7222 = vmul.f32 %v7142, %v4657
          %v7223 = vmul.f32 %v7143, %v7175
          %v7224 = vmul.f32 %v7144, %v4662
          %v7225 = vmul.f32 %v7145, %v7177
          %v7226 = vmul.f32 %v7146, %v4667
          %v7227 = vmul.f32 %v7147, %v7179
          %v7228 = vmul.f32 %v7148, %v4672
          %v7229 = vmul.f32 %v7149, %v7181
          %v7230 = vmul.f32 %v7150, %v4677
          %v7231 = vmul.f32 %v7151, %v7183
          %v7232 = vmul.f32 %v7152, %v4682
          %v7233 = vmul.f32 %v7153, %v7185
          %v7234 = vmul.f32 %v7154, %v4687
          %v7235 = vmul.f32 %v7155, %v7187
          %v7236 = vmul.f32 %v7156, %v4692
          %v7237 = vmul.f32 %v7157, %v7189
          %v7238 = vmul.f32 %v7158, %v4697
          %v7239 = vmul.f32 %v7159, %v7191
          %v7240 = vmul.f32 %v7160, %v4702
          %v7241 = vmul.f32 %v7161, %v7193
          %v7242 = vmul.f32 %v7162, %v4707
          %v7243 = vmul.f32 %v7163, %v7195
          %v7244 = vmul.f32 %v7164, %v4712
          %v7245 = vmul.f32 %v7165, %v7197
          %v7246 = vadd.f32 %v6974, %v7214
          %v7247 = vadd.f32 %v6975, %v7215
          %v7248 = vadd.f32 %v6976, %v7216
          %v7249 = vadd.f32 %v6977, %v7217
          %v7250 = vadd.f32 %v6978, %v7218
          %v7251 = vadd.f32 %v6979, %v7219
          %v7252 = vadd.f32 %v6980, %v7220
          %v7253 = vadd.f32 %v6981, %v7221
          %v7254 = vadd.f32 %v6982, %v7222
          %v7255 = vadd.f32 %v6983, %v7223
          %v7256 = vadd.f32 %v6984, %v7224
          %v7257 = vadd.f32 %v6985, %v7225
          %v7258 = vadd.f32 %v6986, %v7226
          %v7259 = vadd.f32 %v6987, %v7227
          %v7260 = vadd.f32 %v6988, %v7228
          %v7261 = vadd.f32 %v6989, %v7229
          %v7262 = vadd.f32 %v6990, %v7230
          %v7263 = vadd.f32 %v6991, %v7231
          %v7264 = vadd.f32 %v6992, %v7232
          %v7265 = vadd.f32 %v6993, %v7233
          %v7266 = vadd.f32 %v6994, %v7234
          %v7267 = vadd.f32 %v6995, %v7235
          %v7268 = vadd.f32 %v6996, %v7236
          %v7269 = vadd.f32 %v6997, %v7237
          %v7270 = vadd.f32 %v6998, %v7238
          %v7271 = vadd.f32 %v6999, %v7239
          %v7272 = vadd.f32 %v7000, %v7240
          %v7273 = vadd.f32 %v7001, %v7241
          %v7274 = vadd.f32 %v7002, %v7242
          %v7275 = vadd.f32 %v7003, %v7243
          %v7276 = vadd.f32 %v7004, %v7244
          %v7277 = vadd.f32 %v7005, %v7245
        $region49: #{tpu_custom_call.1} parent=35 // loop_footer
          %s3856 = sadd.s32 1, %s3852
        $region50: #{tpu_custom_call.1} parent=35 // loop_footer_branch
          %3851 = sbr.rel target = $region46
        $region51: #{tpu_custom_call.1} parent=35 // loop_exit
          _
        %7310 = vrot.lane.b32.xlu0 %v2571, 64
        %v7311 = vpop.permute.xlu0 %7310
        %7312 = vrot.lane.b32.xlu0 %v2572, 64
        %v7313 = vpop.permute.xlu0 %7312
        %7314 = vrot.lane.b32.xlu0 %v2573, 64
        %v7315 = vpop.permute.xlu0 %7314
        %7316 = vrot.lane.b32.xlu0 %v2574, 64
        %v7317 = vpop.permute.xlu0 %7316
        %7318 = vrot.lane.b32.xlu0 %v2575, 64
        %v7319 = vpop.permute.xlu0 %7318
        %7320 = vrot.lane.b32.xlu0 %v2576, 64
        %v7321 = vpop.permute.xlu0 %7320
        %7322 = vrot.lane.b32.xlu0 %v2577, 64
        %v7323 = vpop.permute.xlu0 %7322
        %7324 = vrot.lane.b32.xlu0 %v2578, 64
        %v7325 = vpop.permute.xlu0 %7324
        %7326 = vrot.lane.b32.xlu0 %v2579, 64
        %v7327 = vpop.permute.xlu0 %7326
        %7328 = vrot.lane.b32.xlu0 %v2580, 64
        %v7329 = vpop.permute.xlu0 %7328
        %7330 = vrot.lane.b32.xlu0 %v2581, 64
        %v7331 = vpop.permute.xlu0 %7330
        %7332 = vrot.lane.b32.xlu0 %v2582, 64
        %v7333 = vpop.permute.xlu0 %7332
        %7334 = vrot.lane.b32.xlu0 %v2583, 64
        %v7335 = vpop.permute.xlu0 %7334
        %7336 = vrot.lane.b32.xlu0 %v2584, 64
        %v7337 = vpop.permute.xlu0 %7336
        %7338 = vrot.lane.b32.xlu0 %v2585, 64
        %v7339 = vpop.permute.xlu0 %7338
        %7340 = vrot.lane.b32.xlu0 %v2586, 64
        %v7341 = vpop.permute.xlu0 %7340
        %7342 = vrot.lane.b32.xlu0 %v2587, 64
        %v7343 = vpop.permute.xlu0 %7342
        %7344 = vrot.lane.b32.xlu0 %v2588, 64
        %v7345 = vpop.permute.xlu0 %7344
        %7346 = vrot.lane.b32.xlu0 %v2589, 64
        %v7347 = vpop.permute.xlu0 %7346
        %7348 = vrot.lane.b32.xlu0 %v2590, 64
        %v7349 = vpop.permute.xlu0 %7348
        %7350 = vrot.lane.b32.xlu0 %v2591, 64
        %v7351 = vpop.permute.xlu0 %7350
        %7352 = vrot.lane.b32.xlu0 %v2592, 64
        %v7353 = vpop.permute.xlu0 %7352
        %7354 = vrot.lane.b32.xlu0 %v2593, 64
        %v7355 = vpop.permute.xlu0 %7354
        %7356 = vrot.lane.b32.xlu0 %v2594, 64
        %v7357 = vpop.permute.xlu0 %7356
        %7358 = vrot.lane.b32.xlu0 %v2595, 64
        %v7359 = vpop.permute.xlu0 %7358
        %7360 = vrot.lane.b32.xlu0 %v2596, 64
        %v7361 = vpop.permute.xlu0 %7360
        %7362 = vrot.lane.b32.xlu0 %v2597, 64
        %v7363 = vpop.permute.xlu0 %7362
        %7364 = vrot.lane.b32.xlu0 %v2598, 64
        %v7365 = vpop.permute.xlu0 %7364
        %7366 = vrot.lane.b32.xlu0 %v2599, 64
        %v7367 = vpop.permute.xlu0 %7366
        %7368 = vrot.lane.b32.xlu0 %v2600, 64
        %v7369 = vpop.permute.xlu0 %7368
        %7370 = vrot.lane.b32.xlu0 %v2601, 64
        %v7371 = vpop.permute.xlu0 %7370
        %7372 = vrot.lane.b32.xlu0 %v2602, 64
        %v7373 = vpop.permute.xlu0 %7372
        %v7406 = vmul.f32 %v3857, %v7311
        %v7407 = vmul.f32 %v3858, %v7313
        %v7408 = vmul.f32 %v3859, %v7315
        %v7409 = vmul.f32 %v3860, %v7317
        %v7410 = vmul.f32 %v3861, %v7319
        %v7411 = vmul.f32 %v3862, %v7321
        %v7412 = vmul.f32 %v3863, %v7323
        %v7413 = vmul.f32 %v3864, %v7325
        %v7414 = vmul.f32 %v3865, %v7327
        %v7415 = vmul.f32 %v3866, %v7329
        %v7416 = vmul.f32 %v3867, %v7331
        %v7417 = vmul.f32 %v3868, %v7333
        %v7418 = vmul.f32 %v3869, %v7335
        %v7419 = vmul.f32 %v3870, %v7337
        %v7420 = vmul.f32 %v3871, %v7339
        %v7421 = vmul.f32 %v3872, %v7341
        %v7422 = vmul.f32 %v3873, %v7343
        %v7423 = vmul.f32 %v3874, %v7345
        %v7424 = vmul.f32 %v3875, %v7347
        %v7425 = vmul.f32 %v3876, %v7349
        %v7426 = vmul.f32 %v3877, %v7351
        %v7427 = vmul.f32 %v3878, %v7353
        %v7428 = vmul.f32 %v3879, %v7355
        %v7429 = vmul.f32 %v3880, %v7357
        %v7430 = vmul.f32 %v3881, %v7359
        %v7431 = vmul.f32 %v3882, %v7361
        %v7432 = vmul.f32 %v3883, %v7363
        %v7433 = vmul.f32 %v3884, %v7365
        %v7434 = vmul.f32 %v3885, %v7367
        %v7435 = vmul.f32 %v3886, %v7369
        %v7436 = vmul.f32 %v3887, %v7371
        %v7437 = vmul.f32 %v3888, %v7373
        %v7438 = vld [vmem:[%s2] sm:$0xff]
        %v7439 = vld [vmem:[%s2 + $0x8] sm:$0xff]
        %v7440 = vld [vmem:[%s2 + $0x10] sm:$0xff]
        %v7441 = vld [vmem:[%s2 + $0x18] sm:$0xff]
        %v7442 = vld [vmem:[%s3] sm:$0xff]
        %v7443 = vld [vmem:[%s3 + $0x8] sm:$0xff]
        %v7444 = vld [vmem:[%s3 + $0x10] sm:$0xff]
        %v7445 = vld [vmem:[%s3 + $0x18] sm:$0xff]
        %7447 = vset.pattern.permute.xlu0 0
        %7448 = vperm.xlu0 %7447, %v7442
        %v7449 = vpop.permute.xlu0 %7448
        %7452 = vset.pattern.permute.xlu0 0
        %7453 = vperm.xlu0 %7452, %v7443
        %v7454 = vpop.permute.xlu0 %7453
        %7457 = vset.pattern.permute.xlu0 0
        %7458 = vperm.xlu0 %7457, %v7444
        %v7459 = vpop.permute.xlu0 %7458
        %7462 = vset.pattern.permute.xlu0 0
        %7463 = vperm.xlu0 %7462, %v7445
        %v7464 = vpop.permute.xlu0 %7463
        %v7467 = vsel %vm310, %v7438, 0
        %v7470 = vsel %vm310, %v7439, 0
        %v7473 = vsel %vm310, %v7440, 0
        %v7476 = vsel %vm310, %v7441, 0
        %v7479 = vsel %vm310, %v7406, 0
        %v7482 = vsel %vm310, %v7407, 0
        %v7485 = vsel %vm310, %v7408, 0
        %v7488 = vsel %vm310, %v7409, 0
        %v7491 = vsel %vm310, %v7410, 0
        %v7494 = vsel %vm310, %v7411, 0
        %v7497 = vsel %vm310, %v7412, 0
        %v7500 = vsel %vm310, %v7413, 0
        %v7503 = vsel %vm310, %v7414, 0
        %v7506 = vsel %vm310, %v7415, 0
        %v7509 = vsel %vm310, %v7416, 0
        %v7512 = vsel %vm310, %v7417, 0
        %v7515 = vsel %vm310, %v7418, 0
        %v7518 = vsel %vm310, %v7419, 0
        %v7521 = vsel %vm310, %v7420, 0
        %v7524 = vsel %vm310, %v7421, 0
        %v7527 = vsel %vm310, %v7422, 0
        %v7530 = vsel %vm310, %v7423, 0
        %v7533 = vsel %vm310, %v7424, 0
        %v7536 = vsel %vm310, %v7425, 0
        %v7539 = vsel %vm310, %v7426, 0
        %v7542 = vsel %vm310, %v7427, 0
        %v7545 = vsel %vm310, %v7428, 0
        %v7548 = vsel %vm310, %v7429, 0
        %v7551 = vsel %vm310, %v7430, 0
        %v7554 = vsel %vm310, %v7431, 0
        %v7557 = vsel %vm310, %v7432, 0
        %v7560 = vsel %vm310, %v7433, 0
        %v7563 = vsel %vm310, %v7434, 0
        %v7566 = vsel %vm310, %v7435, 0
        %v7569 = vsel %vm310, %v7436, 0
        %v7572 = vsel %vm310, %v7437, 0
        %7574 = vmatprep.subr.mxu0 0.0
        %7575 = vmatpush1.xpose.msra.mxu0 %v7479
        %7576 = vmatprep.subr.mxu0 0.0
        %7577 = vmatpush1.xpose.msra.mxu0 %v7482
        %7578 = vmatprep.subr.mxu0 0.0
        %7579 = vmatpush1.xpose.msra.mxu0 %v7485
        %7580 = vmatprep.subr.mxu0 0.0
        %7581 = vmatpush1.xpose.msra.mxu0 %v7488
        %7582 = vmatprep.subr.mxu0 0.0
        %7583 = vmatpush1.xpose.msra.mxu0 %v7491
        %7584 = vmatprep.subr.mxu0 0.0
        %7585 = vmatpush1.xpose.msra.mxu0 %v7494
        %7586 = vmatprep.subr.mxu0 0.0
        %7587 = vmatpush1.xpose.msra.mxu0 %v7497
        %7588 = vmatprep.subr.mxu0 0.0
        %7589 = vmatpush1.xpose.msra.mxu0 %v7500
        %7590 = vmatprep.subr.mxu0 0.0
        %7591 = vmatpush1.xpose.msra.mxu0 %v7503
        %7592 = vmatprep.subr.mxu0 0.0
        %7593 = vmatpush1.xpose.msra.mxu0 %v7506
        %7594 = vmatprep.subr.mxu0 0.0
        %7595 = vmatpush1.xpose.msra.mxu0 %v7509
        %7596 = vmatprep.subr.mxu0 0.0
        %7597 = vmatpush1.xpose.msra.mxu0 %v7512
        %7598 = vmatprep.subr.mxu0 0.0
        %7599 = vmatpush1.xpose.msra.mxu0 %v7515
        %7600 = vmatprep.subr.mxu0 0.0
        %7601 = vmatpush1.xpose.msra.mxu0 %v7518
        %7602 = vmatprep.subr.mxu0 0.0
        %7603 = vmatpush1.xpose.msra.mxu0 %v7521
        %7604 = vmatprep.subr.mxu0 0.0
        %7605 = vmatpush1.xpose.msra.mxu0 %v7524
        %7606 = vmatprep.subr.mxu0 0.0
        %7607 = vmatpush1.xpose.msra.mxu0 %v7527
        %7608 = vmatprep.subr.mxu0 0.0
        %7609 = vmatpush1.xpose.msra.mxu0 %v7530
        %7610 = vmatprep.subr.mxu0 0.0
        %7611 = vmatpush1.xpose.msra.mxu0 %v7533
        %7612 = vmatprep.subr.mxu0 0.0
        %7613 = vmatpush1.xpose.msra.mxu0 %v7536
        %7614 = vmatprep.subr.mxu0 0.0
        %7615 = vmatpush1.xpose.msra.mxu0 %v7539
        %7616 = vmatprep.subr.mxu0 0.0
        %7617 = vmatpush1.xpose.msra.mxu0 %v7542
        %7618 = vmatprep.subr.mxu0 0.0
        %7619 = vmatpush1.xpose.msra.mxu0 %v7545
        %7620 = vmatprep.subr.mxu0 0.0
        %7621 = vmatpush1.xpose.msra.mxu0 %v7548
        %7622 = vmatprep.subr.mxu0 0.0
        %7623 = vmatpush1.xpose.msra.mxu0 %v7551
        %7624 = vmatprep.subr.mxu0 0.0
        %7625 = vmatpush1.xpose.msra.mxu0 %v7554
        %7626 = vmatprep.subr.mxu0 0.0
        %7627 = vmatpush1.xpose.msra.mxu0 %v7557
        %7628 = vmatprep.subr.mxu0 0.0
        %7629 = vmatpush1.xpose.msra.mxu0 %v7560
        %7630 = vmatprep.subr.mxu0 0.0
        %7631 = vmatpush1.xpose.msra.mxu0 %v7563
        %7632 = vmatprep.subr.mxu0 0.0
        %7633 = vmatpush1.xpose.msra.mxu0 %v7566
        %7634 = vmatprep.subr.mxu0 0.0
        %7635 = vmatpush1.xpose.msra.mxu0 %v7569
        %7636 = vmatprep.subr.mxu0 0.0
        %7637 = vmatpush1.xpose.msra.mxu0 %v7572
        %7638 = vmatprep.mubr.f32.mxu0 0.0
        %7639 = vmatmul.mubr.f32.gmra.mrb[0].mxu0 %v7467
        %v7640 = vpop.f32.mrb[0].mxu0
        %v7641 = vadd.f32 %v7449, %v7640
        %v7642 = vpop.f32.mrb[0].mxu0
        %v7643 = vadd.f32 %v7449, %v7642
        %7644 = vmatprep.mubr.f32.mxu0 0.0
        %7645 = vmatmul.mubr.f32.gmra.mrb[0].mxu0 %v7470
        %v7646 = vpop.f32.mrb[0].mxu0
        %v7647 = vadd.f32 %v7454, %v7646
        %v7648 = vpop.f32.mrb[0].mxu0
        %v7649 = vadd.f32 %v7454, %v7648
        %7650 = vmatprep.mubr.f32.mxu0 0.0
        %7651 = vmatmul.mubr.f32.gmra.mrb[0].mxu0 %v7473
        %v7652 = vpop.f32.mrb[0].mxu0
        %v7653 = vadd.f32 %v7459, %v7652
        %v7654 = vpop.f32.mrb[0].mxu0
        %v7655 = vadd.f32 %v7459, %v7654
        %7656 = vmatprep.mubr.f32.mxu0 0.0
        %7657 = vmatmul.mubr.f32.gmra.mrb[0].mxu0 %v7476
        %v7658 = vpop.f32.mrb[0].mxu0
        %v7659 = vadd.f32 %v7464, %v7658
        %v7660 = vpop.f32.mrb[0].mxu0
        %v7661 = vadd.f32 %v7464, %v7660
        %7662 = vdwg.mxu0
        %7663 = vst [vmem:[%s285] sm:$0xff] %v7641
        %7664 = vst [vmem:[%s285 + $0x8] sm:$0xff] %v7643
        %7665 = vst [vmem:[%s285 + $0x10] sm:$0xff] %v7647
        %7666 = vst [vmem:[%s285 + $0x18] sm:$0xff] %v7649
        %7667 = vst [vmem:[%s285 + $0x20] sm:$0xff] %v7653
        %7668 = vst [vmem:[%s285 + $0x28] sm:$0xff] %v7655
        %7669 = vst [vmem:[%s285 + $0x30] sm:$0xff] %v7659
        %7670 = vst [vmem:[%s285 + $0x38] sm:$0xff] %v7661
        %v7671 = vadd.f32 %v7641, %v7643
        %7672 = vadd.xlane.f32.xlu0 %v7671
        %v7673 = vpop.xlane.xlu0 %7672
        %v7674 = vadd.f32 %v7647, %v7649
        %7675 = vadd.xlane.f32.xlu0 %v7674
        %v7676 = vpop.xlane.xlu0 %7675
        %v7677 = vadd.f32 %v7653, %v7655
        %7678 = vadd.xlane.f32.xlu0 %v7677
        %v7679 = vpop.xlane.xlu0 %7678
        %v7680 = vadd.f32 %v7659, %v7661
        %7681 = vadd.xlane.f32.xlu0 %v7680
        %v7682 = vpop.xlane.xlu0 %7681
        %vm7683 = vcmask 7168
        %7684 = vst.msk [vmem:[%s304] sm:$0xff] %vm7683, %v7673
        %7685 = vst.msk [vmem:[%s304 + $0x8] sm:$0xff] %vm7683, %v7676
        %7686 = vst.msk [vmem:[%s304 + $0x10] sm:$0xff] %vm7683, %v7679
        %7687 = vst.msk [vmem:[%s304 + $0x18] sm:$0xff] %vm7683, %v7682
        %v7688 = vmul.f32 %v7641, %v7641
        %v7689 = vmul.f32 %v7643, %v7643
        %v7690 = vmul.f32 %v7647, %v7647
        %v7691 = vmul.f32 %v7649, %v7649
        %v7692 = vmul.f32 %v7653, %v7653
        %v7693 = vmul.f32 %v7655, %v7655
        %v7694 = vmul.f32 %v7659, %v7659
        %v7695 = vmul.f32 %v7661, %v7661
        %v7696 = vadd.f32 %v7688, %v7689
        %7697 = vadd.xlane.f32.xlu0 %v7696
        %v7698 = vpop.xlane.xlu0 %7697
        %v7699 = vadd.f32 %v7690, %v7691
        %7700 = vadd.xlane.f32.xlu0 %v7699
        %v7701 = vpop.xlane.xlu0 %7700
        %v7702 = vadd.f32 %v7692, %v7693
        %7703 = vadd.xlane.f32.xlu0 %v7702
        %v7704 = vpop.xlane.xlu0 %7703
        %v7705 = vadd.f32 %v7694, %v7695
        %7706 = vadd.xlane.f32.xlu0 %v7705
        %v7707 = vpop.xlane.xlu0 %7706
        %7708 = vst.msk [vmem:[%s309] sm:$0xff] %vm7683, %v7698
        %7709 = vst.msk [vmem:[%s309 + $0x8] sm:$0xff] %vm7683, %v7701
        %7710 = vst.msk [vmem:[%s309 + $0x10] sm:$0xff] %vm7683, %v7704
        %7711 = vst.msk [vmem:[%s309 + $0x18] sm:$0xff] %vm7683, %v7707
        %s7712 = sand.u32 %s122, 1
        %s7713 = scalar_lea.sflag [#allocation5], %s7712
        %s7714 = sand.u32 %s122, 1
        %s7715 = smul.addr %s7714, 64
        %s7716 = scalar_lea.vmem [#allocation8], %s7715
        %p7717 = scmp.lt.s32.totalorder %s25, 1
        %s7718 = scalar_select %p7717, %s25, 1
        %s7719 = smul.addr %s7718, 4
        %s7720 = smul.addr %s7719, 8
        %s7721 = scalar_lea.vmem %s5, %s7720
        %p7722 = scmp.lt.s32.totalorder %s25, 1
        %s7723 = scalar_select %p7722, %s25, 1
        %s7724 = smul.addr %s7723, 4
        %s7725 = smul.addr %s7724, 8
        %s7726 = scalar_lea.vmem %s6, %s7725
        // Predicated region
        $region52: #{tpu_custom_call.1} parent=35 // pred_check
          %p7727 = pneg %p132
        $region53: #{tpu_custom_call.1} parent=35 // pred_check_branch
          %7729 = sbr.rel (%p7727) target = $region55
        $region54: #{tpu_custom_call.1} parent=35 // pred_region
          %s7731 = ssub.s32 1024, 1024
          %7732 = vsyncadd %s7713, %s7731
          %s7733 = smul.addr %s25, 8
          %s7734 = smul.addr %s7733, 128
          %s7735 = scalar_lea.hbm %s4, %s7734
          %s7736 = sshll.u32 %s7716, 4
          %s7737 = int_to_ptr.vmem [resolvable:$true] %s7736
          %7742 = dma.vmem_to_hbm [thread:$0]  %s7737, 1024, %s7735, %s7713, 256, 256, 16
        $region55: #{tpu_custom_call.1} parent=35 // pred_fallthru
          _
        // Predicated region
        $region56: #{tpu_custom_call.1} parent=35 // pred_check
          %p7743 = pneg %p158
        $region57: #{tpu_custom_call.1} parent=35 // pred_check_branch
          %7745 = sbr.rel (%p7743) target = $region59
        $region58: #{tpu_custom_call.1} parent=35 // pred_region
          _
        $region59: #{tpu_custom_call.1} parent=35 // pred_fallthru
          _
        // Predicated region
        $region60: #{tpu_custom_call.1} parent=35 // pred_check
          %p7746 = pneg %p184
        $region61: #{tpu_custom_call.1} parent=35 // pred_check_branch
          %7748 = sbr.rel (%p7746) target = $region63
        $region62: #{tpu_custom_call.1} parent=35 // pred_region
          _
        $region63: #{tpu_custom_call.1} parent=35 // pred_fallthru
          _
      $region36: #{tpu_custom_call.1} parent=5 // pred_fallthru
        _
      %p7749 = scmp.le.s32.totalorder 2, %s20
      // Predicated region
      $region64: #{tpu_custom_call.1} parent=5 // pred_check
        %p7750 = pneg %p7749
      $region65: #{tpu_custom_call.1} parent=5 // pred_check_branch
        %7752 = sbr.rel (%p7750) target = $region67
      $region66: #{tpu_custom_call.1} parent=5 // pred_region
        %s7753 = ssub.s32 %s20, 2
        // Predicated region
        $region68: #{tpu_custom_call.1} parent=66 // pred_check
          %p7754 = pneg %p138
        $region69: #{tpu_custom_call.1} parent=66 // pred_check_branch
          %7756 = sbr.rel (%p7754) target = $region71
        $region70: #{tpu_custom_call.1} parent=66 // pred_region
          %s7757 = sand.u32 %s123, 1
          %s7758 = scalar_lea.sflag [#allocation5], %s7757
          %s7759 = sand.u32 %s123, 1
          %s7760 = smul.addr %s7759, 64
          %s7761 = scalar_lea.vmem [#allocation8], %s7760
          %7762 = dma.done %s7758, 1024
        $region71: #{tpu_custom_call.1} parent=66 // pred_fallthru
          _
        // Predicated region
        $region72: #{tpu_custom_call.1} parent=66 // pred_check
          %p7763 = pneg %p164
        $region73: #{tpu_custom_call.1} parent=66 // pred_check_branch
          %7765 = sbr.rel (%p7763) target = $region75
        $region74: #{tpu_custom_call.1} parent=66 // pred_region
          %p7766 = scmp.lt.s32.totalorder %s26, 1
          %s7767 = scalar_select %p7766, %s26, 1
          %s7768 = smul.addr %s7767, 4
          %s7769 = smul.addr %s7768, 8
          %s7770 = scalar_lea.vmem %s5, %s7769
        $region75: #{tpu_custom_call.1} parent=66 // pred_fallthru
          _
        // Predicated region
        $region76: #{tpu_custom_call.1} parent=66 // pred_check
          %p7771 = pneg %p190
        $region77: #{tpu_custom_call.1} parent=66 // pred_check_branch
          %7773 = sbr.rel (%p7771) target = $region79
        $region78: #{tpu_custom_call.1} parent=66 // pred_region
          %p7774 = scmp.lt.s32.totalorder %s26, 1
          %s7775 = scalar_select %p7774, %s26, 1
          %s7776 = smul.addr %s7775, 4
          %s7777 = smul.addr %s7776, 8
          %s7778 = scalar_lea.vmem %s6, %s7777
        $region79: #{tpu_custom_call.1} parent=66 // pred_fallthru
          _
      $region67: #{tpu_custom_call.1} parent=5 // pred_fallthru
        _
    $region6: #{tpu_custom_call.1} parent=1 // loop_footer
      %s24 = sadd.s32 1, %s20
    $region7: #{tpu_custom_call.1} parent=1 // loop_footer_branch
      %19 = sbr.rel target = $region3
    $region8: #{tpu_custom_call.1} parent=1 // loop_exit
      _
    %7779 = vsyncpa [#allocation4], 1
    %s7780 = scalar_lea.sflag [#allocation4], 1
    %7781 = vsyncpa %s7780, 1
    %7782 = vsyncpa [#allocation7], 1
    %7783 = vsyncpa [#allocation5], 1
    %s7784 = scalar_lea.sflag [#allocation5], 1
    %7785 = vsyncpa %s7784, 1

</llo_original>
